<compile_context>
chip_gen: v6e
topology: v6e:2x2x1
jax: 0.10.0
libtpu: 0.0.40
codegen_flags: <defaults>
</compile_context>

<pallas_src>
import jax
import jax.numpy as jnp
from jax.experimental import pallas as pl
from jax.experimental.pallas import tpu as pltpu

# ----------------------------- model hyper-params (small) --------------------
B = 2                              # batch
C_IN = 3                           # image channels
IMG = 16                           # image H = W
PATCH = 8                          # patch size
NP = (IMG // PATCH) ** 2           # 4 patches
T = NP + 1                         # 5 tokens (CLS + patches)
TP = 8                             # tokens padded to one sublane tile
CPP = C_IN * PATCH * PATCH         # 192 patch features
CPP1 = CPP + 1                     # +1 CLS indicator column
D = 32                             # transformer width
NH = 4                             # heads
HD = D // NH                       # head dim
MLP = 4 * D                        # 128
LAYERS = 2
E = 16                             # output embedding dim (CLIP output_num, shrunk)
NCLS = 12                          # number of text classes (visda prompt list)


# ----------------------------- fused kernel ----------------------------------

def _ln(x, g, b):
    # LayerNorm over the last (feature/lane) axis, eps=1e-5 like nn.LayerNorm.
    mu = jnp.mean(x, axis=-1, keepdims=True)
    xc = x - mu
    var = jnp.mean(xc * xc, axis=-1, keepdims=True)
    return xc * jax.lax.rsqrt(var + 1e-5) * g + b


def _clip_fused_kernel(
    tok_ref, w_patch_ref, pos_ref,
    ln_pre_g_ref, ln_pre_b_ref,
    ln1_g_ref, ln1_b_ref, w_qkv_ref, b_qkv_ref, w_o_ref, b_o_ref,
    ln2_g_ref, ln2_b_ref, w_fc_ref, b_fc_ref, w_pr_ref, b_pr_ref,
    ln_post_g_ref, ln_post_b_ref, w_proj_ref, text_ref, ls_ref,
    out_ref,
    xs_ref, qkv_ref,
):
    f32 = jnp.float32
    nb = xs_ref.shape[0] // TP                      # batch size (static)

    # ---- patch embed (+cls via indicator column) + positional embedding ------
    emb = jnp.dot(tok_ref[...], w_patch_ref[...],
                  preferred_element_type=f32)        # [nb*TP, D]
    for b in range(nb):
        r0 = b * TP
        xs_ref[r0:r0 + TP, :] = emb[r0:r0 + TP, :] + pos_ref[...]

    # ---- ln_pre ---------------------------------------------------------------
    xs_ref[...] = _ln(xs_ref[...], ln_pre_g_ref[...], ln_pre_b_ref[...])

    scale = 1.0 / (HD ** 0.5)
    for l in range(LAYERS):
        # ------------------ attention block (pre-LN residual) ------------------
        y = _ln(xs_ref[...], ln1_g_ref[l], ln1_b_ref[l])
        qkv_ref[...] = (jnp.dot(y, w_qkv_ref[l], preferred_element_type=f32)
                        + b_qkv_ref[l])              # [nb*TP, 3D]
        w_o = w_o_ref[l]                             # [D, D]
        for b in range(nb):
            r0 = b * TP
            acc = jnp.zeros((T, D), f32)
            for h in range(NH):
                c = h * HD
                q = qkv_ref[r0:r0 + T, 0 * D + c:0 * D + c + HD]   # [T, HD]
                k = qkv_ref[r0:r0 + T, 1 * D + c:1 * D + c + HD]
                v = qkv_ref[r0:r0 + T, 2 * D + c:2 * D + c + HD]
                s = jax.lax.dot_general(
                    q, k, (((1,), (1,)), ((), ())),
                    preferred_element_type=f32) * scale            # [T, T]
                s = s - jnp.max(s, axis=-1, keepdims=True)
                p = jnp.exp(s)
                p = p * pl.reciprocal(jnp.sum(p, axis=-1, keepdims=True),
                                      approx=True)
                o = jnp.dot(p, v, preferred_element_type=f32)      # [T, HD]
                acc = acc + jnp.dot(o, w_o[c:c + HD, :],
                                    preferred_element_type=f32)    # [T, D]
            xs_ref[r0:r0 + T, :] = xs_ref[r0:r0 + T, :] + acc + b_o_ref[l]

        # ------------------ MLP block (pre-LN residual, QuickGELU) --------------
        y = _ln(xs_ref[...], ln2_g_ref[l], ln2_b_ref[l])
        h1 = jnp.dot(y, w_fc_ref[l], preferred_element_type=f32) + b_fc_ref[l]
        h1 = h1 * jax.nn.sigmoid(1.702 * h1)         # QuickGELU, as in CLIP
        xs_ref[...] = (xs_ref[...]
                       + jnp.dot(h1, w_pr_ref[l], preferred_element_type=f32)
                       + b_pr_ref[l])

    # ---- head: ln_post(CLS) -> projection -> L2 norm -> scaled cosine logits --
    lsc = jnp.exp(ls_ref[0, 0])
    for b in range(nb):
        r0 = b * TP
        f = _ln(xs_ref[r0:r0 + 1, :], ln_post_g_ref[...], ln_post_b_ref[...])
        proj = jnp.dot(f, w_proj_ref[...], preferred_element_type=f32)  # [1, E]
        # NOTE: matches CLIP semantics (divide by raw norm, no epsilon).
        inv = jax.lax.rsqrt(jnp.sum(proj * proj, axis=-1, keepdims=True))
        fn = proj * inv
        logits = lsc * jax.lax.dot_general(
            fn, text_ref[...], (((1,), (1,)), ((), ())),
            preferred_element_type=f32)                               # [1, NCLS]
        out_ref[b:b + 1, :] = logits


# ----------------------------- parameter init --------------------------------

def init_params(key):
    def nrm(k, shape, std=0.02):
        return std * jax.random.normal(k, shape, dtype=jnp.float32)

    keys = iter(jax.random.split(key, 32))
    p = {}
    # patch-embed conv (bias=False in CLIP): torch weight [D, C, P, P] -> [C*P*P, D]
    w_patch = nrm(next(keys), (CPP, D))
    cls = nrm(next(keys), (1, D))
    pos = nrm(next(keys), (T, D))
    # kernel-ready derived forms: cls appended as the last row of the patch-embed
    # matrix (selected by the indicator column), pos zero-padded to TP rows.
    p["w_patch_aug"] = jnp.concatenate([w_patch, cls], axis=0)        # [CPP+1, D]
    p["pos_pad"] = jnp.pad(pos, ((0, TP - T), (0, 0)))                # [TP, D]
    p["ln_pre_g"] = jnp.ones((1, D), jnp.float32)
    p["ln_pre_b"] = jnp.zeros((1, D), jnp.float32)
    # per-layer weights stacked along a leading layer axis.
    p["ln1_g"] = jnp.ones((LAYERS, 1, D), jnp.float32)
    p["ln1_b"] = jnp.zeros((LAYERS, 1, D), jnp.float32)
    p["w_qkv"] = nrm(next(keys), (LAYERS, D, 3 * D))
    p["b_qkv"] = jnp.zeros((LAYERS, 1, 3 * D), jnp.float32)
    p["w_o"] = nrm(next(keys), (LAYERS, D, D))
    p["b_o"] = jnp.zeros((LAYERS, 1, D), jnp.float32)
    p["ln2_g"] = jnp.ones((LAYERS, 1, D), jnp.float32)
    p["ln2_b"] = jnp.zeros((LAYERS, 1, D), jnp.float32)
    p["w_fc"] = nrm(next(keys), (LAYERS, D, MLP))
    p["b_fc"] = jnp.zeros((LAYERS, 1, MLP), jnp.float32)
    p["w_pr"] = nrm(next(keys), (LAYERS, MLP, D))
    p["b_pr"] = jnp.zeros((LAYERS, 1, D), jnp.float32)
    p["ln_post_g"] = jnp.ones((1, D), jnp.float32)
    p["ln_post_b"] = jnp.zeros((1, D), jnp.float32)
    p["w_proj"] = nrm(next(keys), (D, E))             # image projection (no bias)
    # text side: precomputed & L2-normalized text features (constant buffer).
    tf = nrm(next(keys), (NCLS, E), std=1.0)
    p["text_features"] = tf / jnp.linalg.norm(tf, axis=1, keepdims=True)
    # logit_scale parameter, CLIP init: log(1/0.07); exp() taken inside the kernel.
    p["logit_scale"] = jnp.full((1, 1), jnp.log(1.0 / 0.07), jnp.float32)
    return p


# ----------------------------- forward pass ----------------------------------

def clip_forward(params, x_nchw):
    b = x_nchw.shape[0]
    gh = gw = IMG // PATCH
    # NCHW -> [B, NP, C*P*P] patch rows, matching torch conv-weight (C, P, P) order.
    patches = x_nchw.reshape(b, C_IN, gh, PATCH, gw, PATCH)
    patches = patches.transpose(0, 2, 4, 1, 3, 5).reshape(b, NP, CPP)
    # Append CLS-indicator column (0 for patches, 1 for the CLS row), prepend the
    # CLS row, zero-pad to TP tokens per image.
    patches = jnp.concatenate(
        [patches, jnp.zeros((b, NP, 1), jnp.float32)], axis=-1)
    cls_row = jnp.concatenate(
        [jnp.zeros((b, 1, CPP), jnp.float32), jnp.ones((b, 1, 1), jnp.float32)],
        axis=-1)
    tok = jnp.concatenate([cls_row, patches], axis=1)          # [B, T, CPP+1]
    tok = jnp.pad(tok, ((0, 0), (0, TP - T), (0, 0)))          # [B, TP, CPP+1]
    tok = tok.reshape(b * TP, CPP1)

    vmem = pl.BlockSpec(memory_space=pltpu.MemorySpace.VMEM)
    smem = pl.BlockSpec(memory_space=pltpu.MemorySpace.SMEM)

    return pl.pallas_call(
        _clip_fused_kernel,
        out_shape=jax.ShapeDtypeStruct((b, NCLS), jnp.float32),
        in_specs=[vmem] * 21 + [smem],
        out_specs=vmem,
        scratch_shapes=[
            pltpu.VMEM((b * TP, D), jnp.float32),       # token activations
            pltpu.VMEM((b * TP, 3 * D), jnp.float32),   # qkv projections
        ],
    )(
        tok, params["w_patch_aug"], params["pos_pad"],
        params["ln_pre_g"], params["ln_pre_b"],
        params["ln1_g"], params["ln1_b"], params["w_qkv"], params["b_qkv"],
        params["w_o"], params["b_o"],
        params["ln2_g"], params["ln2_b"], params["w_fc"], params["b_fc"],
        params["w_pr"], params["b_pr"],
        params["ln_post_g"], params["ln_post_b"], params["w_proj"],
        params["text_features"], params["logit_scale"],
    )


# ----------------------------- main -------------------------------------------

if __name__ == "__main__":
    key = jax.random.PRNGKey(0)
    k_param, k_x = jax.random.split(key)
    params = init_params(k_param)
    x = jax.random.normal(k_x, (B, C_IN, IMG, IMG), dtype=jnp.float32)  # NCHW input

    logits = jax.jit(clip_forward)(params, x)
    logits = jax.block_until_ready(logits)

    assert logits.shape == (B, NCLS), logits.shape
    assert jnp.all(jnp.isfinite(logits))
    print("KERNEL_OK")
</pallas_src>

<mosaic_0001>
module attributes {stable_mosaic.version = 11 : i64} {
  func.func @_clip_fused_kernel(%arg0: memref<16x193xf32, #tpu.memory_space<vmem>>, %arg1: memref<193x32xf32, #tpu.memory_space<vmem>>, %arg2: memref<8x32xf32, #tpu.memory_space<vmem>>, %arg3: memref<1x32xf32, #tpu.memory_space<vmem>>, %arg4: memref<1x32xf32, #tpu.memory_space<vmem>>, %arg5: memref<2x1x32xf32, #tpu.memory_space<vmem>>, %arg6: memref<2x1x32xf32, #tpu.memory_space<vmem>>, %arg7: memref<2x32x96xf32, #tpu.memory_space<vmem>>, %arg8: memref<2x1x96xf32, #tpu.memory_space<vmem>>, %arg9: memref<2x32x32xf32, #tpu.memory_space<vmem>>, %arg10: memref<2x1x32xf32, #tpu.memory_space<vmem>>, %arg11: memref<2x1x32xf32, #tpu.memory_space<vmem>>, %arg12: memref<2x1x32xf32, #tpu.memory_space<vmem>>, %arg13: memref<2x32x128xf32, #tpu.memory_space<vmem>>, %arg14: memref<2x1x128xf32, #tpu.memory_space<vmem>>, %arg15: memref<2x128x32xf32, #tpu.memory_space<vmem>>, %arg16: memref<2x1x32xf32, #tpu.memory_space<vmem>>, %arg17: memref<1x32xf32, #tpu.memory_space<vmem>>, %arg18: memref<1x32xf32, #tpu.memory_space<vmem>>, %arg19: memref<32x16xf32, #tpu.memory_space<vmem>>, %arg20: memref<12x16xf32, #tpu.memory_space<vmem>>, %arg21: memref<1x1xf32, #tpu.memory_space<smem>>, %arg22: memref<2x12xf32, #tpu.memory_space<vmem>>, %arg23: memref<16x32xf32, #tpu.memory_space<vmem>>, %arg24: memref<16x96xf32, #tpu.memory_space<vmem>>) attributes {dimension_semantics = [], scalar_prefetch = 0 : i64, scratch_operands = 2 : i64, tpu.core_type = #tpu.core_type<tc>} {
    %c0 = arith.constant 0 : index
    %c0_0 = arith.constant 0 : index
    %0 = vector.load %arg0[%c0, %c0_0] : memref<16x193xf32, #tpu.memory_space<vmem>>, vector<16x193xf32>
    %c0_1 = arith.constant 0 : index
    %c0_2 = arith.constant 0 : index
    %1 = vector.load %arg1[%c0_1, %c0_2] : memref<193x32xf32, #tpu.memory_space<vmem>>, vector<193x32xf32>
    %cst = arith.constant dense<0.000000e+00> : vector<16x32xf32>
    %2 = tpu.matmul %0, %1, %cst {dimension_numbers = #tpu.dot_dimension_numbers<[1], [0], [0], [1], [0, 0, 1, 1], [], []>} : vector<16x193xf32>, vector<193x32xf32>, vector<16x32xf32> -> vector<16x32xf32>
    %3 = vector.extract_strided_slice %2 {offsets = [0, 0], sizes = [8, 32], strides = [1, 1]} : vector<16x32xf32> to vector<8x32xf32>
    %c0_3 = arith.constant 0 : index
    %c0_4 = arith.constant 0 : index
    %4 = vector.load %arg2[%c0_3, %c0_4] : memref<8x32xf32, #tpu.memory_space<vmem>>, vector<8x32xf32>
    %5 = arith.addf %3, %4 : vector<8x32xf32>
    %c0_5 = arith.constant 0 : index
    %c0_6 = arith.constant 0 : index
    %6 = vector.load %arg23[%c0_5, %c0_6] : memref<16x32xf32, #tpu.memory_space<vmem>>, vector<8x32xf32>
    tpu.vector_store %arg23[%c0_5, %c0_6], %5 {strides = array<i32>} : memref<16x32xf32, #tpu.memory_space<vmem>>, vector<8x32xf32>,
    %7 = vector.extract_strided_slice %2 {offsets = [8, 0], sizes = [8, 32], strides = [1, 1]} : vector<16x32xf32> to vector<8x32xf32>
    %c0_7 = arith.constant 0 : index
    %c0_8 = arith.constant 0 : index
    %8 = vector.load %arg2[%c0_7, %c0_8] : memref<8x32xf32, #tpu.memory_space<vmem>>, vector<8x32xf32>
    %9 = arith.addf %7, %8 : vector<8x32xf32>
    %c8 = arith.constant 8 : index
    %c0_9 = arith.constant 0 : index
    %10 = vector.load %arg23[%c8, %c0_9] : memref<16x32xf32, #tpu.memory_space<vmem>>, vector<8x32xf32>
    tpu.vector_store %arg23[%c8, %c0_9], %9 {strides = array<i32>} : memref<16x32xf32, #tpu.memory_space<vmem>>, vector<8x32xf32>,
    %c0_10 = arith.constant 0 : index
    %c0_11 = arith.constant 0 : index
    %11 = vector.load %arg23[%c0_10, %c0_11] : memref<16x32xf32, #tpu.memory_space<vmem>>, vector<16x32xf32>
    %c0_12 = arith.constant 0 : index
    %c0_13 = arith.constant 0 : index
    %12 = vector.load %arg3[%c0_12, %c0_13] : memref<1x32xf32, #tpu.memory_space<vmem>>, vector<1x32xf32>
    %c0_14 = arith.constant 0 : index
    %c0_15 = arith.constant 0 : index
    %13 = vector.load %arg4[%c0_14, %c0_15] : memref<1x32xf32, #tpu.memory_space<vmem>>, vector<1x32xf32>
    %cst_16 = arith.constant dense<0.000000e+00> : vector<16xf32>
    %14 = vector.multi_reduction <add>, %11, %cst_16 [1] : vector<16x32xf32> to vector<16xf32>
    %15 = vector.shape_cast %14 : vector<16xf32> to vector<16x1xf32>
    %cst_17 = arith.constant 3.200000e+01 : f32
    %16 = vector.broadcast %cst_17 : f32 to vector<16x1xf32>
    %17 = arith.divf %15, %16 : vector<16x1xf32>
    %18 = vector.broadcast %17 : vector<16x1xf32> to vector<16x32xf32>
    %19 = arith.subf %11, %18 : vector<16x32xf32>
    %20 = arith.mulf %19, %19 : vector<16x32xf32>
    %cst_18 = arith.constant dense<0.000000e+00> : vector<16xf32>
    %21 = vector.multi_reduction <add>, %20, %cst_18 [1] : vector<16x32xf32> to vector<16xf32>
    %22 = vector.shape_cast %21 : vector<16xf32> to vector<16x1xf32>
    %cst_19 = arith.constant 3.200000e+01 : f32
    %23 = vector.broadcast %cst_19 : f32 to vector<16x1xf32>
    %24 = arith.divf %22, %23 : vector<16x1xf32>
    %cst_20 = arith.constant 9.99999974E-6 : f32
    %25 = vector.broadcast %cst_20 : f32 to vector<16x1xf32>
    %26 = arith.addf %24, %25 : vector<16x1xf32>
    %27 = math.rsqrt %26 : vector<16x1xf32>
    %28 = vector.broadcast %27 : vector<16x1xf32> to vector<16x32xf32>
    %29 = arith.mulf %19, %28 : vector<16x32xf32>
    %30 = vector.broadcast %12 : vector<1x32xf32> to vector<16x32xf32>
    %31 = arith.mulf %29, %30 : vector<16x32xf32>
    %32 = vector.broadcast %13 : vector<1x32xf32> to vector<16x32xf32>
    %33 = arith.addf %31, %32 : vector<16x32xf32>
    %c0_21 = arith.constant 0 : index
    %c0_22 = arith.constant 0 : index
    %34 = vector.load %arg23[%c0_21, %c0_22] : memref<16x32xf32, #tpu.memory_space<vmem>>, vector<16x32xf32>
    tpu.vector_store %arg23[%c0_21, %c0_22], %33 {strides = array<i32>} : memref<16x32xf32, #tpu.memory_space<vmem>>, vector<16x32xf32>,
    %c0_23 = arith.constant 0 : index
    %c0_24 = arith.constant 0 : index
    %35 = vector.load %arg23[%c0_23, %c0_24] : memref<16x32xf32, #tpu.memory_space<vmem>>, vector<16x32xf32>
    %c0_25 = arith.constant 0 : index
    %c0_26 = arith.constant 0 : index
    %c0_27 = arith.constant 0 : index
    %36 = vector.load %arg5[%c0_25, %c0_26, %c0_27] : memref<2x1x32xf32, #tpu.memory_space<vmem>>, vector<1x1x32xf32>
    %37 = vector.shape_cast %36 : vector<1x1x32xf32> to vector<1x32xf32>
    %c0_28 = arith.constant 0 : index
    %c0_29 = arith.constant 0 : index
    %c0_30 = arith.constant 0 : index
    %38 = vector.load %arg6[%c0_28, %c0_29, %c0_30] : memref<2x1x32xf32, #tpu.memory_space<vmem>>, vector<1x1x32xf32>
    %39 = vector.shape_cast %38 : vector<1x1x32xf32> to vector<1x32xf32>
    %cst_31 = arith.constant dense<0.000000e+00> : vector<16xf32>
    %40 = vector.multi_reduction <add>, %35, %cst_31 [1] : vector<16x32xf32> to vector<16xf32>
    %41 = vector.shape_cast %40 : vector<16xf32> to vector<16x1xf32>
    %cst_32 = arith.constant 3.200000e+01 : f32
    %42 = vector.broadcast %cst_32 : f32 to vector<16x1xf32>
    %43 = arith.divf %41, %42 : vector<16x1xf32>
    %44 = vector.broadcast %43 : vector<16x1xf32> to vector<16x32xf32>
    %45 = arith.subf %35, %44 : vector<16x32xf32>
    %46 = arith.mulf %45, %45 : vector<16x32xf32>
    %cst_33 = arith.constant dense<0.000000e+00> : vector<16xf32>
    %47 = vector.multi_reduction <add>, %46, %cst_33 [1] : vector<16x32xf32> to vector<16xf32>
    %48 = vector.shape_cast %47 : vector<16xf32> to vector<16x1xf32>
    %cst_34 = arith.constant 3.200000e+01 : f32
    %49 = vector.broadcast %cst_34 : f32 to vector<16x1xf32>
    %50 = arith.divf %48, %49 : vector<16x1xf32>
    %cst_35 = arith.constant 9.99999974E-6 : f32
    %51 = vector.broadcast %cst_35 : f32 to vector<16x1xf32>
    %52 = arith.addf %50, %51 : vector<16x1xf32>
    %53 = math.rsqrt %52 : vector<16x1xf32>
    %54 = vector.broadcast %53 : vector<16x1xf32> to vector<16x32xf32>
    %55 = arith.mulf %45, %54 : vector<16x32xf32>
    %56 = vector.broadcast %37 : vector<1x32xf32> to vector<16x32xf32>
    %57 = arith.mulf %55, %56 : vector<16x32xf32>
    %58 = vector.broadcast %39 : vector<1x32xf32> to vector<16x32xf32>
    %59 = arith.addf %57, %58 : vector<16x32xf32>
    %c0_36 = arith.constant 0 : index
    %c0_37 = arith.constant 0 : index
    %c0_38 = arith.constant 0 : index
    %60 = vector.load %arg7[%c0_36, %c0_37, %c0_38] : memref<2x32x96xf32, #tpu.memory_space<vmem>>, vector<1x32x96xf32>
    %61 = vector.shape_cast %60 : vector<1x32x96xf32> to vector<32x96xf32>
    %cst_39 = arith.constant dense<0.000000e+00> : vector<16x96xf32>
    %62 = tpu.matmul %59, %61, %cst_39 {dimension_numbers = #tpu.dot_dimension_numbers<[1], [0], [0], [1], [0, 0, 1, 1], [], []>} : vector<16x32xf32>, vector<32x96xf32>, vector<16x96xf32> -> vector<16x96xf32>
    %c0_40 = arith.constant 0 : index
    %c0_41 = arith.constant 0 : index
    %c0_42 = arith.constant 0 : index
    %63 = vector.load %arg8[%c0_40, %c0_41, %c0_42] : memref<2x1x96xf32, #tpu.memory_space<vmem>>, vector<1x1x96xf32>
    %64 = vector.shape_cast %63 : vector<1x1x96xf32> to vector<1x96xf32>
    %65 = vector.broadcast %64 : vector<1x96xf32> to vector<16x96xf32>
    %66 = arith.addf %62, %65 : vector<16x96xf32>
    %c0_43 = arith.constant 0 : index
    %c0_44 = arith.constant 0 : index
    %67 = vector.load %arg24[%c0_43, %c0_44] : memref<16x96xf32, #tpu.memory_space<vmem>>, vector<16x96xf32>
    tpu.vector_store %arg24[%c0_43, %c0_44], %66 {strides = array<i32>} : memref<16x96xf32, #tpu.memory_space<vmem>>, vector<16x96xf32>,
    %c0_45 = arith.constant 0 : index
    %c0_46 = arith.constant 0 : index
    %c0_47 = arith.constant 0 : index
    %68 = vector.load %arg9[%c0_45, %c0_46, %c0_47] : memref<2x32x32xf32, #tpu.memory_space<vmem>>, vector<1x32x32xf32>
    %69 = vector.shape_cast %68 : vector<1x32x32xf32> to vector<32x32xf32>
    %cst_48 = arith.constant 0.000000e+00 : f32
    %70 = vector.broadcast %cst_48 : f32 to vector<5x32xf32>
    %c0_49 = arith.constant 0 : index
    %c0_50 = arith.constant 0 : index
    %71 = vector.load %arg24[%c0_49, %c0_50] : memref<16x96xf32, #tpu.memory_space<vmem>>, vector<5x8xf32>
    %c0_51 = arith.constant 0 : index
    %c32 = arith.constant 32 : index
    %72 = vector.load %arg24[%c0_51, %c32] : memref<16x96xf32, #tpu.memory_space<vmem>>, vector<5x8xf32>
    %c0_52 = arith.constant 0 : index
    %c64 = arith.constant 64 : index
    %73 = vector.load %arg24[%c0_52, %c64] : memref<16x96xf32, #tpu.memory_space<vmem>>, vector<5x8xf32>
    %cst_53 = arith.constant dense<0.000000e+00> : vector<5x5xf32>
    %74 = tpu.matmul %71, %72, %cst_53 {dimension_numbers = #tpu.dot_dimension_numbers<[1], [1], [0], [0], [0, 0, 1, 0], [], []>} : vector<5x8xf32>, vector<5x8xf32>, vector<5x5xf32> -> vector<5x5xf32>
    %cst_54 = arith.constant 0.353553385 : f32
    %75 = vector.broadcast %cst_54 : f32 to vector<5x5xf32>
    %76 = arith.mulf %74, %75 : vector<5x5xf32>
    %cst_55 = arith.constant dense<0xFF800000> : vector<5xf32>
    %77 = vector.multi_reduction <maximumf>, %76, %cst_55 [1] : vector<5x5xf32> to vector<5xf32>
    %78 = vector.shape_cast %77 : vector<5xf32> to vector<5x1xf32>
    %79 = vector.broadcast %78 : vector<5x1xf32> to vector<5x5xf32>
    %80 = arith.subf %76, %79 : vector<5x5xf32>
    %81 = math.exp %80 : vector<5x5xf32>
    %cst_56 = arith.constant dense<0.000000e+00> : vector<5xf32>
    %82 = vector.multi_reduction <add>, %81, %cst_56 [1] : vector<5x5xf32> to vector<5xf32>
    %83 = vector.shape_cast %82 : vector<5xf32> to vector<5x1xf32>
    %84 = tpu.reciprocal %83 {approx = true} : vector<5x1xf32> -> vector<5x1xf32>
    %85 = vector.broadcast %84 : vector<5x1xf32> to vector<5x5xf32>
    %86 = arith.mulf %81, %85 : vector<5x5xf32>
    %cst_57 = arith.constant dense<0.000000e+00> : vector<5x8xf32>
    %87 = tpu.matmul %86, %73, %cst_57 {dimension_numbers = #tpu.dot_dimension_numbers<[1], [0], [0], [1], [0, 0, 1, 1], [], []>} : vector<5x5xf32>, vector<5x8xf32>, vector<5x8xf32> -> vector<5x8xf32>
    %88 = vector.extract_strided_slice %69 {offsets = [0, 0], sizes = [8, 32], strides = [1, 1]} : vector<32x32xf32> to vector<8x32xf32>
    %cst_58 = arith.constant dense<0.000000e+00> : vector<5x32xf32>
    %89 = tpu.matmul %87, %88, %cst_58 {dimension_numbers = #tpu.dot_dimension_numbers<[1], [0], [0], [1], [0, 0, 1, 1], [], []>} : vector<5x8xf32>, vector<8x32xf32>, vector<5x32xf32> -> vector<5x32xf32>
    %90 = arith.addf %70, %89 : vector<5x32xf32>
    %c0_59 = arith.constant 0 : index
    %c8_60 = arith.constant 8 : index
    %91 = vector.load %arg24[%c0_59, %c8_60] : memref<16x96xf32, #tpu.memory_space<vmem>>, vector<5x8xf32>
    %c0_61 = arith.constant 0 : index
    %c40 = arith.constant 40 : index
    %92 = vector.load %arg24[%c0_61, %c40] : memref<16x96xf32, #tpu.memory_space<vmem>>, vector<5x8xf32>
    %c0_62 = arith.constant 0 : index
    %c72 = arith.constant 72 : index
    %93 = vector.load %arg24[%c0_62, %c72] : memref<16x96xf32, #tpu.memory_space<vmem>>, vector<5x8xf32>
    %cst_63 = arith.constant dense<0.000000e+00> : vector<5x5xf32>
    %94 = tpu.matmul %91, %92, %cst_63 {dimension_numbers = #tpu.dot_dimension_numbers<[1], [1], [0], [0], [0, 0, 1, 0], [], []>} : vector<5x8xf32>, vector<5x8xf32>, vector<5x5xf32> -> vector<5x5xf32>
    %cst_64 = arith.constant 0.353553385 : f32
    %95 = vector.broadcast %cst_64 : f32 to vector<5x5xf32>
    %96 = arith.mulf %94, %95 : vector<5x5xf32>
    %cst_65 = arith.constant dense<0xFF800000> : vector<5xf32>
    %97 = vector.multi_reduction <maximumf>, %96, %cst_65 [1] : vector<5x5xf32> to vector<5xf32>
    %98 = vector.shape_cast %97 : vector<5xf32> to vector<5x1xf32>
    %99 = vector.broadcast %98 : vector<5x1xf32> to vector<5x5xf32>
    %100 = arith.subf %96, %99 : vector<5x5xf32>
    %101 = math.exp %100 : vector<5x5xf32>
    %cst_66 = arith.constant dense<0.000000e+00> : vector<5xf32>
    %102 = vector.multi_reduction <add>, %101, %cst_66 [1] : vector<5x5xf32> to vector<5xf32>
    %103 = vector.shape_cast %102 : vector<5xf32> to vector<5x1xf32>
    %104 = tpu.reciprocal %103 {approx = true} : vector<5x1xf32> -> vector<5x1xf32>
    %105 = vector.broadcast %104 : vector<5x1xf32> to vector<5x5xf32>
    %106 = arith.mulf %101, %105 : vector<5x5xf32>
    %cst_67 = arith.constant dense<0.000000e+00> : vector<5x8xf32>
    %107 = tpu.matmul %106, %93, %cst_67 {dimension_numbers = #tpu.dot_dimension_numbers<[1], [0], [0], [1], [0, 0, 1, 1], [], []>} : vector<5x5xf32>, vector<5x8xf32>, vector<5x8xf32> -> vector<5x8xf32>
    %108 = vector.extract_strided_slice %69 {offsets = [8, 0], sizes = [8, 32], strides = [1, 1]} : vector<32x32xf32> to vector<8x32xf32>
    %cst_68 = arith.constant dense<0.000000e+00> : vector<5x32xf32>
    %109 = tpu.matmul %107, %108, %cst_68 {dimension_numbers = #tpu.dot_dimension_numbers<[1], [0], [0], [1], [0, 0, 1, 1], [], []>} : vector<5x8xf32>, vector<8x32xf32>, vector<5x32xf32> -> vector<5x32xf32>
    %110 = arith.addf %90, %109 : vector<5x32xf32>
    %c0_69 = arith.constant 0 : index
    %c16 = arith.constant 16 : index
    %111 = vector.load %arg24[%c0_69, %c16] : memref<16x96xf32, #tpu.memory_space<vmem>>, vector<5x8xf32>
    %c0_70 = arith.constant 0 : index
    %c48 = arith.constant 48 : index
    %112 = vector.load %arg24[%c0_70, %c48] : memref<16x96xf32, #tpu.memory_space<vmem>>, vector<5x8xf32>
    %c0_71 = arith.constant 0 : index
    %c80 = arith.constant 80 : index
    %113 = vector.load %arg24[%c0_71, %c80] : memref<16x96xf32, #tpu.memory_space<vmem>>, vector<5x8xf32>
    %cst_72 = arith.constant dense<0.000000e+00> : vector<5x5xf32>
    %114 = tpu.matmul %111, %112, %cst_72 {dimension_numbers = #tpu.dot_dimension_numbers<[1], [1], [0], [0], [0, 0, 1, 0], [], []>} : vector<5x8xf32>, vector<5x8xf32>, vector<5x5xf32> -> vector<5x5xf32>
    %cst_73 = arith.constant 0.353553385 : f32
    %115 = vector.broadcast %cst_73 : f32 to vector<5x5xf32>
    %116 = arith.mulf %114, %115 : vector<5x5xf32>
    %cst_74 = arith.constant dense<0xFF800000> : vector<5xf32>
    %117 = vector.multi_reduction <maximumf>, %116, %cst_74 [1] : vector<5x5xf32> to vector<5xf32>
    %118 = vector.shape_cast %117 : vector<5xf32> to vector<5x1xf32>
    %119 = vector.broadcast %118 : vector<5x1xf32> to vector<5x5xf32>
    %120 = arith.subf %116, %119 : vector<5x5xf32>
    %121 = math.exp %120 : vector<5x5xf32>
    %cst_75 = arith.constant dense<0.000000e+00> : vector<5xf32>
    %122 = vector.multi_reduction <add>, %121, %cst_75 [1] : vector<5x5xf32> to vector<5xf32>
    %123 = vector.shape_cast %122 : vector<5xf32> to vector<5x1xf32>
    %124 = tpu.reciprocal %123 {approx = true} : vector<5x1xf32> -> vector<5x1xf32>
    %125 = vector.broadcast %124 : vector<5x1xf32> to vector<5x5xf32>
    %126 = arith.mulf %121, %125 : vector<5x5xf32>
    %cst_76 = arith.constant dense<0.000000e+00> : vector<5x8xf32>
    %127 = tpu.matmul %126, %113, %cst_76 {dimension_numbers = #tpu.dot_dimension_numbers<[1], [0], [0], [1], [0, 0, 1, 1], [], []>} : vector<5x5xf32>, vector<5x8xf32>, vector<5x8xf32> -> vector<5x8xf32>
    %128 = vector.extract_strided_slice %69 {offsets = [16, 0], sizes = [8, 32], strides = [1, 1]} : vector<32x32xf32> to vector<8x32xf32>
    %cst_77 = arith.constant dense<0.000000e+00> : vector<5x32xf32>
    %129 = tpu.matmul %127, %128, %cst_77 {dimension_numbers = #tpu.dot_dimension_numbers<[1], [0], [0], [1], [0, 0, 1, 1], [], []>} : vector<5x8xf32>, vector<8x32xf32>, vector<5x32xf32> -> vector<5x32xf32>
    %130 = arith.addf %110, %129 : vector<5x32xf32>
    %c0_78 = arith.constant 0 : index
    %c24 = arith.constant 24 : index
    %131 = vector.load %arg24[%c0_78, %c24] : memref<16x96xf32, #tpu.memory_space<vmem>>, vector<5x8xf32>
    %c0_79 = arith.constant 0 : index
    %c56 = arith.constant 56 : index
    %132 = vector.load %arg24[%c0_79, %c56] : memref<16x96xf32, #tpu.memory_space<vmem>>, vector<5x8xf32>
    %c0_80 = arith.constant 0 : index
    %c88 = arith.constant 88 : index
    %133 = vector.load %arg24[%c0_80, %c88] : memref<16x96xf32, #tpu.memory_space<vmem>>, vector<5x8xf32>
    %cst_81 = arith.constant dense<0.000000e+00> : vector<5x5xf32>
    %134 = tpu.matmul %131, %132, %cst_81 {dimension_numbers = #tpu.dot_dimension_numbers<[1], [1], [0], [0], [0, 0, 1, 0], [], []>} : vector<5x8xf32>, vector<5x8xf32>, vector<5x5xf32> -> vector<5x5xf32>
    %cst_82 = arith.constant 0.353553385 : f32
    %135 = vector.broadcast %cst_82 : f32 to vector<5x5xf32>
    %136 = arith.mulf %134, %135 : vector<5x5xf32>
    %cst_83 = arith.constant dense<0xFF800000> : vector<5xf32>
    %137 = vector.multi_reduction <maximumf>, %136, %cst_83 [1] : vector<5x5xf32> to vector<5xf32>
    %138 = vector.shape_cast %137 : vector<5xf32> to vector<5x1xf32>
    %139 = vector.broadcast %138 : vector<5x1xf32> to vector<5x5xf32>
    %140 = arith.subf %136, %139 : vector<5x5xf32>
    %141 = math.exp %140 : vector<5x5xf32>
    %cst_84 = arith.constant dense<0.000000e+00> : vector<5xf32>
    %142 = vector.multi_reduction <add>, %141, %cst_84 [1] : vector<5x5xf32> to vector<5xf32>
    %143 = vector.shape_cast %142 : vector<5xf32> to vector<5x1xf32>
    %144 = tpu.reciprocal %143 {approx = true} : vector<5x1xf32> -> vector<5x1xf32>
    %145 = vector.broadcast %144 : vector<5x1xf32> to vector<5x5xf32>
    %146 = arith.mulf %141, %145 : vector<5x5xf32>
    %cst_85 = arith.constant dense<0.000000e+00> : vector<5x8xf32>
    %147 = tpu.matmul %146, %133, %cst_85 {dimension_numbers = #tpu.dot_dimension_numbers<[1], [0], [0], [1], [0, 0, 1, 1], [], []>} : vector<5x5xf32>, vector<5x8xf32>, vector<5x8xf32> -> vector<5x8xf32>
    %148 = vector.extract_strided_slice %69 {offsets = [24, 0], sizes = [8, 32], strides = [1, 1]} : vector<32x32xf32> to vector<8x32xf32>
    %cst_86 = arith.constant dense<0.000000e+00> : vector<5x32xf32>
    %149 = tpu.matmul %147, %148, %cst_86 {dimension_numbers = #tpu.dot_dimension_numbers<[1], [0], [0], [1], [0, 0, 1, 1], [], []>} : vector<5x8xf32>, vector<8x32xf32>, vector<5x32xf32> -> vector<5x32xf32>
    %150 = arith.addf %130, %149 : vector<5x32xf32>
    %c0_87 = arith.constant 0 : index
    %c0_88 = arith.constant 0 : index
    %151 = vector.load %arg23[%c0_87, %c0_88] : memref<16x32xf32, #tpu.memory_space<vmem>>, vector<5x32xf32>
    %152 = arith.addf %151, %150 : vector<5x32xf32>
    %c0_89 = arith.constant 0 : index
    %c0_90 = arith.constant 0 : index
    %c0_91 = arith.constant 0 : index
    %153 = vector.load %arg10[%c0_89, %c0_90, %c0_91] : memref<2x1x32xf32, #tpu.memory_space<vmem>>, vector<1x1x32xf32>
    %154 = vector.shape_cast %153 : vector<1x1x32xf32> to vector<1x32xf32>
    %155 = vector.broadcast %154 : vector<1x32xf32> to vector<5x32xf32>
    %156 = arith.addf %152, %155 : vector<5x32xf32>
    %c0_92 = arith.constant 0 : index
    %c0_93 = arith.constant 0 : index
    %157 = vector.load %arg23[%c0_92, %c0_93] : memref<16x32xf32, #tpu.memory_space<vmem>>, vector<5x32xf32>
    tpu.vector_store %arg23[%c0_92, %c0_93], %156 {strides = array<i32>} : memref<16x32xf32, #tpu.memory_space<vmem>>, vector<5x32xf32>,
    %cst_94 = arith.constant 0.000000e+00 : f32
    %158 = vector.broadcast %cst_94 : f32 to vector<5x32xf32>
    %c8_95 = arith.constant 8 : index
    %c0_96 = arith.constant 0 : index
    %159 = vector.load %arg24[%c8_95, %c0_96] : memref<16x96xf32, #tpu.memory_space<vmem>>, vector<5x8xf32>
    %c8_97 = arith.constant 8 : index
    %c32_98 = arith.constant 32 : index
    %160 = vector.load %arg24[%c8_97, %c32_98] : memref<16x96xf32, #tpu.memory_space<vmem>>, vector<5x8xf32>
    %c8_99 = arith.constant 8 : index
    %c64_100 = arith.constant 64 : index
    %161 = vector.load %arg24[%c8_99, %c64_100] : memref<16x96xf32, #tpu.memory_space<vmem>>, vector<5x8xf32>
    %cst_101 = arith.constant dense<0.000000e+00> : vector<5x5xf32>
    %162 = tpu.matmul %159, %160, %cst_101 {dimension_numbers = #tpu.dot_dimension_numbers<[1], [1], [0], [0], [0, 0, 1, 0], [], []>} : vector<5x8xf32>, vector<5x8xf32>, vector<5x5xf32> -> vector<5x5xf32>
    %cst_102 = arith.constant 0.353553385 : f32
    %163 = vector.broadcast %cst_102 : f32 to vector<5x5xf32>
    %164 = arith.mulf %162, %163 : vector<5x5xf32>
    %cst_103 = arith.constant dense<0xFF800000> : vector<5xf32>
    %165 = vector.multi_reduction <maximumf>, %164, %cst_103 [1] : vector<5x5xf32> to vector<5xf32>
    %166 = vector.shape_cast %165 : vector<5xf32> to vector<5x1xf32>
    %167 = vector.broadcast %166 : vector<5x1xf32> to vector<5x5xf32>
    %168 = arith.subf %164, %167 : vector<5x5xf32>
    %169 = math.exp %168 : vector<5x5xf32>
    %cst_104 = arith.constant dense<0.000000e+00> : vector<5xf32>
    %170 = vector.multi_reduction <add>, %169, %cst_104 [1] : vector<5x5xf32> to vector<5xf32>
    %171 = vector.shape_cast %170 : vector<5xf32> to vector<5x1xf32>
    %172 = tpu.reciprocal %171 {approx = true} : vector<5x1xf32> -> vector<5x1xf32>
    %173 = vector.broadcast %172 : vector<5x1xf32> to vector<5x5xf32>
    %174 = arith.mulf %169, %173 : vector<5x5xf32>
    %cst_105 = arith.constant dense<0.000000e+00> : vector<5x8xf32>
    %175 = tpu.matmul %174, %161, %cst_105 {dimension_numbers = #tpu.dot_dimension_numbers<[1], [0], [0], [1], [0, 0, 1, 1], [], []>} : vector<5x5xf32>, vector<5x8xf32>, vector<5x8xf32> -> vector<5x8xf32>
    %176 = vector.extract_strided_slice %69 {offsets = [0, 0], sizes = [8, 32], strides = [1, 1]} : vector<32x32xf32> to vector<8x32xf32>
    %cst_106 = arith.constant dense<0.000000e+00> : vector<5x32xf32>
    %177 = tpu.matmul %175, %176, %cst_106 {dimension_numbers = #tpu.dot_dimension_numbers<[1], [0], [0], [1], [0, 0, 1, 1], [], []>} : vector<5x8xf32>, vector<8x32xf32>, vector<5x32xf32> -> vector<5x32xf32>
    %178 = arith.addf %158, %177 : vector<5x32xf32>
    %c8_107 = arith.constant 8 : index
    %c8_108 = arith.constant 8 : index
    %179 = vector.load %arg24[%c8_107, %c8_108] : memref<16x96xf32, #tpu.memory_space<vmem>>, vector<5x8xf32>
    %c8_109 = arith.constant 8 : index
    %c40_110 = arith.constant 40 : index
    %180 = vector.load %arg24[%c8_109, %c40_110] : memref<16x96xf32, #tpu.memory_space<vmem>>, vector<5x8xf32>
    %c8_111 = arith.constant 8 : index
    %c72_112 = arith.constant 72 : index
    %181 = vector.load %arg24[%c8_111, %c72_112] : memref<16x96xf32, #tpu.memory_space<vmem>>, vector<5x8xf32>
    %cst_113 = arith.constant dense<0.000000e+00> : vector<5x5xf32>
    %182 = tpu.matmul %179, %180, %cst_113 {dimension_numbers = #tpu.dot_dimension_numbers<[1], [1], [0], [0], [0, 0, 1, 0], [], []>} : vector<5x8xf32>, vector<5x8xf32>, vector<5x5xf32> -> vector<5x5xf32>
    %cst_114 = arith.constant 0.353553385 : f32
    %183 = vector.broadcast %cst_114 : f32 to vector<5x5xf32>
    %184 = arith.mulf %182, %183 : vector<5x5xf32>
    %cst_115 = arith.constant dense<0xFF800000> : vector<5xf32>
    %185 = vector.multi_reduction <maximumf>, %184, %cst_115 [1] : vector<5x5xf32> to vector<5xf32>
    %186 = vector.shape_cast %185 : vector<5xf32> to vector<5x1xf32>
    %187 = vector.broadcast %186 : vector<5x1xf32> to vector<5x5xf32>
    %188 = arith.subf %184, %187 : vector<5x5xf32>
    %189 = math.exp %188 : vector<5x5xf32>
    %cst_116 = arith.constant dense<0.000000e+00> : vector<5xf32>
    %190 = vector.multi_reduction <add>, %189, %cst_116 [1] : vector<5x5xf32> to vector<5xf32>
    %191 = vector.shape_cast %190 : vector<5xf32> to vector<5x1xf32>
    %192 = tpu.reciprocal %191 {approx = true} : vector<5x1xf32> -> vector<5x1xf32>
    %193 = vector.broadcast %192 : vector<5x1xf32> to vector<5x5xf32>
    %194 = arith.mulf %189, %193 : vector<5x5xf32>
    %cst_117 = arith.constant dense<0.000000e+00> : vector<5x8xf32>
    %195 = tpu.matmul %194, %181, %cst_117 {dimension_numbers = #tpu.dot_dimension_numbers<[1], [0], [0], [1], [0, 0, 1, 1], [], []>} : vector<5x5xf32>, vector<5x8xf32>, vector<5x8xf32> -> vector<5x8xf32>
    %196 = vector.extract_strided_slice %69 {offsets = [8, 0], sizes = [8, 32], strides = [1, 1]} : vector<32x32xf32> to vector<8x32xf32>
    %cst_118 = arith.constant dense<0.000000e+00> : vector<5x32xf32>
    %197 = tpu.matmul %195, %196, %cst_118 {dimension_numbers = #tpu.dot_dimension_numbers<[1], [0], [0], [1], [0, 0, 1, 1], [], []>} : vector<5x8xf32>, vector<8x32xf32>, vector<5x32xf32> -> vector<5x32xf32>
    %198 = arith.addf %178, %197 : vector<5x32xf32>
    %c8_119 = arith.constant 8 : index
    %c16_120 = arith.constant 16 : index
    %199 = vector.load %arg24[%c8_119, %c16_120] : memref<16x96xf32, #tpu.memory_space<vmem>>, vector<5x8xf32>
    %c8_121 = arith.constant 8 : index
    %c48_122 = arith.constant 48 : index
    %200 = vector.load %arg24[%c8_121, %c48_122] : memref<16x96xf32, #tpu.memory_space<vmem>>, vector<5x8xf32>
    %c8_123 = arith.constant 8 : index
    %c80_124 = arith.constant 80 : index
    %201 = vector.load %arg24[%c8_123, %c80_124] : memref<16x96xf32, #tpu.memory_space<vmem>>, vector<5x8xf32>
    %cst_125 = arith.constant dense<0.000000e+00> : vector<5x5xf32>
    %202 = tpu.matmul %199, %200, %cst_125 {dimension_numbers = #tpu.dot_dimension_numbers<[1], [1], [0], [0], [0, 0, 1, 0], [], []>} : vector<5x8xf32>, vector<5x8xf32>, vector<5x5xf32> -> vector<5x5xf32>
    %cst_126 = arith.constant 0.353553385 : f32
    %203 = vector.broadcast %cst_126 : f32 to vector<5x5xf32>
    %204 = arith.mulf %202, %203 : vector<5x5xf32>
    %cst_127 = arith.constant dense<0xFF800000> : vector<5xf32>
    %205 = vector.multi_reduction <maximumf>, %204, %cst_127 [1] : vector<5x5xf32> to vector<5xf32>
    %206 = vector.shape_cast %205 : vector<5xf32> to vector<5x1xf32>
    %207 = vector.broadcast %206 : vector<5x1xf32> to vector<5x5xf32>
    %208 = arith.subf %204, %207 : vector<5x5xf32>
    %209 = math.exp %208 : vector<5x5xf32>
    %cst_128 = arith.constant dense<0.000000e+00> : vector<5xf32>
    %210 = vector.multi_reduction <add>, %209, %cst_128 [1] : vector<5x5xf32> to vector<5xf32>
    %211 = vector.shape_cast %210 : vector<5xf32> to vector<5x1xf32>
    %212 = tpu.reciprocal %211 {approx = true} : vector<5x1xf32> -> vector<5x1xf32>
    %213 = vector.broadcast %212 : vector<5x1xf32> to vector<5x5xf32>
    %214 = arith.mulf %209, %213 : vector<5x5xf32>
    %cst_129 = arith.constant dense<0.000000e+00> : vector<5x8xf32>
    %215 = tpu.matmul %214, %201, %cst_129 {dimension_numbers = #tpu.dot_dimension_numbers<[1], [0], [0], [1], [0, 0, 1, 1], [], []>} : vector<5x5xf32>, vector<5x8xf32>, vector<5x8xf32> -> vector<5x8xf32>
    %216 = vector.extract_strided_slice %69 {offsets = [16, 0], sizes = [8, 32], strides = [1, 1]} : vector<32x32xf32> to vector<8x32xf32>
    %cst_130 = arith.constant dense<0.000000e+00> : vector<5x32xf32>
    %217 = tpu.matmul %215, %216, %cst_130 {dimension_numbers = #tpu.dot_dimension_numbers<[1], [0], [0], [1], [0, 0, 1, 1], [], []>} : vector<5x8xf32>, vector<8x32xf32>, vector<5x32xf32> -> vector<5x32xf32>
    %218 = arith.addf %198, %217 : vector<5x32xf32>
    %c8_131 = arith.constant 8 : index
    %c24_132 = arith.constant 24 : index
    %219 = vector.load %arg24[%c8_131, %c24_132] : memref<16x96xf32, #tpu.memory_space<vmem>>, vector<5x8xf32>
    %c8_133 = arith.constant 8 : index
    %c56_134 = arith.constant 56 : index
    %220 = vector.load %arg24[%c8_133, %c56_134] : memref<16x96xf32, #tpu.memory_space<vmem>>, vector<5x8xf32>
    %c8_135 = arith.constant 8 : index
    %c88_136 = arith.constant 88 : index
    %221 = vector.load %arg24[%c8_135, %c88_136] : memref<16x96xf32, #tpu.memory_space<vmem>>, vector<5x8xf32>
    %cst_137 = arith.constant dense<0.000000e+00> : vector<5x5xf32>
    %222 = tpu.matmul %219, %220, %cst_137 {dimension_numbers = #tpu.dot_dimension_numbers<[1], [1], [0], [0], [0, 0, 1, 0], [], []>} : vector<5x8xf32>, vector<5x8xf32>, vector<5x5xf32> -> vector<5x5xf32>
    %cst_138 = arith.constant 0.353553385 : f32
    %223 = vector.broadcast %cst_138 : f32 to vector<5x5xf32>
    %224 = arith.mulf %222, %223 : vector<5x5xf32>
    %cst_139 = arith.constant dense<0xFF800000> : vector<5xf32>
    %225 = vector.multi_reduction <maximumf>, %224, %cst_139 [1] : vector<5x5xf32> to vector<5xf32>
    %226 = vector.shape_cast %225 : vector<5xf32> to vector<5x1xf32>
    %227 = vector.broadcast %226 : vector<5x1xf32> to vector<5x5xf32>
    %228 = arith.subf %224, %227 : vector<5x5xf32>
    %229 = math.exp %228 : vector<5x5xf32>
    %cst_140 = arith.constant dense<0.000000e+00> : vector<5xf32>
    %230 = vector.multi_reduction <add>, %229, %cst_140 [1] : vector<5x5xf32> to vector<5xf32>
    %231 = vector.shape_cast %230 : vector<5xf32> to vector<5x1xf32>
    %232 = tpu.reciprocal %231 {approx = true} : vector<5x1xf32> -> vector<5x1xf32>
    %233 = vector.broadcast %232 : vector<5x1xf32> to vector<5x5xf32>
    %234 = arith.mulf %229, %233 : vector<5x5xf32>
    %cst_141 = arith.constant dense<0.000000e+00> : vector<5x8xf32>
    %235 = tpu.matmul %234, %221, %cst_141 {dimension_numbers = #tpu.dot_dimension_numbers<[1], [0], [0], [1], [0, 0, 1, 1], [], []>} : vector<5x5xf32>, vector<5x8xf32>, vector<5x8xf32> -> vector<5x8xf32>
    %236 = vector.extract_strided_slice %69 {offsets = [24, 0], sizes = [8, 32], strides = [1, 1]} : vector<32x32xf32> to vector<8x32xf32>
    %cst_142 = arith.constant dense<0.000000e+00> : vector<5x32xf32>
    %237 = tpu.matmul %235, %236, %cst_142 {dimension_numbers = #tpu.dot_dimension_numbers<[1], [0], [0], [1], [0, 0, 1, 1], [], []>} : vector<5x8xf32>, vector<8x32xf32>, vector<5x32xf32> -> vector<5x32xf32>
    %238 = arith.addf %218, %237 : vector<5x32xf32>
    %c8_143 = arith.constant 8 : index
    %c0_144 = arith.constant 0 : index
    %239 = vector.load %arg23[%c8_143, %c0_144] : memref<16x32xf32, #tpu.memory_space<vmem>>, vector<5x32xf32>
    %240 = arith.addf %239, %238 : vector<5x32xf32>
    %c0_145 = arith.constant 0 : index
    %c0_146 = arith.constant 0 : index
    %c0_147 = arith.constant 0 : index
    %241 = vector.load %arg10[%c0_145, %c0_146, %c0_147] : memref<2x1x32xf32, #tpu.memory_space<vmem>>, vector<1x1x32xf32>
    %242 = vector.shape_cast %241 : vector<1x1x32xf32> to vector<1x32xf32>
    %243 = vector.broadcast %242 : vector<1x32xf32> to vector<5x32xf32>
    %244 = arith.addf %240, %243 : vector<5x32xf32>
    %c8_148 = arith.constant 8 : index
    %c0_149 = arith.constant 0 : index
    %245 = vector.load %arg23[%c8_148, %c0_149] : memref<16x32xf32, #tpu.memory_space<vmem>>, vector<5x32xf32>
    tpu.vector_store %arg23[%c8_148, %c0_149], %244 {strides = array<i32>} : memref<16x32xf32, #tpu.memory_space<vmem>>, vector<5x32xf32>,
    %c0_150 = arith.constant 0 : index
    %c0_151 = arith.constant 0 : index
    %246 = vector.load %arg23[%c0_150, %c0_151] : memref<16x32xf32, #tpu.memory_space<vmem>>, vector<16x32xf32>
    %c0_152 = arith.constant 0 : index
    %c0_153 = arith.constant 0 : index
    %c0_154 = arith.constant 0 : index
    %247 = vector.load %arg11[%c0_152, %c0_153, %c0_154] : memref<2x1x32xf32, #tpu.memory_space<vmem>>, vector<1x1x32xf32>
    %248 = vector.shape_cast %247 : vector<1x1x32xf32> to vector<1x32xf32>
    %c0_155 = arith.constant 0 : index
    %c0_156 = arith.constant 0 : index
    %c0_157 = arith.constant 0 : index
    %249 = vector.load %arg12[%c0_155, %c0_156, %c0_157] : memref<2x1x32xf32, #tpu.memory_space<vmem>>, vector<1x1x32xf32>
    %250 = vector.shape_cast %249 : vector<1x1x32xf32> to vector<1x32xf32>
    %cst_158 = arith.constant dense<0.000000e+00> : vector<16xf32>
    %251 = vector.multi_reduction <add>, %246, %cst_158 [1] : vector<16x32xf32> to vector<16xf32>
    %252 = vector.shape_cast %251 : vector<16xf32> to vector<16x1xf32>
    %cst_159 = arith.constant 3.200000e+01 : f32
    %253 = vector.broadcast %cst_159 : f32 to vector<16x1xf32>
    %254 = arith.divf %252, %253 : vector<16x1xf32>
    %255 = vector.broadcast %254 : vector<16x1xf32> to vector<16x32xf32>
    %256 = arith.subf %246, %255 : vector<16x32xf32>
    %257 = arith.mulf %256, %256 : vector<16x32xf32>
    %cst_160 = arith.constant dense<0.000000e+00> : vector<16xf32>
    %258 = vector.multi_reduction <add>, %257, %cst_160 [1] : vector<16x32xf32> to vector<16xf32>
    %259 = vector.shape_cast %258 : vector<16xf32> to vector<16x1xf32>
    %cst_161 = arith.constant 3.200000e+01 : f32
    %260 = vector.broadcast %cst_161 : f32 to vector<16x1xf32>
    %261 = arith.divf %259, %260 : vector<16x1xf32>
    %cst_162 = arith.constant 9.99999974E-6 : f32
    %262 = vector.broadcast %cst_162 : f32 to vector<16x1xf32>
    %263 = arith.addf %261, %262 : vector<16x1xf32>
    %264 = math.rsqrt %263 : vector<16x1xf32>
    %265 = vector.broadcast %264 : vector<16x1xf32> to vector<16x32xf32>
    %266 = arith.mulf %256, %265 : vector<16x32xf32>
    %267 = vector.broadcast %248 : vector<1x32xf32> to vector<16x32xf32>
    %268 = arith.mulf %266, %267 : vector<16x32xf32>
    %269 = vector.broadcast %250 : vector<1x32xf32> to vector<16x32xf32>
    %270 = arith.addf %268, %269 : vector<16x32xf32>
    %c0_163 = arith.constant 0 : index
    %c0_164 = arith.constant 0 : index
    %c0_165 = arith.constant 0 : index
    %271 = vector.load %arg13[%c0_163, %c0_164, %c0_165] : memref<2x32x128xf32, #tpu.memory_space<vmem>>, vector<1x32x128xf32>
    %272 = vector.shape_cast %271 : vector<1x32x128xf32> to vector<32x128xf32>
    %cst_166 = arith.constant dense<0.000000e+00> : vector<16x128xf32>
    %273 = tpu.matmul %270, %272, %cst_166 {dimension_numbers = #tpu.dot_dimension_numbers<[1], [0], [0], [1], [0, 0, 1, 1], [], []>} : vector<16x32xf32>, vector<32x128xf32>, vector<16x128xf32> -> vector<16x128xf32>
    %c0_167 = arith.constant 0 : index
    %c0_168 = arith.constant 0 : index
    %c0_169 = arith.constant 0 : index
    %274 = vector.load %arg14[%c0_167, %c0_168, %c0_169] : memref<2x1x128xf32, #tpu.memory_space<vmem>>, vector<1x1x128xf32>
    %275 = vector.shape_cast %274 : vector<1x1x128xf32> to vector<1x128xf32>
    %276 = vector.broadcast %275 : vector<1x128xf32> to vector<16x128xf32>
    %277 = arith.addf %273, %276 : vector<16x128xf32>
    %cst_170 = arith.constant 1.702000e+00 : f32
    %278 = vector.broadcast %cst_170 : f32 to vector<16x128xf32>
    %279 = arith.mulf %278, %277 : vector<16x128xf32>
    %280 = arith.negf %279 : vector<16x128xf32>
    %281 = math.exp %280 : vector<16x128xf32>
    %cst_171 = arith.constant 1.000000e+00 : f32
    %282 = vector.broadcast %cst_171 : f32 to vector<16x128xf32>
    %283 = arith.addf %282, %281 : vector<16x128xf32>
    %284 = arith.divf %282, %283 : vector<16x128xf32>
    %285 = arith.mulf %277, %284 : vector<16x128xf32>
    %c0_172 = arith.constant 0 : index
    %c0_173 = arith.constant 0 : index
    %286 = vector.load %arg23[%c0_172, %c0_173] : memref<16x32xf32, #tpu.memory_space<vmem>>, vector<16x32xf32>
    %c0_174 = arith.constant 0 : index
    %c0_175 = arith.constant 0 : index
    %c0_176 = arith.constant 0 : index
    %287 = vector.load %arg15[%c0_174, %c0_175, %c0_176] : memref<2x128x32xf32, #tpu.memory_space<vmem>>, vector<1x128x32xf32>
    %288 = vector.shape_cast %287 : vector<1x128x32xf32> to vector<128x32xf32>
    %cst_177 = arith.constant dense<0.000000e+00> : vector<16x32xf32>
    %289 = tpu.matmul %285, %288, %cst_177 {dimension_numbers = #tpu.dot_dimension_numbers<[1], [0], [0], [1], [0, 0, 1, 1], [], []>} : vector<16x128xf32>, vector<128x32xf32>, vector<16x32xf32> -> vector<16x32xf32>
    %290 = arith.addf %286, %289 : vector<16x32xf32>
    %c0_178 = arith.constant 0 : index
    %c0_179 = arith.constant 0 : index
    %c0_180 = arith.constant 0 : index
    %291 = vector.load %arg16[%c0_178, %c0_179, %c0_180] : memref<2x1x32xf32, #tpu.memory_space<vmem>>, vector<1x1x32xf32>
    %292 = vector.shape_cast %291 : vector<1x1x32xf32> to vector<1x32xf32>
    %293 = vector.broadcast %292 : vector<1x32xf32> to vector<16x32xf32>
    %294 = arith.addf %290, %293 : vector<16x32xf32>
    %c0_181 = arith.constant 0 : index
    %c0_182 = arith.constant 0 : index
    %295 = vector.load %arg23[%c0_181, %c0_182] : memref<16x32xf32, #tpu.memory_space<vmem>>, vector<16x32xf32>
    tpu.vector_store %arg23[%c0_181, %c0_182], %294 {strides = array<i32>} : memref<16x32xf32, #tpu.memory_space<vmem>>, vector<16x32xf32>,
    %c0_183 = arith.constant 0 : index
    %c0_184 = arith.constant 0 : index
    %296 = vector.load %arg23[%c0_183, %c0_184] : memref<16x32xf32, #tpu.memory_space<vmem>>, vector<16x32xf32>
    %c1 = arith.constant 1 : index
    %c0_185 = arith.constant 0 : index
    %c0_186 = arith.constant 0 : index
    %297 = vector.load %arg5[%c1, %c0_185, %c0_186] : memref<2x1x32xf32, #tpu.memory_space<vmem>>, vector<1x1x32xf32>
    %298 = vector.shape_cast %297 : vector<1x1x32xf32> to vector<1x32xf32>
    %c1_187 = arith.constant 1 : index
    %c0_188 = arith.constant 0 : index
    %c0_189 = arith.constant 0 : index
    %299 = vector.load %arg6[%c1_187, %c0_188, %c0_189] : memref<2x1x32xf32, #tpu.memory_space<vmem>>, vector<1x1x32xf32>
    %300 = vector.shape_cast %299 : vector<1x1x32xf32> to vector<1x32xf32>
    %cst_190 = arith.constant dense<0.000000e+00> : vector<16xf32>
    %301 = vector.multi_reduction <add>, %296, %cst_190 [1] : vector<16x32xf32> to vector<16xf32>
    %302 = vector.shape_cast %301 : vector<16xf32> to vector<16x1xf32>
    %cst_191 = arith.constant 3.200000e+01 : f32
    %303 = vector.broadcast %cst_191 : f32 to vector<16x1xf32>
    %304 = arith.divf %302, %303 : vector<16x1xf32>
    %305 = vector.broadcast %304 : vector<16x1xf32> to vector<16x32xf32>
    %306 = arith.subf %296, %305 : vector<16x32xf32>
    %307 = arith.mulf %306, %306 : vector<16x32xf32>
    %cst_192 = arith.constant dense<0.000000e+00> : vector<16xf32>
    %308 = vector.multi_reduction <add>, %307, %cst_192 [1] : vector<16x32xf32> to vector<16xf32>
    %309 = vector.shape_cast %308 : vector<16xf32> to vector<16x1xf32>
    %cst_193 = arith.constant 3.200000e+01 : f32
    %310 = vector.broadcast %cst_193 : f32 to vector<16x1xf32>
    %311 = arith.divf %309, %310 : vector<16x1xf32>
    %cst_194 = arith.constant 9.99999974E-6 : f32
    %312 = vector.broadcast %cst_194 : f32 to vector<16x1xf32>
    %313 = arith.addf %311, %312 : vector<16x1xf32>
    %314 = math.rsqrt %313 : vector<16x1xf32>
    %315 = vector.broadcast %314 : vector<16x1xf32> to vector<16x32xf32>
    %316 = arith.mulf %306, %315 : vector<16x32xf32>
    %317 = vector.broadcast %298 : vector<1x32xf32> to vector<16x32xf32>
    %318 = arith.mulf %316, %317 : vector<16x32xf32>
    %319 = vector.broadcast %300 : vector<1x32xf32> to vector<16x32xf32>
    %320 = arith.addf %318, %319 : vector<16x32xf32>
    %c1_195 = arith.constant 1 : index
    %c0_196 = arith.constant 0 : index
    %c0_197 = arith.constant 0 : index
    %321 = vector.load %arg7[%c1_195, %c0_196, %c0_197] : memref<2x32x96xf32, #tpu.memory_space<vmem>>, vector<1x32x96xf32>
    %322 = vector.shape_cast %321 : vector<1x32x96xf32> to vector<32x96xf32>
    %cst_198 = arith.constant dense<0.000000e+00> : vector<16x96xf32>
    %323 = tpu.matmul %320, %322, %cst_198 {dimension_numbers = #tpu.dot_dimension_numbers<[1], [0], [0], [1], [0, 0, 1, 1], [], []>} : vector<16x32xf32>, vector<32x96xf32>, vector<16x96xf32> -> vector<16x96xf32>
    %c1_199 = arith.constant 1 : index
    %c0_200 = arith.constant 0 : index
    %c0_201 = arith.constant 0 : index
    %324 = vector.load %arg8[%c1_199, %c0_200, %c0_201] : memref<2x1x96xf32, #tpu.memory_space<vmem>>, vector<1x1x96xf32>
    %325 = vector.shape_cast %324 : vector<1x1x96xf32> to vector<1x96xf32>
    %326 = vector.broadcast %325 : vector<1x96xf32> to vector<16x96xf32>
    %327 = arith.addf %323, %326 : vector<16x96xf32>
    %c0_202 = arith.constant 0 : index
    %c0_203 = arith.constant 0 : index
    %328 = vector.load %arg24[%c0_202, %c0_203] : memref<16x96xf32, #tpu.memory_space<vmem>>, vector<16x96xf32>
    tpu.vector_store %arg24[%c0_202, %c0_203], %327 {strides = array<i32>} : memref<16x96xf32, #tpu.memory_space<vmem>>, vector<16x96xf32>,
    %c1_204 = arith.constant 1 : index
    %c0_205 = arith.constant 0 : index
    %c0_206 = arith.constant 0 : index
    %329 = vector.load %arg9[%c1_204, %c0_205, %c0_206] : memref<2x32x32xf32, #tpu.memory_space<vmem>>, vector<1x32x32xf32>
    %330 = vector.shape_cast %329 : vector<1x32x32xf32> to vector<32x32xf32>
    %cst_207 = arith.constant 0.000000e+00 : f32
    %331 = vector.broadcast %cst_207 : f32 to vector<5x32xf32>
    %c0_208 = arith.constant 0 : index
    %c0_209 = arith.constant 0 : index
    %332 = vector.load %arg24[%c0_208, %c0_209] : memref<16x96xf32, #tpu.memory_space<vmem>>, vector<5x8xf32>
    %c0_210 = arith.constant 0 : index
    %c32_211 = arith.constant 32 : index
    %333 = vector.load %arg24[%c0_210, %c32_211] : memref<16x96xf32, #tpu.memory_space<vmem>>, vector<5x8xf32>
    %c0_212 = arith.constant 0 : index
    %c64_213 = arith.constant 64 : index
    %334 = vector.load %arg24[%c0_212, %c64_213] : memref<16x96xf32, #tpu.memory_space<vmem>>, vector<5x8xf32>
    %cst_214 = arith.constant dense<0.000000e+00> : vector<5x5xf32>
    %335 = tpu.matmul %332, %333, %cst_214 {dimension_numbers = #tpu.dot_dimension_numbers<[1], [1], [0], [0], [0, 0, 1, 0], [], []>} : vector<5x8xf32>, vector<5x8xf32>, vector<5x5xf32> -> vector<5x5xf32>
    %cst_215 = arith.constant 0.353553385 : f32
    %336 = vector.broadcast %cst_215 : f32 to vector<5x5xf32>
    %337 = arith.mulf %335, %336 : vector<5x5xf32>
    %cst_216 = arith.constant dense<0xFF800000> : vector<5xf32>
    %338 = vector.multi_reduction <maximumf>, %337, %cst_216 [1] : vector<5x5xf32> to vector<5xf32>
    %339 = vector.shape_cast %338 : vector<5xf32> to vector<5x1xf32>
    %340 = vector.broadcast %339 : vector<5x1xf32> to vector<5x5xf32>
    %341 = arith.subf %337, %340 : vector<5x5xf32>
    %342 = math.exp %341 : vector<5x5xf32>
    %cst_217 = arith.constant dense<0.000000e+00> : vector<5xf32>
    %343 = vector.multi_reduction <add>, %342, %cst_217 [1] : vector<5x5xf32> to vector<5xf32>
    %344 = vector.shape_cast %343 : vector<5xf32> to vector<5x1xf32>
    %345 = tpu.reciprocal %344 {approx = true} : vector<5x1xf32> -> vector<5x1xf32>
    %346 = vector.broadcast %345 : vector<5x1xf32> to vector<5x5xf32>
    %347 = arith.mulf %342, %346 : vector<5x5xf32>
    %cst_218 = arith.constant dense<0.000000e+00> : vector<5x8xf32>
    %348 = tpu.matmul %347, %334, %cst_218 {dimension_numbers = #tpu.dot_dimension_numbers<[1], [0], [0], [1], [0, 0, 1, 1], [], []>} : vector<5x5xf32>, vector<5x8xf32>, vector<5x8xf32> -> vector<5x8xf32>
    %349 = vector.extract_strided_slice %330 {offsets = [0, 0], sizes = [8, 32], strides = [1, 1]} : vector<32x32xf32> to vector<8x32xf32>
    %cst_219 = arith.constant dense<0.000000e+00> : vector<5x32xf32>
    %350 = tpu.matmul %348, %349, %cst_219 {dimension_numbers = #tpu.dot_dimension_numbers<[1], [0], [0], [1], [0, 0, 1, 1], [], []>} : vector<5x8xf32>, vector<8x32xf32>, vector<5x32xf32> -> vector<5x32xf32>
    %351 = arith.addf %331, %350 : vector<5x32xf32>
    %c0_220 = arith.constant 0 : index
    %c8_221 = arith.constant 8 : index
    %352 = vector.load %arg24[%c0_220, %c8_221] : memref<16x96xf32, #tpu.memory_space<vmem>>, vector<5x8xf32>
    %c0_222 = arith.constant 0 : index
    %c40_223 = arith.constant 40 : index
    %353 = vector.load %arg24[%c0_222, %c40_223] : memref<16x96xf32, #tpu.memory_space<vmem>>, vector<5x8xf32>
    %c0_224 = arith.constant 0 : index
    %c72_225 = arith.constant 72 : index
    %354 = vector.load %arg24[%c0_224, %c72_225] : memref<16x96xf32, #tpu.memory_space<vmem>>, vector<5x8xf32>
    %cst_226 = arith.constant dense<0.000000e+00> : vector<5x5xf32>
    %355 = tpu.matmul %352, %353, %cst_226 {dimension_numbers = #tpu.dot_dimension_numbers<[1], [1], [0], [0], [0, 0, 1, 0], [], []>} : vector<5x8xf32>, vector<5x8xf32>, vector<5x5xf32> -> vector<5x5xf32>
    %cst_227 = arith.constant 0.353553385 : f32
    %356 = vector.broadcast %cst_227 : f32 to vector<5x5xf32>
    %357 = arith.mulf %355, %356 : vector<5x5xf32>
    %cst_228 = arith.constant dense<0xFF800000> : vector<5xf32>
    %358 = vector.multi_reduction <maximumf>, %357, %cst_228 [1] : vector<5x5xf32> to vector<5xf32>
    %359 = vector.shape_cast %358 : vector<5xf32> to vector<5x1xf32>
    %360 = vector.broadcast %359 : vector<5x1xf32> to vector<5x5xf32>
    %361 = arith.subf %357, %360 : vector<5x5xf32>
    %362 = math.exp %361 : vector<5x5xf32>
    %cst_229 = arith.constant dense<0.000000e+00> : vector<5xf32>
    %363 = vector.multi_reduction <add>, %362, %cst_229 [1] : vector<5x5xf32> to vector<5xf32>
    %364 = vector.shape_cast %363 : vector<5xf32> to vector<5x1xf32>
    %365 = tpu.reciprocal %364 {approx = true} : vector<5x1xf32> -> vector<5x1xf32>
    %366 = vector.broadcast %365 : vector<5x1xf32> to vector<5x5xf32>
    %367 = arith.mulf %362, %366 : vector<5x5xf32>
    %cst_230 = arith.constant dense<0.000000e+00> : vector<5x8xf32>
    %368 = tpu.matmul %367, %354, %cst_230 {dimension_numbers = #tpu.dot_dimension_numbers<[1], [0], [0], [1], [0, 0, 1, 1], [], []>} : vector<5x5xf32>, vector<5x8xf32>, vector<5x8xf32> -> vector<5x8xf32>
    %369 = vector.extract_strided_slice %330 {offsets = [8, 0], sizes = [8, 32], strides = [1, 1]} : vector<32x32xf32> to vector<8x32xf32>
    %cst_231 = arith.constant dense<0.000000e+00> : vector<5x32xf32>
    %370 = tpu.matmul %368, %369, %cst_231 {dimension_numbers = #tpu.dot_dimension_numbers<[1], [0], [0], [1], [0, 0, 1, 1], [], []>} : vector<5x8xf32>, vector<8x32xf32>, vector<5x32xf32> -> vector<5x32xf32>
    %371 = arith.addf %351, %370 : vector<5x32xf32>
    %c0_232 = arith.constant 0 : index
    %c16_233 = arith.constant 16 : index
    %372 = vector.load %arg24[%c0_232, %c16_233] : memref<16x96xf32, #tpu.memory_space<vmem>>, vector<5x8xf32>
    %c0_234 = arith.constant 0 : index
    %c48_235 = arith.constant 48 : index
    %373 = vector.load %arg24[%c0_234, %c48_235] : memref<16x96xf32, #tpu.memory_space<vmem>>, vector<5x8xf32>
    %c0_236 = arith.constant 0 : index
    %c80_237 = arith.constant 80 : index
    %374 = vector.load %arg24[%c0_236, %c80_237] : memref<16x96xf32, #tpu.memory_space<vmem>>, vector<5x8xf32>
    %cst_238 = arith.constant dense<0.000000e+00> : vector<5x5xf32>
    %375 = tpu.matmul %372, %373, %cst_238 {dimension_numbers = #tpu.dot_dimension_numbers<[1], [1], [0], [0], [0, 0, 1, 0], [], []>} : vector<5x8xf32>, vector<5x8xf32>, vector<5x5xf32> -> vector<5x5xf32>
    %cst_239 = arith.constant 0.353553385 : f32
    %376 = vector.broadcast %cst_239 : f32 to vector<5x5xf32>
    %377 = arith.mulf %375, %376 : vector<5x5xf32>
    %cst_240 = arith.constant dense<0xFF800000> : vector<5xf32>
    %378 = vector.multi_reduction <maximumf>, %377, %cst_240 [1] : vector<5x5xf32> to vector<5xf32>
    %379 = vector.shape_cast %378 : vector<5xf32> to vector<5x1xf32>
    %380 = vector.broadcast %379 : vector<5x1xf32> to vector<5x5xf32>
    %381 = arith.subf %377, %380 : vector<5x5xf32>
    %382 = math.exp %381 : vector<5x5xf32>
    %cst_241 = arith.constant dense<0.000000e+00> : vector<5xf32>
    %383 = vector.multi_reduction <add>, %382, %cst_241 [1] : vector<5x5xf32> to vector<5xf32>
    %384 = vector.shape_cast %383 : vector<5xf32> to vector<5x1xf32>
    %385 = tpu.reciprocal %384 {approx = true} : vector<5x1xf32> -> vector<5x1xf32>
    %386 = vector.broadcast %385 : vector<5x1xf32> to vector<5x5xf32>
    %387 = arith.mulf %382, %386 : vector<5x5xf32>
    %cst_242 = arith.constant dense<0.000000e+00> : vector<5x8xf32>
    %388 = tpu.matmul %387, %374, %cst_242 {dimension_numbers = #tpu.dot_dimension_numbers<[1], [0], [0], [1], [0, 0, 1, 1], [], []>} : vector<5x5xf32>, vector<5x8xf32>, vector<5x8xf32> -> vector<5x8xf32>
    %389 = vector.extract_strided_slice %330 {offsets = [16, 0], sizes = [8, 32], strides = [1, 1]} : vector<32x32xf32> to vector<8x32xf32>
    %cst_243 = arith.constant dense<0.000000e+00> : vector<5x32xf32>
    %390 = tpu.matmul %388, %389, %cst_243 {dimension_numbers = #tpu.dot_dimension_numbers<[1], [0], [0], [1], [0, 0, 1, 1], [], []>} : vector<5x8xf32>, vector<8x32xf32>, vector<5x32xf32> -> vector<5x32xf32>
    %391 = arith.addf %371, %390 : vector<5x32xf32>
    %c0_244 = arith.constant 0 : index
    %c24_245 = arith.constant 24 : index
    %392 = vector.load %arg24[%c0_244, %c24_245] : memref<16x96xf32, #tpu.memory_space<vmem>>, vector<5x8xf32>
    %c0_246 = arith.constant 0 : index
    %c56_247 = arith.constant 56 : index
    %393 = vector.load %arg24[%c0_246, %c56_247] : memref<16x96xf32, #tpu.memory_space<vmem>>, vector<5x8xf32>
    %c0_248 = arith.constant 0 : index
    %c88_249 = arith.constant 88 : index
    %394 = vector.load %arg24[%c0_248, %c88_249] : memref<16x96xf32, #tpu.memory_space<vmem>>, vector<5x8xf32>
    %cst_250 = arith.constant dense<0.000000e+00> : vector<5x5xf32>
    %395 = tpu.matmul %392, %393, %cst_250 {dimension_numbers = #tpu.dot_dimension_numbers<[1], [1], [0], [0], [0, 0, 1, 0], [], []>} : vector<5x8xf32>, vector<5x8xf32>, vector<5x5xf32> -> vector<5x5xf32>
    %cst_251 = arith.constant 0.353553385 : f32
    %396 = vector.broadcast %cst_251 : f32 to vector<5x5xf32>
    %397 = arith.mulf %395, %396 : vector<5x5xf32>
    %cst_252 = arith.constant dense<0xFF800000> : vector<5xf32>
    %398 = vector.multi_reduction <maximumf>, %397, %cst_252 [1] : vector<5x5xf32> to vector<5xf32>
    %399 = vector.shape_cast %398 : vector<5xf32> to vector<5x1xf32>
    %400 = vector.broadcast %399 : vector<5x1xf32> to vector<5x5xf32>
    %401 = arith.subf %397, %400 : vector<5x5xf32>
    %402 = math.exp %401 : vector<5x5xf32>
    %cst_253 = arith.constant dense<0.000000e+00> : vector<5xf32>
    %403 = vector.multi_reduction <add>, %402, %cst_253 [1] : vector<5x5xf32> to vector<5xf32>
    %404 = vector.shape_cast %403 : vector<5xf32> to vector<5x1xf32>
    %405 = tpu.reciprocal %404 {approx = true} : vector<5x1xf32> -> vector<5x1xf32>
    %406 = vector.broadcast %405 : vector<5x1xf32> to vector<5x5xf32>
    %407 = arith.mulf %402, %406 : vector<5x5xf32>
    %cst_254 = arith.constant dense<0.000000e+00> : vector<5x8xf32>
    %408 = tpu.matmul %407, %394, %cst_254 {dimension_numbers = #tpu.dot_dimension_numbers<[1], [0], [0], [1], [0, 0, 1, 1], [], []>} : vector<5x5xf32>, vector<5x8xf32>, vector<5x8xf32> -> vector<5x8xf32>
    %409 = vector.extract_strided_slice %330 {offsets = [24, 0], sizes = [8, 32], strides = [1, 1]} : vector<32x32xf32> to vector<8x32xf32>
    %cst_255 = arith.constant dense<0.000000e+00> : vector<5x32xf32>
    %410 = tpu.matmul %408, %409, %cst_255 {dimension_numbers = #tpu.dot_dimension_numbers<[1], [0], [0], [1], [0, 0, 1, 1], [], []>} : vector<5x8xf32>, vector<8x32xf32>, vector<5x32xf32> -> vector<5x32xf32>
    %411 = arith.addf %391, %410 : vector<5x32xf32>
    %c0_256 = arith.constant 0 : index
    %c0_257 = arith.constant 0 : index
    %412 = vector.load %arg23[%c0_256, %c0_257] : memref<16x32xf32, #tpu.memory_space<vmem>>, vector<5x32xf32>
    %413 = arith.addf %412, %411 : vector<5x32xf32>
    %c1_258 = arith.constant 1 : index
    %c0_259 = arith.constant 0 : index
    %c0_260 = arith.constant 0 : index
    %414 = vector.load %arg10[%c1_258, %c0_259, %c0_260] : memref<2x1x32xf32, #tpu.memory_space<vmem>>, vector<1x1x32xf32>
    %415 = vector.shape_cast %414 : vector<1x1x32xf32> to vector<1x32xf32>
    %416 = vector.broadcast %415 : vector<1x32xf32> to vector<5x32xf32>
    %417 = arith.addf %413, %416 : vector<5x32xf32>
    %c0_261 = arith.constant 0 : index
    %c0_262 = arith.constant 0 : index
    %418 = vector.load %arg23[%c0_261, %c0_262] : memref<16x32xf32, #tpu.memory_space<vmem>>, vector<5x32xf32>
    tpu.vector_store %arg23[%c0_261, %c0_262], %417 {strides = array<i32>} : memref<16x32xf32, #tpu.memory_space<vmem>>, vector<5x32xf32>,
    %cst_263 = arith.constant 0.000000e+00 : f32
    %419 = vector.broadcast %cst_263 : f32 to vector<5x32xf32>
    %c8_264 = arith.constant 8 : index
    %c0_265 = arith.constant 0 : index
    %420 = vector.load %arg24[%c8_264, %c0_265] : memref<16x96xf32, #tpu.memory_space<vmem>>, vector<5x8xf32>
    %c8_266 = arith.constant 8 : index
    %c32_267 = arith.constant 32 : index
    %421 = vector.load %arg24[%c8_266, %c32_267] : memref<16x96xf32, #tpu.memory_space<vmem>>, vector<5x8xf32>
    %c8_268 = arith.constant 8 : index
    %c64_269 = arith.constant 64 : index
    %422 = vector.load %arg24[%c8_268, %c64_269] : memref<16x96xf32, #tpu.memory_space<vmem>>, vector<5x8xf32>
    %cst_270 = arith.constant dense<0.000000e+00> : vector<5x5xf32>
    %423 = tpu.matmul %420, %421, %cst_270 {dimension_numbers = #tpu.dot_dimension_numbers<[1], [1], [0], [0], [0, 0, 1, 0], [], []>} : vector<5x8xf32>, vector<5x8xf32>, vector<5x5xf32> -> vector<5x5xf32>
    %cst_271 = arith.constant 0.353553385 : f32
    %424 = vector.broadcast %cst_271 : f32 to vector<5x5xf32>
    %425 = arith.mulf %423, %424 : vector<5x5xf32>
    %cst_272 = arith.constant dense<0xFF800000> : vector<5xf32>
    %426 = vector.multi_reduction <maximumf>, %425, %cst_272 [1] : vector<5x5xf32> to vector<5xf32>
    %427 = vector.shape_cast %426 : vector<5xf32> to vector<5x1xf32>
    %428 = vector.broadcast %427 : vector<5x1xf32> to vector<5x5xf32>
    %429 = arith.subf %425, %428 : vector<5x5xf32>
    %430 = math.exp %429 : vector<5x5xf32>
    %cst_273 = arith.constant dense<0.000000e+00> : vector<5xf32>
    %431 = vector.multi_reduction <add>, %430, %cst_273 [1] : vector<5x5xf32> to vector<5xf32>
    %432 = vector.shape_cast %431 : vector<5xf32> to vector<5x1xf32>
    %433 = tpu.reciprocal %432 {approx = true} : vector<5x1xf32> -> vector<5x1xf32>
    %434 = vector.broadcast %433 : vector<5x1xf32> to vector<5x5xf32>
    %435 = arith.mulf %430, %434 : vector<5x5xf32>
    %cst_274 = arith.constant dense<0.000000e+00> : vector<5x8xf32>
    %436 = tpu.matmul %435, %422, %cst_274 {dimension_numbers = #tpu.dot_dimension_numbers<[1], [0], [0], [1], [0, 0, 1, 1], [], []>} : vector<5x5xf32>, vector<5x8xf32>, vector<5x8xf32> -> vector<5x8xf32>
    %437 = vector.extract_strided_slice %330 {offsets = [0, 0], sizes = [8, 32], strides = [1, 1]} : vector<32x32xf32> to vector<8x32xf32>
    %cst_275 = arith.constant dense<0.000000e+00> : vector<5x32xf32>
    %438 = tpu.matmul %436, %437, %cst_275 {dimension_numbers = #tpu.dot_dimension_numbers<[1], [0], [0], [1], [0, 0, 1, 1], [], []>} : vector<5x8xf32>, vector<8x32xf32>, vector<5x32xf32> -> vector<5x32xf32>
    %439 = arith.addf %419, %438 : vector<5x32xf32>
    %c8_276 = arith.constant 8 : index
    %c8_277 = arith.constant 8 : index
    %440 = vector.load %arg24[%c8_276, %c8_277] : memref<16x96xf32, #tpu.memory_space<vmem>>, vector<5x8xf32>
    %c8_278 = arith.constant 8 : index
    %c40_279 = arith.constant 40 : index
    %441 = vector.load %arg24[%c8_278, %c40_279] : memref<16x96xf32, #tpu.memory_space<vmem>>, vector<5x8xf32>
    %c8_280 = arith.constant 8 : index
    %c72_281 = arith.constant 72 : index
    %442 = vector.load %arg24[%c8_280, %c72_281] : memref<16x96xf32, #tpu.memory_space<vmem>>, vector<5x8xf32>
    %cst_282 = arith.constant dense<0.000000e+00> : vector<5x5xf32>
    %443 = tpu.matmul %440, %441, %cst_282 {dimension_numbers = #tpu.dot_dimension_numbers<[1], [1], [0], [0], [0, 0, 1, 0], [], []>} : vector<5x8xf32>, vector<5x8xf32>, vector<5x5xf32> -> vector<5x5xf32>
    %cst_283 = arith.constant 0.353553385 : f32
    %444 = vector.broadcast %cst_283 : f32 to vector<5x5xf32>
    %445 = arith.mulf %443, %444 : vector<5x5xf32>
    %cst_284 = arith.constant dense<0xFF800000> : vector<5xf32>
    %446 = vector.multi_reduction <maximumf>, %445, %cst_284 [1] : vector<5x5xf32> to vector<5xf32>
    %447 = vector.shape_cast %446 : vector<5xf32> to vector<5x1xf32>
    %448 = vector.broadcast %447 : vector<5x1xf32> to vector<5x5xf32>
    %449 = arith.subf %445, %448 : vector<5x5xf32>
    %450 = math.exp %449 : vector<5x5xf32>
    %cst_285 = arith.constant dense<0.000000e+00> : vector<5xf32>
    %451 = vector.multi_reduction <add>, %450, %cst_285 [1] : vector<5x5xf32> to vector<5xf32>
    %452 = vector.shape_cast %451 : vector<5xf32> to vector<5x1xf32>
    %453 = tpu.reciprocal %452 {approx = true} : vector<5x1xf32> -> vector<5x1xf32>
    %454 = vector.broadcast %453 : vector<5x1xf32> to vector<5x5xf32>
    %455 = arith.mulf %450, %454 : vector<5x5xf32>
    %cst_286 = arith.constant dense<0.000000e+00> : vector<5x8xf32>
    %456 = tpu.matmul %455, %442, %cst_286 {dimension_numbers = #tpu.dot_dimension_numbers<[1], [0], [0], [1], [0, 0, 1, 1], [], []>} : vector<5x5xf32>, vector<5x8xf32>, vector<5x8xf32> -> vector<5x8xf32>
    %457 = vector.extract_strided_slice %330 {offsets = [8, 0], sizes = [8, 32], strides = [1, 1]} : vector<32x32xf32> to vector<8x32xf32>
    %cst_287 = arith.constant dense<0.000000e+00> : vector<5x32xf32>
    %458 = tpu.matmul %456, %457, %cst_287 {dimension_numbers = #tpu.dot_dimension_numbers<[1], [0], [0], [1], [0, 0, 1, 1], [], []>} : vector<5x8xf32>, vector<8x32xf32>, vector<5x32xf32> -> vector<5x32xf32>
    %459 = arith.addf %439, %458 : vector<5x32xf32>
    %c8_288 = arith.constant 8 : index
    %c16_289 = arith.constant 16 : index
    %460 = vector.load %arg24[%c8_288, %c16_289] : memref<16x96xf32, #tpu.memory_space<vmem>>, vector<5x8xf32>
    %c8_290 = arith.constant 8 : index
    %c48_291 = arith.constant 48 : index
    %461 = vector.load %arg24[%c8_290, %c48_291] : memref<16x96xf32, #tpu.memory_space<vmem>>, vector<5x8xf32>
    %c8_292 = arith.constant 8 : index
    %c80_293 = arith.constant 80 : index
    %462 = vector.load %arg24[%c8_292, %c80_293] : memref<16x96xf32, #tpu.memory_space<vmem>>, vector<5x8xf32>
    %cst_294 = arith.constant dense<0.000000e+00> : vector<5x5xf32>
    %463 = tpu.matmul %460, %461, %cst_294 {dimension_numbers = #tpu.dot_dimension_numbers<[1], [1], [0], [0], [0, 0, 1, 0], [], []>} : vector<5x8xf32>, vector<5x8xf32>, vector<5x5xf32> -> vector<5x5xf32>
    %cst_295 = arith.constant 0.353553385 : f32
    %464 = vector.broadcast %cst_295 : f32 to vector<5x5xf32>
    %465 = arith.mulf %463, %464 : vector<5x5xf32>
    %cst_296 = arith.constant dense<0xFF800000> : vector<5xf32>
    %466 = vector.multi_reduction <maximumf>, %465, %cst_296 [1] : vector<5x5xf32> to vector<5xf32>
    %467 = vector.shape_cast %466 : vector<5xf32> to vector<5x1xf32>
    %468 = vector.broadcast %467 : vector<5x1xf32> to vector<5x5xf32>
    %469 = arith.subf %465, %468 : vector<5x5xf32>
    %470 = math.exp %469 : vector<5x5xf32>
    %cst_297 = arith.constant dense<0.000000e+00> : vector<5xf32>
    %471 = vector.multi_reduction <add>, %470, %cst_297 [1] : vector<5x5xf32> to vector<5xf32>
    %472 = vector.shape_cast %471 : vector<5xf32> to vector<5x1xf32>
    %473 = tpu.reciprocal %472 {approx = true} : vector<5x1xf32> -> vector<5x1xf32>
    %474 = vector.broadcast %473 : vector<5x1xf32> to vector<5x5xf32>
    %475 = arith.mulf %470, %474 : vector<5x5xf32>
    %cst_298 = arith.constant dense<0.000000e+00> : vector<5x8xf32>
    %476 = tpu.matmul %475, %462, %cst_298 {dimension_numbers = #tpu.dot_dimension_numbers<[1], [0], [0], [1], [0, 0, 1, 1], [], []>} : vector<5x5xf32>, vector<5x8xf32>, vector<5x8xf32> -> vector<5x8xf32>
    %477 = vector.extract_strided_slice %330 {offsets = [16, 0], sizes = [8, 32], strides = [1, 1]} : vector<32x32xf32> to vector<8x32xf32>
    %cst_299 = arith.constant dense<0.000000e+00> : vector<5x32xf32>
    %478 = tpu.matmul %476, %477, %cst_299 {dimension_numbers = #tpu.dot_dimension_numbers<[1], [0], [0], [1], [0, 0, 1, 1], [], []>} : vector<5x8xf32>, vector<8x32xf32>, vector<5x32xf32> -> vector<5x32xf32>
    %479 = arith.addf %459, %478 : vector<5x32xf32>
    %c8_300 = arith.constant 8 : index
    %c24_301 = arith.constant 24 : index
    %480 = vector.load %arg24[%c8_300, %c24_301] : memref<16x96xf32, #tpu.memory_space<vmem>>, vector<5x8xf32>
    %c8_302 = arith.constant 8 : index
    %c56_303 = arith.constant 56 : index
    %481 = vector.load %arg24[%c8_302, %c56_303] : memref<16x96xf32, #tpu.memory_space<vmem>>, vector<5x8xf32>
    %c8_304 = arith.constant 8 : index
    %c88_305 = arith.constant 88 : index
    %482 = vector.load %arg24[%c8_304, %c88_305] : memref<16x96xf32, #tpu.memory_space<vmem>>, vector<5x8xf32>
    %cst_306 = arith.constant dense<0.000000e+00> : vector<5x5xf32>
    %483 = tpu.matmul %480, %481, %cst_306 {dimension_numbers = #tpu.dot_dimension_numbers<[1], [1], [0], [0], [0, 0, 1, 0], [], []>} : vector<5x8xf32>, vector<5x8xf32>, vector<5x5xf32> -> vector<5x5xf32>
    %cst_307 = arith.constant 0.353553385 : f32
    %484 = vector.broadcast %cst_307 : f32 to vector<5x5xf32>
    %485 = arith.mulf %483, %484 : vector<5x5xf32>
    %cst_308 = arith.constant dense<0xFF800000> : vector<5xf32>
    %486 = vector.multi_reduction <maximumf>, %485, %cst_308 [1] : vector<5x5xf32> to vector<5xf32>
    %487 = vector.shape_cast %486 : vector<5xf32> to vector<5x1xf32>
    %488 = vector.broadcast %487 : vector<5x1xf32> to vector<5x5xf32>
    %489 = arith.subf %485, %488 : vector<5x5xf32>
    %490 = math.exp %489 : vector<5x5xf32>
    %cst_309 = arith.constant dense<0.000000e+00> : vector<5xf32>
    %491 = vector.multi_reduction <add>, %490, %cst_309 [1] : vector<5x5xf32> to vector<5xf32>
    %492 = vector.shape_cast %491 : vector<5xf32> to vector<5x1xf32>
    %493 = tpu.reciprocal %492 {approx = true} : vector<5x1xf32> -> vector<5x1xf32>
    %494 = vector.broadcast %493 : vector<5x1xf32> to vector<5x5xf32>
    %495 = arith.mulf %490, %494 : vector<5x5xf32>
    %cst_310 = arith.constant dense<0.000000e+00> : vector<5x8xf32>
    %496 = tpu.matmul %495, %482, %cst_310 {dimension_numbers = #tpu.dot_dimension_numbers<[1], [0], [0], [1], [0, 0, 1, 1], [], []>} : vector<5x5xf32>, vector<5x8xf32>, vector<5x8xf32> -> vector<5x8xf32>
    %497 = vector.extract_strided_slice %330 {offsets = [24, 0], sizes = [8, 32], strides = [1, 1]} : vector<32x32xf32> to vector<8x32xf32>
    %cst_311 = arith.constant dense<0.000000e+00> : vector<5x32xf32>
    %498 = tpu.matmul %496, %497, %cst_311 {dimension_numbers = #tpu.dot_dimension_numbers<[1], [0], [0], [1], [0, 0, 1, 1], [], []>} : vector<5x8xf32>, vector<8x32xf32>, vector<5x32xf32> -> vector<5x32xf32>
    %499 = arith.addf %479, %498 : vector<5x32xf32>
    %c8_312 = arith.constant 8 : index
    %c0_313 = arith.constant 0 : index
    %500 = vector.load %arg23[%c8_312, %c0_313] : memref<16x32xf32, #tpu.memory_space<vmem>>, vector<5x32xf32>
    %501 = arith.addf %500, %499 : vector<5x32xf32>
    %c1_314 = arith.constant 1 : index
    %c0_315 = arith.constant 0 : index
    %c0_316 = arith.constant 0 : index
    %502 = vector.load %arg10[%c1_314, %c0_315, %c0_316] : memref<2x1x32xf32, #tpu.memory_space<vmem>>, vector<1x1x32xf32>
    %503 = vector.shape_cast %502 : vector<1x1x32xf32> to vector<1x32xf32>
    %504 = vector.broadcast %503 : vector<1x32xf32> to vector<5x32xf32>
    %505 = arith.addf %501, %504 : vector<5x32xf32>
    %c8_317 = arith.constant 8 : index
    %c0_318 = arith.constant 0 : index
    %506 = vector.load %arg23[%c8_317, %c0_318] : memref<16x32xf32, #tpu.memory_space<vmem>>, vector<5x32xf32>
    tpu.vector_store %arg23[%c8_317, %c0_318], %505 {strides = array<i32>} : memref<16x32xf32, #tpu.memory_space<vmem>>, vector<5x32xf32>,
    %c0_319 = arith.constant 0 : index
    %c0_320 = arith.constant 0 : index
    %507 = vector.load %arg23[%c0_319, %c0_320] : memref<16x32xf32, #tpu.memory_space<vmem>>, vector<16x32xf32>
    %c1_321 = arith.constant 1 : index
    %c0_322 = arith.constant 0 : index
    %c0_323 = arith.constant 0 : index
    %508 = vector.load %arg11[%c1_321, %c0_322, %c0_323] : memref<2x1x32xf32, #tpu.memory_space<vmem>>, vector<1x1x32xf32>
    %509 = vector.shape_cast %508 : vector<1x1x32xf32> to vector<1x32xf32>
    %c1_324 = arith.constant 1 : index
    %c0_325 = arith.constant 0 : index
    %c0_326 = arith.constant 0 : index
    %510 = vector.load %arg12[%c1_324, %c0_325, %c0_326] : memref<2x1x32xf32, #tpu.memory_space<vmem>>, vector<1x1x32xf32>
    %511 = vector.shape_cast %510 : vector<1x1x32xf32> to vector<1x32xf32>
    %cst_327 = arith.constant dense<0.000000e+00> : vector<16xf32>
    %512 = vector.multi_reduction <add>, %507, %cst_327 [1] : vector<16x32xf32> to vector<16xf32>
    %513 = vector.shape_cast %512 : vector<16xf32> to vector<16x1xf32>
    %cst_328 = arith.constant 3.200000e+01 : f32
    %514 = vector.broadcast %cst_328 : f32 to vector<16x1xf32>
    %515 = arith.divf %513, %514 : vector<16x1xf32>
    %516 = vector.broadcast %515 : vector<16x1xf32> to vector<16x32xf32>
    %517 = arith.subf %507, %516 : vector<16x32xf32>
    %518 = arith.mulf %517, %517 : vector<16x32xf32>
    %cst_329 = arith.constant dense<0.000000e+00> : vector<16xf32>
    %519 = vector.multi_reduction <add>, %518, %cst_329 [1] : vector<16x32xf32> to vector<16xf32>
    %520 = vector.shape_cast %519 : vector<16xf32> to vector<16x1xf32>
    %cst_330 = arith.constant 3.200000e+01 : f32
    %521 = vector.broadcast %cst_330 : f32 to vector<16x1xf32>
    %522 = arith.divf %520, %521 : vector<16x1xf32>
    %cst_331 = arith.constant 9.99999974E-6 : f32
    %523 = vector.broadcast %cst_331 : f32 to vector<16x1xf32>
    %524 = arith.addf %522, %523 : vector<16x1xf32>
    %525 = math.rsqrt %524 : vector<16x1xf32>
    %526 = vector.broadcast %525 : vector<16x1xf32> to vector<16x32xf32>
    %527 = arith.mulf %517, %526 : vector<16x32xf32>
    %528 = vector.broadcast %509 : vector<1x32xf32> to vector<16x32xf32>
    %529 = arith.mulf %527, %528 : vector<16x32xf32>
    %530 = vector.broadcast %511 : vector<1x32xf32> to vector<16x32xf32>
    %531 = arith.addf %529, %530 : vector<16x32xf32>
    %c1_332 = arith.constant 1 : index
    %c0_333 = arith.constant 0 : index
    %c0_334 = arith.constant 0 : index
    %532 = vector.load %arg13[%c1_332, %c0_333, %c0_334] : memref<2x32x128xf32, #tpu.memory_space<vmem>>, vector<1x32x128xf32>
    %533 = vector.shape_cast %532 : vector<1x32x128xf32> to vector<32x128xf32>
    %cst_335 = arith.constant dense<0.000000e+00> : vector<16x128xf32>
    %534 = tpu.matmul %531, %533, %cst_335 {dimension_numbers = #tpu.dot_dimension_numbers<[1], [0], [0], [1], [0, 0, 1, 1], [], []>} : vector<16x32xf32>, vector<32x128xf32>, vector<16x128xf32> -> vector<16x128xf32>
    %c1_336 = arith.constant 1 : index
    %c0_337 = arith.constant 0 : index
    %c0_338 = arith.constant 0 : index
    %535 = vector.load %arg14[%c1_336, %c0_337, %c0_338] : memref<2x1x128xf32, #tpu.memory_space<vmem>>, vector<1x1x128xf32>
    %536 = vector.shape_cast %535 : vector<1x1x128xf32> to vector<1x128xf32>
    %537 = vector.broadcast %536 : vector<1x128xf32> to vector<16x128xf32>
    %538 = arith.addf %534, %537 : vector<16x128xf32>
    %cst_339 = arith.constant 1.702000e+00 : f32
    %539 = vector.broadcast %cst_339 : f32 to vector<16x128xf32>
    %540 = arith.mulf %539, %538 : vector<16x128xf32>
    %541 = arith.negf %540 : vector<16x128xf32>
    %542 = math.exp %541 : vector<16x128xf32>
    %cst_340 = arith.constant 1.000000e+00 : f32
    %543 = vector.broadcast %cst_340 : f32 to vector<16x128xf32>
    %544 = arith.addf %543, %542 : vector<16x128xf32>
    %545 = arith.divf %543, %544 : vector<16x128xf32>
    %546 = arith.mulf %538, %545 : vector<16x128xf32>
    %c0_341 = arith.constant 0 : index
    %c0_342 = arith.constant 0 : index
    %547 = vector.load %arg23[%c0_341, %c0_342] : memref<16x32xf32, #tpu.memory_space<vmem>>, vector<16x32xf32>
    %c1_343 = arith.constant 1 : index
    %c0_344 = arith.constant 0 : index
    %c0_345 = arith.constant 0 : index
    %548 = vector.load %arg15[%c1_343, %c0_344, %c0_345] : memref<2x128x32xf32, #tpu.memory_space<vmem>>, vector<1x128x32xf32>
    %549 = vector.shape_cast %548 : vector<1x128x32xf32> to vector<128x32xf32>
    %cst_346 = arith.constant dense<0.000000e+00> : vector<16x32xf32>
    %550 = tpu.matmul %546, %549, %cst_346 {dimension_numbers = #tpu.dot_dimension_numbers<[1], [0], [0], [1], [0, 0, 1, 1], [], []>} : vector<16x128xf32>, vector<128x32xf32>, vector<16x32xf32> -> vector<16x32xf32>
    %551 = arith.addf %547, %550 : vector<16x32xf32>
    %c1_347 = arith.constant 1 : index
    %c0_348 = arith.constant 0 : index
    %c0_349 = arith.constant 0 : index
    %552 = vector.load %arg16[%c1_347, %c0_348, %c0_349] : memref<2x1x32xf32, #tpu.memory_space<vmem>>, vector<1x1x32xf32>
    %553 = vector.shape_cast %552 : vector<1x1x32xf32> to vector<1x32xf32>
    %554 = vector.broadcast %553 : vector<1x32xf32> to vector<16x32xf32>
    %555 = arith.addf %551, %554 : vector<16x32xf32>
    %c0_350 = arith.constant 0 : index
    %c0_351 = arith.constant 0 : index
    %556 = vector.load %arg23[%c0_350, %c0_351] : memref<16x32xf32, #tpu.memory_space<vmem>>, vector<16x32xf32>
    tpu.vector_store %arg23[%c0_350, %c0_351], %555 {strides = array<i32>} : memref<16x32xf32, #tpu.memory_space<vmem>>, vector<16x32xf32>,
    %c0_352 = arith.constant 0 : index
    %c0_353 = arith.constant 0 : index
    %557 = memref.load %arg21[%c0_352, %c0_353] : memref<1x1xf32, #tpu.memory_space<smem>>
    %558 = math.exp %557 : f32
    %c0_354 = arith.constant 0 : index
    %c0_355 = arith.constant 0 : index
    %559 = vector.load %arg23[%c0_354, %c0_355] : memref<16x32xf32, #tpu.memory_space<vmem>>, vector<1x32xf32>
    %c0_356 = arith.constant 0 : index
    %c0_357 = arith.constant 0 : index
    %560 = vector.load %arg17[%c0_356, %c0_357] : memref<1x32xf32, #tpu.memory_space<vmem>>, vector<1x32xf32>
    %c0_358 = arith.constant 0 : index
    %c0_359 = arith.constant 0 : index
    %561 = vector.load %arg18[%c0_358, %c0_359] : memref<1x32xf32, #tpu.memory_space<vmem>>, vector<1x32xf32>
    %cst_360 = arith.constant dense<0.000000e+00> : vector<1xf32>
    %562 = vector.multi_reduction <add>, %559, %cst_360 [1] : vector<1x32xf32> to vector<1xf32>
    %563 = vector.shape_cast %562 : vector<1xf32> to vector<1x1xf32>
    %cst_361 = arith.constant 3.200000e+01 : f32
    %564 = vector.broadcast %cst_361 : f32 to vector<1x1xf32>
    %565 = arith.divf %563, %564 : vector<1x1xf32>
    %566 = vector.broadcast %565 : vector<1x1xf32> to vector<1x32xf32>
    %567 = arith.subf %559, %566 : vector<1x32xf32>
    %568 = arith.mulf %567, %567 : vector<1x32xf32>
    %cst_362 = arith.constant dense<0.000000e+00> : vector<1xf32>
    %569 = vector.multi_reduction <add>, %568, %cst_362 [1] : vector<1x32xf32> to vector<1xf32>
    %570 = vector.shape_cast %569 : vector<1xf32> to vector<1x1xf32>
    %cst_363 = arith.constant 3.200000e+01 : f32
    %571 = vector.broadcast %cst_363 : f32 to vector<1x1xf32>
    %572 = arith.divf %570, %571 : vector<1x1xf32>
    %cst_364 = arith.constant 9.99999974E-6 : f32
    %573 = vector.broadcast %cst_364 : f32 to vector<1x1xf32>
    %574 = arith.addf %572, %573 : vector<1x1xf32>
    %575 = math.rsqrt %574 : vector<1x1xf32>
    %576 = vector.broadcast %575 : vector<1x1xf32> to vector<1x32xf32>
    %577 = arith.mulf %567, %576 : vector<1x32xf32>
    %578 = arith.mulf %577, %560 : vector<1x32xf32>
    %579 = arith.addf %578, %561 : vector<1x32xf32>
    %c0_365 = arith.constant 0 : index
    %c0_366 = arith.constant 0 : index
    %580 = vector.load %arg19[%c0_365, %c0_366] : memref<32x16xf32, #tpu.memory_space<vmem>>, vector<32x16xf32>
    %cst_367 = arith.constant dense<0.000000e+00> : vector<1x16xf32>
    %581 = tpu.matmul %579, %580, %cst_367 {dimension_numbers = #tpu.dot_dimension_numbers<[1], [0], [0], [1], [0, 0, 1, 1], [], []>} : vector<1x32xf32>, vector<32x16xf32>, vector<1x16xf32> -> vector<1x16xf32>
    %582 = arith.mulf %581, %581 : vector<1x16xf32>
    %cst_368 = arith.constant dense<0.000000e+00> : vector<1xf32>
    %583 = vector.multi_reduction <add>, %582, %cst_368 [1] : vector<1x16xf32> to vector<1xf32>
    %584 = vector.shape_cast %583 : vector<1xf32> to vector<1x1xf32>
    %585 = math.rsqrt %584 : vector<1x1xf32>
    %586 = vector.broadcast %585 : vector<1x1xf32> to vector<1x16xf32>
    %587 = arith.mulf %581, %586 : vector<1x16xf32>
    %c0_369 = arith.constant 0 : index
    %c0_370 = arith.constant 0 : index
    %588 = vector.load %arg20[%c0_369, %c0_370] : memref<12x16xf32, #tpu.memory_space<vmem>>, vector<12x16xf32>
    %cst_371 = arith.constant dense<0.000000e+00> : vector<1x12xf32>
    %589 = tpu.matmul %587, %588, %cst_371 {dimension_numbers = #tpu.dot_dimension_numbers<[1], [1], [0], [0], [0, 0, 1, 0], [], []>} : vector<1x16xf32>, vector<12x16xf32>, vector<1x12xf32> -> vector<1x12xf32>
    %590 = vector.broadcast %558 : f32 to vector<1x12xf32>
    %591 = arith.mulf %590, %589 : vector<1x12xf32>
    %c0_372 = arith.constant 0 : index
    %c0_373 = arith.constant 0 : index
    %592 = vector.load %arg22[%c0_372, %c0_373] : memref<2x12xf32, #tpu.memory_space<vmem>>, vector<1x12xf32>
    tpu.vector_store %arg22[%c0_372, %c0_373], %591 {strides = array<i32>} : memref<2x12xf32, #tpu.memory_space<vmem>>, vector<1x12xf32>,
    %c8_374 = arith.constant 8 : index
    %c0_375 = arith.constant 0 : index
    %593 = vector.load %arg23[%c8_374, %c0_375] : memref<16x32xf32, #tpu.memory_space<vmem>>, vector<1x32xf32>
    %c0_376 = arith.constant 0 : index
    %c0_377 = arith.constant 0 : index
    %594 = vector.load %arg17[%c0_376, %c0_377] : memref<1x32xf32, #tpu.memory_space<vmem>>, vector<1x32xf32>
    %c0_378 = arith.constant 0 : index
    %c0_379 = arith.constant 0 : index
    %595 = vector.load %arg18[%c0_378, %c0_379] : memref<1x32xf32, #tpu.memory_space<vmem>>, vector<1x32xf32>
    %cst_380 = arith.constant dense<0.000000e+00> : vector<1xf32>
    %596 = vector.multi_reduction <add>, %593, %cst_380 [1] : vector<1x32xf32> to vector<1xf32>
    %597 = vector.shape_cast %596 : vector<1xf32> to vector<1x1xf32>
    %cst_381 = arith.constant 3.200000e+01 : f32
    %598 = vector.broadcast %cst_381 : f32 to vector<1x1xf32>
    %599 = arith.divf %597, %598 : vector<1x1xf32>
    %600 = vector.broadcast %599 : vector<1x1xf32> to vector<1x32xf32>
    %601 = arith.subf %593, %600 : vector<1x32xf32>
    %602 = arith.mulf %601, %601 : vector<1x32xf32>
    %cst_382 = arith.constant dense<0.000000e+00> : vector<1xf32>
    %603 = vector.multi_reduction <add>, %602, %cst_382 [1] : vector<1x32xf32> to vector<1xf32>
    %604 = vector.shape_cast %603 : vector<1xf32> to vector<1x1xf32>
    %cst_383 = arith.constant 3.200000e+01 : f32
    %605 = vector.broadcast %cst_383 : f32 to vector<1x1xf32>
    %606 = arith.divf %604, %605 : vector<1x1xf32>
    %cst_384 = arith.constant 9.99999974E-6 : f32
    %607 = vector.broadcast %cst_384 : f32 to vector<1x1xf32>
    %608 = arith.addf %606, %607 : vector<1x1xf32>
    %609 = math.rsqrt %608 : vector<1x1xf32>
    %610 = vector.broadcast %609 : vector<1x1xf32> to vector<1x32xf32>
    %611 = arith.mulf %601, %610 : vector<1x32xf32>
    %612 = arith.mulf %611, %594 : vector<1x32xf32>
    %613 = arith.addf %612, %595 : vector<1x32xf32>
    %c0_385 = arith.constant 0 : index
    %c0_386 = arith.constant 0 : index
    %614 = vector.load %arg19[%c0_385, %c0_386] : memref<32x16xf32, #tpu.memory_space<vmem>>, vector<32x16xf32>
    %cst_387 = arith.constant dense<0.000000e+00> : vector<1x16xf32>
    %615 = tpu.matmul %613, %614, %cst_387 {dimension_numbers = #tpu.dot_dimension_numbers<[1], [0], [0], [1], [0, 0, 1, 1], [], []>} : vector<1x32xf32>, vector<32x16xf32>, vector<1x16xf32> -> vector<1x16xf32>
    %616 = arith.mulf %615, %615 : vector<1x16xf32>
    %cst_388 = arith.constant dense<0.000000e+00> : vector<1xf32>
    %617 = vector.multi_reduction <add>, %616, %cst_388 [1] : vector<1x16xf32> to vector<1xf32>
    %618 = vector.shape_cast %617 : vector<1xf32> to vector<1x1xf32>
    %619 = math.rsqrt %618 : vector<1x1xf32>
    %620 = vector.broadcast %619 : vector<1x1xf32> to vector<1x16xf32>
    %621 = arith.mulf %615, %620 : vector<1x16xf32>
    %c0_389 = arith.constant 0 : index
    %c0_390 = arith.constant 0 : index
    %622 = vector.load %arg20[%c0_389, %c0_390] : memref<12x16xf32, #tpu.memory_space<vmem>>, vector<12x16xf32>
    %cst_391 = arith.constant dense<0.000000e+00> : vector<1x12xf32>
    %623 = tpu.matmul %621, %622, %cst_391 {dimension_numbers = #tpu.dot_dimension_numbers<[1], [1], [0], [0], [0, 0, 1, 0], [], []>} : vector<1x16xf32>, vector<12x16xf32>, vector<1x12xf32> -> vector<1x12xf32>
    %624 = vector.broadcast %558 : f32 to vector<1x12xf32>
    %625 = arith.mulf %624, %623 : vector<1x12xf32>
    %c1_392 = arith.constant 1 : index
    %c0_393 = arith.constant 0 : index
    %626 = vector.load %arg22[%c1_392, %c0_393] : memref<2x12xf32, #tpu.memory_space<vmem>>, vector<1x12xf32>
    tpu.vector_store %arg22[%c1_392, %c0_393], %625 {strides = array<i32>} : memref<2x12xf32, #tpu.memory_space<vmem>>, vector<1x12xf32>,
    return
  }
}

</mosaic_0001>

<llo_original>
// kernel: clip_forward.1
$region0: #{clip_forward.1}
  #allocation0 [shape = 'u32[]', space=smem, size = 0x4, offset = 0x4, fixed_abs, tag = 'smem constant byte address 0x4 - core index']
  #allocation1 [shape = 'u32[144,128]{1,0:T(1,128)}', space=vmem, size = 0x12000, scoped, tag = 'internal scratch']
  #allocation2 [shape = 'f32[16,32]{1,0:T(8,128)}', space=vmem, size = 0x2000, scoped, tag = 'scratch operand']
  #allocation3 [shape = 'f32[16,96]{1,0:T(8,128)}', space=vmem, size = 0x2000, scoped, tag = 'scratch operand']
  #allocation4 [shape = 'f32[1,1]{1,0:T(1,128)S(6)}', space=smem, size = 0x200, scoped, tag = 'scoped memory for clip_forward.1']
  %s0 = inlined_call_operand.vmem [shape: f32[16,193], index: 0, kind: input, shape index: {}]
  %s1 = inlined_call_operand.vmem [shape: f32[193,32], index: 1, kind: input, shape index: {}]
  %s2 = inlined_call_operand.vmem [shape: f32[8,32], index: 2, kind: input, shape index: {}]
  %s3 = inlined_call_operand.vmem [shape: f32[1,32], index: 3, kind: input, shape index: {}]
  %s4 = inlined_call_operand.vmem [shape: f32[1,32], index: 4, kind: input, shape index: {}]
  %s5 = inlined_call_operand.vmem [shape: f32[2,1,32], index: 5, kind: input, shape index: {}]
  %s6 = inlined_call_operand.vmem [shape: f32[2,1,32], index: 6, kind: input, shape index: {}]
  %s7 = inlined_call_operand.vmem [shape: f32[2,32,96], index: 7, kind: input, shape index: {}]
  %s8 = inlined_call_operand.vmem [shape: f32[2,1,96], index: 8, kind: input, shape index: {}]
  %s9 = inlined_call_operand.vmem [shape: f32[2,32,32], index: 9, kind: input, shape index: {}]
  %s10 = inlined_call_operand.vmem [shape: f32[2,1,32], index: 10, kind: input, shape index: {}]
  %s11 = inlined_call_operand.vmem [shape: f32[2,1,32], index: 11, kind: input, shape index: {}]
  %s12 = inlined_call_operand.vmem [shape: f32[2,1,32], index: 12, kind: input, shape index: {}]
  %s13 = inlined_call_operand.vmem [shape: f32[2,32,128], index: 13, kind: input, shape index: {}]
  %s14 = inlined_call_operand.vmem [shape: f32[2,1,128], index: 14, kind: input, shape index: {}]
  %s15 = inlined_call_operand.vmem [shape: f32[2,128,32], index: 15, kind: input, shape index: {}]
  %s16 = inlined_call_operand.vmem [shape: f32[2,1,32], index: 16, kind: input, shape index: {}]
  %s17 = inlined_call_operand.vmem [shape: f32[1,32], index: 17, kind: input, shape index: {}]
  %s18 = inlined_call_operand.vmem [shape: f32[1,32], index: 18, kind: input, shape index: {}]
  %s19 = inlined_call_operand.vmem [shape: f32[32,16], index: 19, kind: input, shape index: {}]
  %s20 = inlined_call_operand.vmem [shape: f32[12,16], index: 20, kind: input, shape index: {}]
  %s21 = inlined_call_operand.<no memory space> [shape: f32[1,1], index: 21, kind: input, shape index: {}]
  %s22 = inlined_call_operand.hbm [shape: f32[2,12], index: 22, kind: output, shape index: {}]
  %s23 = sld [smem:[#allocation0]]
  $region98: #{clip_forward.1} parent=0
    _
  %s25 = ssub.s32 1, %s23
  %s26 = scalar_select 0, %s25, %s23
  %27 = sst [smem:[#allocation4]] %s21
  $region1: #{clip_forward.1} parent=0
    #allocation5 [shape = 'u8[1024]{0}', space=vmem, size = 0x400, scoped, tag = 'output window, operand 0, single buffered']
    #allocation6 [shape = 's32[1]{0}', space=sflag, size = 0x4, scoped, tag = 'scoped memory for clip_forward.1']
    %28 = vsyncpa [#allocation6], 0
    // Predicated region
    $region2: #{clip_forward.1} parent=1 // pred_check
      _
    $region3: #{clip_forward.1} parent=1 // pred_check_branch
      %30 = sbr.rel (0) target = $region5
    $region4: #{clip_forward.1} parent=1 // pred_region
      _
    $region5: #{clip_forward.1} parent=1 // pred_fallthru
      _
    // Predicated region
    $region6: #{clip_forward.1} parent=1 // pred_check
      _
    $region7: #{clip_forward.1} parent=1 // pred_check_branch
      %32 = sbr.rel (0) target = $region9
    $region8: #{clip_forward.1} parent=1 // pred_region
      _
    $region9: #{clip_forward.1} parent=1 // pred_fallthru
      _
    // Predicated region
    $region10: #{clip_forward.1} parent=1 // pred_check
      _
    $region11: #{clip_forward.1} parent=1 // pred_check_branch
      %34 = sbr.rel (0) target = $region13
    $region12: #{clip_forward.1} parent=1 // pred_region
      _
    $region13: #{clip_forward.1} parent=1 // pred_fallthru
      _
    // Predicated region
    $region14: #{clip_forward.1} parent=1 // pred_check
      _
    $region15: #{clip_forward.1} parent=1 // pred_check_branch
      %36 = sbr.rel (0) target = $region17
    $region16: #{clip_forward.1} parent=1 // pred_region
      _
    $region17: #{clip_forward.1} parent=1 // pred_fallthru
      _
    // Predicated region
    $region18: #{clip_forward.1} parent=1 // pred_check
      _
    $region19: #{clip_forward.1} parent=1 // pred_check_branch
      %38 = sbr.rel (0) target = $region21
    $region20: #{clip_forward.1} parent=1 // pred_region
      _
    $region21: #{clip_forward.1} parent=1 // pred_fallthru
      _
    // Predicated region
    $region22: #{clip_forward.1} parent=1 // pred_check
      _
    $region23: #{clip_forward.1} parent=1 // pred_check_branch
      %40 = sbr.rel (0) target = $region25
    $region24: #{clip_forward.1} parent=1 // pred_region
      _
    $region25: #{clip_forward.1} parent=1 // pred_fallthru
      _
    // Predicated region
    $region26: #{clip_forward.1} parent=1 // pred_check
      _
    $region27: #{clip_forward.1} parent=1 // pred_check_branch
      %42 = sbr.rel (0) target = $region29
    $region28: #{clip_forward.1} parent=1 // pred_region
      _
    $region29: #{clip_forward.1} parent=1 // pred_fallthru
      _
    // Predicated region
    $region30: #{clip_forward.1} parent=1 // pred_check
      _
    $region31: #{clip_forward.1} parent=1 // pred_check_branch
      %44 = sbr.rel (0) target = $region33
    $region32: #{clip_forward.1} parent=1 // pred_region
      _
    $region33: #{clip_forward.1} parent=1 // pred_fallthru
      _
    // Predicated region
    $region34: #{clip_forward.1} parent=1 // pred_check
      _
    $region35: #{clip_forward.1} parent=1 // pred_check_branch
      %46 = sbr.rel (0) target = $region37
    $region36: #{clip_forward.1} parent=1 // pred_region
      _
    $region37: #{clip_forward.1} parent=1 // pred_fallthru
      _
    // Predicated region
    $region38: #{clip_forward.1} parent=1 // pred_check
      _
    $region39: #{clip_forward.1} parent=1 // pred_check_branch
      %48 = sbr.rel (0) target = $region41
    $region40: #{clip_forward.1} parent=1 // pred_region
      _
    $region41: #{clip_forward.1} parent=1 // pred_fallthru
      _
    // Predicated region
    $region42: #{clip_forward.1} parent=1 // pred_check
      _
    $region43: #{clip_forward.1} parent=1 // pred_check_branch
      %50 = sbr.rel (0) target = $region45
    $region44: #{clip_forward.1} parent=1 // pred_region
      _
    $region45: #{clip_forward.1} parent=1 // pred_fallthru
      _
    // Predicated region
    $region46: #{clip_forward.1} parent=1 // pred_check
      _
    $region47: #{clip_forward.1} parent=1 // pred_check_branch
      %52 = sbr.rel (0) target = $region49
    $region48: #{clip_forward.1} parent=1 // pred_region
      _
    $region49: #{clip_forward.1} parent=1 // pred_fallthru
      _
    // Predicated region
    $region50: #{clip_forward.1} parent=1 // pred_check
      _
    $region51: #{clip_forward.1} parent=1 // pred_check_branch
      %54 = sbr.rel (0) target = $region53
    $region52: #{clip_forward.1} parent=1 // pred_region
      _
    $region53: #{clip_forward.1} parent=1 // pred_fallthru
      _
    // Predicated region
    $region54: #{clip_forward.1} parent=1 // pred_check
      _
    $region55: #{clip_forward.1} parent=1 // pred_check_branch
      %56 = sbr.rel (0) target = $region57
    $region56: #{clip_forward.1} parent=1 // pred_region
      _
    $region57: #{clip_forward.1} parent=1 // pred_fallthru
      _
    // Predicated region
    $region58: #{clip_forward.1} parent=1 // pred_check
      _
    $region59: #{clip_forward.1} parent=1 // pred_check_branch
      %58 = sbr.rel (0) target = $region61
    $region60: #{clip_forward.1} parent=1 // pred_region
      _
    $region61: #{clip_forward.1} parent=1 // pred_fallthru
      _
    // Predicated region
    $region62: #{clip_forward.1} parent=1 // pred_check
      _
    $region63: #{clip_forward.1} parent=1 // pred_check_branch
      %60 = sbr.rel (0) target = $region65
    $region64: #{clip_forward.1} parent=1 // pred_region
      _
    $region65: #{clip_forward.1} parent=1 // pred_fallthru
      _
    // Predicated region
    $region66: #{clip_forward.1} parent=1 // pred_check
      _
    $region67: #{clip_forward.1} parent=1 // pred_check_branch
      %62 = sbr.rel (0) target = $region69
    $region68: #{clip_forward.1} parent=1 // pred_region
      _
    $region69: #{clip_forward.1} parent=1 // pred_fallthru
      _
    // Predicated region
    $region70: #{clip_forward.1} parent=1 // pred_check
      _
    $region71: #{clip_forward.1} parent=1 // pred_check_branch
      %64 = sbr.rel (0) target = $region73
    $region72: #{clip_forward.1} parent=1 // pred_region
      _
    $region73: #{clip_forward.1} parent=1 // pred_fallthru
      _
    // Predicated region
    $region74: #{clip_forward.1} parent=1 // pred_check
      _
    $region75: #{clip_forward.1} parent=1 // pred_check_branch
      %66 = sbr.rel (0) target = $region77
    $region76: #{clip_forward.1} parent=1 // pred_region
      _
    $region77: #{clip_forward.1} parent=1 // pred_fallthru
      _
    // Predicated region
    $region78: #{clip_forward.1} parent=1 // pred_check
      _
    $region79: #{clip_forward.1} parent=1 // pred_check_branch
      %68 = sbr.rel (0) target = $region81
    $region80: #{clip_forward.1} parent=1 // pred_region
      _
    $region81: #{clip_forward.1} parent=1 // pred_fallthru
      _
    // Predicated region
    $region82: #{clip_forward.1} parent=1 // pred_check
      _
    $region83: #{clip_forward.1} parent=1 // pred_check_branch
      %70 = sbr.rel (0) target = $region85
    $region84: #{clip_forward.1} parent=1 // pred_region
      _
    $region85: #{clip_forward.1} parent=1 // pred_fallthru
      _
    // Predicated region
    $region86: #{clip_forward.1} parent=1 // pred_check
      _
    $region87: #{clip_forward.1} parent=1 // pred_check_branch
      %72 = sbr.rel (0) target = $region89
    $region88: #{clip_forward.1} parent=1 // pred_region
      _
    $region89: #{clip_forward.1} parent=1 // pred_fallthru
      _
    %v73 = vld [vmem:[%s0] sm:$0xff]
    %v74 = vld [vmem:[%s0 + $0x8] sm:$0xff]
    %v75 = vld [vmem:[%s0 + $0x10] sm:$0xff]
    %v76 = vld [vmem:[%s0 + $0x18] sm:$0xff]
    %v77 = vld [vmem:[%s1] sm:$0xff]
    %v78 = vld [vmem:[%s1 + $0x8] sm:$0xff]
    %v79 = vld [vmem:[%s1 + $0x10] sm:$0xff]
    %v80 = vld [vmem:[%s1 + $0x18] sm:$0xff]
    %v81 = vld [vmem:[%s1 + $0x20] sm:$0xff]
    %v82 = vld [vmem:[%s1 + $0x28] sm:$0xff]
    %v83 = vld [vmem:[%s1 + $0x30] sm:$0xff]
    %v84 = vld [vmem:[%s1 + $0x38] sm:$0xff]
    %v85 = vld [vmem:[%s1 + $0x40] sm:$0xff]
    %v86 = vld [vmem:[%s1 + $0x48] sm:$0xff]
    %v87 = vld [vmem:[%s1 + $0x50] sm:$0xff]
    %v88 = vld [vmem:[%s1 + $0x58] sm:$0xff]
    %v89 = vld [vmem:[%s1 + $0x60] sm:$0xff]
    %v90 = vld [vmem:[%s1 + $0x68] sm:$0xff]
    %v91 = vld [vmem:[%s1 + $0x70] sm:$0xff]
    %v92 = vld [vmem:[%s1 + $0x78] sm:$0xff]
    %v93 = vld [vmem:[%s1 + $0x80] sm:$0xff]
    %v94 = vld [vmem:[%s1 + $0x88] sm:$0xff]
    %v95 = vld [vmem:[%s1 + $0x90] sm:$0xff]
    %v96 = vld [vmem:[%s1 + $0x98] sm:$0xff]
    %v97 = vld [vmem:[%s1 + $0xa0] sm:$0xff]
    %v98 = vld [vmem:[%s1 + $0xa8] sm:$0xff]
    %v99 = vld [vmem:[%s1 + $0xb0] sm:$0xff]
    %v100 = vld [vmem:[%s1 + $0xb8] sm:$0xff]
    %v101 = vld [vmem:[%s1 + $0xc0] sm:$0x1]
    %vm102 = vcmask 531456
    %v104 = vsel %vm102, %v74, 0
    %v107 = vsel %vm102, %v76, 0
    %vm109 = vcmask 1040384
    %v111 = vsel %vm109, %v101, 0
    %113 = vmatprep.subr.mxu0 0.0
    %114 = vmatpush1.msra.mxu0 %v92
    %115 = vmatprep.subr.mxu0 0.0
    %116 = vmatpush1.msra.mxu0 %v91
    %117 = vmatprep.subr.mxu0 0.0
    %118 = vmatpush1.msra.mxu0 %v90
    %119 = vmatprep.subr.mxu0 0.0
    %120 = vmatpush1.msra.mxu0 %v89
    %121 = vmatprep.subr.mxu0 0.0
    %122 = vmatpush1.msra.mxu0 %v88
    %123 = vmatprep.subr.mxu0 0.0
    %124 = vmatpush1.msra.mxu0 %v87
    %125 = vmatprep.subr.mxu0 0.0
    %126 = vmatpush1.msra.mxu0 %v86
    %127 = vmatprep.subr.mxu0 0.0
    %128 = vmatpush1.msra.mxu0 %v85
    %129 = vmatprep.subr.mxu0 0.0
    %130 = vmatpush1.msra.mxu0 %v84
    %131 = vmatprep.subr.mxu0 0.0
    %132 = vmatpush1.msra.mxu0 %v83
    %133 = vmatprep.subr.mxu0 0.0
    %134 = vmatpush1.msra.mxu0 %v82
    %135 = vmatprep.subr.mxu0 0.0
    %136 = vmatpush1.msra.mxu0 %v81
    %137 = vmatprep.subr.mxu0 0.0
    %138 = vmatpush1.msra.mxu0 %v80
    %139 = vmatprep.subr.mxu0 0.0
    %140 = vmatpush1.msra.mxu0 %v79
    %141 = vmatprep.subr.mxu0 0.0
    %142 = vmatpush1.msra.mxu0 %v78
    %143 = vmatprep.subr.mxu0 0.0
    %144 = vmatpush1.msra.mxu0 %v77
    %145 = vmatprep.subr.mxu0 0.0
    %146 = vmatpush2.msra.mxu0 0.0
    %147 = vmatprep.subr.mxu0 0.0
    %148 = vmatpush2.msra.mxu0 0.0
    %149 = vmatprep.subr.mxu0 0.0
    %150 = vmatpush2.msra.mxu0 0.0
    %151 = vmatprep.subr.mxu0 0.0
    %152 = vmatpush2.msra.mxu0 0.0
    %153 = vmatprep.subr.mxu0 0.0
    %154 = vmatpush2.msra.mxu0 0.0
    %155 = vmatprep.subr.mxu0 0.0
    %156 = vmatpush2.msra.mxu0 0.0
    %157 = vmatprep.subr.mxu0 0.0
    %158 = vmatpush2.msra.mxu0 0.0
    %159 = vmatprep.subr.mxu0 0.0
    %160 = vmatpush2.msra.mxu0 %v111
    %161 = vmatprep.subr.mxu0 0.0
    %162 = vmatpush2.msra.mxu0 %v100
    %163 = vmatprep.subr.mxu0 0.0
    %164 = vmatpush2.msra.mxu0 %v99
    %165 = vmatprep.subr.mxu0 0.0
    %166 = vmatpush2.msra.mxu0 %v98
    %167 = vmatprep.subr.mxu0 0.0
    %168 = vmatpush2.msra.mxu0 %v97
    %169 = vmatprep.subr.mxu0 0.0
    %170 = vmatpush2.msra.mxu0 %v96
    %171 = vmatprep.subr.mxu0 0.0
    %172 = vmatpush2.msra.mxu0 %v95
    %173 = vmatprep.subr.mxu0 0.0
    %174 = vmatpush2.msra.mxu0 %v94
    %175 = vmatprep.subr.mxu0 0.0
    %176 = vmatpush2.msra.mxu0 %v93
    %177 = vmatprep.mubr.f32.mxu0 %v104
    %178 = vmatmul.mubr.f32.gmra.mxu0 %v73
    %v179 = vpop.f32.mrf.mxu0
    %v180 = vadd.f32 0.0, %v179
    %v181 = vpop.f32.mrf.mxu0
    %182 = vmatprep.mubr.f32.mxu0 %v107
    %183 = vmatmul.mubr.f32.gmra.mxu0 %v75
    %v184 = vpop.f32.mrf.mxu0
    %v185 = vadd.f32 0.0, %v184
    %v186 = vpop.f32.mrf.mxu0
    %187 = vdwg.mxu0
    %v188 = vld [vmem:[%s2] sm:$0xff]
    %v189 = vadd.f32 %v180, %v188
    %vm190 = vcmask 261120
    %191 = vst.msk [vmem:[#allocation2] sm:$0xff] %vm190, %v189
    %v192 = vld [vmem:[%s2] sm:$0xff]
    %v193 = vadd.f32 %v185, %v192
    %194 = vst.msk [vmem:[#allocation2 + $0x8] sm:$0xff] %vm190, %v193
    %v195 = vld [vmem:[#allocation2] sm:$0xff]
    %v196 = vld [vmem:[#allocation2 + $0x8] sm:$0xff]
    %v197 = vld [vmem:[%s3] sm:$0x1]
    %v198 = vld [vmem:[%s4] sm:$0x1]
    %v199 = vsel %vm190, %v195, 0.0
    %200 = vadd.xlane.f32.xlu0 %v199
    %v201 = vpop.xlane.xlu0 %200
    %v202 = vsel %vm190, %v196, 0.0
    %203 = vadd.xlane.f32.xlu0 %v202
    %v204 = vpop.xlane.xlu0 %203
    %v205 = vrcp.pop 32.0
    %v206 = vmul.f32 %v201, %v205
    %v207 = vmul.f32 %v204, %v205
    %v208 = vsub.f32 %v195, %v206
    %v209 = vsub.f32 %v196, %v207
    %v210 = vmul.f32 %v208, %v208
    %v211 = vmul.f32 %v209, %v209
    %v212 = vsel %vm190, %v210, 0.0
    %213 = vadd.xlane.f32.xlu0 %v212
    %v214 = vpop.xlane.xlu0 %213
    %v215 = vsel %vm190, %v211, 0.0
    %216 = vadd.xlane.f32.xlu0 %v215
    %v217 = vpop.xlane.xlu0 %216
    %v218 = vmul.f32 %v214, %v205
    %v219 = vmul.f32 %v217, %v205
    %v220 = vadd.f32 %v218, 1e-05
    %v221 = vadd.f32 %v219, 1e-05
    %v222 = vrsqrt.pop %v220
    %v223 = vrsqrt.pop %v221
    %v224 = vmul.f32 %v208, %v222
    %v225 = vmul.f32 %v209, %v223
    %v227 = vlaneseq
    %v228 = vshrl.u32 %v227, 7
    %v229 = vsub.s32 0, %v228
    %v230 = vrot.slane %v197, %v229
    %v232 = vmul.f32 %v224, %v230
    %v233 = vmul.f32 %v225, %v230
    %v235 = vlaneseq
    %v236 = vshrl.u32 %v235, 7
    %v237 = vsub.s32 0, %v236
    %v238 = vrot.slane %v198, %v237
    %v240 = vadd.f32 %v232, %v238
    %v241 = vadd.f32 %v233, %v238
    %242 = vst.msk [vmem:[#allocation2] sm:$0xff] %vm190, %v240
    %243 = vst.msk [vmem:[#allocation2 + $0x8] sm:$0xff] %vm190, %v241
    %v244 = vld [vmem:[#allocation2] sm:$0xff]
    %v245 = vld [vmem:[#allocation2 + $0x8] sm:$0xff]
    %v246 = vld [vmem:[%s5] sm:$0x1]
    %v247 = vld [vmem:[%s6] sm:$0x1]
    %v248 = vsel %vm190, %v244, 0.0
    %249 = vadd.xlane.f32.xlu0 %v248
    %v250 = vpop.xlane.xlu0 %249
    %v251 = vsel %vm190, %v245, 0.0
    %252 = vadd.xlane.f32.xlu0 %v251
    %v253 = vpop.xlane.xlu0 %252
    %v254 = vmul.f32 %v250, %v205
    %v255 = vmul.f32 %v253, %v205
    %v256 = vsub.f32 %v244, %v254
    %v257 = vsub.f32 %v245, %v255
    %v258 = vmul.f32 %v256, %v256
    %v259 = vmul.f32 %v257, %v257
    %v260 = vsel %vm190, %v258, 0.0
    %261 = vadd.xlane.f32.xlu0 %v260
    %v262 = vpop.xlane.xlu0 %261
    %v263 = vsel %vm190, %v259, 0.0
    %264 = vadd.xlane.f32.xlu0 %v263
    %v265 = vpop.xlane.xlu0 %264
    %v266 = vmul.f32 %v262, %v205
    %v267 = vmul.f32 %v265, %v205
    %v268 = vadd.f32 %v266, 1e-05
    %v269 = vadd.f32 %v267, 1e-05
    %v270 = vrsqrt.pop %v268
    %v271 = vrsqrt.pop %v269
    %v272 = vmul.f32 %v256, %v270
    %v273 = vmul.f32 %v257, %v271
    %v275 = vlaneseq
    %v276 = vshrl.u32 %v275, 7
    %v277 = vsub.s32 0, %v276
    %v278 = vrot.slane %v246, %v277
    %v280 = vmul.f32 %v272, %v278
    %v281 = vmul.f32 %v273, %v278
    %v283 = vlaneseq
    %v284 = vshrl.u32 %v283, 7
    %v285 = vsub.s32 0, %v284
    %v286 = vrot.slane %v247, %v285
    %v288 = vadd.f32 %v280, %v286
    %v289 = vadd.f32 %v281, %v286
    %v290 = vld [vmem:[%s7] sm:$0xff]
    %v291 = vld [vmem:[%s7 + $0x8] sm:$0xff]
    %v292 = vld [vmem:[%s7 + $0x10] sm:$0xff]
    %v293 = vld [vmem:[%s7 + $0x18] sm:$0xff]
    %v294 = vld [vmem:[%s8] sm:$0x1]
    %v296 = vlaneseq
    %v297 = vshrl.u32 %v296, 7
    %v298 = vsub.s32 0, %v297
    %v299 = vrot.slane %v294, %v298
    %v302 = vsel %vm190, %v288, 0
    %v305 = vsel %vm190, %v289, 0
    %307 = vmatprep.subr.mxu0 0.0
    %308 = vmatpush1.msra.mxu0 0.0
    %309 = vmatprep.subr.mxu0 0.0
    %310 = vmatpush1.msra.mxu0 0.0
    %311 = vmatprep.subr.mxu0 0.0
    %312 = vmatpush1.msra.mxu0 0.0
    %313 = vmatprep.subr.mxu0 0.0
    %314 = vmatpush1.msra.mxu0 0.0
    %315 = vmatprep.subr.mxu0 0.0
    %316 = vmatpush1.msra.mxu0 0.0
    %317 = vmatprep.subr.mxu0 0.0
    %318 = vmatpush1.msra.mxu0 0.0
    %319 = vmatprep.subr.mxu0 0.0
    %320 = vmatpush1.msra.mxu0 0.0
    %321 = vmatprep.subr.mxu0 0.0
    %322 = vmatpush1.msra.mxu0 0.0
    %323 = vmatprep.subr.mxu0 0.0
    %324 = vmatpush1.msra.mxu0 0.0
    %325 = vmatprep.subr.mxu0 0.0
    %326 = vmatpush1.msra.mxu0 0.0
    %327 = vmatprep.subr.mxu0 0.0
    %328 = vmatpush1.msra.mxu0 0.0
    %329 = vmatprep.subr.mxu0 0.0
    %330 = vmatpush1.msra.mxu0 0.0
    %331 = vmatprep.subr.mxu0 0.0
    %332 = vmatpush1.msra.mxu0 %v293
    %333 = vmatprep.subr.mxu0 0.0
    %334 = vmatpush1.msra.mxu0 %v292
    %335 = vmatprep.subr.mxu0 0.0
    %336 = vmatpush1.msra.mxu0 %v291
    %337 = vmatprep.subr.mxu0 0.0
    %338 = vmatpush1.msra.mxu0 %v290
    %339 = vmatprep.subr.mxu0 0.0
    %340 = vmatpush2.msra.mxu0 0.0
    %341 = vmatprep.subr.mxu0 0.0
    %342 = vmatpush2.msra.mxu0 0.0
    %343 = vmatprep.subr.mxu0 0.0
    %344 = vmatpush2.msra.mxu0 0.0
    %345 = vmatprep.subr.mxu0 0.0
    %346 = vmatpush2.msra.mxu0 0.0
    %347 = vmatprep.subr.mxu0 0.0
    %348 = vmatpush2.msra.mxu0 0.0
    %349 = vmatprep.subr.mxu0 0.0
    %350 = vmatpush2.msra.mxu0 0.0
    %351 = vmatprep.subr.mxu0 0.0
    %352 = vmatpush2.msra.mxu0 0.0
    %353 = vmatprep.subr.mxu0 0.0
    %354 = vmatpush2.msra.mxu0 0.0
    %355 = vmatprep.subr.mxu0 0.0
    %356 = vmatpush2.msra.mxu0 0.0
    %357 = vmatprep.subr.mxu0 0.0
    %358 = vmatpush2.msra.mxu0 0.0
    %359 = vmatprep.subr.mxu0 0.0
    %360 = vmatpush2.msra.mxu0 0.0
    %361 = vmatprep.subr.mxu0 0.0
    %362 = vmatpush2.msra.mxu0 0.0
    %363 = vmatprep.subr.mxu0 0.0
    %364 = vmatpush2.msra.mxu0 0.0
    %365 = vmatprep.subr.mxu0 0.0
    %366 = vmatpush2.msra.mxu0 0.0
    %367 = vmatprep.subr.mxu0 0.0
    %368 = vmatpush2.msra.mxu0 0.0
    %369 = vmatprep.subr.mxu0 0.0
    %370 = vmatpush2.msra.mxu0 0.0
    %371 = vmatprep.mubr.f32.mxu0 0.0
    %372 = vmatmul.mubr.f32.gmra.mxu0 %v302
    %v373 = vpop.f32.mrf.mxu0
    %v374 = vadd.f32 %v299, %v373
    %v375 = vpop.f32.mrf.mxu0
    %376 = vmatprep.mubr.f32.mxu0 0.0
    %377 = vmatmul.mubr.f32.gmra.mxu0 %v305
    %v378 = vpop.f32.mrf.mxu0
    %v379 = vadd.f32 %v299, %v378
    %v380 = vpop.f32.mrf.mxu0
    %381 = vdwg.mxu0
    %vm382 = vcmask 785408
    %383 = vst.msk [vmem:[#allocation3] sm:$0xff] %vm382, %v374
    %384 = vst.msk [vmem:[#allocation3 + $0x8] sm:$0xff] %vm382, %v379
    %v385 = vld [vmem:[%s9] sm:$0xff]
    %v386 = vld [vmem:[%s9 + $0x8] sm:$0xff]
    %v387 = vld [vmem:[%s9 + $0x10] sm:$0xff]
    %v388 = vld [vmem:[%s9 + $0x18] sm:$0xff]
    %v389 = vld [vmem:[#allocation3] sm:$0x1f]
    %391 = vrot.lane.b32.xlu0 %v389, 96
    %v392 = vpop.permute.xlu0 %391
    %vm393 = vcmask 64512
    %v394 = vsel %vm393, %v389, 0
    %v396 = vsel %vm393, %v392, 0
    %398 = vmatprep.subr.mxu0 0.0
    %399 = vmatpush1.xpose.msra.mxu0 0.0
    %400 = vmatprep.subr.mxu0 0.0
    %401 = vmatpush1.xpose.msra.mxu0 0.0
    %402 = vmatprep.subr.mxu0 0.0
    %403 = vmatpush1.xpose.msra.mxu0 0.0
    %404 = vmatprep.subr.mxu0 0.0
    %405 = vmatpush1.xpose.msra.mxu0 0.0
    %406 = vmatprep.subr.mxu0 0.0
    %407 = vmatpush1.xpose.msra.mxu0 0.0
    %408 = vmatprep.subr.mxu0 0.0
    %409 = vmatpush1.xpose.msra.mxu0 0.0
    %410 = vmatprep.subr.mxu0 0.0
    %411 = vmatpush1.xpose.msra.mxu0 0.0
    %412 = vmatprep.subr.mxu0 0.0
    %413 = vmatpush1.xpose.msra.mxu0 0.0
    %414 = vmatprep.subr.mxu0 0.0
    %415 = vmatpush1.xpose.msra.mxu0 0.0
    %416 = vmatprep.subr.mxu0 0.0
    %417 = vmatpush1.xpose.msra.mxu0 0.0
    %418 = vmatprep.subr.mxu0 0.0
    %419 = vmatpush1.xpose.msra.mxu0 0.0
    %420 = vmatprep.subr.mxu0 0.0
    %421 = vmatpush1.xpose.msra.mxu0 0.0
    %422 = vmatprep.subr.mxu0 0.0
    %423 = vmatpush1.xpose.msra.mxu0 0.0
    %424 = vmatprep.subr.mxu0 0.0
    %425 = vmatpush1.xpose.msra.mxu0 0.0
    %426 = vmatprep.subr.mxu0 0.0
    %427 = vmatpush1.xpose.msra.mxu0 0.0
    %428 = vmatprep.subr.mxu0 0.0
    %429 = vmatpush1.xpose.msra.mxu0 %v396
    %430 = vmatprep.subr.mxu0 0.0
    %431 = vmatpush2.xpose.msra.mxu0 0.0
    %432 = vmatprep.subr.mxu0 0.0
    %433 = vmatpush2.xpose.msra.mxu0 0.0
    %434 = vmatprep.subr.mxu0 0.0
    %435 = vmatpush2.xpose.msra.mxu0 0.0
    %436 = vmatprep.subr.mxu0 0.0
    %437 = vmatpush2.xpose.msra.mxu0 0.0
    %438 = vmatprep.subr.mxu0 0.0
    %439 = vmatpush2.xpose.msra.mxu0 0.0
    %440 = vmatprep.subr.mxu0 0.0
    %441 = vmatpush2.xpose.msra.mxu0 0.0
    %442 = vmatprep.subr.mxu0 0.0
    %443 = vmatpush2.xpose.msra.mxu0 0.0
    %444 = vmatprep.subr.mxu0 0.0
    %445 = vmatpush2.xpose.msra.mxu0 0.0
    %446 = vmatprep.subr.mxu0 0.0
    %447 = vmatpush2.xpose.msra.mxu0 0.0
    %448 = vmatprep.subr.mxu0 0.0
    %449 = vmatpush2.xpose.msra.mxu0 0.0
    %450 = vmatprep.subr.mxu0 0.0
    %451 = vmatpush2.xpose.msra.mxu0 0.0
    %452 = vmatprep.subr.mxu0 0.0
    %453 = vmatpush2.xpose.msra.mxu0 0.0
    %454 = vmatprep.subr.mxu0 0.0
    %455 = vmatpush2.xpose.msra.mxu0 0.0
    %456 = vmatprep.subr.mxu0 0.0
    %457 = vmatpush2.xpose.msra.mxu0 0.0
    %458 = vmatprep.subr.mxu0 0.0
    %459 = vmatpush2.xpose.msra.mxu0 0.0
    %460 = vmatprep.subr.mxu0 0.0
    %461 = vmatpush2.xpose.msra.mxu0 0.0
    %462 = vmatprep.mubr.f32.mxu0 0.0
    %463 = vmatmul.mubr.f32.gmra.mxu0 %v394
    %v464 = vpop.f32.mrf.mxu0
    %v465 = vadd.f32 0.0, %v464
    %v466 = vpop.f32.mrf.mxu0
    %467 = vdwg.mxu0
    %v468 = vmul.f32 %v465, 0.35355338
    %vm469 = vcmask 36864
    %v470 = vsel %vm469, %v468, -inf
    %471 = vmax.xlane.f32.xlu0 %v470
    %v472 = vpop.xlane.xlu0 %471
    %v473 = vsub.f32 %v468, %v472
    %v474 = vmul.f32 %v473, 1.442695
    %v475 = vpow.pop %v474
    %v476 = vsel %vm469, %v475, 0.0
    %477 = vadd.xlane.f32.xlu0 %v476
    %v478 = vpop.xlane.xlu0 %477
    %v479 = vrcp.pop %v478
    %v480 = vmul.f32 %v475, %v479
    %481 = vrot.lane.b32.xlu0 %v389, 64
    %v482 = vpop.permute.xlu0 %481
    %vm483 = vcmask 39936
    %v485 = vsel %vm483, %v480, 0
    %vm487 = vcmask 1044480
    %v488 = vsel %vm487, %v482, 0
    %490 = vmatprep.subr.mxu0 0.0
    %491 = vmatpush1.msra.mxu0 0.0
    %492 = vmatprep.subr.mxu0 0.0
    %493 = vmatpush1.msra.mxu0 0.0
    %494 = vmatprep.subr.mxu0 0.0
    %495 = vmatpush1.msra.mxu0 0.0
    %496 = vmatprep.subr.mxu0 0.0
    %497 = vmatpush1.msra.mxu0 0.0
    %498 = vmatprep.subr.mxu0 0.0
    %499 = vmatpush1.msra.mxu0 0.0
    %500 = vmatprep.subr.mxu0 0.0
    %501 = vmatpush1.msra.mxu0 0.0
    %502 = vmatprep.subr.mxu0 0.0
    %503 = vmatpush1.msra.mxu0 0.0
    %504 = vmatprep.subr.mxu0 0.0
    %505 = vmatpush1.msra.mxu0 0.0
    %506 = vmatprep.subr.mxu0 0.0
    %507 = vmatpush1.msra.mxu0 0.0
    %508 = vmatprep.subr.mxu0 0.0
    %509 = vmatpush1.msra.mxu0 0.0
    %510 = vmatprep.subr.mxu0 0.0
    %511 = vmatpush1.msra.mxu0 0.0
    %512 = vmatprep.subr.mxu0 0.0
    %513 = vmatpush1.msra.mxu0 0.0
    %514 = vmatprep.subr.mxu0 0.0
    %515 = vmatpush1.msra.mxu0 0.0
    %516 = vmatprep.subr.mxu0 0.0
    %517 = vmatpush1.msra.mxu0 0.0
    %518 = vmatprep.subr.mxu0 0.0
    %519 = vmatpush1.msra.mxu0 0.0
    %520 = vmatprep.subr.mxu0 0.0
    %521 = vmatpush1.msra.mxu0 %v488
    %522 = vmatprep.subr.mxu0 0.0
    %523 = vmatpush2.msra.mxu0 0.0
    %524 = vmatprep.subr.mxu0 0.0
    %525 = vmatpush2.msra.mxu0 0.0
    %526 = vmatprep.subr.mxu0 0.0
    %527 = vmatpush2.msra.mxu0 0.0
    %528 = vmatprep.subr.mxu0 0.0
    %529 = vmatpush2.msra.mxu0 0.0
    %530 = vmatprep.subr.mxu0 0.0
    %531 = vmatpush2.msra.mxu0 0.0
    %532 = vmatprep.subr.mxu0 0.0
    %533 = vmatpush2.msra.mxu0 0.0
    %534 = vmatprep.subr.mxu0 0.0
    %535 = vmatpush2.msra.mxu0 0.0
    %536 = vmatprep.subr.mxu0 0.0
    %537 = vmatpush2.msra.mxu0 0.0
    %538 = vmatprep.subr.mxu0 0.0
    %539 = vmatpush2.msra.mxu0 0.0
    %540 = vmatprep.subr.mxu0 0.0
    %541 = vmatpush2.msra.mxu0 0.0
    %542 = vmatprep.subr.mxu0 0.0
    %543 = vmatpush2.msra.mxu0 0.0
    %544 = vmatprep.subr.mxu0 0.0
    %545 = vmatpush2.msra.mxu0 0.0
    %546 = vmatprep.subr.mxu0 0.0
    %547 = vmatpush2.msra.mxu0 0.0
    %548 = vmatprep.subr.mxu0 0.0
    %549 = vmatpush2.msra.mxu0 0.0
    %550 = vmatprep.subr.mxu0 0.0
    %551 = vmatpush2.msra.mxu0 0.0
    %552 = vmatprep.subr.mxu0 0.0
    %553 = vmatpush2.msra.mxu0 0.0
    %554 = vmatprep.mubr.f32.mxu0 0.0
    %555 = vmatmul.mubr.f32.gmra.mxu0 %v485
    %v556 = vpop.f32.mrf.mxu0
    %v557 = vadd.f32 0.0, %v556
    %v558 = vpop.f32.mrf.mxu0
    %559 = vdwg.mxu0
    %560 = vrot.lane.b32.xlu0 %v389, 120
    %v561 = vpop.permute.xlu0 %560
    %562 = vrot.lane.b32.xlu0 %v389, 88
    %v563 = vpop.permute.xlu0 %562
    %v564 = vsel %vm393, %v561, 0
    %v566 = vsel %vm393, %v563, 0
    %568 = vmatprep.subr.mxu0 0.0
    %569 = vmatpush1.xpose.msra.mxu0 0.0
    %570 = vmatprep.subr.mxu0 0.0
    %571 = vmatpush1.xpose.msra.mxu0 0.0
    %572 = vmatprep.subr.mxu0 0.0
    %573 = vmatpush1.xpose.msra.mxu0 0.0
    %574 = vmatprep.subr.mxu0 0.0
    %575 = vmatpush1.xpose.msra.mxu0 0.0
    %576 = vmatprep.subr.mxu0 0.0
    %577 = vmatpush1.xpose.msra.mxu0 0.0
    %578 = vmatprep.subr.mxu0 0.0
    %579 = vmatpush1.xpose.msra.mxu0 0.0
    %580 = vmatprep.subr.mxu0 0.0
    %581 = vmatpush1.xpose.msra.mxu0 0.0
    %582 = vmatprep.subr.mxu0 0.0
    %583 = vmatpush1.xpose.msra.mxu0 0.0
    %584 = vmatprep.subr.mxu0 0.0
    %585 = vmatpush1.xpose.msra.mxu0 0.0
    %586 = vmatprep.subr.mxu0 0.0
    %587 = vmatpush1.xpose.msra.mxu0 0.0
    %588 = vmatprep.subr.mxu0 0.0
    %589 = vmatpush1.xpose.msra.mxu0 0.0
    %590 = vmatprep.subr.mxu0 0.0
    %591 = vmatpush1.xpose.msra.mxu0 0.0
    %592 = vmatprep.subr.mxu0 0.0
    %593 = vmatpush1.xpose.msra.mxu0 0.0
    %594 = vmatprep.subr.mxu0 0.0
    %595 = vmatpush1.xpose.msra.mxu0 0.0
    %596 = vmatprep.subr.mxu0 0.0
    %597 = vmatpush1.xpose.msra.mxu0 0.0
    %598 = vmatprep.subr.mxu0 0.0
    %599 = vmatpush1.xpose.msra.mxu0 %v566
    %600 = vmatprep.subr.mxu0 0.0
    %601 = vmatpush2.xpose.msra.mxu0 0.0
    %602 = vmatprep.subr.mxu0 0.0
    %603 = vmatpush2.xpose.msra.mxu0 0.0
    %604 = vmatprep.subr.mxu0 0.0
    %605 = vmatpush2.xpose.msra.mxu0 0.0
    %606 = vmatprep.subr.mxu0 0.0
    %607 = vmatpush2.xpose.msra.mxu0 0.0
    %608 = vmatprep.subr.mxu0 0.0
    %609 = vmatpush2.xpose.msra.mxu0 0.0
    %610 = vmatprep.subr.mxu0 0.0
    %611 = vmatpush2.xpose.msra.mxu0 0.0
    %612 = vmatprep.subr.mxu0 0.0
    %613 = vmatpush2.xpose.msra.mxu0 0.0
    %614 = vmatprep.subr.mxu0 0.0
    %615 = vmatpush2.xpose.msra.mxu0 0.0
    %616 = vmatprep.subr.mxu0 0.0
    %617 = vmatpush2.xpose.msra.mxu0 0.0
    %618 = vmatprep.subr.mxu0 0.0
    %619 = vmatpush2.xpose.msra.mxu0 0.0
    %620 = vmatprep.subr.mxu0 0.0
    %621 = vmatpush2.xpose.msra.mxu0 0.0
    %622 = vmatprep.subr.mxu0 0.0
    %623 = vmatpush2.xpose.msra.mxu0 0.0
    %624 = vmatprep.subr.mxu0 0.0
    %625 = vmatpush2.xpose.msra.mxu0 0.0
    %626 = vmatprep.subr.mxu0 0.0
    %627 = vmatpush2.xpose.msra.mxu0 0.0
    %628 = vmatprep.subr.mxu0 0.0
    %629 = vmatpush2.xpose.msra.mxu0 0.0
    %630 = vmatprep.subr.mxu0 0.0
    %631 = vmatpush2.xpose.msra.mxu0 0.0
    %632 = vmatprep.mubr.f32.mxu0 0.0
    %633 = vmatmul.mubr.f32.gmra.mxu0 %v564
    %v634 = vpop.f32.mrf.mxu0
    %v635 = vadd.f32 0.0, %v634
    %v636 = vpop.f32.mrf.mxu0
    %637 = vdwg.mxu0
    %v638 = vmul.f32 %v635, 0.35355338
    %v639 = vsel %vm469, %v638, -inf
    %640 = vmax.xlane.f32.xlu0 %v639
    %v641 = vpop.xlane.xlu0 %640
    %v642 = vsub.f32 %v638, %v641
    %v643 = vmul.f32 %v642, 1.442695
    %v644 = vpow.pop %v643
    %v645 = vsel %vm469, %v644, 0.0
    %646 = vadd.xlane.f32.xlu0 %v645
    %v647 = vpop.xlane.xlu0 %646
    %v648 = vrcp.pop %v647
    %v649 = vmul.f32 %v644, %v648
    %650 = vrot.lane.b32.xlu0 %v389, 56
    %v651 = vpop.permute.xlu0 %650
    %v653 = vsel %vm483, %v649, 0
    %v655 = vsel %vm487, %v651, 0
    %657 = vmatprep.subr.mxu0 0.0
    %658 = vmatpush1.msra.mxu0 0.0
    %659 = vmatprep.subr.mxu0 0.0
    %660 = vmatpush1.msra.mxu0 0.0
    %661 = vmatprep.subr.mxu0 0.0
    %662 = vmatpush1.msra.mxu0 0.0
    %663 = vmatprep.subr.mxu0 0.0
    %664 = vmatpush1.msra.mxu0 0.0
    %665 = vmatprep.subr.mxu0 0.0
    %666 = vmatpush1.msra.mxu0 0.0
    %667 = vmatprep.subr.mxu0 0.0
    %668 = vmatpush1.msra.mxu0 0.0
    %669 = vmatprep.subr.mxu0 0.0
    %670 = vmatpush1.msra.mxu0 0.0
    %671 = vmatprep.subr.mxu0 0.0
    %672 = vmatpush1.msra.mxu0 0.0
    %673 = vmatprep.subr.mxu0 0.0
    %674 = vmatpush1.msra.mxu0 0.0
    %675 = vmatprep.subr.mxu0 0.0
    %676 = vmatpush1.msra.mxu0 0.0
    %677 = vmatprep.subr.mxu0 0.0
    %678 = vmatpush1.msra.mxu0 0.0
    %679 = vmatprep.subr.mxu0 0.0
    %680 = vmatpush1.msra.mxu0 0.0
    %681 = vmatprep.subr.mxu0 0.0
    %682 = vmatpush1.msra.mxu0 0.0
    %683 = vmatprep.subr.mxu0 0.0
    %684 = vmatpush1.msra.mxu0 0.0
    %685 = vmatprep.subr.mxu0 0.0
    %686 = vmatpush1.msra.mxu0 0.0
    %687 = vmatprep.subr.mxu0 0.0
    %688 = vmatpush1.msra.mxu0 %v655
    %689 = vmatprep.subr.mxu0 0.0
    %690 = vmatpush2.msra.mxu0 0.0
    %691 = vmatprep.subr.mxu0 0.0
    %692 = vmatpush2.msra.mxu0 0.0
    %693 = vmatprep.subr.mxu0 0.0
    %694 = vmatpush2.msra.mxu0 0.0
    %695 = vmatprep.subr.mxu0 0.0
    %696 = vmatpush2.msra.mxu0 0.0
    %697 = vmatprep.subr.mxu0 0.0
    %698 = vmatpush2.msra.mxu0 0.0
    %699 = vmatprep.subr.mxu0 0.0
    %700 = vmatpush2.msra.mxu0 0.0
    %701 = vmatprep.subr.mxu0 0.0
    %702 = vmatpush2.msra.mxu0 0.0
    %703 = vmatprep.subr.mxu0 0.0
    %704 = vmatpush2.msra.mxu0 0.0
    %705 = vmatprep.subr.mxu0 0.0
    %706 = vmatpush2.msra.mxu0 0.0
    %707 = vmatprep.subr.mxu0 0.0
    %708 = vmatpush2.msra.mxu0 0.0
    %709 = vmatprep.subr.mxu0 0.0
    %710 = vmatpush2.msra.mxu0 0.0
    %711 = vmatprep.subr.mxu0 0.0
    %712 = vmatpush2.msra.mxu0 0.0
    %713 = vmatprep.subr.mxu0 0.0
    %714 = vmatpush2.msra.mxu0 0.0
    %715 = vmatprep.subr.mxu0 0.0
    %716 = vmatpush2.msra.mxu0 0.0
    %717 = vmatprep.subr.mxu0 0.0
    %718 = vmatpush2.msra.mxu0 0.0
    %719 = vmatprep.subr.mxu0 0.0
    %720 = vmatpush2.msra.mxu0 0.0
    %721 = vmatprep.mubr.f32.mxu0 0.0
    %722 = vmatmul.mubr.f32.gmra.mxu0 %v653
    %v723 = vpop.f32.mrf.mxu0
    %v724 = vadd.f32 0.0, %v723
    %v725 = vpop.f32.mrf.mxu0
    %726 = vdwg.mxu0
    %v728 = vsel %vm393, %v724, 0
    %730 = vmatprep.subr.mxu0 0.0
    %731 = vmatpush1.msra.mxu0 0.0
    %732 = vmatprep.subr.mxu0 0.0
    %733 = vmatpush1.msra.mxu0 0.0
    %734 = vmatprep.subr.mxu0 0.0
    %735 = vmatpush1.msra.mxu0 0.0
    %736 = vmatprep.subr.mxu0 0.0
    %737 = vmatpush1.msra.mxu0 0.0
    %738 = vmatprep.subr.mxu0 0.0
    %739 = vmatpush1.msra.mxu0 0.0
    %740 = vmatprep.subr.mxu0 0.0
    %741 = vmatpush1.msra.mxu0 0.0
    %742 = vmatprep.subr.mxu0 0.0
    %743 = vmatpush1.msra.mxu0 0.0
    %744 = vmatprep.subr.mxu0 0.0
    %745 = vmatpush1.msra.mxu0 0.0
    %746 = vmatprep.subr.mxu0 0.0
    %747 = vmatpush1.msra.mxu0 0.0
    %748 = vmatprep.subr.mxu0 0.0
    %749 = vmatpush1.msra.mxu0 0.0
    %750 = vmatprep.subr.mxu0 0.0
    %751 = vmatpush1.msra.mxu0 0.0
    %752 = vmatprep.subr.mxu0 0.0
    %753 = vmatpush1.msra.mxu0 0.0
    %754 = vmatprep.subr.mxu0 0.0
    %755 = vmatpush1.msra.mxu0 0.0
    %756 = vmatprep.subr.mxu0 0.0
    %757 = vmatpush1.msra.mxu0 0.0
    %758 = vmatprep.subr.mxu0 0.0
    %759 = vmatpush1.msra.mxu0 0.0
    %760 = vmatprep.subr.mxu0 0.0
    %761 = vmatpush1.msra.mxu0 %v386
    %762 = vmatprep.subr.mxu0 0.0
    %763 = vmatpush2.msra.mxu0 0.0
    %764 = vmatprep.subr.mxu0 0.0
    %765 = vmatpush2.msra.mxu0 0.0
    %766 = vmatprep.subr.mxu0 0.0
    %767 = vmatpush2.msra.mxu0 0.0
    %768 = vmatprep.subr.mxu0 0.0
    %769 = vmatpush2.msra.mxu0 0.0
    %770 = vmatprep.subr.mxu0 0.0
    %771 = vmatpush2.msra.mxu0 0.0
    %772 = vmatprep.subr.mxu0 0.0
    %773 = vmatpush2.msra.mxu0 0.0
    %774 = vmatprep.subr.mxu0 0.0
    %775 = vmatpush2.msra.mxu0 0.0
    %776 = vmatprep.subr.mxu0 0.0
    %777 = vmatpush2.msra.mxu0 0.0
    %778 = vmatprep.subr.mxu0 0.0
    %779 = vmatpush2.msra.mxu0 0.0
    %780 = vmatprep.subr.mxu0 0.0
    %781 = vmatpush2.msra.mxu0 0.0
    %782 = vmatprep.subr.mxu0 0.0
    %783 = vmatpush2.msra.mxu0 0.0
    %784 = vmatprep.subr.mxu0 0.0
    %785 = vmatpush2.msra.mxu0 0.0
    %786 = vmatprep.subr.mxu0 0.0
    %787 = vmatpush2.msra.mxu0 0.0
    %788 = vmatprep.subr.mxu0 0.0
    %789 = vmatpush2.msra.mxu0 0.0
    %790 = vmatprep.subr.mxu0 0.0
    %791 = vmatpush2.msra.mxu0 0.0
    %792 = vmatprep.subr.mxu0 0.0
    %793 = vmatpush2.msra.mxu0 0.0
    %794 = vmatprep.mubr.f32.mxu0 0.0
    %795 = vmatmul.mubr.f32.gmra.mxu0 %v728
    %v796 = vpop.f32.mrf.mxu0
    %v797 = vadd.f32 0.0, %v796
    %v798 = vpop.f32.mrf.mxu0
    %799 = vdwg.mxu0
    %v801 = vsel %vm393, %v557, 0
    %803 = vmatprep.subr.mxu0 0.0
    %804 = vmatpush1.msra.mxu0 0.0
    %805 = vmatprep.subr.mxu0 0.0
    %806 = vmatpush1.msra.mxu0 0.0
    %807 = vmatprep.subr.mxu0 0.0
    %808 = vmatpush1.msra.mxu0 0.0
    %809 = vmatprep.subr.mxu0 0.0
    %810 = vmatpush1.msra.mxu0 0.0
    %811 = vmatprep.subr.mxu0 0.0
    %812 = vmatpush1.msra.mxu0 0.0
    %813 = vmatprep.subr.mxu0 0.0
    %814 = vmatpush1.msra.mxu0 0.0
    %815 = vmatprep.subr.mxu0 0.0
    %816 = vmatpush1.msra.mxu0 0.0
    %817 = vmatprep.subr.mxu0 0.0
    %818 = vmatpush1.msra.mxu0 0.0
    %819 = vmatprep.subr.mxu0 0.0
    %820 = vmatpush1.msra.mxu0 0.0
    %821 = vmatprep.subr.mxu0 0.0
    %822 = vmatpush1.msra.mxu0 0.0
    %823 = vmatprep.subr.mxu0 0.0
    %824 = vmatpush1.msra.mxu0 0.0
    %825 = vmatprep.subr.mxu0 0.0
    %826 = vmatpush1.msra.mxu0 0.0
    %827 = vmatprep.subr.mxu0 0.0
    %828 = vmatpush1.msra.mxu0 0.0
    %829 = vmatprep.subr.mxu0 0.0
    %830 = vmatpush1.msra.mxu0 0.0
    %831 = vmatprep.subr.mxu0 0.0
    %832 = vmatpush1.msra.mxu0 0.0
    %833 = vmatprep.subr.mxu0 0.0
    %834 = vmatpush1.msra.mxu0 %v385
    %835 = vmatprep.subr.mxu0 0.0
    %836 = vmatpush2.msra.mxu0 0.0
    %837 = vmatprep.subr.mxu0 0.0
    %838 = vmatpush2.msra.mxu0 0.0
    %839 = vmatprep.subr.mxu0 0.0
    %840 = vmatpush2.msra.mxu0 0.0
    %841 = vmatprep.subr.mxu0 0.0
    %842 = vmatpush2.msra.mxu0 0.0
    %843 = vmatprep.subr.mxu0 0.0
    %844 = vmatpush2.msra.mxu0 0.0
    %845 = vmatprep.subr.mxu0 0.0
    %846 = vmatpush2.msra.mxu0 0.0
    %847 = vmatprep.subr.mxu0 0.0
    %848 = vmatpush2.msra.mxu0 0.0
    %849 = vmatprep.subr.mxu0 0.0
    %850 = vmatpush2.msra.mxu0 0.0
    %851 = vmatprep.subr.mxu0 0.0
    %852 = vmatpush2.msra.mxu0 0.0
    %853 = vmatprep.subr.mxu0 0.0
    %854 = vmatpush2.msra.mxu0 0.0
    %855 = vmatprep.subr.mxu0 0.0
    %856 = vmatpush2.msra.mxu0 0.0
    %857 = vmatprep.subr.mxu0 0.0
    %858 = vmatpush2.msra.mxu0 0.0
    %859 = vmatprep.subr.mxu0 0.0
    %860 = vmatpush2.msra.mxu0 0.0
    %861 = vmatprep.subr.mxu0 0.0
    %862 = vmatpush2.msra.mxu0 0.0
    %863 = vmatprep.subr.mxu0 0.0
    %864 = vmatpush2.msra.mxu0 0.0
    %865 = vmatprep.subr.mxu0 0.0
    %866 = vmatpush2.msra.mxu0 0.0
    %867 = vmatprep.mubr.f32.mxu0 0.0
    %868 = vmatmul.mubr.f32.gmra.mxu0 %v801
    %v869 = vpop.f32.mrf.mxu0
    %v870 = vadd.f32 %v797, %v869
    %v871 = vpop.f32.mrf.mxu0
    %872 = vdwg.mxu0
    %873 = vrot.lane.b32.xlu0 %v389, 112
    %v874 = vpop.permute.xlu0 %873
    %875 = vrot.lane.b32.xlu0 %v389, 80
    %v876 = vpop.permute.xlu0 %875
    %v877 = vsel %vm393, %v874, 0
    %v879 = vsel %vm393, %v876, 0
    %881 = vmatprep.subr.mxu0 0.0
    %882 = vmatpush1.xpose.msra.mxu0 0.0
    %883 = vmatprep.subr.mxu0 0.0
    %884 = vmatpush1.xpose.msra.mxu0 0.0
    %885 = vmatprep.subr.mxu0 0.0
    %886 = vmatpush1.xpose.msra.mxu0 0.0
    %887 = vmatprep.subr.mxu0 0.0
    %888 = vmatpush1.xpose.msra.mxu0 0.0
    %889 = vmatprep.subr.mxu0 0.0
    %890 = vmatpush1.xpose.msra.mxu0 0.0
    %891 = vmatprep.subr.mxu0 0.0
    %892 = vmatpush1.xpose.msra.mxu0 0.0
    %893 = vmatprep.subr.mxu0 0.0
    %894 = vmatpush1.xpose.msra.mxu0 0.0
    %895 = vmatprep.subr.mxu0 0.0
    %896 = vmatpush1.xpose.msra.mxu0 0.0
    %897 = vmatprep.subr.mxu0 0.0
    %898 = vmatpush1.xpose.msra.mxu0 0.0
    %899 = vmatprep.subr.mxu0 0.0
    %900 = vmatpush1.xpose.msra.mxu0 0.0
    %901 = vmatprep.subr.mxu0 0.0
    %902 = vmatpush1.xpose.msra.mxu0 0.0
    %903 = vmatprep.subr.mxu0 0.0
    %904 = vmatpush1.xpose.msra.mxu0 0.0
    %905 = vmatprep.subr.mxu0 0.0
    %906 = vmatpush1.xpose.msra.mxu0 0.0
    %907 = vmatprep.subr.mxu0 0.0
    %908 = vmatpush1.xpose.msra.mxu0 0.0
    %909 = vmatprep.subr.mxu0 0.0
    %910 = vmatpush1.xpose.msra.mxu0 0.0
    %911 = vmatprep.subr.mxu0 0.0
    %912 = vmatpush1.xpose.msra.mxu0 %v879
    %913 = vmatprep.subr.mxu0 0.0
    %914 = vmatpush2.xpose.msra.mxu0 0.0
    %915 = vmatprep.subr.mxu0 0.0
    %916 = vmatpush2.xpose.msra.mxu0 0.0
    %917 = vmatprep.subr.mxu0 0.0
    %918 = vmatpush2.xpose.msra.mxu0 0.0
    %919 = vmatprep.subr.mxu0 0.0
    %920 = vmatpush2.xpose.msra.mxu0 0.0
    %921 = vmatprep.subr.mxu0 0.0
    %922 = vmatpush2.xpose.msra.mxu0 0.0
    %923 = vmatprep.subr.mxu0 0.0
    %924 = vmatpush2.xpose.msra.mxu0 0.0
    %925 = vmatprep.subr.mxu0 0.0
    %926 = vmatpush2.xpose.msra.mxu0 0.0
    %927 = vmatprep.subr.mxu0 0.0
    %928 = vmatpush2.xpose.msra.mxu0 0.0
    %929 = vmatprep.subr.mxu0 0.0
    %930 = vmatpush2.xpose.msra.mxu0 0.0
    %931 = vmatprep.subr.mxu0 0.0
    %932 = vmatpush2.xpose.msra.mxu0 0.0
    %933 = vmatprep.subr.mxu0 0.0
    %934 = vmatpush2.xpose.msra.mxu0 0.0
    %935 = vmatprep.subr.mxu0 0.0
    %936 = vmatpush2.xpose.msra.mxu0 0.0
    %937 = vmatprep.subr.mxu0 0.0
    %938 = vmatpush2.xpose.msra.mxu0 0.0
    %939 = vmatprep.subr.mxu0 0.0
    %940 = vmatpush2.xpose.msra.mxu0 0.0
    %941 = vmatprep.subr.mxu0 0.0
    %942 = vmatpush2.xpose.msra.mxu0 0.0
    %943 = vmatprep.subr.mxu0 0.0
    %944 = vmatpush2.xpose.msra.mxu0 0.0
    %945 = vmatprep.mubr.f32.mxu0 0.0
    %946 = vmatmul.mubr.f32.gmra.mxu0 %v877
    %v947 = vpop.f32.mrf.mxu0
    %v948 = vadd.f32 0.0, %v947
    %v949 = vpop.f32.mrf.mxu0
    %950 = vdwg.mxu0
    %v951 = vmul.f32 %v948, 0.35355338
    %v952 = vsel %vm469, %v951, -inf
    %953 = vmax.xlane.f32.xlu0 %v952
    %v954 = vpop.xlane.xlu0 %953
    %v955 = vsub.f32 %v951, %v954
    %v956 = vmul.f32 %v955, 1.442695
    %v957 = vpow.pop %v956
    %v958 = vsel %vm469, %v957, 0.0
    %959 = vadd.xlane.f32.xlu0 %v958
    %v960 = vpop.xlane.xlu0 %959
    %v961 = vrcp.pop %v960
    %v962 = vmul.f32 %v957, %v961
    %963 = vrot.lane.b32.xlu0 %v389, 48
    %v964 = vpop.permute.xlu0 %963
    %v966 = vsel %vm483, %v962, 0
    %v968 = vsel %vm487, %v964, 0
    %970 = vmatprep.subr.mxu0 0.0
    %971 = vmatpush1.msra.mxu0 0.0
    %972 = vmatprep.subr.mxu0 0.0
    %973 = vmatpush1.msra.mxu0 0.0
    %974 = vmatprep.subr.mxu0 0.0
    %975 = vmatpush1.msra.mxu0 0.0
    %976 = vmatprep.subr.mxu0 0.0
    %977 = vmatpush1.msra.mxu0 0.0
    %978 = vmatprep.subr.mxu0 0.0
    %979 = vmatpush1.msra.mxu0 0.0
    %980 = vmatprep.subr.mxu0 0.0
    %981 = vmatpush1.msra.mxu0 0.0
    %982 = vmatprep.subr.mxu0 0.0
    %983 = vmatpush1.msra.mxu0 0.0
    %984 = vmatprep.subr.mxu0 0.0
    %985 = vmatpush1.msra.mxu0 0.0
    %986 = vmatprep.subr.mxu0 0.0
    %987 = vmatpush1.msra.mxu0 0.0
    %988 = vmatprep.subr.mxu0 0.0
    %989 = vmatpush1.msra.mxu0 0.0
    %990 = vmatprep.subr.mxu0 0.0
    %991 = vmatpush1.msra.mxu0 0.0
    %992 = vmatprep.subr.mxu0 0.0
    %993 = vmatpush1.msra.mxu0 0.0
    %994 = vmatprep.subr.mxu0 0.0
    %995 = vmatpush1.msra.mxu0 0.0
    %996 = vmatprep.subr.mxu0 0.0
    %997 = vmatpush1.msra.mxu0 0.0
    %998 = vmatprep.subr.mxu0 0.0
    %999 = vmatpush1.msra.mxu0 0.0
    %1000 = vmatprep.subr.mxu0 0.0
    %1001 = vmatpush1.msra.mxu0 %v968
    %1002 = vmatprep.subr.mxu0 0.0
    %1003 = vmatpush2.msra.mxu0 0.0
    %1004 = vmatprep.subr.mxu0 0.0
    %1005 = vmatpush2.msra.mxu0 0.0
    %1006 = vmatprep.subr.mxu0 0.0
    %1007 = vmatpush2.msra.mxu0 0.0
    %1008 = vmatprep.subr.mxu0 0.0
    %1009 = vmatpush2.msra.mxu0 0.0
    %1010 = vmatprep.subr.mxu0 0.0
    %1011 = vmatpush2.msra.mxu0 0.0
    %1012 = vmatprep.subr.mxu0 0.0
    %1013 = vmatpush2.msra.mxu0 0.0
    %1014 = vmatprep.subr.mxu0 0.0
    %1015 = vmatpush2.msra.mxu0 0.0
    %1016 = vmatprep.subr.mxu0 0.0
    %1017 = vmatpush2.msra.mxu0 0.0
    %1018 = vmatprep.subr.mxu0 0.0
    %1019 = vmatpush2.msra.mxu0 0.0
    %1020 = vmatprep.subr.mxu0 0.0
    %1021 = vmatpush2.msra.mxu0 0.0
    %1022 = vmatprep.subr.mxu0 0.0
    %1023 = vmatpush2.msra.mxu0 0.0
    %1024 = vmatprep.subr.mxu0 0.0
    %1025 = vmatpush2.msra.mxu0 0.0
    %1026 = vmatprep.subr.mxu0 0.0
    %1027 = vmatpush2.msra.mxu0 0.0
    %1028 = vmatprep.subr.mxu0 0.0
    %1029 = vmatpush2.msra.mxu0 0.0
    %1030 = vmatprep.subr.mxu0 0.0
    %1031 = vmatpush2.msra.mxu0 0.0
    %1032 = vmatprep.subr.mxu0 0.0
    %1033 = vmatpush2.msra.mxu0 0.0
    %1034 = vmatprep.mubr.f32.mxu0 0.0
    %1035 = vmatmul.mubr.f32.gmra.mxu0 %v966
    %v1036 = vpop.f32.mrf.mxu0
    %v1037 = vadd.f32 0.0, %v1036
    %v1038 = vpop.f32.mrf.mxu0
    %1039 = vdwg.mxu0
    %v1041 = vsel %vm393, %v1037, 0
    %1043 = vmatprep.subr.mxu0 0.0
    %1044 = vmatpush1.msra.mxu0 0.0
    %1045 = vmatprep.subr.mxu0 0.0
    %1046 = vmatpush1.msra.mxu0 0.0
    %1047 = vmatprep.subr.mxu0 0.0
    %1048 = vmatpush1.msra.mxu0 0.0
    %1049 = vmatprep.subr.mxu0 0.0
    %1050 = vmatpush1.msra.mxu0 0.0
    %1051 = vmatprep.subr.mxu0 0.0
    %1052 = vmatpush1.msra.mxu0 0.0
    %1053 = vmatprep.subr.mxu0 0.0
    %1054 = vmatpush1.msra.mxu0 0.0
    %1055 = vmatprep.subr.mxu0 0.0
    %1056 = vmatpush1.msra.mxu0 0.0
    %1057 = vmatprep.subr.mxu0 0.0
    %1058 = vmatpush1.msra.mxu0 0.0
    %1059 = vmatprep.subr.mxu0 0.0
    %1060 = vmatpush1.msra.mxu0 0.0
    %1061 = vmatprep.subr.mxu0 0.0
    %1062 = vmatpush1.msra.mxu0 0.0
    %1063 = vmatprep.subr.mxu0 0.0
    %1064 = vmatpush1.msra.mxu0 0.0
    %1065 = vmatprep.subr.mxu0 0.0
    %1066 = vmatpush1.msra.mxu0 0.0
    %1067 = vmatprep.subr.mxu0 0.0
    %1068 = vmatpush1.msra.mxu0 0.0
    %1069 = vmatprep.subr.mxu0 0.0
    %1070 = vmatpush1.msra.mxu0 0.0
    %1071 = vmatprep.subr.mxu0 0.0
    %1072 = vmatpush1.msra.mxu0 0.0
    %1073 = vmatprep.subr.mxu0 0.0
    %1074 = vmatpush1.msra.mxu0 %v387
    %1075 = vmatprep.subr.mxu0 0.0
    %1076 = vmatpush2.msra.mxu0 0.0
    %1077 = vmatprep.subr.mxu0 0.0
    %1078 = vmatpush2.msra.mxu0 0.0
    %1079 = vmatprep.subr.mxu0 0.0
    %1080 = vmatpush2.msra.mxu0 0.0
    %1081 = vmatprep.subr.mxu0 0.0
    %1082 = vmatpush2.msra.mxu0 0.0
    %1083 = vmatprep.subr.mxu0 0.0
    %1084 = vmatpush2.msra.mxu0 0.0
    %1085 = vmatprep.subr.mxu0 0.0
    %1086 = vmatpush2.msra.mxu0 0.0
    %1087 = vmatprep.subr.mxu0 0.0
    %1088 = vmatpush2.msra.mxu0 0.0
    %1089 = vmatprep.subr.mxu0 0.0
    %1090 = vmatpush2.msra.mxu0 0.0
    %1091 = vmatprep.subr.mxu0 0.0
    %1092 = vmatpush2.msra.mxu0 0.0
    %1093 = vmatprep.subr.mxu0 0.0
    %1094 = vmatpush2.msra.mxu0 0.0
    %1095 = vmatprep.subr.mxu0 0.0
    %1096 = vmatpush2.msra.mxu0 0.0
    %1097 = vmatprep.subr.mxu0 0.0
    %1098 = vmatpush2.msra.mxu0 0.0
    %1099 = vmatprep.subr.mxu0 0.0
    %1100 = vmatpush2.msra.mxu0 0.0
    %1101 = vmatprep.subr.mxu0 0.0
    %1102 = vmatpush2.msra.mxu0 0.0
    %1103 = vmatprep.subr.mxu0 0.0
    %1104 = vmatpush2.msra.mxu0 0.0
    %1105 = vmatprep.subr.mxu0 0.0
    %1106 = vmatpush2.msra.mxu0 0.0
    %1107 = vmatprep.mubr.f32.mxu0 0.0
    %1108 = vmatmul.mubr.f32.gmra.mxu0 %v1041
    %v1109 = vpop.f32.mrf.mxu0
    %v1110 = vadd.f32 0.0, %v1109
    %v1111 = vpop.f32.mrf.mxu0
    %1112 = vdwg.mxu0
    %v1113 = vadd.f32 %v870, %v1110
    %1114 = vrot.lane.b32.xlu0 %v389, 104
    %v1115 = vpop.permute.xlu0 %1114
    %1116 = vrot.lane.b32.xlu0 %v389, 72
    %v1117 = vpop.permute.xlu0 %1116
    %v1118 = vsel %vm393, %v1115, 0
    %v1120 = vsel %vm393, %v1117, 0
    %1122 = vmatprep.subr.mxu0 0.0
    %1123 = vmatpush1.xpose.msra.mxu0 0.0
    %1124 = vmatprep.subr.mxu0 0.0
    %1125 = vmatpush1.xpose.msra.mxu0 0.0
    %1126 = vmatprep.subr.mxu0 0.0
    %1127 = vmatpush1.xpose.msra.mxu0 0.0
    %1128 = vmatprep.subr.mxu0 0.0
    %1129 = vmatpush1.xpose.msra.mxu0 0.0
    %1130 = vmatprep.subr.mxu0 0.0
    %1131 = vmatpush1.xpose.msra.mxu0 0.0
    %1132 = vmatprep.subr.mxu0 0.0
    %1133 = vmatpush1.xpose.msra.mxu0 0.0
    %1134 = vmatprep.subr.mxu0 0.0
    %1135 = vmatpush1.xpose.msra.mxu0 0.0
    %1136 = vmatprep.subr.mxu0 0.0
    %1137 = vmatpush1.xpose.msra.mxu0 0.0
    %1138 = vmatprep.subr.mxu0 0.0
    %1139 = vmatpush1.xpose.msra.mxu0 0.0
    %1140 = vmatprep.subr.mxu0 0.0
    %1141 = vmatpush1.xpose.msra.mxu0 0.0
    %1142 = vmatprep.subr.mxu0 0.0
    %1143 = vmatpush1.xpose.msra.mxu0 0.0
    %1144 = vmatprep.subr.mxu0 0.0
    %1145 = vmatpush1.xpose.msra.mxu0 0.0
    %1146 = vmatprep.subr.mxu0 0.0
    %1147 = vmatpush1.xpose.msra.mxu0 0.0
    %1148 = vmatprep.subr.mxu0 0.0
    %1149 = vmatpush1.xpose.msra.mxu0 0.0
    %1150 = vmatprep.subr.mxu0 0.0
    %1151 = vmatpush1.xpose.msra.mxu0 0.0
    %1152 = vmatprep.subr.mxu0 0.0
    %1153 = vmatpush1.xpose.msra.mxu0 %v1120
    %1154 = vmatprep.subr.mxu0 0.0
    %1155 = vmatpush2.xpose.msra.mxu0 0.0
    %1156 = vmatprep.subr.mxu0 0.0
    %1157 = vmatpush2.xpose.msra.mxu0 0.0
    %1158 = vmatprep.subr.mxu0 0.0
    %1159 = vmatpush2.xpose.msra.mxu0 0.0
    %1160 = vmatprep.subr.mxu0 0.0
    %1161 = vmatpush2.xpose.msra.mxu0 0.0
    %1162 = vmatprep.subr.mxu0 0.0
    %1163 = vmatpush2.xpose.msra.mxu0 0.0
    %1164 = vmatprep.subr.mxu0 0.0
    %1165 = vmatpush2.xpose.msra.mxu0 0.0
    %1166 = vmatprep.subr.mxu0 0.0
    %1167 = vmatpush2.xpose.msra.mxu0 0.0
    %1168 = vmatprep.subr.mxu0 0.0
    %1169 = vmatpush2.xpose.msra.mxu0 0.0
    %1170 = vmatprep.subr.mxu0 0.0
    %1171 = vmatpush2.xpose.msra.mxu0 0.0
    %1172 = vmatprep.subr.mxu0 0.0
    %1173 = vmatpush2.xpose.msra.mxu0 0.0
    %1174 = vmatprep.subr.mxu0 0.0
    %1175 = vmatpush2.xpose.msra.mxu0 0.0
    %1176 = vmatprep.subr.mxu0 0.0
    %1177 = vmatpush2.xpose.msra.mxu0 0.0
    %1178 = vmatprep.subr.mxu0 0.0
    %1179 = vmatpush2.xpose.msra.mxu0 0.0
    %1180 = vmatprep.subr.mxu0 0.0
    %1181 = vmatpush2.xpose.msra.mxu0 0.0
    %1182 = vmatprep.subr.mxu0 0.0
    %1183 = vmatpush2.xpose.msra.mxu0 0.0
    %1184 = vmatprep.subr.mxu0 0.0
    %1185 = vmatpush2.xpose.msra.mxu0 0.0
    %1186 = vmatprep.mubr.f32.mxu0 0.0
    %1187 = vmatmul.mubr.f32.gmra.mxu0 %v1118
    %v1188 = vpop.f32.mrf.mxu0
    %v1189 = vadd.f32 0.0, %v1188
    %v1190 = vpop.f32.mrf.mxu0
    %1191 = vdwg.mxu0
    %v1192 = vmul.f32 %v1189, 0.35355338
    %v1193 = vsel %vm469, %v1192, -inf
    %1194 = vmax.xlane.f32.xlu0 %v1193
    %v1195 = vpop.xlane.xlu0 %1194
    %v1196 = vsub.f32 %v1192, %v1195
    %v1197 = vmul.f32 %v1196, 1.442695
    %v1198 = vpow.pop %v1197
    %v1199 = vsel %vm469, %v1198, 0.0
    %1200 = vadd.xlane.f32.xlu0 %v1199
    %v1201 = vpop.xlane.xlu0 %1200
    %v1202 = vrcp.pop %v1201
    %v1203 = vmul.f32 %v1198, %v1202
    %1204 = vrot.lane.b32.xlu0 %v389, 40
    %v1205 = vpop.permute.xlu0 %1204
    %v1207 = vsel %vm483, %v1203, 0
    %v1209 = vsel %vm487, %v1205, 0
    %1211 = vmatprep.subr.mxu0 0.0
    %1212 = vmatpush1.msra.mxu0 0.0
    %1213 = vmatprep.subr.mxu0 0.0
    %1214 = vmatpush1.msra.mxu0 0.0
    %1215 = vmatprep.subr.mxu0 0.0
    %1216 = vmatpush1.msra.mxu0 0.0
    %1217 = vmatprep.subr.mxu0 0.0
    %1218 = vmatpush1.msra.mxu0 0.0
    %1219 = vmatprep.subr.mxu0 0.0
    %1220 = vmatpush1.msra.mxu0 0.0
    %1221 = vmatprep.subr.mxu0 0.0
    %1222 = vmatpush1.msra.mxu0 0.0
    %1223 = vmatprep.subr.mxu0 0.0
    %1224 = vmatpush1.msra.mxu0 0.0
    %1225 = vmatprep.subr.mxu0 0.0
    %1226 = vmatpush1.msra.mxu0 0.0
    %1227 = vmatprep.subr.mxu0 0.0
    %1228 = vmatpush1.msra.mxu0 0.0
    %1229 = vmatprep.subr.mxu0 0.0
    %1230 = vmatpush1.msra.mxu0 0.0
    %1231 = vmatprep.subr.mxu0 0.0
    %1232 = vmatpush1.msra.mxu0 0.0
    %1233 = vmatprep.subr.mxu0 0.0
    %1234 = vmatpush1.msra.mxu0 0.0
    %1235 = vmatprep.subr.mxu0 0.0
    %1236 = vmatpush1.msra.mxu0 0.0
    %1237 = vmatprep.subr.mxu0 0.0
    %1238 = vmatpush1.msra.mxu0 0.0
    %1239 = vmatprep.subr.mxu0 0.0
    %1240 = vmatpush1.msra.mxu0 0.0
    %1241 = vmatprep.subr.mxu0 0.0
    %1242 = vmatpush1.msra.mxu0 %v1209
    %1243 = vmatprep.subr.mxu0 0.0
    %1244 = vmatpush2.msra.mxu0 0.0
    %1245 = vmatprep.subr.mxu0 0.0
    %1246 = vmatpush2.msra.mxu0 0.0
    %1247 = vmatprep.subr.mxu0 0.0
    %1248 = vmatpush2.msra.mxu0 0.0
    %1249 = vmatprep.subr.mxu0 0.0
    %1250 = vmatpush2.msra.mxu0 0.0
    %1251 = vmatprep.subr.mxu0 0.0
    %1252 = vmatpush2.msra.mxu0 0.0
    %1253 = vmatprep.subr.mxu0 0.0
    %1254 = vmatpush2.msra.mxu0 0.0
    %1255 = vmatprep.subr.mxu0 0.0
    %1256 = vmatpush2.msra.mxu0 0.0
    %1257 = vmatprep.subr.mxu0 0.0
    %1258 = vmatpush2.msra.mxu0 0.0
    %1259 = vmatprep.subr.mxu0 0.0
    %1260 = vmatpush2.msra.mxu0 0.0
    %1261 = vmatprep.subr.mxu0 0.0
    %1262 = vmatpush2.msra.mxu0 0.0
    %1263 = vmatprep.subr.mxu0 0.0
    %1264 = vmatpush2.msra.mxu0 0.0
    %1265 = vmatprep.subr.mxu0 0.0
    %1266 = vmatpush2.msra.mxu0 0.0
    %1267 = vmatprep.subr.mxu0 0.0
    %1268 = vmatpush2.msra.mxu0 0.0
    %1269 = vmatprep.subr.mxu0 0.0
    %1270 = vmatpush2.msra.mxu0 0.0
    %1271 = vmatprep.subr.mxu0 0.0
    %1272 = vmatpush2.msra.mxu0 0.0
    %1273 = vmatprep.subr.mxu0 0.0
    %1274 = vmatpush2.msra.mxu0 0.0
    %1275 = vmatprep.mubr.f32.mxu0 0.0
    %1276 = vmatmul.mubr.f32.gmra.mxu0 %v1207
    %v1277 = vpop.f32.mrf.mxu0
    %v1278 = vadd.f32 0.0, %v1277
    %v1279 = vpop.f32.mrf.mxu0
    %1280 = vdwg.mxu0
    %v1282 = vsel %vm393, %v1278, 0
    %1284 = vmatprep.subr.mxu0 0.0
    %1285 = vmatpush1.msra.mxu0 0.0
    %1286 = vmatprep.subr.mxu0 0.0
    %1287 = vmatpush1.msra.mxu0 0.0
    %1288 = vmatprep.subr.mxu0 0.0
    %1289 = vmatpush1.msra.mxu0 0.0
    %1290 = vmatprep.subr.mxu0 0.0
    %1291 = vmatpush1.msra.mxu0 0.0
    %1292 = vmatprep.subr.mxu0 0.0
    %1293 = vmatpush1.msra.mxu0 0.0
    %1294 = vmatprep.subr.mxu0 0.0
    %1295 = vmatpush1.msra.mxu0 0.0
    %1296 = vmatprep.subr.mxu0 0.0
    %1297 = vmatpush1.msra.mxu0 0.0
    %1298 = vmatprep.subr.mxu0 0.0
    %1299 = vmatpush1.msra.mxu0 0.0
    %1300 = vmatprep.subr.mxu0 0.0
    %1301 = vmatpush1.msra.mxu0 0.0
    %1302 = vmatprep.subr.mxu0 0.0
    %1303 = vmatpush1.msra.mxu0 0.0
    %1304 = vmatprep.subr.mxu0 0.0
    %1305 = vmatpush1.msra.mxu0 0.0
    %1306 = vmatprep.subr.mxu0 0.0
    %1307 = vmatpush1.msra.mxu0 0.0
    %1308 = vmatprep.subr.mxu0 0.0
    %1309 = vmatpush1.msra.mxu0 0.0
    %1310 = vmatprep.subr.mxu0 0.0
    %1311 = vmatpush1.msra.mxu0 0.0
    %1312 = vmatprep.subr.mxu0 0.0
    %1313 = vmatpush1.msra.mxu0 0.0
    %1314 = vmatprep.subr.mxu0 0.0
    %1315 = vmatpush1.msra.mxu0 %v388
    %1316 = vmatprep.subr.mxu0 0.0
    %1317 = vmatpush2.msra.mxu0 0.0
    %1318 = vmatprep.subr.mxu0 0.0
    %1319 = vmatpush2.msra.mxu0 0.0
    %1320 = vmatprep.subr.mxu0 0.0
    %1321 = vmatpush2.msra.mxu0 0.0
    %1322 = vmatprep.subr.mxu0 0.0
    %1323 = vmatpush2.msra.mxu0 0.0
    %1324 = vmatprep.subr.mxu0 0.0
    %1325 = vmatpush2.msra.mxu0 0.0
    %1326 = vmatprep.subr.mxu0 0.0
    %1327 = vmatpush2.msra.mxu0 0.0
    %1328 = vmatprep.subr.mxu0 0.0
    %1329 = vmatpush2.msra.mxu0 0.0
    %1330 = vmatprep.subr.mxu0 0.0
    %1331 = vmatpush2.msra.mxu0 0.0
    %1332 = vmatprep.subr.mxu0 0.0
    %1333 = vmatpush2.msra.mxu0 0.0
    %1334 = vmatprep.subr.mxu0 0.0
    %1335 = vmatpush2.msra.mxu0 0.0
    %1336 = vmatprep.subr.mxu0 0.0
    %1337 = vmatpush2.msra.mxu0 0.0
    %1338 = vmatprep.subr.mxu0 0.0
    %1339 = vmatpush2.msra.mxu0 0.0
    %1340 = vmatprep.subr.mxu0 0.0
    %1341 = vmatpush2.msra.mxu0 0.0
    %1342 = vmatprep.subr.mxu0 0.0
    %1343 = vmatpush2.msra.mxu0 0.0
    %1344 = vmatprep.subr.mxu0 0.0
    %1345 = vmatpush2.msra.mxu0 0.0
    %1346 = vmatprep.subr.mxu0 0.0
    %1347 = vmatpush2.msra.mxu0 0.0
    %1348 = vmatprep.mubr.f32.mxu0 0.0
    %1349 = vmatmul.mubr.f32.gmra.mxu0 %v1282
    %v1350 = vpop.f32.mrf.mxu0
    %v1351 = vadd.f32 0.0, %v1350
    %v1352 = vpop.f32.mrf.mxu0
    %1353 = vdwg.mxu0
    %v1354 = vadd.f32 %v1113, %v1351
    %v1355 = vld [vmem:[#allocation2] sm:$0x1f]
    %v1356 = vadd.f32 %v1355, %v1354
    %v1357 = vld [vmem:[%s10] sm:$0x1]
    %v1359 = vlaneseq
    %v1360 = vshrl.u32 %v1359, 7
    %v1361 = vsub.s32 0, %v1360
    %v1362 = vrot.slane %v1357, %v1361
    %v1364 = vadd.f32 %v1356, %v1362
    %vm1365 = vcmask 258048
    %1366 = vst.msk [vmem:[#allocation2] sm:$0x1f] %vm1365, %v1364
    %v1367 = vld [vmem:[#allocation3 + $0x8] sm:$0x1f]
    %1369 = vrot.lane.b32.xlu0 %v1367, 96
    %v1370 = vpop.permute.xlu0 %1369
    %v1371 = vsel %vm393, %v1367, 0
    %v1373 = vsel %vm393, %v1370, 0
    %1375 = vmatprep.subr.mxu0 0.0
    %1376 = vmatpush1.xpose.msra.mxu0 0.0
    %1377 = vmatprep.subr.mxu0 0.0
    %1378 = vmatpush1.xpose.msra.mxu0 0.0
    %1379 = vmatprep.subr.mxu0 0.0
    %1380 = vmatpush1.xpose.msra.mxu0 0.0
    %1381 = vmatprep.subr.mxu0 0.0
    %1382 = vmatpush1.xpose.msra.mxu0 0.0
    %1383 = vmatprep.subr.mxu0 0.0
    %1384 = vmatpush1.xpose.msra.mxu0 0.0
    %1385 = vmatprep.subr.mxu0 0.0
    %1386 = vmatpush1.xpose.msra.mxu0 0.0
    %1387 = vmatprep.subr.mxu0 0.0
    %1388 = vmatpush1.xpose.msra.mxu0 0.0
    %1389 = vmatprep.subr.mxu0 0.0
    %1390 = vmatpush1.xpose.msra.mxu0 0.0
    %1391 = vmatprep.subr.mxu0 0.0
    %1392 = vmatpush1.xpose.msra.mxu0 0.0
    %1393 = vmatprep.subr.mxu0 0.0
    %1394 = vmatpush1.xpose.msra.mxu0 0.0
    %1395 = vmatprep.subr.mxu0 0.0
    %1396 = vmatpush1.xpose.msra.mxu0 0.0
    %1397 = vmatprep.subr.mxu0 0.0
    %1398 = vmatpush1.xpose.msra.mxu0 0.0
    %1399 = vmatprep.subr.mxu0 0.0
    %1400 = vmatpush1.xpose.msra.mxu0 0.0
    %1401 = vmatprep.subr.mxu0 0.0
    %1402 = vmatpush1.xpose.msra.mxu0 0.0
    %1403 = vmatprep.subr.mxu0 0.0
    %1404 = vmatpush1.xpose.msra.mxu0 0.0
    %1405 = vmatprep.subr.mxu0 0.0
    %1406 = vmatpush1.xpose.msra.mxu0 %v1373
    %1407 = vmatprep.subr.mxu0 0.0
    %1408 = vmatpush2.xpose.msra.mxu0 0.0
    %1409 = vmatprep.subr.mxu0 0.0
    %1410 = vmatpush2.xpose.msra.mxu0 0.0
    %1411 = vmatprep.subr.mxu0 0.0
    %1412 = vmatpush2.xpose.msra.mxu0 0.0
    %1413 = vmatprep.subr.mxu0 0.0
    %1414 = vmatpush2.xpose.msra.mxu0 0.0
    %1415 = vmatprep.subr.mxu0 0.0
    %1416 = vmatpush2.xpose.msra.mxu0 0.0
    %1417 = vmatprep.subr.mxu0 0.0
    %1418 = vmatpush2.xpose.msra.mxu0 0.0
    %1419 = vmatprep.subr.mxu0 0.0
    %1420 = vmatpush2.xpose.msra.mxu0 0.0
    %1421 = vmatprep.subr.mxu0 0.0
    %1422 = vmatpush2.xpose.msra.mxu0 0.0
    %1423 = vmatprep.subr.mxu0 0.0
    %1424 = vmatpush2.xpose.msra.mxu0 0.0
    %1425 = vmatprep.subr.mxu0 0.0
    %1426 = vmatpush2.xpose.msra.mxu0 0.0
    %1427 = vmatprep.subr.mxu0 0.0
    %1428 = vmatpush2.xpose.msra.mxu0 0.0
    %1429 = vmatprep.subr.mxu0 0.0
    %1430 = vmatpush2.xpose.msra.mxu0 0.0
    %1431 = vmatprep.subr.mxu0 0.0
    %1432 = vmatpush2.xpose.msra.mxu0 0.0
    %1433 = vmatprep.subr.mxu0 0.0
    %1434 = vmatpush2.xpose.msra.mxu0 0.0
    %1435 = vmatprep.subr.mxu0 0.0
    %1436 = vmatpush2.xpose.msra.mxu0 0.0
    %1437 = vmatprep.subr.mxu0 0.0
    %1438 = vmatpush2.xpose.msra.mxu0 0.0
    %1439 = vmatprep.mubr.f32.mxu0 0.0
    %1440 = vmatmul.mubr.f32.gmra.mxu0 %v1371
    %v1441 = vpop.f32.mrf.mxu0
    %v1442 = vadd.f32 0.0, %v1441
    %v1443 = vpop.f32.mrf.mxu0
    %1444 = vdwg.mxu0
    %v1445 = vmul.f32 %v1442, 0.35355338
    %v1446 = vsel %vm469, %v1445, -inf
    %1447 = vmax.xlane.f32.xlu0 %v1446
    %v1448 = vpop.xlane.xlu0 %1447
    %v1449 = vsub.f32 %v1445, %v1448
    %v1450 = vmul.f32 %v1449, 1.442695
    %v1451 = vpow.pop %v1450
    %v1452 = vsel %vm469, %v1451, 0.0
    %1453 = vadd.xlane.f32.xlu0 %v1452
    %v1454 = vpop.xlane.xlu0 %1453
    %v1455 = vrcp.pop %v1454
    %v1456 = vmul.f32 %v1451, %v1455
    %1457 = vrot.lane.b32.xlu0 %v1367, 64
    %v1458 = vpop.permute.xlu0 %1457
    %v1460 = vsel %vm483, %v1456, 0
    %v1462 = vsel %vm487, %v1458, 0
    %1464 = vmatprep.subr.mxu0 0.0
    %1465 = vmatpush1.msra.mxu0 0.0
    %1466 = vmatprep.subr.mxu0 0.0
    %1467 = vmatpush1.msra.mxu0 0.0
    %1468 = vmatprep.subr.mxu0 0.0
    %1469 = vmatpush1.msra.mxu0 0.0
    %1470 = vmatprep.subr.mxu0 0.0
    %1471 = vmatpush1.msra.mxu0 0.0
    %1472 = vmatprep.subr.mxu0 0.0
    %1473 = vmatpush1.msra.mxu0 0.0
    %1474 = vmatprep.subr.mxu0 0.0
    %1475 = vmatpush1.msra.mxu0 0.0
    %1476 = vmatprep.subr.mxu0 0.0
    %1477 = vmatpush1.msra.mxu0 0.0
    %1478 = vmatprep.subr.mxu0 0.0
    %1479 = vmatpush1.msra.mxu0 0.0
    %1480 = vmatprep.subr.mxu0 0.0
    %1481 = vmatpush1.msra.mxu0 0.0
    %1482 = vmatprep.subr.mxu0 0.0
    %1483 = vmatpush1.msra.mxu0 0.0
    %1484 = vmatprep.subr.mxu0 0.0
    %1485 = vmatpush1.msra.mxu0 0.0
    %1486 = vmatprep.subr.mxu0 0.0
    %1487 = vmatpush1.msra.mxu0 0.0
    %1488 = vmatprep.subr.mxu0 0.0
    %1489 = vmatpush1.msra.mxu0 0.0
    %1490 = vmatprep.subr.mxu0 0.0
    %1491 = vmatpush1.msra.mxu0 0.0
    %1492 = vmatprep.subr.mxu0 0.0
    %1493 = vmatpush1.msra.mxu0 0.0
    %1494 = vmatprep.subr.mxu0 0.0
    %1495 = vmatpush1.msra.mxu0 %v1462
    %1496 = vmatprep.subr.mxu0 0.0
    %1497 = vmatpush2.msra.mxu0 0.0
    %1498 = vmatprep.subr.mxu0 0.0
    %1499 = vmatpush2.msra.mxu0 0.0
    %1500 = vmatprep.subr.mxu0 0.0
    %1501 = vmatpush2.msra.mxu0 0.0
    %1502 = vmatprep.subr.mxu0 0.0
    %1503 = vmatpush2.msra.mxu0 0.0
    %1504 = vmatprep.subr.mxu0 0.0
    %1505 = vmatpush2.msra.mxu0 0.0
    %1506 = vmatprep.subr.mxu0 0.0
    %1507 = vmatpush2.msra.mxu0 0.0
    %1508 = vmatprep.subr.mxu0 0.0
    %1509 = vmatpush2.msra.mxu0 0.0
    %1510 = vmatprep.subr.mxu0 0.0
    %1511 = vmatpush2.msra.mxu0 0.0
    %1512 = vmatprep.subr.mxu0 0.0
    %1513 = vmatpush2.msra.mxu0 0.0
    %1514 = vmatprep.subr.mxu0 0.0
    %1515 = vmatpush2.msra.mxu0 0.0
    %1516 = vmatprep.subr.mxu0 0.0
    %1517 = vmatpush2.msra.mxu0 0.0
    %1518 = vmatprep.subr.mxu0 0.0
    %1519 = vmatpush2.msra.mxu0 0.0
    %1520 = vmatprep.subr.mxu0 0.0
    %1521 = vmatpush2.msra.mxu0 0.0
    %1522 = vmatprep.subr.mxu0 0.0
    %1523 = vmatpush2.msra.mxu0 0.0
    %1524 = vmatprep.subr.mxu0 0.0
    %1525 = vmatpush2.msra.mxu0 0.0
    %1526 = vmatprep.subr.mxu0 0.0
    %1527 = vmatpush2.msra.mxu0 0.0
    %1528 = vmatprep.mubr.f32.mxu0 0.0
    %1529 = vmatmul.mubr.f32.gmra.mxu0 %v1460
    %v1530 = vpop.f32.mrf.mxu0
    %v1531 = vadd.f32 0.0, %v1530
    %v1532 = vpop.f32.mrf.mxu0
    %1533 = vdwg.mxu0
    %1534 = vrot.lane.b32.xlu0 %v1367, 120
    %v1535 = vpop.permute.xlu0 %1534
    %1536 = vrot.lane.b32.xlu0 %v1367, 88
    %v1537 = vpop.permute.xlu0 %1536
    %v1538 = vsel %vm393, %v1535, 0
    %v1540 = vsel %vm393, %v1537, 0
    %1542 = vmatprep.subr.mxu0 0.0
    %1543 = vmatpush1.xpose.msra.mxu0 0.0
    %1544 = vmatprep.subr.mxu0 0.0
    %1545 = vmatpush1.xpose.msra.mxu0 0.0
    %1546 = vmatprep.subr.mxu0 0.0
    %1547 = vmatpush1.xpose.msra.mxu0 0.0
    %1548 = vmatprep.subr.mxu0 0.0
    %1549 = vmatpush1.xpose.msra.mxu0 0.0
    %1550 = vmatprep.subr.mxu0 0.0
    %1551 = vmatpush1.xpose.msra.mxu0 0.0
    %1552 = vmatprep.subr.mxu0 0.0
    %1553 = vmatpush1.xpose.msra.mxu0 0.0
    %1554 = vmatprep.subr.mxu0 0.0
    %1555 = vmatpush1.xpose.msra.mxu0 0.0
    %1556 = vmatprep.subr.mxu0 0.0
    %1557 = vmatpush1.xpose.msra.mxu0 0.0
    %1558 = vmatprep.subr.mxu0 0.0
    %1559 = vmatpush1.xpose.msra.mxu0 0.0
    %1560 = vmatprep.subr.mxu0 0.0
    %1561 = vmatpush1.xpose.msra.mxu0 0.0
    %1562 = vmatprep.subr.mxu0 0.0
    %1563 = vmatpush1.xpose.msra.mxu0 0.0
    %1564 = vmatprep.subr.mxu0 0.0
    %1565 = vmatpush1.xpose.msra.mxu0 0.0
    %1566 = vmatprep.subr.mxu0 0.0
    %1567 = vmatpush1.xpose.msra.mxu0 0.0
    %1568 = vmatprep.subr.mxu0 0.0
    %1569 = vmatpush1.xpose.msra.mxu0 0.0
    %1570 = vmatprep.subr.mxu0 0.0
    %1571 = vmatpush1.xpose.msra.mxu0 0.0
    %1572 = vmatprep.subr.mxu0 0.0
    %1573 = vmatpush1.xpose.msra.mxu0 %v1540
    %1574 = vmatprep.subr.mxu0 0.0
    %1575 = vmatpush2.xpose.msra.mxu0 0.0
    %1576 = vmatprep.subr.mxu0 0.0
    %1577 = vmatpush2.xpose.msra.mxu0 0.0
    %1578 = vmatprep.subr.mxu0 0.0
    %1579 = vmatpush2.xpose.msra.mxu0 0.0
    %1580 = vmatprep.subr.mxu0 0.0
    %1581 = vmatpush2.xpose.msra.mxu0 0.0
    %1582 = vmatprep.subr.mxu0 0.0
    %1583 = vmatpush2.xpose.msra.mxu0 0.0
    %1584 = vmatprep.subr.mxu0 0.0
    %1585 = vmatpush2.xpose.msra.mxu0 0.0
    %1586 = vmatprep.subr.mxu0 0.0
    %1587 = vmatpush2.xpose.msra.mxu0 0.0
    %1588 = vmatprep.subr.mxu0 0.0
    %1589 = vmatpush2.xpose.msra.mxu0 0.0
    %1590 = vmatprep.subr.mxu0 0.0
    %1591 = vmatpush2.xpose.msra.mxu0 0.0
    %1592 = vmatprep.subr.mxu0 0.0
    %1593 = vmatpush2.xpose.msra.mxu0 0.0
    %1594 = vmatprep.subr.mxu0 0.0
    %1595 = vmatpush2.xpose.msra.mxu0 0.0
    %1596 = vmatprep.subr.mxu0 0.0
    %1597 = vmatpush2.xpose.msra.mxu0 0.0
    %1598 = vmatprep.subr.mxu0 0.0
    %1599 = vmatpush2.xpose.msra.mxu0 0.0
    %1600 = vmatprep.subr.mxu0 0.0
    %1601 = vmatpush2.xpose.msra.mxu0 0.0
    %1602 = vmatprep.subr.mxu0 0.0
    %1603 = vmatpush2.xpose.msra.mxu0 0.0
    %1604 = vmatprep.subr.mxu0 0.0
    %1605 = vmatpush2.xpose.msra.mxu0 0.0
    %1606 = vmatprep.mubr.f32.mxu0 0.0
    %1607 = vmatmul.mubr.f32.gmra.mxu0 %v1538
    %v1608 = vpop.f32.mrf.mxu0
    %v1609 = vadd.f32 0.0, %v1608
    %v1610 = vpop.f32.mrf.mxu0
    %1611 = vdwg.mxu0
    %v1612 = vmul.f32 %v1609, 0.35355338
    %v1613 = vsel %vm469, %v1612, -inf
    %1614 = vmax.xlane.f32.xlu0 %v1613
    %v1615 = vpop.xlane.xlu0 %1614
    %v1616 = vsub.f32 %v1612, %v1615
    %v1617 = vmul.f32 %v1616, 1.442695
    %v1618 = vpow.pop %v1617
    %v1619 = vsel %vm469, %v1618, 0.0
    %1620 = vadd.xlane.f32.xlu0 %v1619
    %v1621 = vpop.xlane.xlu0 %1620
    %v1622 = vrcp.pop %v1621
    %v1623 = vmul.f32 %v1618, %v1622
    %1624 = vrot.lane.b32.xlu0 %v1367, 56
    %v1625 = vpop.permute.xlu0 %1624
    %v1627 = vsel %vm483, %v1623, 0
    %v1629 = vsel %vm487, %v1625, 0
    %1631 = vmatprep.subr.mxu0 0.0
    %1632 = vmatpush1.msra.mxu0 0.0
    %1633 = vmatprep.subr.mxu0 0.0
    %1634 = vmatpush1.msra.mxu0 0.0
    %1635 = vmatprep.subr.mxu0 0.0
    %1636 = vmatpush1.msra.mxu0 0.0
    %1637 = vmatprep.subr.mxu0 0.0
    %1638 = vmatpush1.msra.mxu0 0.0
    %1639 = vmatprep.subr.mxu0 0.0
    %1640 = vmatpush1.msra.mxu0 0.0
    %1641 = vmatprep.subr.mxu0 0.0
    %1642 = vmatpush1.msra.mxu0 0.0
    %1643 = vmatprep.subr.mxu0 0.0
    %1644 = vmatpush1.msra.mxu0 0.0
    %1645 = vmatprep.subr.mxu0 0.0
    %1646 = vmatpush1.msra.mxu0 0.0
    %1647 = vmatprep.subr.mxu0 0.0
    %1648 = vmatpush1.msra.mxu0 0.0
    %1649 = vmatprep.subr.mxu0 0.0
    %1650 = vmatpush1.msra.mxu0 0.0
    %1651 = vmatprep.subr.mxu0 0.0
    %1652 = vmatpush1.msra.mxu0 0.0
    %1653 = vmatprep.subr.mxu0 0.0
    %1654 = vmatpush1.msra.mxu0 0.0
    %1655 = vmatprep.subr.mxu0 0.0
    %1656 = vmatpush1.msra.mxu0 0.0
    %1657 = vmatprep.subr.mxu0 0.0
    %1658 = vmatpush1.msra.mxu0 0.0
    %1659 = vmatprep.subr.mxu0 0.0
    %1660 = vmatpush1.msra.mxu0 0.0
    %1661 = vmatprep.subr.mxu0 0.0
    %1662 = vmatpush1.msra.mxu0 %v1629
    %1663 = vmatprep.subr.mxu0 0.0
    %1664 = vmatpush2.msra.mxu0 0.0
    %1665 = vmatprep.subr.mxu0 0.0
    %1666 = vmatpush2.msra.mxu0 0.0
    %1667 = vmatprep.subr.mxu0 0.0
    %1668 = vmatpush2.msra.mxu0 0.0
    %1669 = vmatprep.subr.mxu0 0.0
    %1670 = vmatpush2.msra.mxu0 0.0
    %1671 = vmatprep.subr.mxu0 0.0
    %1672 = vmatpush2.msra.mxu0 0.0
    %1673 = vmatprep.subr.mxu0 0.0
    %1674 = vmatpush2.msra.mxu0 0.0
    %1675 = vmatprep.subr.mxu0 0.0
    %1676 = vmatpush2.msra.mxu0 0.0
    %1677 = vmatprep.subr.mxu0 0.0
    %1678 = vmatpush2.msra.mxu0 0.0
    %1679 = vmatprep.subr.mxu0 0.0
    %1680 = vmatpush2.msra.mxu0 0.0
    %1681 = vmatprep.subr.mxu0 0.0
    %1682 = vmatpush2.msra.mxu0 0.0
    %1683 = vmatprep.subr.mxu0 0.0
    %1684 = vmatpush2.msra.mxu0 0.0
    %1685 = vmatprep.subr.mxu0 0.0
    %1686 = vmatpush2.msra.mxu0 0.0
    %1687 = vmatprep.subr.mxu0 0.0
    %1688 = vmatpush2.msra.mxu0 0.0
    %1689 = vmatprep.subr.mxu0 0.0
    %1690 = vmatpush2.msra.mxu0 0.0
    %1691 = vmatprep.subr.mxu0 0.0
    %1692 = vmatpush2.msra.mxu0 0.0
    %1693 = vmatprep.subr.mxu0 0.0
    %1694 = vmatpush2.msra.mxu0 0.0
    %1695 = vmatprep.mubr.f32.mxu0 0.0
    %1696 = vmatmul.mubr.f32.gmra.mxu0 %v1627
    %v1697 = vpop.f32.mrf.mxu0
    %v1698 = vadd.f32 0.0, %v1697
    %v1699 = vpop.f32.mrf.mxu0
    %1700 = vdwg.mxu0
    %v1702 = vsel %vm393, %v1698, 0
    %1704 = vmatprep.subr.mxu0 0.0
    %1705 = vmatpush1.msra.mxu0 0.0
    %1706 = vmatprep.subr.mxu0 0.0
    %1707 = vmatpush1.msra.mxu0 0.0
    %1708 = vmatprep.subr.mxu0 0.0
    %1709 = vmatpush1.msra.mxu0 0.0
    %1710 = vmatprep.subr.mxu0 0.0
    %1711 = vmatpush1.msra.mxu0 0.0
    %1712 = vmatprep.subr.mxu0 0.0
    %1713 = vmatpush1.msra.mxu0 0.0
    %1714 = vmatprep.subr.mxu0 0.0
    %1715 = vmatpush1.msra.mxu0 0.0
    %1716 = vmatprep.subr.mxu0 0.0
    %1717 = vmatpush1.msra.mxu0 0.0
    %1718 = vmatprep.subr.mxu0 0.0
    %1719 = vmatpush1.msra.mxu0 0.0
    %1720 = vmatprep.subr.mxu0 0.0
    %1721 = vmatpush1.msra.mxu0 0.0
    %1722 = vmatprep.subr.mxu0 0.0
    %1723 = vmatpush1.msra.mxu0 0.0
    %1724 = vmatprep.subr.mxu0 0.0
    %1725 = vmatpush1.msra.mxu0 0.0
    %1726 = vmatprep.subr.mxu0 0.0
    %1727 = vmatpush1.msra.mxu0 0.0
    %1728 = vmatprep.subr.mxu0 0.0
    %1729 = vmatpush1.msra.mxu0 0.0
    %1730 = vmatprep.subr.mxu0 0.0
    %1731 = vmatpush1.msra.mxu0 0.0
    %1732 = vmatprep.subr.mxu0 0.0
    %1733 = vmatpush1.msra.mxu0 0.0
    %1734 = vmatprep.subr.mxu0 0.0
    %1735 = vmatpush1.msra.mxu0 %v386
    %1736 = vmatprep.subr.mxu0 0.0
    %1737 = vmatpush2.msra.mxu0 0.0
    %1738 = vmatprep.subr.mxu0 0.0
    %1739 = vmatpush2.msra.mxu0 0.0
    %1740 = vmatprep.subr.mxu0 0.0
    %1741 = vmatpush2.msra.mxu0 0.0
    %1742 = vmatprep.subr.mxu0 0.0
    %1743 = vmatpush2.msra.mxu0 0.0
    %1744 = vmatprep.subr.mxu0 0.0
    %1745 = vmatpush2.msra.mxu0 0.0
    %1746 = vmatprep.subr.mxu0 0.0
    %1747 = vmatpush2.msra.mxu0 0.0
    %1748 = vmatprep.subr.mxu0 0.0
    %1749 = vmatpush2.msra.mxu0 0.0
    %1750 = vmatprep.subr.mxu0 0.0
    %1751 = vmatpush2.msra.mxu0 0.0
    %1752 = vmatprep.subr.mxu0 0.0
    %1753 = vmatpush2.msra.mxu0 0.0
    %1754 = vmatprep.subr.mxu0 0.0
    %1755 = vmatpush2.msra.mxu0 0.0
    %1756 = vmatprep.subr.mxu0 0.0
    %1757 = vmatpush2.msra.mxu0 0.0
    %1758 = vmatprep.subr.mxu0 0.0
    %1759 = vmatpush2.msra.mxu0 0.0
    %1760 = vmatprep.subr.mxu0 0.0
    %1761 = vmatpush2.msra.mxu0 0.0
    %1762 = vmatprep.subr.mxu0 0.0
    %1763 = vmatpush2.msra.mxu0 0.0
    %1764 = vmatprep.subr.mxu0 0.0
    %1765 = vmatpush2.msra.mxu0 0.0
    %1766 = vmatprep.subr.mxu0 0.0
    %1767 = vmatpush2.msra.mxu0 0.0
    %1768 = vmatprep.mubr.f32.mxu0 0.0
    %1769 = vmatmul.mubr.f32.gmra.mxu0 %v1702
    %v1770 = vpop.f32.mrf.mxu0
    %v1771 = vadd.f32 0.0, %v1770
    %v1772 = vpop.f32.mrf.mxu0
    %1773 = vdwg.mxu0
    %v1775 = vsel %vm393, %v1531, 0
    %1777 = vmatprep.subr.mxu0 0.0
    %1778 = vmatpush1.msra.mxu0 0.0
    %1779 = vmatprep.subr.mxu0 0.0
    %1780 = vmatpush1.msra.mxu0 0.0
    %1781 = vmatprep.subr.mxu0 0.0
    %1782 = vmatpush1.msra.mxu0 0.0
    %1783 = vmatprep.subr.mxu0 0.0
    %1784 = vmatpush1.msra.mxu0 0.0
    %1785 = vmatprep.subr.mxu0 0.0
    %1786 = vmatpush1.msra.mxu0 0.0
    %1787 = vmatprep.subr.mxu0 0.0
    %1788 = vmatpush1.msra.mxu0 0.0
    %1789 = vmatprep.subr.mxu0 0.0
    %1790 = vmatpush1.msra.mxu0 0.0
    %1791 = vmatprep.subr.mxu0 0.0
    %1792 = vmatpush1.msra.mxu0 0.0
    %1793 = vmatprep.subr.mxu0 0.0
    %1794 = vmatpush1.msra.mxu0 0.0
    %1795 = vmatprep.subr.mxu0 0.0
    %1796 = vmatpush1.msra.mxu0 0.0
    %1797 = vmatprep.subr.mxu0 0.0
    %1798 = vmatpush1.msra.mxu0 0.0
    %1799 = vmatprep.subr.mxu0 0.0
    %1800 = vmatpush1.msra.mxu0 0.0
    %1801 = vmatprep.subr.mxu0 0.0
    %1802 = vmatpush1.msra.mxu0 0.0
    %1803 = vmatprep.subr.mxu0 0.0
    %1804 = vmatpush1.msra.mxu0 0.0
    %1805 = vmatprep.subr.mxu0 0.0
    %1806 = vmatpush1.msra.mxu0 0.0
    %1807 = vmatprep.subr.mxu0 0.0
    %1808 = vmatpush1.msra.mxu0 %v385
    %1809 = vmatprep.subr.mxu0 0.0
    %1810 = vmatpush2.msra.mxu0 0.0
    %1811 = vmatprep.subr.mxu0 0.0
    %1812 = vmatpush2.msra.mxu0 0.0
    %1813 = vmatprep.subr.mxu0 0.0
    %1814 = vmatpush2.msra.mxu0 0.0
    %1815 = vmatprep.subr.mxu0 0.0
    %1816 = vmatpush2.msra.mxu0 0.0
    %1817 = vmatprep.subr.mxu0 0.0
    %1818 = vmatpush2.msra.mxu0 0.0
    %1819 = vmatprep.subr.mxu0 0.0
    %1820 = vmatpush2.msra.mxu0 0.0
    %1821 = vmatprep.subr.mxu0 0.0
    %1822 = vmatpush2.msra.mxu0 0.0
    %1823 = vmatprep.subr.mxu0 0.0
    %1824 = vmatpush2.msra.mxu0 0.0
    %1825 = vmatprep.subr.mxu0 0.0
    %1826 = vmatpush2.msra.mxu0 0.0
    %1827 = vmatprep.subr.mxu0 0.0
    %1828 = vmatpush2.msra.mxu0 0.0
    %1829 = vmatprep.subr.mxu0 0.0
    %1830 = vmatpush2.msra.mxu0 0.0
    %1831 = vmatprep.subr.mxu0 0.0
    %1832 = vmatpush2.msra.mxu0 0.0
    %1833 = vmatprep.subr.mxu0 0.0
    %1834 = vmatpush2.msra.mxu0 0.0
    %1835 = vmatprep.subr.mxu0 0.0
    %1836 = vmatpush2.msra.mxu0 0.0
    %1837 = vmatprep.subr.mxu0 0.0
    %1838 = vmatpush2.msra.mxu0 0.0
    %1839 = vmatprep.subr.mxu0 0.0
    %1840 = vmatpush2.msra.mxu0 0.0
    %1841 = vmatprep.mubr.f32.mxu0 0.0
    %1842 = vmatmul.mubr.f32.gmra.mxu0 %v1775
    %v1843 = vpop.f32.mrf.mxu0
    %v1844 = vadd.f32 %v1771, %v1843
    %v1845 = vpop.f32.mrf.mxu0
    %1846 = vdwg.mxu0
    %1847 = vrot.lane.b32.xlu0 %v1367, 112
    %v1848 = vpop.permute.xlu0 %1847
    %1849 = vrot.lane.b32.xlu0 %v1367, 80
    %v1850 = vpop.permute.xlu0 %1849
    %v1851 = vsel %vm393, %v1848, 0
    %v1853 = vsel %vm393, %v1850, 0
    %1855 = vmatprep.subr.mxu0 0.0
    %1856 = vmatpush1.xpose.msra.mxu0 0.0
    %1857 = vmatprep.subr.mxu0 0.0
    %1858 = vmatpush1.xpose.msra.mxu0 0.0
    %1859 = vmatprep.subr.mxu0 0.0
    %1860 = vmatpush1.xpose.msra.mxu0 0.0
    %1861 = vmatprep.subr.mxu0 0.0
    %1862 = vmatpush1.xpose.msra.mxu0 0.0
    %1863 = vmatprep.subr.mxu0 0.0
    %1864 = vmatpush1.xpose.msra.mxu0 0.0
    %1865 = vmatprep.subr.mxu0 0.0
    %1866 = vmatpush1.xpose.msra.mxu0 0.0
    %1867 = vmatprep.subr.mxu0 0.0
    %1868 = vmatpush1.xpose.msra.mxu0 0.0
    %1869 = vmatprep.subr.mxu0 0.0
    %1870 = vmatpush1.xpose.msra.mxu0 0.0
    %1871 = vmatprep.subr.mxu0 0.0
    %1872 = vmatpush1.xpose.msra.mxu0 0.0
    %1873 = vmatprep.subr.mxu0 0.0
    %1874 = vmatpush1.xpose.msra.mxu0 0.0
    %1875 = vmatprep.subr.mxu0 0.0
    %1876 = vmatpush1.xpose.msra.mxu0 0.0
    %1877 = vmatprep.subr.mxu0 0.0
    %1878 = vmatpush1.xpose.msra.mxu0 0.0
    %1879 = vmatprep.subr.mxu0 0.0
    %1880 = vmatpush1.xpose.msra.mxu0 0.0
    %1881 = vmatprep.subr.mxu0 0.0
    %1882 = vmatpush1.xpose.msra.mxu0 0.0
    %1883 = vmatprep.subr.mxu0 0.0
    %1884 = vmatpush1.xpose.msra.mxu0 0.0
    %1885 = vmatprep.subr.mxu0 0.0
    %1886 = vmatpush1.xpose.msra.mxu0 %v1853
    %1887 = vmatprep.subr.mxu0 0.0
    %1888 = vmatpush2.xpose.msra.mxu0 0.0
    %1889 = vmatprep.subr.mxu0 0.0
    %1890 = vmatpush2.xpose.msra.mxu0 0.0
    %1891 = vmatprep.subr.mxu0 0.0
    %1892 = vmatpush2.xpose.msra.mxu0 0.0
    %1893 = vmatprep.subr.mxu0 0.0
    %1894 = vmatpush2.xpose.msra.mxu0 0.0
    %1895 = vmatprep.subr.mxu0 0.0
    %1896 = vmatpush2.xpose.msra.mxu0 0.0
    %1897 = vmatprep.subr.mxu0 0.0
    %1898 = vmatpush2.xpose.msra.mxu0 0.0
    %1899 = vmatprep.subr.mxu0 0.0
    %1900 = vmatpush2.xpose.msra.mxu0 0.0
    %1901 = vmatprep.subr.mxu0 0.0
    %1902 = vmatpush2.xpose.msra.mxu0 0.0
    %1903 = vmatprep.subr.mxu0 0.0
    %1904 = vmatpush2.xpose.msra.mxu0 0.0
    %1905 = vmatprep.subr.mxu0 0.0
    %1906 = vmatpush2.xpose.msra.mxu0 0.0
    %1907 = vmatprep.subr.mxu0 0.0
    %1908 = vmatpush2.xpose.msra.mxu0 0.0
    %1909 = vmatprep.subr.mxu0 0.0
    %1910 = vmatpush2.xpose.msra.mxu0 0.0
    %1911 = vmatprep.subr.mxu0 0.0
    %1912 = vmatpush2.xpose.msra.mxu0 0.0
    %1913 = vmatprep.subr.mxu0 0.0
    %1914 = vmatpush2.xpose.msra.mxu0 0.0
    %1915 = vmatprep.subr.mxu0 0.0
    %1916 = vmatpush2.xpose.msra.mxu0 0.0
    %1917 = vmatprep.subr.mxu0 0.0
    %1918 = vmatpush2.xpose.msra.mxu0 0.0
    %1919 = vmatprep.mubr.f32.mxu0 0.0
    %1920 = vmatmul.mubr.f32.gmra.mxu0 %v1851
    %v1921 = vpop.f32.mrf.mxu0
    %v1922 = vadd.f32 0.0, %v1921
    %v1923 = vpop.f32.mrf.mxu0
    %1924 = vdwg.mxu0
    %v1925 = vmul.f32 %v1922, 0.35355338
    %v1926 = vsel %vm469, %v1925, -inf
    %1927 = vmax.xlane.f32.xlu0 %v1926
    %v1928 = vpop.xlane.xlu0 %1927
    %v1929 = vsub.f32 %v1925, %v1928
    %v1930 = vmul.f32 %v1929, 1.442695
    %v1931 = vpow.pop %v1930
    %v1932 = vsel %vm469, %v1931, 0.0
    %1933 = vadd.xlane.f32.xlu0 %v1932
    %v1934 = vpop.xlane.xlu0 %1933
    %v1935 = vrcp.pop %v1934
    %v1936 = vmul.f32 %v1931, %v1935
    %1937 = vrot.lane.b32.xlu0 %v1367, 48
    %v1938 = vpop.permute.xlu0 %1937
    %v1940 = vsel %vm483, %v1936, 0
    %v1942 = vsel %vm487, %v1938, 0
    %1944 = vmatprep.subr.mxu0 0.0
    %1945 = vmatpush1.msra.mxu0 0.0
    %1946 = vmatprep.subr.mxu0 0.0
    %1947 = vmatpush1.msra.mxu0 0.0
    %1948 = vmatprep.subr.mxu0 0.0
    %1949 = vmatpush1.msra.mxu0 0.0
    %1950 = vmatprep.subr.mxu0 0.0
    %1951 = vmatpush1.msra.mxu0 0.0
    %1952 = vmatprep.subr.mxu0 0.0
    %1953 = vmatpush1.msra.mxu0 0.0
    %1954 = vmatprep.subr.mxu0 0.0
    %1955 = vmatpush1.msra.mxu0 0.0
    %1956 = vmatprep.subr.mxu0 0.0
    %1957 = vmatpush1.msra.mxu0 0.0
    %1958 = vmatprep.subr.mxu0 0.0
    %1959 = vmatpush1.msra.mxu0 0.0
    %1960 = vmatprep.subr.mxu0 0.0
    %1961 = vmatpush1.msra.mxu0 0.0
    %1962 = vmatprep.subr.mxu0 0.0
    %1963 = vmatpush1.msra.mxu0 0.0
    %1964 = vmatprep.subr.mxu0 0.0
    %1965 = vmatpush1.msra.mxu0 0.0
    %1966 = vmatprep.subr.mxu0 0.0
    %1967 = vmatpush1.msra.mxu0 0.0
    %1968 = vmatprep.subr.mxu0 0.0
    %1969 = vmatpush1.msra.mxu0 0.0
    %1970 = vmatprep.subr.mxu0 0.0
    %1971 = vmatpush1.msra.mxu0 0.0
    %1972 = vmatprep.subr.mxu0 0.0
    %1973 = vmatpush1.msra.mxu0 0.0
    %1974 = vmatprep.subr.mxu0 0.0
    %1975 = vmatpush1.msra.mxu0 %v1942
    %1976 = vmatprep.subr.mxu0 0.0
    %1977 = vmatpush2.msra.mxu0 0.0
    %1978 = vmatprep.subr.mxu0 0.0
    %1979 = vmatpush2.msra.mxu0 0.0
    %1980 = vmatprep.subr.mxu0 0.0
    %1981 = vmatpush2.msra.mxu0 0.0
    %1982 = vmatprep.subr.mxu0 0.0
    %1983 = vmatpush2.msra.mxu0 0.0
    %1984 = vmatprep.subr.mxu0 0.0
    %1985 = vmatpush2.msra.mxu0 0.0
    %1986 = vmatprep.subr.mxu0 0.0
    %1987 = vmatpush2.msra.mxu0 0.0
    %1988 = vmatprep.subr.mxu0 0.0
    %1989 = vmatpush2.msra.mxu0 0.0
    %1990 = vmatprep.subr.mxu0 0.0
    %1991 = vmatpush2.msra.mxu0 0.0
    %1992 = vmatprep.subr.mxu0 0.0
    %1993 = vmatpush2.msra.mxu0 0.0
    %1994 = vmatprep.subr.mxu0 0.0
    %1995 = vmatpush2.msra.mxu0 0.0
    %1996 = vmatprep.subr.mxu0 0.0
    %1997 = vmatpush2.msra.mxu0 0.0
    %1998 = vmatprep.subr.mxu0 0.0
    %1999 = vmatpush2.msra.mxu0 0.0
    %2000 = vmatprep.subr.mxu0 0.0
    %2001 = vmatpush2.msra.mxu0 0.0
    %2002 = vmatprep.subr.mxu0 0.0
    %2003 = vmatpush2.msra.mxu0 0.0
    %2004 = vmatprep.subr.mxu0 0.0
    %2005 = vmatpush2.msra.mxu0 0.0
    %2006 = vmatprep.subr.mxu0 0.0
    %2007 = vmatpush2.msra.mxu0 0.0
    %2008 = vmatprep.mubr.f32.mxu0 0.0
    %2009 = vmatmul.mubr.f32.gmra.mxu0 %v1940
    %v2010 = vpop.f32.mrf.mxu0
    %v2011 = vadd.f32 0.0, %v2010
    %v2012 = vpop.f32.mrf.mxu0
    %2013 = vdwg.mxu0
    %v2015 = vsel %vm393, %v2011, 0
    %2017 = vmatprep.subr.mxu0 0.0
    %2018 = vmatpush1.msra.mxu0 0.0
    %2019 = vmatprep.subr.mxu0 0.0
    %2020 = vmatpush1.msra.mxu0 0.0
    %2021 = vmatprep.subr.mxu0 0.0
    %2022 = vmatpush1.msra.mxu0 0.0
    %2023 = vmatprep.subr.mxu0 0.0
    %2024 = vmatpush1.msra.mxu0 0.0
    %2025 = vmatprep.subr.mxu0 0.0
    %2026 = vmatpush1.msra.mxu0 0.0
    %2027 = vmatprep.subr.mxu0 0.0
    %2028 = vmatpush1.msra.mxu0 0.0
    %2029 = vmatprep.subr.mxu0 0.0
    %2030 = vmatpush1.msra.mxu0 0.0
    %2031 = vmatprep.subr.mxu0 0.0
    %2032 = vmatpush1.msra.mxu0 0.0
    %2033 = vmatprep.subr.mxu0 0.0
    %2034 = vmatpush1.msra.mxu0 0.0
    %2035 = vmatprep.subr.mxu0 0.0
    %2036 = vmatpush1.msra.mxu0 0.0
    %2037 = vmatprep.subr.mxu0 0.0
    %2038 = vmatpush1.msra.mxu0 0.0
    %2039 = vmatprep.subr.mxu0 0.0
    %2040 = vmatpush1.msra.mxu0 0.0
    %2041 = vmatprep.subr.mxu0 0.0
    %2042 = vmatpush1.msra.mxu0 0.0
    %2043 = vmatprep.subr.mxu0 0.0
    %2044 = vmatpush1.msra.mxu0 0.0
    %2045 = vmatprep.subr.mxu0 0.0
    %2046 = vmatpush1.msra.mxu0 0.0
    %2047 = vmatprep.subr.mxu0 0.0
    %2048 = vmatpush1.msra.mxu0 %v387
    %2049 = vmatprep.subr.mxu0 0.0
    %2050 = vmatpush2.msra.mxu0 0.0
    %2051 = vmatprep.subr.mxu0 0.0
    %2052 = vmatpush2.msra.mxu0 0.0
    %2053 = vmatprep.subr.mxu0 0.0
    %2054 = vmatpush2.msra.mxu0 0.0
    %2055 = vmatprep.subr.mxu0 0.0
    %2056 = vmatpush2.msra.mxu0 0.0
    %2057 = vmatprep.subr.mxu0 0.0
    %2058 = vmatpush2.msra.mxu0 0.0
    %2059 = vmatprep.subr.mxu0 0.0
    %2060 = vmatpush2.msra.mxu0 0.0
    %2061 = vmatprep.subr.mxu0 0.0
    %2062 = vmatpush2.msra.mxu0 0.0
    %2063 = vmatprep.subr.mxu0 0.0
    %2064 = vmatpush2.msra.mxu0 0.0
    %2065 = vmatprep.subr.mxu0 0.0
    %2066 = vmatpush2.msra.mxu0 0.0
    %2067 = vmatprep.subr.mxu0 0.0
    %2068 = vmatpush2.msra.mxu0 0.0
    %2069 = vmatprep.subr.mxu0 0.0
    %2070 = vmatpush2.msra.mxu0 0.0
    %2071 = vmatprep.subr.mxu0 0.0
    %2072 = vmatpush2.msra.mxu0 0.0
    %2073 = vmatprep.subr.mxu0 0.0
    %2074 = vmatpush2.msra.mxu0 0.0
    %2075 = vmatprep.subr.mxu0 0.0
    %2076 = vmatpush2.msra.mxu0 0.0
    %2077 = vmatprep.subr.mxu0 0.0
    %2078 = vmatpush2.msra.mxu0 0.0
    %2079 = vmatprep.subr.mxu0 0.0
    %2080 = vmatpush2.msra.mxu0 0.0
    %2081 = vmatprep.mubr.f32.mxu0 0.0
    %2082 = vmatmul.mubr.f32.gmra.mxu0 %v2015
    %v2083 = vpop.f32.mrf.mxu0
    %v2084 = vadd.f32 0.0, %v2083
    %v2085 = vpop.f32.mrf.mxu0
    %2086 = vdwg.mxu0
    %v2087 = vadd.f32 %v1844, %v2084
    %2088 = vrot.lane.b32.xlu0 %v1367, 104
    %v2089 = vpop.permute.xlu0 %2088
    %2090 = vrot.lane.b32.xlu0 %v1367, 72
    %v2091 = vpop.permute.xlu0 %2090
    %v2092 = vsel %vm393, %v2089, 0
    %v2094 = vsel %vm393, %v2091, 0
    %2096 = vmatprep.subr.mxu0 0.0
    %2097 = vmatpush1.xpose.msra.mxu0 0.0
    %2098 = vmatprep.subr.mxu0 0.0
    %2099 = vmatpush1.xpose.msra.mxu0 0.0
    %2100 = vmatprep.subr.mxu0 0.0
    %2101 = vmatpush1.xpose.msra.mxu0 0.0
    %2102 = vmatprep.subr.mxu0 0.0
    %2103 = vmatpush1.xpose.msra.mxu0 0.0
    %2104 = vmatprep.subr.mxu0 0.0
    %2105 = vmatpush1.xpose.msra.mxu0 0.0
    %2106 = vmatprep.subr.mxu0 0.0
    %2107 = vmatpush1.xpose.msra.mxu0 0.0
    %2108 = vmatprep.subr.mxu0 0.0
    %2109 = vmatpush1.xpose.msra.mxu0 0.0
    %2110 = vmatprep.subr.mxu0 0.0
    %2111 = vmatpush1.xpose.msra.mxu0 0.0
    %2112 = vmatprep.subr.mxu0 0.0
    %2113 = vmatpush1.xpose.msra.mxu0 0.0
    %2114 = vmatprep.subr.mxu0 0.0
    %2115 = vmatpush1.xpose.msra.mxu0 0.0
    %2116 = vmatprep.subr.mxu0 0.0
    %2117 = vmatpush1.xpose.msra.mxu0 0.0
    %2118 = vmatprep.subr.mxu0 0.0
    %2119 = vmatpush1.xpose.msra.mxu0 0.0
    %2120 = vmatprep.subr.mxu0 0.0
    %2121 = vmatpush1.xpose.msra.mxu0 0.0
    %2122 = vmatprep.subr.mxu0 0.0
    %2123 = vmatpush1.xpose.msra.mxu0 0.0
    %2124 = vmatprep.subr.mxu0 0.0
    %2125 = vmatpush1.xpose.msra.mxu0 0.0
    %2126 = vmatprep.subr.mxu0 0.0
    %2127 = vmatpush1.xpose.msra.mxu0 %v2094
    %2128 = vmatprep.subr.mxu0 0.0
    %2129 = vmatpush2.xpose.msra.mxu0 0.0
    %2130 = vmatprep.subr.mxu0 0.0
    %2131 = vmatpush2.xpose.msra.mxu0 0.0
    %2132 = vmatprep.subr.mxu0 0.0
    %2133 = vmatpush2.xpose.msra.mxu0 0.0
    %2134 = vmatprep.subr.mxu0 0.0
    %2135 = vmatpush2.xpose.msra.mxu0 0.0
    %2136 = vmatprep.subr.mxu0 0.0
    %2137 = vmatpush2.xpose.msra.mxu0 0.0
    %2138 = vmatprep.subr.mxu0 0.0
    %2139 = vmatpush2.xpose.msra.mxu0 0.0
    %2140 = vmatprep.subr.mxu0 0.0
    %2141 = vmatpush2.xpose.msra.mxu0 0.0
    %2142 = vmatprep.subr.mxu0 0.0
    %2143 = vmatpush2.xpose.msra.mxu0 0.0
    %2144 = vmatprep.subr.mxu0 0.0
    %2145 = vmatpush2.xpose.msra.mxu0 0.0
    %2146 = vmatprep.subr.mxu0 0.0
    %2147 = vmatpush2.xpose.msra.mxu0 0.0
    %2148 = vmatprep.subr.mxu0 0.0
    %2149 = vmatpush2.xpose.msra.mxu0 0.0
    %2150 = vmatprep.subr.mxu0 0.0
    %2151 = vmatpush2.xpose.msra.mxu0 0.0
    %2152 = vmatprep.subr.mxu0 0.0
    %2153 = vmatpush2.xpose.msra.mxu0 0.0
    %2154 = vmatprep.subr.mxu0 0.0
    %2155 = vmatpush2.xpose.msra.mxu0 0.0
    %2156 = vmatprep.subr.mxu0 0.0
    %2157 = vmatpush2.xpose.msra.mxu0 0.0
    %2158 = vmatprep.subr.mxu0 0.0
    %2159 = vmatpush2.xpose.msra.mxu0 0.0
    %2160 = vmatprep.mubr.f32.mxu0 0.0
    %2161 = vmatmul.mubr.f32.gmra.mxu0 %v2092
    %v2162 = vpop.f32.mrf.mxu0
    %v2163 = vadd.f32 0.0, %v2162
    %v2164 = vpop.f32.mrf.mxu0
    %2165 = vdwg.mxu0
    %v2166 = vmul.f32 %v2163, 0.35355338
    %v2167 = vsel %vm469, %v2166, -inf
    %2168 = vmax.xlane.f32.xlu0 %v2167
    %v2169 = vpop.xlane.xlu0 %2168
    %v2170 = vsub.f32 %v2166, %v2169
    %v2171 = vmul.f32 %v2170, 1.442695
    %v2172 = vpow.pop %v2171
    %v2173 = vsel %vm469, %v2172, 0.0
    %2174 = vadd.xlane.f32.xlu0 %v2173
    %v2175 = vpop.xlane.xlu0 %2174
    %v2176 = vrcp.pop %v2175
    %v2177 = vmul.f32 %v2172, %v2176
    %2178 = vrot.lane.b32.xlu0 %v1367, 40
    %v2179 = vpop.permute.xlu0 %2178
    %v2181 = vsel %vm483, %v2177, 0
    %v2183 = vsel %vm487, %v2179, 0
    %2185 = vmatprep.subr.mxu0 0.0
    %2186 = vmatpush1.msra.mxu0 0.0
    %2187 = vmatprep.subr.mxu0 0.0
    %2188 = vmatpush1.msra.mxu0 0.0
    %2189 = vmatprep.subr.mxu0 0.0
    %2190 = vmatpush1.msra.mxu0 0.0
    %2191 = vmatprep.subr.mxu0 0.0
    %2192 = vmatpush1.msra.mxu0 0.0
    %2193 = vmatprep.subr.mxu0 0.0
    %2194 = vmatpush1.msra.mxu0 0.0
    %2195 = vmatprep.subr.mxu0 0.0
    %2196 = vmatpush1.msra.mxu0 0.0
    %2197 = vmatprep.subr.mxu0 0.0
    %2198 = vmatpush1.msra.mxu0 0.0
    %2199 = vmatprep.subr.mxu0 0.0
    %2200 = vmatpush1.msra.mxu0 0.0
    %2201 = vmatprep.subr.mxu0 0.0
    %2202 = vmatpush1.msra.mxu0 0.0
    %2203 = vmatprep.subr.mxu0 0.0
    %2204 = vmatpush1.msra.mxu0 0.0
    %2205 = vmatprep.subr.mxu0 0.0
    %2206 = vmatpush1.msra.mxu0 0.0
    %2207 = vmatprep.subr.mxu0 0.0
    %2208 = vmatpush1.msra.mxu0 0.0
    %2209 = vmatprep.subr.mxu0 0.0
    %2210 = vmatpush1.msra.mxu0 0.0
    %2211 = vmatprep.subr.mxu0 0.0
    %2212 = vmatpush1.msra.mxu0 0.0
    %2213 = vmatprep.subr.mxu0 0.0
    %2214 = vmatpush1.msra.mxu0 0.0
    %2215 = vmatprep.subr.mxu0 0.0
    %2216 = vmatpush1.msra.mxu0 %v2183
    %2217 = vmatprep.subr.mxu0 0.0
    %2218 = vmatpush2.msra.mxu0 0.0
    %2219 = vmatprep.subr.mxu0 0.0
    %2220 = vmatpush2.msra.mxu0 0.0
    %2221 = vmatprep.subr.mxu0 0.0
    %2222 = vmatpush2.msra.mxu0 0.0
    %2223 = vmatprep.subr.mxu0 0.0
    %2224 = vmatpush2.msra.mxu0 0.0
    %2225 = vmatprep.subr.mxu0 0.0
    %2226 = vmatpush2.msra.mxu0 0.0
    %2227 = vmatprep.subr.mxu0 0.0
    %2228 = vmatpush2.msra.mxu0 0.0
    %2229 = vmatprep.subr.mxu0 0.0
    %2230 = vmatpush2.msra.mxu0 0.0
    %2231 = vmatprep.subr.mxu0 0.0
    %2232 = vmatpush2.msra.mxu0 0.0
    %2233 = vmatprep.subr.mxu0 0.0
    %2234 = vmatpush2.msra.mxu0 0.0
    %2235 = vmatprep.subr.mxu0 0.0
    %2236 = vmatpush2.msra.mxu0 0.0
    %2237 = vmatprep.subr.mxu0 0.0
    %2238 = vmatpush2.msra.mxu0 0.0
    %2239 = vmatprep.subr.mxu0 0.0
    %2240 = vmatpush2.msra.mxu0 0.0
    %2241 = vmatprep.subr.mxu0 0.0
    %2242 = vmatpush2.msra.mxu0 0.0
    %2243 = vmatprep.subr.mxu0 0.0
    %2244 = vmatpush2.msra.mxu0 0.0
    %2245 = vmatprep.subr.mxu0 0.0
    %2246 = vmatpush2.msra.mxu0 0.0
    %2247 = vmatprep.subr.mxu0 0.0
    %2248 = vmatpush2.msra.mxu0 0.0
    %2249 = vmatprep.mubr.f32.mxu0 0.0
    %2250 = vmatmul.mubr.f32.gmra.mxu0 %v2181
    %v2251 = vpop.f32.mrf.mxu0
    %v2252 = vadd.f32 0.0, %v2251
    %v2253 = vpop.f32.mrf.mxu0
    %2254 = vdwg.mxu0
    %v2256 = vsel %vm393, %v2252, 0
    %2258 = vmatprep.subr.mxu0 0.0
    %2259 = vmatpush1.msra.mxu0 0.0
    %2260 = vmatprep.subr.mxu0 0.0
    %2261 = vmatpush1.msra.mxu0 0.0
    %2262 = vmatprep.subr.mxu0 0.0
    %2263 = vmatpush1.msra.mxu0 0.0
    %2264 = vmatprep.subr.mxu0 0.0
    %2265 = vmatpush1.msra.mxu0 0.0
    %2266 = vmatprep.subr.mxu0 0.0
    %2267 = vmatpush1.msra.mxu0 0.0
    %2268 = vmatprep.subr.mxu0 0.0
    %2269 = vmatpush1.msra.mxu0 0.0
    %2270 = vmatprep.subr.mxu0 0.0
    %2271 = vmatpush1.msra.mxu0 0.0
    %2272 = vmatprep.subr.mxu0 0.0
    %2273 = vmatpush1.msra.mxu0 0.0
    %2274 = vmatprep.subr.mxu0 0.0
    %2275 = vmatpush1.msra.mxu0 0.0
    %2276 = vmatprep.subr.mxu0 0.0
    %2277 = vmatpush1.msra.mxu0 0.0
    %2278 = vmatprep.subr.mxu0 0.0
    %2279 = vmatpush1.msra.mxu0 0.0
    %2280 = vmatprep.subr.mxu0 0.0
    %2281 = vmatpush1.msra.mxu0 0.0
    %2282 = vmatprep.subr.mxu0 0.0
    %2283 = vmatpush1.msra.mxu0 0.0
    %2284 = vmatprep.subr.mxu0 0.0
    %2285 = vmatpush1.msra.mxu0 0.0
    %2286 = vmatprep.subr.mxu0 0.0
    %2287 = vmatpush1.msra.mxu0 0.0
    %2288 = vmatprep.subr.mxu0 0.0
    %2289 = vmatpush1.msra.mxu0 %v388
    %2290 = vmatprep.subr.mxu0 0.0
    %2291 = vmatpush2.msra.mxu0 0.0
    %2292 = vmatprep.subr.mxu0 0.0
    %2293 = vmatpush2.msra.mxu0 0.0
    %2294 = vmatprep.subr.mxu0 0.0
    %2295 = vmatpush2.msra.mxu0 0.0
    %2296 = vmatprep.subr.mxu0 0.0
    %2297 = vmatpush2.msra.mxu0 0.0
    %2298 = vmatprep.subr.mxu0 0.0
    %2299 = vmatpush2.msra.mxu0 0.0
    %2300 = vmatprep.subr.mxu0 0.0
    %2301 = vmatpush2.msra.mxu0 0.0
    %2302 = vmatprep.subr.mxu0 0.0
    %2303 = vmatpush2.msra.mxu0 0.0
    %2304 = vmatprep.subr.mxu0 0.0
    %2305 = vmatpush2.msra.mxu0 0.0
    %2306 = vmatprep.subr.mxu0 0.0
    %2307 = vmatpush2.msra.mxu0 0.0
    %2308 = vmatprep.subr.mxu0 0.0
    %2309 = vmatpush2.msra.mxu0 0.0
    %2310 = vmatprep.subr.mxu0 0.0
    %2311 = vmatpush2.msra.mxu0 0.0
    %2312 = vmatprep.subr.mxu0 0.0
    %2313 = vmatpush2.msra.mxu0 0.0
    %2314 = vmatprep.subr.mxu0 0.0
    %2315 = vmatpush2.msra.mxu0 0.0
    %2316 = vmatprep.subr.mxu0 0.0
    %2317 = vmatpush2.msra.mxu0 0.0
    %2318 = vmatprep.subr.mxu0 0.0
    %2319 = vmatpush2.msra.mxu0 0.0
    %2320 = vmatprep.subr.mxu0 0.0
    %2321 = vmatpush2.msra.mxu0 0.0
    %2322 = vmatprep.mubr.f32.mxu0 0.0
    %2323 = vmatmul.mubr.f32.gmra.mxu0 %v2256
    %v2324 = vpop.f32.mrf.mxu0
    %v2325 = vadd.f32 0.0, %v2324
    %v2326 = vpop.f32.mrf.mxu0
    %2327 = vdwg.mxu0
    %v2328 = vadd.f32 %v2087, %v2325
    %v2329 = vld [vmem:[#allocation2 + $0x8] sm:$0x1f]
    %v2330 = vadd.f32 %v2329, %v2328
    %v2331 = vld [vmem:[%s10] sm:$0x1]
    %v2333 = vlaneseq
    %v2334 = vshrl.u32 %v2333, 7
    %v2335 = vsub.s32 0, %v2334
    %v2336 = vrot.slane %v2331, %v2335
    %v2338 = vadd.f32 %v2330, %v2336
    %2339 = vst.msk [vmem:[#allocation2 + $0x8] sm:$0x1f] %vm1365, %v2338
    %v2340 = vld [vmem:[#allocation2] sm:$0xff]
    %v2341 = vld [vmem:[#allocation2 + $0x8] sm:$0xff]
    %v2342 = vld [vmem:[%s11] sm:$0x1]
    %v2343 = vld [vmem:[%s12] sm:$0x1]
    %v2344 = vsel %vm190, %v2340, 0.0
    %2345 = vadd.xlane.f32.xlu0 %v2344
    %v2346 = vpop.xlane.xlu0 %2345
    %v2347 = vsel %vm190, %v2341, 0.0
    %2348 = vadd.xlane.f32.xlu0 %v2347
    %v2349 = vpop.xlane.xlu0 %2348
    %v2350 = vmul.f32 %v2346, %v205
    %v2351 = vmul.f32 %v2349, %v205
    %v2352 = vsub.f32 %v2340, %v2350
    %v2353 = vsub.f32 %v2341, %v2351
    %v2354 = vmul.f32 %v2352, %v2352
    %v2355 = vmul.f32 %v2353, %v2353
    %v2356 = vsel %vm190, %v2354, 0.0
    %2357 = vadd.xlane.f32.xlu0 %v2356
    %v2358 = vpop.xlane.xlu0 %2357
    %v2359 = vsel %vm190, %v2355, 0.0
    %2360 = vadd.xlane.f32.xlu0 %v2359
    %v2361 = vpop.xlane.xlu0 %2360
    %v2362 = vmul.f32 %v2358, %v205
    %v2363 = vmul.f32 %v2361, %v205
    %v2364 = vadd.f32 %v2362, 1e-05
    %v2365 = vadd.f32 %v2363, 1e-05
    %v2366 = vrsqrt.pop %v2364
    %v2367 = vrsqrt.pop %v2365
    %v2368 = vmul.f32 %v2352, %v2366
    %v2369 = vmul.f32 %v2353, %v2367
    %v2371 = vlaneseq
    %v2372 = vshrl.u32 %v2371, 7
    %v2373 = vsub.s32 0, %v2372
    %v2374 = vrot.slane %v2342, %v2373
    %v2376 = vmul.f32 %v2368, %v2374
    %v2377 = vmul.f32 %v2369, %v2374
    %v2379 = vlaneseq
    %v2380 = vshrl.u32 %v2379, 7
    %v2381 = vsub.s32 0, %v2380
    %v2382 = vrot.slane %v2343, %v2381
    %v2384 = vadd.f32 %v2376, %v2382
    %v2385 = vadd.f32 %v2377, %v2382
    %v2386 = vld [vmem:[%s13] sm:$0xff]
    %v2387 = vld [vmem:[%s13 + $0x8] sm:$0xff]
    %v2388 = vld [vmem:[%s13 + $0x10] sm:$0xff]
    %v2389 = vld [vmem:[%s13 + $0x18] sm:$0xff]
    %v2390 = vld [vmem:[%s14] sm:$0x1]
    %v2392 = vlaneseq
    %v2393 = vshrl.u32 %v2392, 7
    %v2394 = vsub.s32 0, %v2393
    %v2395 = vrot.slane %v2390, %v2394
    %v2398 = vsel %vm190, %v2384, 0
    %v2401 = vsel %vm190, %v2385, 0
    %2403 = vmatprep.subr.mxu0 0.0
    %2404 = vmatpush1.msra.mxu0 0.0
    %2405 = vmatprep.subr.mxu0 0.0
    %2406 = vmatpush1.msra.mxu0 0.0
    %2407 = vmatprep.subr.mxu0 0.0
    %2408 = vmatpush1.msra.mxu0 0.0
    %2409 = vmatprep.subr.mxu0 0.0
    %2410 = vmatpush1.msra.mxu0 0.0
    %2411 = vmatprep.subr.mxu0 0.0
    %2412 = vmatpush1.msra.mxu0 0.0
    %2413 = vmatprep.subr.mxu0 0.0
    %2414 = vmatpush1.msra.mxu0 0.0
    %2415 = vmatprep.subr.mxu0 0.0
    %2416 = vmatpush1.msra.mxu0 0.0
    %2417 = vmatprep.subr.mxu0 0.0
    %2418 = vmatpush1.msra.mxu0 0.0
    %2419 = vmatprep.subr.mxu0 0.0
    %2420 = vmatpush1.msra.mxu0 0.0
    %2421 = vmatprep.subr.mxu0 0.0
    %2422 = vmatpush1.msra.mxu0 0.0
    %2423 = vmatprep.subr.mxu0 0.0
    %2424 = vmatpush1.msra.mxu0 0.0
    %2425 = vmatprep.subr.mxu0 0.0
    %2426 = vmatpush1.msra.mxu0 0.0
    %2427 = vmatprep.subr.mxu0 0.0
    %2428 = vmatpush1.msra.mxu0 %v2389
    %2429 = vmatprep.subr.mxu0 0.0
    %2430 = vmatpush1.msra.mxu0 %v2388
    %2431 = vmatprep.subr.mxu0 0.0
    %2432 = vmatpush1.msra.mxu0 %v2387
    %2433 = vmatprep.subr.mxu0 0.0
    %2434 = vmatpush1.msra.mxu0 %v2386
    %2435 = vmatprep.subr.mxu0 0.0
    %2436 = vmatpush2.msra.mxu0 0.0
    %2437 = vmatprep.subr.mxu0 0.0
    %2438 = vmatpush2.msra.mxu0 0.0
    %2439 = vmatprep.subr.mxu0 0.0
    %2440 = vmatpush2.msra.mxu0 0.0
    %2441 = vmatprep.subr.mxu0 0.0
    %2442 = vmatpush2.msra.mxu0 0.0
    %2443 = vmatprep.subr.mxu0 0.0
    %2444 = vmatpush2.msra.mxu0 0.0
    %2445 = vmatprep.subr.mxu0 0.0
    %2446 = vmatpush2.msra.mxu0 0.0
    %2447 = vmatprep.subr.mxu0 0.0
    %2448 = vmatpush2.msra.mxu0 0.0
    %2449 = vmatprep.subr.mxu0 0.0
    %2450 = vmatpush2.msra.mxu0 0.0
    %2451 = vmatprep.subr.mxu0 0.0
    %2452 = vmatpush2.msra.mxu0 0.0
    %2453 = vmatprep.subr.mxu0 0.0
    %2454 = vmatpush2.msra.mxu0 0.0
    %2455 = vmatprep.subr.mxu0 0.0
    %2456 = vmatpush2.msra.mxu0 0.0
    %2457 = vmatprep.subr.mxu0 0.0
    %2458 = vmatpush2.msra.mxu0 0.0
    %2459 = vmatprep.subr.mxu0 0.0
    %2460 = vmatpush2.msra.mxu0 0.0
    %2461 = vmatprep.subr.mxu0 0.0
    %2462 = vmatpush2.msra.mxu0 0.0
    %2463 = vmatprep.subr.mxu0 0.0
    %2464 = vmatpush2.msra.mxu0 0.0
    %2465 = vmatprep.subr.mxu0 0.0
    %2466 = vmatpush2.msra.mxu0 0.0
    %2467 = vmatprep.mubr.f32.mxu0 0.0
    %2468 = vmatmul.mubr.f32.gmra.mxu0 %v2398
    %v2469 = vpop.f32.mrf.mxu0
    %v2470 = vadd.f32 %v2395, %v2469
    %v2471 = vpop.f32.mrf.mxu0
    %2472 = vmatprep.mubr.f32.mxu0 0.0
    %2473 = vmatmul.mubr.f32.gmra.mxu0 %v2401
    %v2474 = vpop.f32.mrf.mxu0
    %v2475 = vadd.f32 %v2395, %v2474
    %v2476 = vpop.f32.mrf.mxu0
    %2477 = vdwg.mxu0
    %v2478 = vmul.f32 %v2470, 1.702
    %v2479 = vmul.f32 %v2475, 1.702
    %v2480 = vxor.u32 %v2478, 2147483648
    %v2481 = vxor.u32 %v2479, 2147483648
    %v2482 = vmul.f32 %v2480, 1.442695
    %v2483 = vpow.pop %v2482
    %v2484 = vmul.f32 %v2481, 1.442695
    %v2485 = vpow.pop %v2484
    %v2486 = vadd.f32 %v2483, 1.0
    %v2487 = vadd.f32 %v2485, 1.0
    %v2488 = vrcp.pop %v2486
    %v2489 = vmul.f32 1.0, %v2488
    %v2490 = vrcp.pop %v2487
    %v2491 = vmul.f32 1.0, %v2490
    %v2492 = vmul.f32 %v2470, %v2489
    %v2493 = vmul.f32 %v2475, %v2491
    %v2494 = vld [vmem:[%s15] sm:$0xff]
    %v2495 = vld [vmem:[%s15 + $0x8] sm:$0xff]
    %v2496 = vld [vmem:[%s15 + $0x10] sm:$0xff]
    %v2497 = vld [vmem:[%s15 + $0x18] sm:$0xff]
    %v2498 = vld [vmem:[%s15 + $0x20] sm:$0xff]
    %v2499 = vld [vmem:[%s15 + $0x28] sm:$0xff]
    %v2500 = vld [vmem:[%s15 + $0x30] sm:$0xff]
    %v2501 = vld [vmem:[%s15 + $0x38] sm:$0xff]
    %v2502 = vld [vmem:[%s15 + $0x40] sm:$0xff]
    %v2503 = vld [vmem:[%s15 + $0x48] sm:$0xff]
    %v2504 = vld [vmem:[%s15 + $0x50] sm:$0xff]
    %v2505 = vld [vmem:[%s15 + $0x58] sm:$0xff]
    %v2506 = vld [vmem:[%s15 + $0x60] sm:$0xff]
    %v2507 = vld [vmem:[%s15 + $0x68] sm:$0xff]
    %v2508 = vld [vmem:[%s15 + $0x70] sm:$0xff]
    %v2509 = vld [vmem:[%s15 + $0x78] sm:$0xff]
    %2510 = vmatprep.subr.mxu0 0.0
    %2511 = vmatpush1.msra.mxu0 %v2509
    %2512 = vmatprep.subr.mxu0 0.0
    %2513 = vmatpush1.msra.mxu0 %v2508
    %2514 = vmatprep.subr.mxu0 0.0
    %2515 = vmatpush1.msra.mxu0 %v2507
    %2516 = vmatprep.subr.mxu0 0.0
    %2517 = vmatpush1.msra.mxu0 %v2506
    %2518 = vmatprep.subr.mxu0 0.0
    %2519 = vmatpush1.msra.mxu0 %v2505
    %2520 = vmatprep.subr.mxu0 0.0
    %2521 = vmatpush1.msra.mxu0 %v2504
    %2522 = vmatprep.subr.mxu0 0.0
    %2523 = vmatpush1.msra.mxu0 %v2503
    %2524 = vmatprep.subr.mxu0 0.0
    %2525 = vmatpush1.msra.mxu0 %v2502
    %2526 = vmatprep.subr.mxu0 0.0
    %2527 = vmatpush1.msra.mxu0 %v2501
    %2528 = vmatprep.subr.mxu0 0.0
    %2529 = vmatpush1.msra.mxu0 %v2500
    %2530 = vmatprep.subr.mxu0 0.0
    %2531 = vmatpush1.msra.mxu0 %v2499
    %2532 = vmatprep.subr.mxu0 0.0
    %2533 = vmatpush1.msra.mxu0 %v2498
    %2534 = vmatprep.subr.mxu0 0.0
    %2535 = vmatpush1.msra.mxu0 %v2497
    %2536 = vmatprep.subr.mxu0 0.0
    %2537 = vmatpush1.msra.mxu0 %v2496
    %2538 = vmatprep.subr.mxu0 0.0
    %2539 = vmatpush1.msra.mxu0 %v2495
    %2540 = vmatprep.subr.mxu0 0.0
    %2541 = vmatpush1.msra.mxu0 %v2494
    %2542 = vmatprep.subr.mxu0 0.0
    %2543 = vmatpush2.msra.mxu0 0.0
    %2544 = vmatprep.subr.mxu0 0.0
    %2545 = vmatpush2.msra.mxu0 0.0
    %2546 = vmatprep.subr.mxu0 0.0
    %2547 = vmatpush2.msra.mxu0 0.0
    %2548 = vmatprep.subr.mxu0 0.0
    %2549 = vmatpush2.msra.mxu0 0.0
    %2550 = vmatprep.subr.mxu0 0.0
    %2551 = vmatpush2.msra.mxu0 0.0
    %2552 = vmatprep.subr.mxu0 0.0
    %2553 = vmatpush2.msra.mxu0 0.0
    %2554 = vmatprep.subr.mxu0 0.0
    %2555 = vmatpush2.msra.mxu0 0.0
    %2556 = vmatprep.subr.mxu0 0.0
    %2557 = vmatpush2.msra.mxu0 0.0
    %2558 = vmatprep.subr.mxu0 0.0
    %2559 = vmatpush2.msra.mxu0 0.0
    %2560 = vmatprep.subr.mxu0 0.0
    %2561 = vmatpush2.msra.mxu0 0.0
    %2562 = vmatprep.subr.mxu0 0.0
    %2563 = vmatpush2.msra.mxu0 0.0
    %2564 = vmatprep.subr.mxu0 0.0
    %2565 = vmatpush2.msra.mxu0 0.0
    %2566 = vmatprep.subr.mxu0 0.0
    %2567 = vmatpush2.msra.mxu0 0.0
    %2568 = vmatprep.subr.mxu0 0.0
    %2569 = vmatpush2.msra.mxu0 0.0
    %2570 = vmatprep.subr.mxu0 0.0
    %2571 = vmatpush2.msra.mxu0 0.0
    %2572 = vmatprep.subr.mxu0 0.0
    %2573 = vmatpush2.msra.mxu0 0.0
    %2574 = vmatprep.mubr.f32.mxu0 0.0
    %2575 = vmatmul.mubr.f32.gmra.mxu0 %v2492
    %v2576 = vpop.f32.mrf.mxu0
    %v2577 = vadd.f32 0.0, %v2576
    %v2578 = vpop.f32.mrf.mxu0
    %2579 = vmatprep.mubr.f32.mxu0 0.0
    %2580 = vmatmul.mubr.f32.gmra.mxu0 %v2493
    %v2581 = vpop.f32.mrf.mxu0
    %v2582 = vadd.f32 0.0, %v2581
    %v2583 = vpop.f32.mrf.mxu0
    %2584 = vdwg.mxu0
    %v2585 = vadd.f32 %v2340, %v2577
    %v2586 = vadd.f32 %v2341, %v2582
    %v2587 = vld [vmem:[%s16] sm:$0x1]
    %v2589 = vlaneseq
    %v2590 = vshrl.u32 %v2589, 7
    %v2591 = vsub.s32 0, %v2590
    %v2592 = vrot.slane %v2587, %v2591
    %v2594 = vadd.f32 %v2585, %v2592
    %v2595 = vadd.f32 %v2586, %v2592
    %2596 = vst.msk [vmem:[#allocation2] sm:$0xff] %vm190, %v2594
    %2597 = vst.msk [vmem:[#allocation2 + $0x8] sm:$0xff] %vm190, %v2595
    %v2598 = vld [vmem:[#allocation2] sm:$0xff]
    %v2599 = vld [vmem:[#allocation2 + $0x8] sm:$0xff]
    %s2600 = scalar_lea.vmem %s5, 1
    %v2601 = vld [vmem:[%s2600] sm:$0x1]
    %s2602 = scalar_lea.vmem %s6, 1
    %v2603 = vld [vmem:[%s2602] sm:$0x1]
    %v2604 = vsel %vm190, %v2598, 0.0
    %2605 = vadd.xlane.f32.xlu0 %v2604
    %v2606 = vpop.xlane.xlu0 %2605
    %v2607 = vsel %vm190, %v2599, 0.0
    %2608 = vadd.xlane.f32.xlu0 %v2607
    %v2609 = vpop.xlane.xlu0 %2608
    %v2610 = vmul.f32 %v2606, %v205
    %v2611 = vmul.f32 %v2609, %v205
    %v2612 = vsub.f32 %v2598, %v2610
    %v2613 = vsub.f32 %v2599, %v2611
    %v2614 = vmul.f32 %v2612, %v2612
    %v2615 = vmul.f32 %v2613, %v2613
    %v2616 = vsel %vm190, %v2614, 0.0
    %2617 = vadd.xlane.f32.xlu0 %v2616
    %v2618 = vpop.xlane.xlu0 %2617
    %v2619 = vsel %vm190, %v2615, 0.0
    %2620 = vadd.xlane.f32.xlu0 %v2619
    %v2621 = vpop.xlane.xlu0 %2620
    %v2622 = vmul.f32 %v2618, %v205
    %v2623 = vmul.f32 %v2621, %v205
    %v2624 = vadd.f32 %v2622, 1e-05
    %v2625 = vadd.f32 %v2623, 1e-05
    %v2626 = vrsqrt.pop %v2624
    %v2627 = vrsqrt.pop %v2625
    %v2628 = vmul.f32 %v2612, %v2626
    %v2629 = vmul.f32 %v2613, %v2627
    %v2631 = vlaneseq
    %v2632 = vshrl.u32 %v2631, 7
    %v2633 = vsub.s32 0, %v2632
    %v2634 = vrot.slane %v2601, %v2633
    %v2636 = vmul.f32 %v2628, %v2634
    %v2637 = vmul.f32 %v2629, %v2634
    %v2639 = vlaneseq
    %v2640 = vshrl.u32 %v2639, 7
    %v2641 = vsub.s32 0, %v2640
    %v2642 = vrot.slane %v2603, %v2641
    %v2644 = vadd.f32 %v2636, %v2642
    %v2645 = vadd.f32 %v2637, %v2642
    %s2646 = scalar_lea.vmem %s7, 32
    %v2647 = vld [vmem:[%s2646] sm:$0xff]
    %v2648 = vld [vmem:[%s2646 + $0x8] sm:$0xff]
    %v2649 = vld [vmem:[%s2646 + $0x10] sm:$0xff]
    %v2650 = vld [vmem:[%s2646 + $0x18] sm:$0xff]
    %s2651 = scalar_lea.vmem %s8, 1
    %v2652 = vld [vmem:[%s2651] sm:$0x1]
    %v2654 = vlaneseq
    %v2655 = vshrl.u32 %v2654, 7
    %v2656 = vsub.s32 0, %v2655
    %v2657 = vrot.slane %v2652, %v2656
    %v2660 = vsel %vm190, %v2644, 0
    %v2663 = vsel %vm190, %v2645, 0
    %2665 = vmatprep.subr.mxu0 0.0
    %2666 = vmatpush1.msra.mxu0 0.0
    %2667 = vmatprep.subr.mxu0 0.0
    %2668 = vmatpush1.msra.mxu0 0.0
    %2669 = vmatprep.subr.mxu0 0.0
    %2670 = vmatpush1.msra.mxu0 0.0
    %2671 = vmatprep.subr.mxu0 0.0
    %2672 = vmatpush1.msra.mxu0 0.0
    %2673 = vmatprep.subr.mxu0 0.0
    %2674 = vmatpush1.msra.mxu0 0.0
    %2675 = vmatprep.subr.mxu0 0.0
    %2676 = vmatpush1.msra.mxu0 0.0
    %2677 = vmatprep.subr.mxu0 0.0
    %2678 = vmatpush1.msra.mxu0 0.0
    %2679 = vmatprep.subr.mxu0 0.0
    %2680 = vmatpush1.msra.mxu0 0.0
    %2681 = vmatprep.subr.mxu0 0.0
    %2682 = vmatpush1.msra.mxu0 0.0
    %2683 = vmatprep.subr.mxu0 0.0
    %2684 = vmatpush1.msra.mxu0 0.0
    %2685 = vmatprep.subr.mxu0 0.0
    %2686 = vmatpush1.msra.mxu0 0.0
    %2687 = vmatprep.subr.mxu0 0.0
    %2688 = vmatpush1.msra.mxu0 0.0
    %2689 = vmatprep.subr.mxu0 0.0
    %2690 = vmatpush1.msra.mxu0 %v2650
    %2691 = vmatprep.subr.mxu0 0.0
    %2692 = vmatpush1.msra.mxu0 %v2649
    %2693 = vmatprep.subr.mxu0 0.0
    %2694 = vmatpush1.msra.mxu0 %v2648
    %2695 = vmatprep.subr.mxu0 0.0
    %2696 = vmatpush1.msra.mxu0 %v2647
    %2697 = vmatprep.subr.mxu0 0.0
    %2698 = vmatpush2.msra.mxu0 0.0
    %2699 = vmatprep.subr.mxu0 0.0
    %2700 = vmatpush2.msra.mxu0 0.0
    %2701 = vmatprep.subr.mxu0 0.0
    %2702 = vmatpush2.msra.mxu0 0.0
    %2703 = vmatprep.subr.mxu0 0.0
    %2704 = vmatpush2.msra.mxu0 0.0
    %2705 = vmatprep.subr.mxu0 0.0
    %2706 = vmatpush2.msra.mxu0 0.0
    %2707 = vmatprep.subr.mxu0 0.0
    %2708 = vmatpush2.msra.mxu0 0.0
    %2709 = vmatprep.subr.mxu0 0.0
    %2710 = vmatpush2.msra.mxu0 0.0
    %2711 = vmatprep.subr.mxu0 0.0
    %2712 = vmatpush2.msra.mxu0 0.0
    %2713 = vmatprep.subr.mxu0 0.0
    %2714 = vmatpush2.msra.mxu0 0.0
    %2715 = vmatprep.subr.mxu0 0.0
    %2716 = vmatpush2.msra.mxu0 0.0
    %2717 = vmatprep.subr.mxu0 0.0
    %2718 = vmatpush2.msra.mxu0 0.0
    %2719 = vmatprep.subr.mxu0 0.0
    %2720 = vmatpush2.msra.mxu0 0.0
    %2721 = vmatprep.subr.mxu0 0.0
    %2722 = vmatpush2.msra.mxu0 0.0
    %2723 = vmatprep.subr.mxu0 0.0
    %2724 = vmatpush2.msra.mxu0 0.0
    %2725 = vmatprep.subr.mxu0 0.0
    %2726 = vmatpush2.msra.mxu0 0.0
    %2727 = vmatprep.subr.mxu0 0.0
    %2728 = vmatpush2.msra.mxu0 0.0
    %2729 = vmatprep.mubr.f32.mxu0 0.0
    %2730 = vmatmul.mubr.f32.gmra.mxu0 %v2660
    %v2731 = vpop.f32.mrf.mxu0
    %v2732 = vadd.f32 %v2657, %v2731
    %v2733 = vpop.f32.mrf.mxu0
    %2734 = vmatprep.mubr.f32.mxu0 0.0
    %2735 = vmatmul.mubr.f32.gmra.mxu0 %v2663
    %v2736 = vpop.f32.mrf.mxu0
    %v2737 = vadd.f32 %v2657, %v2736
    %v2738 = vpop.f32.mrf.mxu0
    %2739 = vdwg.mxu0
    %2740 = vst.msk [vmem:[#allocation3] sm:$0xff] %vm382, %v2732
    %2741 = vst.msk [vmem:[#allocation3 + $0x8] sm:$0xff] %vm382, %v2737
    %s2742 = scalar_lea.vmem %s9, 32
    %v2743 = vld [vmem:[%s2742] sm:$0xff]
    %v2744 = vld [vmem:[%s2742 + $0x8] sm:$0xff]
    %v2745 = vld [vmem:[%s2742 + $0x10] sm:$0xff]
    %v2746 = vld [vmem:[%s2742 + $0x18] sm:$0xff]
    %v2747 = vld [vmem:[#allocation3] sm:$0x1f]
    %2749 = vrot.lane.b32.xlu0 %v2747, 96
    %v2750 = vpop.permute.xlu0 %2749
    %v2751 = vsel %vm393, %v2747, 0
    %v2753 = vsel %vm393, %v2750, 0
    %2755 = vmatprep.subr.mxu0 0.0
    %2756 = vmatpush1.xpose.msra.mxu0 0.0
    %2757 = vmatprep.subr.mxu0 0.0
    %2758 = vmatpush1.xpose.msra.mxu0 0.0
    %2759 = vmatprep.subr.mxu0 0.0
    %2760 = vmatpush1.xpose.msra.mxu0 0.0
    %2761 = vmatprep.subr.mxu0 0.0
    %2762 = vmatpush1.xpose.msra.mxu0 0.0
    %2763 = vmatprep.subr.mxu0 0.0
    %2764 = vmatpush1.xpose.msra.mxu0 0.0
    %2765 = vmatprep.subr.mxu0 0.0
    %2766 = vmatpush1.xpose.msra.mxu0 0.0
    %2767 = vmatprep.subr.mxu0 0.0
    %2768 = vmatpush1.xpose.msra.mxu0 0.0
    %2769 = vmatprep.subr.mxu0 0.0
    %2770 = vmatpush1.xpose.msra.mxu0 0.0
    %2771 = vmatprep.subr.mxu0 0.0
    %2772 = vmatpush1.xpose.msra.mxu0 0.0
    %2773 = vmatprep.subr.mxu0 0.0
    %2774 = vmatpush1.xpose.msra.mxu0 0.0
    %2775 = vmatprep.subr.mxu0 0.0
    %2776 = vmatpush1.xpose.msra.mxu0 0.0
    %2777 = vmatprep.subr.mxu0 0.0
    %2778 = vmatpush1.xpose.msra.mxu0 0.0
    %2779 = vmatprep.subr.mxu0 0.0
    %2780 = vmatpush1.xpose.msra.mxu0 0.0
    %2781 = vmatprep.subr.mxu0 0.0
    %2782 = vmatpush1.xpose.msra.mxu0 0.0
    %2783 = vmatprep.subr.mxu0 0.0
    %2784 = vmatpush1.xpose.msra.mxu0 0.0
    %2785 = vmatprep.subr.mxu0 0.0
    %2786 = vmatpush1.xpose.msra.mxu0 %v2753
    %2787 = vmatprep.subr.mxu0 0.0
    %2788 = vmatpush2.xpose.msra.mxu0 0.0
    %2789 = vmatprep.subr.mxu0 0.0
    %2790 = vmatpush2.xpose.msra.mxu0 0.0
    %2791 = vmatprep.subr.mxu0 0.0
    %2792 = vmatpush2.xpose.msra.mxu0 0.0
    %2793 = vmatprep.subr.mxu0 0.0
    %2794 = vmatpush2.xpose.msra.mxu0 0.0
    %2795 = vmatprep.subr.mxu0 0.0
    %2796 = vmatpush2.xpose.msra.mxu0 0.0
    %2797 = vmatprep.subr.mxu0 0.0
    %2798 = vmatpush2.xpose.msra.mxu0 0.0
    %2799 = vmatprep.subr.mxu0 0.0
    %2800 = vmatpush2.xpose.msra.mxu0 0.0
    %2801 = vmatprep.subr.mxu0 0.0
    %2802 = vmatpush2.xpose.msra.mxu0 0.0
    %2803 = vmatprep.subr.mxu0 0.0
    %2804 = vmatpush2.xpose.msra.mxu0 0.0
    %2805 = vmatprep.subr.mxu0 0.0
    %2806 = vmatpush2.xpose.msra.mxu0 0.0
    %2807 = vmatprep.subr.mxu0 0.0
    %2808 = vmatpush2.xpose.msra.mxu0 0.0
    %2809 = vmatprep.subr.mxu0 0.0
    %2810 = vmatpush2.xpose.msra.mxu0 0.0
    %2811 = vmatprep.subr.mxu0 0.0
    %2812 = vmatpush2.xpose.msra.mxu0 0.0
    %2813 = vmatprep.subr.mxu0 0.0
    %2814 = vmatpush2.xpose.msra.mxu0 0.0
    %2815 = vmatprep.subr.mxu0 0.0
    %2816 = vmatpush2.xpose.msra.mxu0 0.0
    %2817 = vmatprep.subr.mxu0 0.0
    %2818 = vmatpush2.xpose.msra.mxu0 0.0
    %2819 = vmatprep.mubr.f32.mxu0 0.0
    %2820 = vmatmul.mubr.f32.gmra.mxu0 %v2751
    %v2821 = vpop.f32.mrf.mxu0
    %v2822 = vadd.f32 0.0, %v2821
    %v2823 = vpop.f32.mrf.mxu0
    %2824 = vdwg.mxu0
    %v2825 = vmul.f32 %v2822, 0.35355338
    %v2826 = vsel %vm469, %v2825, -inf
    %2827 = vmax.xlane.f32.xlu0 %v2826
    %v2828 = vpop.xlane.xlu0 %2827
    %v2829 = vsub.f32 %v2825, %v2828
    %v2830 = vmul.f32 %v2829, 1.442695
    %v2831 = vpow.pop %v2830
    %v2832 = vsel %vm469, %v2831, 0.0
    %2833 = vadd.xlane.f32.xlu0 %v2832
    %v2834 = vpop.xlane.xlu0 %2833
    %v2835 = vrcp.pop %v2834
    %v2836 = vmul.f32 %v2831, %v2835
    %2837 = vrot.lane.b32.xlu0 %v2747, 64
    %v2838 = vpop.permute.xlu0 %2837
    %v2840 = vsel %vm483, %v2836, 0
    %v2842 = vsel %vm487, %v2838, 0
    %2844 = vmatprep.subr.mxu0 0.0
    %2845 = vmatpush1.msra.mxu0 0.0
    %2846 = vmatprep.subr.mxu0 0.0
    %2847 = vmatpush1.msra.mxu0 0.0
    %2848 = vmatprep.subr.mxu0 0.0
    %2849 = vmatpush1.msra.mxu0 0.0
    %2850 = vmatprep.subr.mxu0 0.0
    %2851 = vmatpush1.msra.mxu0 0.0
    %2852 = vmatprep.subr.mxu0 0.0
    %2853 = vmatpush1.msra.mxu0 0.0
    %2854 = vmatprep.subr.mxu0 0.0
    %2855 = vmatpush1.msra.mxu0 0.0
    %2856 = vmatprep.subr.mxu0 0.0
    %2857 = vmatpush1.msra.mxu0 0.0
    %2858 = vmatprep.subr.mxu0 0.0
    %2859 = vmatpush1.msra.mxu0 0.0
    %2860 = vmatprep.subr.mxu0 0.0
    %2861 = vmatpush1.msra.mxu0 0.0
    %2862 = vmatprep.subr.mxu0 0.0
    %2863 = vmatpush1.msra.mxu0 0.0
    %2864 = vmatprep.subr.mxu0 0.0
    %2865 = vmatpush1.msra.mxu0 0.0
    %2866 = vmatprep.subr.mxu0 0.0
    %2867 = vmatpush1.msra.mxu0 0.0
    %2868 = vmatprep.subr.mxu0 0.0
    %2869 = vmatpush1.msra.mxu0 0.0
    %2870 = vmatprep.subr.mxu0 0.0
    %2871 = vmatpush1.msra.mxu0 0.0
    %2872 = vmatprep.subr.mxu0 0.0
    %2873 = vmatpush1.msra.mxu0 0.0
    %2874 = vmatprep.subr.mxu0 0.0
    %2875 = vmatpush1.msra.mxu0 %v2842
    %2876 = vmatprep.subr.mxu0 0.0
    %2877 = vmatpush2.msra.mxu0 0.0
    %2878 = vmatprep.subr.mxu0 0.0
    %2879 = vmatpush2.msra.mxu0 0.0
    %2880 = vmatprep.subr.mxu0 0.0
    %2881 = vmatpush2.msra.mxu0 0.0
    %2882 = vmatprep.subr.mxu0 0.0
    %2883 = vmatpush2.msra.mxu0 0.0
    %2884 = vmatprep.subr.mxu0 0.0
    %2885 = vmatpush2.msra.mxu0 0.0
    %2886 = vmatprep.subr.mxu0 0.0
    %2887 = vmatpush2.msra.mxu0 0.0
    %2888 = vmatprep.subr.mxu0 0.0
    %2889 = vmatpush2.msra.mxu0 0.0
    %2890 = vmatprep.subr.mxu0 0.0
    %2891 = vmatpush2.msra.mxu0 0.0
    %2892 = vmatprep.subr.mxu0 0.0
    %2893 = vmatpush2.msra.mxu0 0.0
    %2894 = vmatprep.subr.mxu0 0.0
    %2895 = vmatpush2.msra.mxu0 0.0
    %2896 = vmatprep.subr.mxu0 0.0
    %2897 = vmatpush2.msra.mxu0 0.0
    %2898 = vmatprep.subr.mxu0 0.0
    %2899 = vmatpush2.msra.mxu0 0.0
    %2900 = vmatprep.subr.mxu0 0.0
    %2901 = vmatpush2.msra.mxu0 0.0
    %2902 = vmatprep.subr.mxu0 0.0
    %2903 = vmatpush2.msra.mxu0 0.0
    %2904 = vmatprep.subr.mxu0 0.0
    %2905 = vmatpush2.msra.mxu0 0.0
    %2906 = vmatprep.subr.mxu0 0.0
    %2907 = vmatpush2.msra.mxu0 0.0
    %2908 = vmatprep.mubr.f32.mxu0 0.0
    %2909 = vmatmul.mubr.f32.gmra.mxu0 %v2840
    %v2910 = vpop.f32.mrf.mxu0
    %v2911 = vadd.f32 0.0, %v2910
    %v2912 = vpop.f32.mrf.mxu0
    %2913 = vdwg.mxu0
    %2914 = vrot.lane.b32.xlu0 %v2747, 120
    %v2915 = vpop.permute.xlu0 %2914
    %2916 = vrot.lane.b32.xlu0 %v2747, 88
    %v2917 = vpop.permute.xlu0 %2916
    %v2918 = vsel %vm393, %v2915, 0
    %v2920 = vsel %vm393, %v2917, 0
    %2922 = vmatprep.subr.mxu0 0.0
    %2923 = vmatpush1.xpose.msra.mxu0 0.0
    %2924 = vmatprep.subr.mxu0 0.0
    %2925 = vmatpush1.xpose.msra.mxu0 0.0
    %2926 = vmatprep.subr.mxu0 0.0
    %2927 = vmatpush1.xpose.msra.mxu0 0.0
    %2928 = vmatprep.subr.mxu0 0.0
    %2929 = vmatpush1.xpose.msra.mxu0 0.0
    %2930 = vmatprep.subr.mxu0 0.0
    %2931 = vmatpush1.xpose.msra.mxu0 0.0
    %2932 = vmatprep.subr.mxu0 0.0
    %2933 = vmatpush1.xpose.msra.mxu0 0.0
    %2934 = vmatprep.subr.mxu0 0.0
    %2935 = vmatpush1.xpose.msra.mxu0 0.0
    %2936 = vmatprep.subr.mxu0 0.0
    %2937 = vmatpush1.xpose.msra.mxu0 0.0
    %2938 = vmatprep.subr.mxu0 0.0
    %2939 = vmatpush1.xpose.msra.mxu0 0.0
    %2940 = vmatprep.subr.mxu0 0.0
    %2941 = vmatpush1.xpose.msra.mxu0 0.0
    %2942 = vmatprep.subr.mxu0 0.0
    %2943 = vmatpush1.xpose.msra.mxu0 0.0
    %2944 = vmatprep.subr.mxu0 0.0
    %2945 = vmatpush1.xpose.msra.mxu0 0.0
    %2946 = vmatprep.subr.mxu0 0.0
    %2947 = vmatpush1.xpose.msra.mxu0 0.0
    %2948 = vmatprep.subr.mxu0 0.0
    %2949 = vmatpush1.xpose.msra.mxu0 0.0
    %2950 = vmatprep.subr.mxu0 0.0
    %2951 = vmatpush1.xpose.msra.mxu0 0.0
    %2952 = vmatprep.subr.mxu0 0.0
    %2953 = vmatpush1.xpose.msra.mxu0 %v2920
    %2954 = vmatprep.subr.mxu0 0.0
    %2955 = vmatpush2.xpose.msra.mxu0 0.0
    %2956 = vmatprep.subr.mxu0 0.0
    %2957 = vmatpush2.xpose.msra.mxu0 0.0
    %2958 = vmatprep.subr.mxu0 0.0
    %2959 = vmatpush2.xpose.msra.mxu0 0.0
    %2960 = vmatprep.subr.mxu0 0.0
    %2961 = vmatpush2.xpose.msra.mxu0 0.0
    %2962 = vmatprep.subr.mxu0 0.0
    %2963 = vmatpush2.xpose.msra.mxu0 0.0
    %2964 = vmatprep.subr.mxu0 0.0
    %2965 = vmatpush2.xpose.msra.mxu0 0.0
    %2966 = vmatprep.subr.mxu0 0.0
    %2967 = vmatpush2.xpose.msra.mxu0 0.0
    %2968 = vmatprep.subr.mxu0 0.0
    %2969 = vmatpush2.xpose.msra.mxu0 0.0
    %2970 = vmatprep.subr.mxu0 0.0
    %2971 = vmatpush2.xpose.msra.mxu0 0.0
    %2972 = vmatprep.subr.mxu0 0.0
    %2973 = vmatpush2.xpose.msra.mxu0 0.0
    %2974 = vmatprep.subr.mxu0 0.0
    %2975 = vmatpush2.xpose.msra.mxu0 0.0
    %2976 = vmatprep.subr.mxu0 0.0
    %2977 = vmatpush2.xpose.msra.mxu0 0.0
    %2978 = vmatprep.subr.mxu0 0.0
    %2979 = vmatpush2.xpose.msra.mxu0 0.0
    %2980 = vmatprep.subr.mxu0 0.0
    %2981 = vmatpush2.xpose.msra.mxu0 0.0
    %2982 = vmatprep.subr.mxu0 0.0
    %2983 = vmatpush2.xpose.msra.mxu0 0.0
    %2984 = vmatprep.subr.mxu0 0.0
    %2985 = vmatpush2.xpose.msra.mxu0 0.0
    %2986 = vmatprep.mubr.f32.mxu0 0.0
    %2987 = vmatmul.mubr.f32.gmra.mxu0 %v2918
    %v2988 = vpop.f32.mrf.mxu0
    %v2989 = vadd.f32 0.0, %v2988
    %v2990 = vpop.f32.mrf.mxu0
    %2991 = vdwg.mxu0
    %v2992 = vmul.f32 %v2989, 0.35355338
    %v2993 = vsel %vm469, %v2992, -inf
    %2994 = vmax.xlane.f32.xlu0 %v2993
    %v2995 = vpop.xlane.xlu0 %2994
    %v2996 = vsub.f32 %v2992, %v2995
    %v2997 = vmul.f32 %v2996, 1.442695
    %v2998 = vpow.pop %v2997
    %v2999 = vsel %vm469, %v2998, 0.0
    %3000 = vadd.xlane.f32.xlu0 %v2999
    %v3001 = vpop.xlane.xlu0 %3000
    %v3002 = vrcp.pop %v3001
    %v3003 = vmul.f32 %v2998, %v3002
    %3004 = vrot.lane.b32.xlu0 %v2747, 56
    %v3005 = vpop.permute.xlu0 %3004
    %v3007 = vsel %vm483, %v3003, 0
    %v3009 = vsel %vm487, %v3005, 0
    %3011 = vmatprep.subr.mxu0 0.0
    %3012 = vmatpush1.msra.mxu0 0.0
    %3013 = vmatprep.subr.mxu0 0.0
    %3014 = vmatpush1.msra.mxu0 0.0
    %3015 = vmatprep.subr.mxu0 0.0
    %3016 = vmatpush1.msra.mxu0 0.0
    %3017 = vmatprep.subr.mxu0 0.0
    %3018 = vmatpush1.msra.mxu0 0.0
    %3019 = vmatprep.subr.mxu0 0.0
    %3020 = vmatpush1.msra.mxu0 0.0
    %3021 = vmatprep.subr.mxu0 0.0
    %3022 = vmatpush1.msra.mxu0 0.0
    %3023 = vmatprep.subr.mxu0 0.0
    %3024 = vmatpush1.msra.mxu0 0.0
    %3025 = vmatprep.subr.mxu0 0.0
    %3026 = vmatpush1.msra.mxu0 0.0
    %3027 = vmatprep.subr.mxu0 0.0
    %3028 = vmatpush1.msra.mxu0 0.0
    %3029 = vmatprep.subr.mxu0 0.0
    %3030 = vmatpush1.msra.mxu0 0.0
    %3031 = vmatprep.subr.mxu0 0.0
    %3032 = vmatpush1.msra.mxu0 0.0
    %3033 = vmatprep.subr.mxu0 0.0
    %3034 = vmatpush1.msra.mxu0 0.0
    %3035 = vmatprep.subr.mxu0 0.0
    %3036 = vmatpush1.msra.mxu0 0.0
    %3037 = vmatprep.subr.mxu0 0.0
    %3038 = vmatpush1.msra.mxu0 0.0
    %3039 = vmatprep.subr.mxu0 0.0
    %3040 = vmatpush1.msra.mxu0 0.0
    %3041 = vmatprep.subr.mxu0 0.0
    %3042 = vmatpush1.msra.mxu0 %v3009
    %3043 = vmatprep.subr.mxu0 0.0
    %3044 = vmatpush2.msra.mxu0 0.0
    %3045 = vmatprep.subr.mxu0 0.0
    %3046 = vmatpush2.msra.mxu0 0.0
    %3047 = vmatprep.subr.mxu0 0.0
    %3048 = vmatpush2.msra.mxu0 0.0
    %3049 = vmatprep.subr.mxu0 0.0
    %3050 = vmatpush2.msra.mxu0 0.0
    %3051 = vmatprep.subr.mxu0 0.0
    %3052 = vmatpush2.msra.mxu0 0.0
    %3053 = vmatprep.subr.mxu0 0.0
    %3054 = vmatpush2.msra.mxu0 0.0
    %3055 = vmatprep.subr.mxu0 0.0
    %3056 = vmatpush2.msra.mxu0 0.0
    %3057 = vmatprep.subr.mxu0 0.0
    %3058 = vmatpush2.msra.mxu0 0.0
    %3059 = vmatprep.subr.mxu0 0.0
    %3060 = vmatpush2.msra.mxu0 0.0
    %3061 = vmatprep.subr.mxu0 0.0
    %3062 = vmatpush2.msra.mxu0 0.0
    %3063 = vmatprep.subr.mxu0 0.0
    %3064 = vmatpush2.msra.mxu0 0.0
    %3065 = vmatprep.subr.mxu0 0.0
    %3066 = vmatpush2.msra.mxu0 0.0
    %3067 = vmatprep.subr.mxu0 0.0
    %3068 = vmatpush2.msra.mxu0 0.0
    %3069 = vmatprep.subr.mxu0 0.0
    %3070 = vmatpush2.msra.mxu0 0.0
    %3071 = vmatprep.subr.mxu0 0.0
    %3072 = vmatpush2.msra.mxu0 0.0
    %3073 = vmatprep.subr.mxu0 0.0
    %3074 = vmatpush2.msra.mxu0 0.0
    %3075 = vmatprep.mubr.f32.mxu0 0.0
    %3076 = vmatmul.mubr.f32.gmra.mxu0 %v3007
    %v3077 = vpop.f32.mrf.mxu0
    %v3078 = vadd.f32 0.0, %v3077
    %v3079 = vpop.f32.mrf.mxu0
    %3080 = vdwg.mxu0
    %v3082 = vsel %vm393, %v3078, 0
    %3084 = vmatprep.subr.mxu0 0.0
    %3085 = vmatpush1.msra.mxu0 0.0
    %3086 = vmatprep.subr.mxu0 0.0
    %3087 = vmatpush1.msra.mxu0 0.0
    %3088 = vmatprep.subr.mxu0 0.0
    %3089 = vmatpush1.msra.mxu0 0.0
    %3090 = vmatprep.subr.mxu0 0.0
    %3091 = vmatpush1.msra.mxu0 0.0
    %3092 = vmatprep.subr.mxu0 0.0
    %3093 = vmatpush1.msra.mxu0 0.0
    %3094 = vmatprep.subr.mxu0 0.0
    %3095 = vmatpush1.msra.mxu0 0.0
    %3096 = vmatprep.subr.mxu0 0.0
    %3097 = vmatpush1.msra.mxu0 0.0
    %3098 = vmatprep.subr.mxu0 0.0
    %3099 = vmatpush1.msra.mxu0 0.0
    %3100 = vmatprep.subr.mxu0 0.0
    %3101 = vmatpush1.msra.mxu0 0.0
    %3102 = vmatprep.subr.mxu0 0.0
    %3103 = vmatpush1.msra.mxu0 0.0
    %3104 = vmatprep.subr.mxu0 0.0
    %3105 = vmatpush1.msra.mxu0 0.0
    %3106 = vmatprep.subr.mxu0 0.0
    %3107 = vmatpush1.msra.mxu0 0.0
    %3108 = vmatprep.subr.mxu0 0.0
    %3109 = vmatpush1.msra.mxu0 0.0
    %3110 = vmatprep.subr.mxu0 0.0
    %3111 = vmatpush1.msra.mxu0 0.0
    %3112 = vmatprep.subr.mxu0 0.0
    %3113 = vmatpush1.msra.mxu0 0.0
    %3114 = vmatprep.subr.mxu0 0.0
    %3115 = vmatpush1.msra.mxu0 %v2744
    %3116 = vmatprep.subr.mxu0 0.0
    %3117 = vmatpush2.msra.mxu0 0.0
    %3118 = vmatprep.subr.mxu0 0.0
    %3119 = vmatpush2.msra.mxu0 0.0
    %3120 = vmatprep.subr.mxu0 0.0
    %3121 = vmatpush2.msra.mxu0 0.0
    %3122 = vmatprep.subr.mxu0 0.0
    %3123 = vmatpush2.msra.mxu0 0.0
    %3124 = vmatprep.subr.mxu0 0.0
    %3125 = vmatpush2.msra.mxu0 0.0
    %3126 = vmatprep.subr.mxu0 0.0
    %3127 = vmatpush2.msra.mxu0 0.0
    %3128 = vmatprep.subr.mxu0 0.0
    %3129 = vmatpush2.msra.mxu0 0.0
    %3130 = vmatprep.subr.mxu0 0.0
    %3131 = vmatpush2.msra.mxu0 0.0
    %3132 = vmatprep.subr.mxu0 0.0
    %3133 = vmatpush2.msra.mxu0 0.0
    %3134 = vmatprep.subr.mxu0 0.0
    %3135 = vmatpush2.msra.mxu0 0.0
    %3136 = vmatprep.subr.mxu0 0.0
    %3137 = vmatpush2.msra.mxu0 0.0
    %3138 = vmatprep.subr.mxu0 0.0
    %3139 = vmatpush2.msra.mxu0 0.0
    %3140 = vmatprep.subr.mxu0 0.0
    %3141 = vmatpush2.msra.mxu0 0.0
    %3142 = vmatprep.subr.mxu0 0.0
    %3143 = vmatpush2.msra.mxu0 0.0
    %3144 = vmatprep.subr.mxu0 0.0
    %3145 = vmatpush2.msra.mxu0 0.0
    %3146 = vmatprep.subr.mxu0 0.0
    %3147 = vmatpush2.msra.mxu0 0.0
    %3148 = vmatprep.mubr.f32.mxu0 0.0
    %3149 = vmatmul.mubr.f32.gmra.mxu0 %v3082
    %v3150 = vpop.f32.mrf.mxu0
    %v3151 = vadd.f32 0.0, %v3150
    %v3152 = vpop.f32.mrf.mxu0
    %3153 = vdwg.mxu0
    %v3155 = vsel %vm393, %v2911, 0
    %3157 = vmatprep.subr.mxu0 0.0
    %3158 = vmatpush1.msra.mxu0 0.0
    %3159 = vmatprep.subr.mxu0 0.0
    %3160 = vmatpush1.msra.mxu0 0.0
    %3161 = vmatprep.subr.mxu0 0.0
    %3162 = vmatpush1.msra.mxu0 0.0
    %3163 = vmatprep.subr.mxu0 0.0
    %3164 = vmatpush1.msra.mxu0 0.0
    %3165 = vmatprep.subr.mxu0 0.0
    %3166 = vmatpush1.msra.mxu0 0.0
    %3167 = vmatprep.subr.mxu0 0.0
    %3168 = vmatpush1.msra.mxu0 0.0
    %3169 = vmatprep.subr.mxu0 0.0
    %3170 = vmatpush1.msra.mxu0 0.0
    %3171 = vmatprep.subr.mxu0 0.0
    %3172 = vmatpush1.msra.mxu0 0.0
    %3173 = vmatprep.subr.mxu0 0.0
    %3174 = vmatpush1.msra.mxu0 0.0
    %3175 = vmatprep.subr.mxu0 0.0
    %3176 = vmatpush1.msra.mxu0 0.0
    %3177 = vmatprep.subr.mxu0 0.0
    %3178 = vmatpush1.msra.mxu0 0.0
    %3179 = vmatprep.subr.mxu0 0.0
    %3180 = vmatpush1.msra.mxu0 0.0
    %3181 = vmatprep.subr.mxu0 0.0
    %3182 = vmatpush1.msra.mxu0 0.0
    %3183 = vmatprep.subr.mxu0 0.0
    %3184 = vmatpush1.msra.mxu0 0.0
    %3185 = vmatprep.subr.mxu0 0.0
    %3186 = vmatpush1.msra.mxu0 0.0
    %3187 = vmatprep.subr.mxu0 0.0
    %3188 = vmatpush1.msra.mxu0 %v2743
    %3189 = vmatprep.subr.mxu0 0.0
    %3190 = vmatpush2.msra.mxu0 0.0
    %3191 = vmatprep.subr.mxu0 0.0
    %3192 = vmatpush2.msra.mxu0 0.0
    %3193 = vmatprep.subr.mxu0 0.0
    %3194 = vmatpush2.msra.mxu0 0.0
    %3195 = vmatprep.subr.mxu0 0.0
    %3196 = vmatpush2.msra.mxu0 0.0
    %3197 = vmatprep.subr.mxu0 0.0
    %3198 = vmatpush2.msra.mxu0 0.0
    %3199 = vmatprep.subr.mxu0 0.0
    %3200 = vmatpush2.msra.mxu0 0.0
    %3201 = vmatprep.subr.mxu0 0.0
    %3202 = vmatpush2.msra.mxu0 0.0
    %3203 = vmatprep.subr.mxu0 0.0
    %3204 = vmatpush2.msra.mxu0 0.0
    %3205 = vmatprep.subr.mxu0 0.0
    %3206 = vmatpush2.msra.mxu0 0.0
    %3207 = vmatprep.subr.mxu0 0.0
    %3208 = vmatpush2.msra.mxu0 0.0
    %3209 = vmatprep.subr.mxu0 0.0
    %3210 = vmatpush2.msra.mxu0 0.0
    %3211 = vmatprep.subr.mxu0 0.0
    %3212 = vmatpush2.msra.mxu0 0.0
    %3213 = vmatprep.subr.mxu0 0.0
    %3214 = vmatpush2.msra.mxu0 0.0
    %3215 = vmatprep.subr.mxu0 0.0
    %3216 = vmatpush2.msra.mxu0 0.0
    %3217 = vmatprep.subr.mxu0 0.0
    %3218 = vmatpush2.msra.mxu0 0.0
    %3219 = vmatprep.subr.mxu0 0.0
    %3220 = vmatpush2.msra.mxu0 0.0
    %3221 = vmatprep.mubr.f32.mxu0 0.0
    %3222 = vmatmul.mubr.f32.gmra.mxu0 %v3155
    %v3223 = vpop.f32.mrf.mxu0
    %v3224 = vadd.f32 %v3151, %v3223
    %v3225 = vpop.f32.mrf.mxu0
    %3226 = vdwg.mxu0
    %3227 = vrot.lane.b32.xlu0 %v2747, 112
    %v3228 = vpop.permute.xlu0 %3227
    %3229 = vrot.lane.b32.xlu0 %v2747, 80
    %v3230 = vpop.permute.xlu0 %3229
    %v3231 = vsel %vm393, %v3228, 0
    %v3233 = vsel %vm393, %v3230, 0
    %3235 = vmatprep.subr.mxu0 0.0
    %3236 = vmatpush1.xpose.msra.mxu0 0.0
    %3237 = vmatprep.subr.mxu0 0.0
    %3238 = vmatpush1.xpose.msra.mxu0 0.0
    %3239 = vmatprep.subr.mxu0 0.0
    %3240 = vmatpush1.xpose.msra.mxu0 0.0
    %3241 = vmatprep.subr.mxu0 0.0
    %3242 = vmatpush1.xpose.msra.mxu0 0.0
    %3243 = vmatprep.subr.mxu0 0.0
    %3244 = vmatpush1.xpose.msra.mxu0 0.0
    %3245 = vmatprep.subr.mxu0 0.0
    %3246 = vmatpush1.xpose.msra.mxu0 0.0
    %3247 = vmatprep.subr.mxu0 0.0
    %3248 = vmatpush1.xpose.msra.mxu0 0.0
    %3249 = vmatprep.subr.mxu0 0.0
    %3250 = vmatpush1.xpose.msra.mxu0 0.0
    %3251 = vmatprep.subr.mxu0 0.0
    %3252 = vmatpush1.xpose.msra.mxu0 0.0
    %3253 = vmatprep.subr.mxu0 0.0
    %3254 = vmatpush1.xpose.msra.mxu0 0.0
    %3255 = vmatprep.subr.mxu0 0.0
    %3256 = vmatpush1.xpose.msra.mxu0 0.0
    %3257 = vmatprep.subr.mxu0 0.0
    %3258 = vmatpush1.xpose.msra.mxu0 0.0
    %3259 = vmatprep.subr.mxu0 0.0
    %3260 = vmatpush1.xpose.msra.mxu0 0.0
    %3261 = vmatprep.subr.mxu0 0.0
    %3262 = vmatpush1.xpose.msra.mxu0 0.0
    %3263 = vmatprep.subr.mxu0 0.0
    %3264 = vmatpush1.xpose.msra.mxu0 0.0
    %3265 = vmatprep.subr.mxu0 0.0
    %3266 = vmatpush1.xpose.msra.mxu0 %v3233
    %3267 = vmatprep.subr.mxu0 0.0
    %3268 = vmatpush2.xpose.msra.mxu0 0.0
    %3269 = vmatprep.subr.mxu0 0.0
    %3270 = vmatpush2.xpose.msra.mxu0 0.0
    %3271 = vmatprep.subr.mxu0 0.0
    %3272 = vmatpush2.xpose.msra.mxu0 0.0
    %3273 = vmatprep.subr.mxu0 0.0
    %3274 = vmatpush2.xpose.msra.mxu0 0.0
    %3275 = vmatprep.subr.mxu0 0.0
    %3276 = vmatpush2.xpose.msra.mxu0 0.0
    %3277 = vmatprep.subr.mxu0 0.0
    %3278 = vmatpush2.xpose.msra.mxu0 0.0
    %3279 = vmatprep.subr.mxu0 0.0
    %3280 = vmatpush2.xpose.msra.mxu0 0.0
    %3281 = vmatprep.subr.mxu0 0.0
    %3282 = vmatpush2.xpose.msra.mxu0 0.0
    %3283 = vmatprep.subr.mxu0 0.0
    %3284 = vmatpush2.xpose.msra.mxu0 0.0
    %3285 = vmatprep.subr.mxu0 0.0
    %3286 = vmatpush2.xpose.msra.mxu0 0.0
    %3287 = vmatprep.subr.mxu0 0.0
    %3288 = vmatpush2.xpose.msra.mxu0 0.0
    %3289 = vmatprep.subr.mxu0 0.0
    %3290 = vmatpush2.xpose.msra.mxu0 0.0
    %3291 = vmatprep.subr.mxu0 0.0
    %3292 = vmatpush2.xpose.msra.mxu0 0.0
    %3293 = vmatprep.subr.mxu0 0.0
    %3294 = vmatpush2.xpose.msra.mxu0 0.0
    %3295 = vmatprep.subr.mxu0 0.0
    %3296 = vmatpush2.xpose.msra.mxu0 0.0
    %3297 = vmatprep.subr.mxu0 0.0
    %3298 = vmatpush2.xpose.msra.mxu0 0.0
    %3299 = vmatprep.mubr.f32.mxu0 0.0
    %3300 = vmatmul.mubr.f32.gmra.mxu0 %v3231
    %v3301 = vpop.f32.mrf.mxu0
    %v3302 = vadd.f32 0.0, %v3301
    %v3303 = vpop.f32.mrf.mxu0
    %3304 = vdwg.mxu0
    %v3305 = vmul.f32 %v3302, 0.35355338
    %v3306 = vsel %vm469, %v3305, -inf
    %3307 = vmax.xlane.f32.xlu0 %v3306
    %v3308 = vpop.xlane.xlu0 %3307
    %v3309 = vsub.f32 %v3305, %v3308
    %v3310 = vmul.f32 %v3309, 1.442695
    %v3311 = vpow.pop %v3310
    %v3312 = vsel %vm469, %v3311, 0.0
    %3313 = vadd.xlane.f32.xlu0 %v3312
    %v3314 = vpop.xlane.xlu0 %3313
    %v3315 = vrcp.pop %v3314
    %v3316 = vmul.f32 %v3311, %v3315
    %3317 = vrot.lane.b32.xlu0 %v2747, 48
    %v3318 = vpop.permute.xlu0 %3317
    %v3320 = vsel %vm483, %v3316, 0
    %v3322 = vsel %vm487, %v3318, 0
    %3324 = vmatprep.subr.mxu0 0.0
    %3325 = vmatpush1.msra.mxu0 0.0
    %3326 = vmatprep.subr.mxu0 0.0
    %3327 = vmatpush1.msra.mxu0 0.0
    %3328 = vmatprep.subr.mxu0 0.0
    %3329 = vmatpush1.msra.mxu0 0.0
    %3330 = vmatprep.subr.mxu0 0.0
    %3331 = vmatpush1.msra.mxu0 0.0
    %3332 = vmatprep.subr.mxu0 0.0
    %3333 = vmatpush1.msra.mxu0 0.0
    %3334 = vmatprep.subr.mxu0 0.0
    %3335 = vmatpush1.msra.mxu0 0.0
    %3336 = vmatprep.subr.mxu0 0.0
    %3337 = vmatpush1.msra.mxu0 0.0
    %3338 = vmatprep.subr.mxu0 0.0
    %3339 = vmatpush1.msra.mxu0 0.0
    %3340 = vmatprep.subr.mxu0 0.0
    %3341 = vmatpush1.msra.mxu0 0.0
    %3342 = vmatprep.subr.mxu0 0.0
    %3343 = vmatpush1.msra.mxu0 0.0
    %3344 = vmatprep.subr.mxu0 0.0
    %3345 = vmatpush1.msra.mxu0 0.0
    %3346 = vmatprep.subr.mxu0 0.0
    %3347 = vmatpush1.msra.mxu0 0.0
    %3348 = vmatprep.subr.mxu0 0.0
    %3349 = vmatpush1.msra.mxu0 0.0
    %3350 = vmatprep.subr.mxu0 0.0
    %3351 = vmatpush1.msra.mxu0 0.0
    %3352 = vmatprep.subr.mxu0 0.0
    %3353 = vmatpush1.msra.mxu0 0.0
    %3354 = vmatprep.subr.mxu0 0.0
    %3355 = vmatpush1.msra.mxu0 %v3322
    %3356 = vmatprep.subr.mxu0 0.0
    %3357 = vmatpush2.msra.mxu0 0.0
    %3358 = vmatprep.subr.mxu0 0.0
    %3359 = vmatpush2.msra.mxu0 0.0
    %3360 = vmatprep.subr.mxu0 0.0
    %3361 = vmatpush2.msra.mxu0 0.0
    %3362 = vmatprep.subr.mxu0 0.0
    %3363 = vmatpush2.msra.mxu0 0.0
    %3364 = vmatprep.subr.mxu0 0.0
    %3365 = vmatpush2.msra.mxu0 0.0
    %3366 = vmatprep.subr.mxu0 0.0
    %3367 = vmatpush2.msra.mxu0 0.0
    %3368 = vmatprep.subr.mxu0 0.0
    %3369 = vmatpush2.msra.mxu0 0.0
    %3370 = vmatprep.subr.mxu0 0.0
    %3371 = vmatpush2.msra.mxu0 0.0
    %3372 = vmatprep.subr.mxu0 0.0
    %3373 = vmatpush2.msra.mxu0 0.0
    %3374 = vmatprep.subr.mxu0 0.0
    %3375 = vmatpush2.msra.mxu0 0.0
    %3376 = vmatprep.subr.mxu0 0.0
    %3377 = vmatpush2.msra.mxu0 0.0
    %3378 = vmatprep.subr.mxu0 0.0
    %3379 = vmatpush2.msra.mxu0 0.0
    %3380 = vmatprep.subr.mxu0 0.0
    %3381 = vmatpush2.msra.mxu0 0.0
    %3382 = vmatprep.subr.mxu0 0.0
    %3383 = vmatpush2.msra.mxu0 0.0
    %3384 = vmatprep.subr.mxu0 0.0
    %3385 = vmatpush2.msra.mxu0 0.0
    %3386 = vmatprep.subr.mxu0 0.0
    %3387 = vmatpush2.msra.mxu0 0.0
    %3388 = vmatprep.mubr.f32.mxu0 0.0
    %3389 = vmatmul.mubr.f32.gmra.mxu0 %v3320
    %v3390 = vpop.f32.mrf.mxu0
    %v3391 = vadd.f32 0.0, %v3390
    %v3392 = vpop.f32.mrf.mxu0
    %3393 = vdwg.mxu0
    %v3395 = vsel %vm393, %v3391, 0
    %3397 = vmatprep.subr.mxu0 0.0
    %3398 = vmatpush1.msra.mxu0 0.0
    %3399 = vmatprep.subr.mxu0 0.0
    %3400 = vmatpush1.msra.mxu0 0.0
    %3401 = vmatprep.subr.mxu0 0.0
    %3402 = vmatpush1.msra.mxu0 0.0
    %3403 = vmatprep.subr.mxu0 0.0
    %3404 = vmatpush1.msra.mxu0 0.0
    %3405 = vmatprep.subr.mxu0 0.0
    %3406 = vmatpush1.msra.mxu0 0.0
    %3407 = vmatprep.subr.mxu0 0.0
    %3408 = vmatpush1.msra.mxu0 0.0
    %3409 = vmatprep.subr.mxu0 0.0
    %3410 = vmatpush1.msra.mxu0 0.0
    %3411 = vmatprep.subr.mxu0 0.0
    %3412 = vmatpush1.msra.mxu0 0.0
    %3413 = vmatprep.subr.mxu0 0.0
    %3414 = vmatpush1.msra.mxu0 0.0
    %3415 = vmatprep.subr.mxu0 0.0
    %3416 = vmatpush1.msra.mxu0 0.0
    %3417 = vmatprep.subr.mxu0 0.0
    %3418 = vmatpush1.msra.mxu0 0.0
    %3419 = vmatprep.subr.mxu0 0.0
    %3420 = vmatpush1.msra.mxu0 0.0
    %3421 = vmatprep.subr.mxu0 0.0
    %3422 = vmatpush1.msra.mxu0 0.0
    %3423 = vmatprep.subr.mxu0 0.0
    %3424 = vmatpush1.msra.mxu0 0.0
    %3425 = vmatprep.subr.mxu0 0.0
    %3426 = vmatpush1.msra.mxu0 0.0
    %3427 = vmatprep.subr.mxu0 0.0
    %3428 = vmatpush1.msra.mxu0 %v2745
    %3429 = vmatprep.subr.mxu0 0.0
    %3430 = vmatpush2.msra.mxu0 0.0
    %3431 = vmatprep.subr.mxu0 0.0
    %3432 = vmatpush2.msra.mxu0 0.0
    %3433 = vmatprep.subr.mxu0 0.0
    %3434 = vmatpush2.msra.mxu0 0.0
    %3435 = vmatprep.subr.mxu0 0.0
    %3436 = vmatpush2.msra.mxu0 0.0
    %3437 = vmatprep.subr.mxu0 0.0
    %3438 = vmatpush2.msra.mxu0 0.0
    %3439 = vmatprep.subr.mxu0 0.0
    %3440 = vmatpush2.msra.mxu0 0.0
    %3441 = vmatprep.subr.mxu0 0.0
    %3442 = vmatpush2.msra.mxu0 0.0
    %3443 = vmatprep.subr.mxu0 0.0
    %3444 = vmatpush2.msra.mxu0 0.0
    %3445 = vmatprep.subr.mxu0 0.0
    %3446 = vmatpush2.msra.mxu0 0.0
    %3447 = vmatprep.subr.mxu0 0.0
    %3448 = vmatpush2.msra.mxu0 0.0
    %3449 = vmatprep.subr.mxu0 0.0
    %3450 = vmatpush2.msra.mxu0 0.0
    %3451 = vmatprep.subr.mxu0 0.0
    %3452 = vmatpush2.msra.mxu0 0.0
    %3453 = vmatprep.subr.mxu0 0.0
    %3454 = vmatpush2.msra.mxu0 0.0
    %3455 = vmatprep.subr.mxu0 0.0
    %3456 = vmatpush2.msra.mxu0 0.0
    %3457 = vmatprep.subr.mxu0 0.0
    %3458 = vmatpush2.msra.mxu0 0.0
    %3459 = vmatprep.subr.mxu0 0.0
    %3460 = vmatpush2.msra.mxu0 0.0
    %3461 = vmatprep.mubr.f32.mxu0 0.0
    %3462 = vmatmul.mubr.f32.gmra.mxu0 %v3395
    %v3463 = vpop.f32.mrf.mxu0
    %v3464 = vadd.f32 0.0, %v3463
    %v3465 = vpop.f32.mrf.mxu0
    %3466 = vdwg.mxu0
    %v3467 = vadd.f32 %v3224, %v3464
    %3468 = vrot.lane.b32.xlu0 %v2747, 104
    %v3469 = vpop.permute.xlu0 %3468
    %3470 = vrot.lane.b32.xlu0 %v2747, 72
    %v3471 = vpop.permute.xlu0 %3470
    %v3472 = vsel %vm393, %v3469, 0
    %v3474 = vsel %vm393, %v3471, 0
    %3476 = vmatprep.subr.mxu0 0.0
    %3477 = vmatpush1.xpose.msra.mxu0 0.0
    %3478 = vmatprep.subr.mxu0 0.0
    %3479 = vmatpush1.xpose.msra.mxu0 0.0
    %3480 = vmatprep.subr.mxu0 0.0
    %3481 = vmatpush1.xpose.msra.mxu0 0.0
    %3482 = vmatprep.subr.mxu0 0.0
    %3483 = vmatpush1.xpose.msra.mxu0 0.0
    %3484 = vmatprep.subr.mxu0 0.0
    %3485 = vmatpush1.xpose.msra.mxu0 0.0
    %3486 = vmatprep.subr.mxu0 0.0
    %3487 = vmatpush1.xpose.msra.mxu0 0.0
    %3488 = vmatprep.subr.mxu0 0.0
    %3489 = vmatpush1.xpose.msra.mxu0 0.0
    %3490 = vmatprep.subr.mxu0 0.0
    %3491 = vmatpush1.xpose.msra.mxu0 0.0
    %3492 = vmatprep.subr.mxu0 0.0
    %3493 = vmatpush1.xpose.msra.mxu0 0.0
    %3494 = vmatprep.subr.mxu0 0.0
    %3495 = vmatpush1.xpose.msra.mxu0 0.0
    %3496 = vmatprep.subr.mxu0 0.0
    %3497 = vmatpush1.xpose.msra.mxu0 0.0
    %3498 = vmatprep.subr.mxu0 0.0
    %3499 = vmatpush1.xpose.msra.mxu0 0.0
    %3500 = vmatprep.subr.mxu0 0.0
    %3501 = vmatpush1.xpose.msra.mxu0 0.0
    %3502 = vmatprep.subr.mxu0 0.0
    %3503 = vmatpush1.xpose.msra.mxu0 0.0
    %3504 = vmatprep.subr.mxu0 0.0
    %3505 = vmatpush1.xpose.msra.mxu0 0.0
    %3506 = vmatprep.subr.mxu0 0.0
    %3507 = vmatpush1.xpose.msra.mxu0 %v3474
    %3508 = vmatprep.subr.mxu0 0.0
    %3509 = vmatpush2.xpose.msra.mxu0 0.0
    %3510 = vmatprep.subr.mxu0 0.0
    %3511 = vmatpush2.xpose.msra.mxu0 0.0
    %3512 = vmatprep.subr.mxu0 0.0
    %3513 = vmatpush2.xpose.msra.mxu0 0.0
    %3514 = vmatprep.subr.mxu0 0.0
    %3515 = vmatpush2.xpose.msra.mxu0 0.0
    %3516 = vmatprep.subr.mxu0 0.0
    %3517 = vmatpush2.xpose.msra.mxu0 0.0
    %3518 = vmatprep.subr.mxu0 0.0
    %3519 = vmatpush2.xpose.msra.mxu0 0.0
    %3520 = vmatprep.subr.mxu0 0.0
    %3521 = vmatpush2.xpose.msra.mxu0 0.0
    %3522 = vmatprep.subr.mxu0 0.0
    %3523 = vmatpush2.xpose.msra.mxu0 0.0
    %3524 = vmatprep.subr.mxu0 0.0
    %3525 = vmatpush2.xpose.msra.mxu0 0.0
    %3526 = vmatprep.subr.mxu0 0.0
    %3527 = vmatpush2.xpose.msra.mxu0 0.0
    %3528 = vmatprep.subr.mxu0 0.0
    %3529 = vmatpush2.xpose.msra.mxu0 0.0
    %3530 = vmatprep.subr.mxu0 0.0
    %3531 = vmatpush2.xpose.msra.mxu0 0.0
    %3532 = vmatprep.subr.mxu0 0.0
    %3533 = vmatpush2.xpose.msra.mxu0 0.0
    %3534 = vmatprep.subr.mxu0 0.0
    %3535 = vmatpush2.xpose.msra.mxu0 0.0
    %3536 = vmatprep.subr.mxu0 0.0
    %3537 = vmatpush2.xpose.msra.mxu0 0.0
    %3538 = vmatprep.subr.mxu0 0.0
    %3539 = vmatpush2.xpose.msra.mxu0 0.0
    %3540 = vmatprep.mubr.f32.mxu0 0.0
    %3541 = vmatmul.mubr.f32.gmra.mxu0 %v3472
    %v3542 = vpop.f32.mrf.mxu0
    %v3543 = vadd.f32 0.0, %v3542
    %v3544 = vpop.f32.mrf.mxu0
    %3545 = vdwg.mxu0
    %v3546 = vmul.f32 %v3543, 0.35355338
    %v3547 = vsel %vm469, %v3546, -inf
    %3548 = vmax.xlane.f32.xlu0 %v3547
    %v3549 = vpop.xlane.xlu0 %3548
    %v3550 = vsub.f32 %v3546, %v3549
    %v3551 = vmul.f32 %v3550, 1.442695
    %v3552 = vpow.pop %v3551
    %v3553 = vsel %vm469, %v3552, 0.0
    %3554 = vadd.xlane.f32.xlu0 %v3553
    %v3555 = vpop.xlane.xlu0 %3554
    %v3556 = vrcp.pop %v3555
    %v3557 = vmul.f32 %v3552, %v3556
    %3558 = vrot.lane.b32.xlu0 %v2747, 40
    %v3559 = vpop.permute.xlu0 %3558
    %v3561 = vsel %vm483, %v3557, 0
    %v3563 = vsel %vm487, %v3559, 0
    %3565 = vmatprep.subr.mxu0 0.0
    %3566 = vmatpush1.msra.mxu0 0.0
    %3567 = vmatprep.subr.mxu0 0.0
    %3568 = vmatpush1.msra.mxu0 0.0
    %3569 = vmatprep.subr.mxu0 0.0
    %3570 = vmatpush1.msra.mxu0 0.0
    %3571 = vmatprep.subr.mxu0 0.0
    %3572 = vmatpush1.msra.mxu0 0.0
    %3573 = vmatprep.subr.mxu0 0.0
    %3574 = vmatpush1.msra.mxu0 0.0
    %3575 = vmatprep.subr.mxu0 0.0
    %3576 = vmatpush1.msra.mxu0 0.0
    %3577 = vmatprep.subr.mxu0 0.0
    %3578 = vmatpush1.msra.mxu0 0.0
    %3579 = vmatprep.subr.mxu0 0.0
    %3580 = vmatpush1.msra.mxu0 0.0
    %3581 = vmatprep.subr.mxu0 0.0
    %3582 = vmatpush1.msra.mxu0 0.0
    %3583 = vmatprep.subr.mxu0 0.0
    %3584 = vmatpush1.msra.mxu0 0.0
    %3585 = vmatprep.subr.mxu0 0.0
    %3586 = vmatpush1.msra.mxu0 0.0
    %3587 = vmatprep.subr.mxu0 0.0
    %3588 = vmatpush1.msra.mxu0 0.0
    %3589 = vmatprep.subr.mxu0 0.0
    %3590 = vmatpush1.msra.mxu0 0.0
    %3591 = vmatprep.subr.mxu0 0.0
    %3592 = vmatpush1.msra.mxu0 0.0
    %3593 = vmatprep.subr.mxu0 0.0
    %3594 = vmatpush1.msra.mxu0 0.0
    %3595 = vmatprep.subr.mxu0 0.0
    %3596 = vmatpush1.msra.mxu0 %v3563
    %3597 = vmatprep.subr.mxu0 0.0
    %3598 = vmatpush2.msra.mxu0 0.0
    %3599 = vmatprep.subr.mxu0 0.0
    %3600 = vmatpush2.msra.mxu0 0.0
    %3601 = vmatprep.subr.mxu0 0.0
    %3602 = vmatpush2.msra.mxu0 0.0
    %3603 = vmatprep.subr.mxu0 0.0
    %3604 = vmatpush2.msra.mxu0 0.0
    %3605 = vmatprep.subr.mxu0 0.0
    %3606 = vmatpush2.msra.mxu0 0.0
    %3607 = vmatprep.subr.mxu0 0.0
    %3608 = vmatpush2.msra.mxu0 0.0
    %3609 = vmatprep.subr.mxu0 0.0
    %3610 = vmatpush2.msra.mxu0 0.0
    %3611 = vmatprep.subr.mxu0 0.0
    %3612 = vmatpush2.msra.mxu0 0.0
    %3613 = vmatprep.subr.mxu0 0.0
    %3614 = vmatpush2.msra.mxu0 0.0
    %3615 = vmatprep.subr.mxu0 0.0
    %3616 = vmatpush2.msra.mxu0 0.0
    %3617 = vmatprep.subr.mxu0 0.0
    %3618 = vmatpush2.msra.mxu0 0.0
    %3619 = vmatprep.subr.mxu0 0.0
    %3620 = vmatpush2.msra.mxu0 0.0
    %3621 = vmatprep.subr.mxu0 0.0
    %3622 = vmatpush2.msra.mxu0 0.0
    %3623 = vmatprep.subr.mxu0 0.0
    %3624 = vmatpush2.msra.mxu0 0.0
    %3625 = vmatprep.subr.mxu0 0.0
    %3626 = vmatpush2.msra.mxu0 0.0
    %3627 = vmatprep.subr.mxu0 0.0
    %3628 = vmatpush2.msra.mxu0 0.0
    %3629 = vmatprep.mubr.f32.mxu0 0.0
    %3630 = vmatmul.mubr.f32.gmra.mxu0 %v3561
    %v3631 = vpop.f32.mrf.mxu0
    %v3632 = vadd.f32 0.0, %v3631
    %v3633 = vpop.f32.mrf.mxu0
    %3634 = vdwg.mxu0
    %v3636 = vsel %vm393, %v3632, 0
    %3638 = vmatprep.subr.mxu0 0.0
    %3639 = vmatpush1.msra.mxu0 0.0
    %3640 = vmatprep.subr.mxu0 0.0
    %3641 = vmatpush1.msra.mxu0 0.0
    %3642 = vmatprep.subr.mxu0 0.0
    %3643 = vmatpush1.msra.mxu0 0.0
    %3644 = vmatprep.subr.mxu0 0.0
    %3645 = vmatpush1.msra.mxu0 0.0
    %3646 = vmatprep.subr.mxu0 0.0
    %3647 = vmatpush1.msra.mxu0 0.0
    %3648 = vmatprep.subr.mxu0 0.0
    %3649 = vmatpush1.msra.mxu0 0.0
    %3650 = vmatprep.subr.mxu0 0.0
    %3651 = vmatpush1.msra.mxu0 0.0
    %3652 = vmatprep.subr.mxu0 0.0
    %3653 = vmatpush1.msra.mxu0 0.0
    %3654 = vmatprep.subr.mxu0 0.0
    %3655 = vmatpush1.msra.mxu0 0.0
    %3656 = vmatprep.subr.mxu0 0.0
    %3657 = vmatpush1.msra.mxu0 0.0
    %3658 = vmatprep.subr.mxu0 0.0
    %3659 = vmatpush1.msra.mxu0 0.0
    %3660 = vmatprep.subr.mxu0 0.0
    %3661 = vmatpush1.msra.mxu0 0.0
    %3662 = vmatprep.subr.mxu0 0.0
    %3663 = vmatpush1.msra.mxu0 0.0
    %3664 = vmatprep.subr.mxu0 0.0
    %3665 = vmatpush1.msra.mxu0 0.0
    %3666 = vmatprep.subr.mxu0 0.0
    %3667 = vmatpush1.msra.mxu0 0.0
    %3668 = vmatprep.subr.mxu0 0.0
    %3669 = vmatpush1.msra.mxu0 %v2746
    %3670 = vmatprep.subr.mxu0 0.0
    %3671 = vmatpush2.msra.mxu0 0.0
    %3672 = vmatprep.subr.mxu0 0.0
    %3673 = vmatpush2.msra.mxu0 0.0
    %3674 = vmatprep.subr.mxu0 0.0
    %3675 = vmatpush2.msra.mxu0 0.0
    %3676 = vmatprep.subr.mxu0 0.0
    %3677 = vmatpush2.msra.mxu0 0.0
    %3678 = vmatprep.subr.mxu0 0.0
    %3679 = vmatpush2.msra.mxu0 0.0
    %3680 = vmatprep.subr.mxu0 0.0
    %3681 = vmatpush2.msra.mxu0 0.0
    %3682 = vmatprep.subr.mxu0 0.0
    %3683 = vmatpush2.msra.mxu0 0.0
    %3684 = vmatprep.subr.mxu0 0.0
    %3685 = vmatpush2.msra.mxu0 0.0
    %3686 = vmatprep.subr.mxu0 0.0
    %3687 = vmatpush2.msra.mxu0 0.0
    %3688 = vmatprep.subr.mxu0 0.0
    %3689 = vmatpush2.msra.mxu0 0.0
    %3690 = vmatprep.subr.mxu0 0.0
    %3691 = vmatpush2.msra.mxu0 0.0
    %3692 = vmatprep.subr.mxu0 0.0
    %3693 = vmatpush2.msra.mxu0 0.0
    %3694 = vmatprep.subr.mxu0 0.0
    %3695 = vmatpush2.msra.mxu0 0.0
    %3696 = vmatprep.subr.mxu0 0.0
    %3697 = vmatpush2.msra.mxu0 0.0
    %3698 = vmatprep.subr.mxu0 0.0
    %3699 = vmatpush2.msra.mxu0 0.0
    %3700 = vmatprep.subr.mxu0 0.0
    %3701 = vmatpush2.msra.mxu0 0.0
    %3702 = vmatprep.mubr.f32.mxu0 0.0
    %3703 = vmatmul.mubr.f32.gmra.mxu0 %v3636
    %v3704 = vpop.f32.mrf.mxu0
    %v3705 = vadd.f32 0.0, %v3704
    %v3706 = vpop.f32.mrf.mxu0
    %3707 = vdwg.mxu0
    %v3708 = vadd.f32 %v3467, %v3705
    %v3709 = vld [vmem:[#allocation2] sm:$0x1f]
    %v3710 = vadd.f32 %v3709, %v3708
    %s3711 = scalar_lea.vmem %s10, 1
    %v3712 = vld [vmem:[%s3711] sm:$0x1]
    %v3714 = vlaneseq
    %v3715 = vshrl.u32 %v3714, 7
    %v3716 = vsub.s32 0, %v3715
    %v3717 = vrot.slane %v3712, %v3716
    %v3719 = vadd.f32 %v3710, %v3717
    %3720 = vst.msk [vmem:[#allocation2] sm:$0x1f] %vm1365, %v3719
    %v3721 = vld [vmem:[#allocation3 + $0x8] sm:$0x1f]
    %3723 = vrot.lane.b32.xlu0 %v3721, 96
    %v3724 = vpop.permute.xlu0 %3723
    %v3725 = vsel %vm393, %v3721, 0
    %v3727 = vsel %vm393, %v3724, 0
    %3729 = vmatprep.subr.mxu0 0.0
    %3730 = vmatpush1.xpose.msra.mxu0 0.0
    %3731 = vmatprep.subr.mxu0 0.0
    %3732 = vmatpush1.xpose.msra.mxu0 0.0
    %3733 = vmatprep.subr.mxu0 0.0
    %3734 = vmatpush1.xpose.msra.mxu0 0.0
    %3735 = vmatprep.subr.mxu0 0.0
    %3736 = vmatpush1.xpose.msra.mxu0 0.0
    %3737 = vmatprep.subr.mxu0 0.0
    %3738 = vmatpush1.xpose.msra.mxu0 0.0
    %3739 = vmatprep.subr.mxu0 0.0
    %3740 = vmatpush1.xpose.msra.mxu0 0.0
    %3741 = vmatprep.subr.mxu0 0.0
    %3742 = vmatpush1.xpose.msra.mxu0 0.0
    %3743 = vmatprep.subr.mxu0 0.0
    %3744 = vmatpush1.xpose.msra.mxu0 0.0
    %3745 = vmatprep.subr.mxu0 0.0
    %3746 = vmatpush1.xpose.msra.mxu0 0.0
    %3747 = vmatprep.subr.mxu0 0.0
    %3748 = vmatpush1.xpose.msra.mxu0 0.0
    %3749 = vmatprep.subr.mxu0 0.0
    %3750 = vmatpush1.xpose.msra.mxu0 0.0
    %3751 = vmatprep.subr.mxu0 0.0
    %3752 = vmatpush1.xpose.msra.mxu0 0.0
    %3753 = vmatprep.subr.mxu0 0.0
    %3754 = vmatpush1.xpose.msra.mxu0 0.0
    %3755 = vmatprep.subr.mxu0 0.0
    %3756 = vmatpush1.xpose.msra.mxu0 0.0
    %3757 = vmatprep.subr.mxu0 0.0
    %3758 = vmatpush1.xpose.msra.mxu0 0.0
    %3759 = vmatprep.subr.mxu0 0.0
    %3760 = vmatpush1.xpose.msra.mxu0 %v3727
    %3761 = vmatprep.subr.mxu0 0.0
    %3762 = vmatpush2.xpose.msra.mxu0 0.0
    %3763 = vmatprep.subr.mxu0 0.0
    %3764 = vmatpush2.xpose.msra.mxu0 0.0
    %3765 = vmatprep.subr.mxu0 0.0
    %3766 = vmatpush2.xpose.msra.mxu0 0.0
    %3767 = vmatprep.subr.mxu0 0.0
    %3768 = vmatpush2.xpose.msra.mxu0 0.0
    %3769 = vmatprep.subr.mxu0 0.0
    %3770 = vmatpush2.xpose.msra.mxu0 0.0
    %3771 = vmatprep.subr.mxu0 0.0
    %3772 = vmatpush2.xpose.msra.mxu0 0.0
    %3773 = vmatprep.subr.mxu0 0.0
    %3774 = vmatpush2.xpose.msra.mxu0 0.0
    %3775 = vmatprep.subr.mxu0 0.0
    %3776 = vmatpush2.xpose.msra.mxu0 0.0
    %3777 = vmatprep.subr.mxu0 0.0
    %3778 = vmatpush2.xpose.msra.mxu0 0.0
    %3779 = vmatprep.subr.mxu0 0.0
    %3780 = vmatpush2.xpose.msra.mxu0 0.0
    %3781 = vmatprep.subr.mxu0 0.0
    %3782 = vmatpush2.xpose.msra.mxu0 0.0
    %3783 = vmatprep.subr.mxu0 0.0
    %3784 = vmatpush2.xpose.msra.mxu0 0.0
    %3785 = vmatprep.subr.mxu0 0.0
    %3786 = vmatpush2.xpose.msra.mxu0 0.0
    %3787 = vmatprep.subr.mxu0 0.0
    %3788 = vmatpush2.xpose.msra.mxu0 0.0
    %3789 = vmatprep.subr.mxu0 0.0
    %3790 = vmatpush2.xpose.msra.mxu0 0.0
    %3791 = vmatprep.subr.mxu0 0.0
    %3792 = vmatpush2.xpose.msra.mxu0 0.0
    %3793 = vmatprep.mubr.f32.mxu0 0.0
    %3794 = vmatmul.mubr.f32.gmra.mxu0 %v3725
    %v3795 = vpop.f32.mrf.mxu0
    %v3796 = vadd.f32 0.0, %v3795
    %v3797 = vpop.f32.mrf.mxu0
    %3798 = vdwg.mxu0
    %v3799 = vmul.f32 %v3796, 0.35355338
    %v3800 = vsel %vm469, %v3799, -inf
    %3801 = vmax.xlane.f32.xlu0 %v3800
    %v3802 = vpop.xlane.xlu0 %3801
    %v3803 = vsub.f32 %v3799, %v3802
    %v3804 = vmul.f32 %v3803, 1.442695
    %v3805 = vpow.pop %v3804
    %v3806 = vsel %vm469, %v3805, 0.0
    %3807 = vadd.xlane.f32.xlu0 %v3806
    %v3808 = vpop.xlane.xlu0 %3807
    %v3809 = vrcp.pop %v3808
    %v3810 = vmul.f32 %v3805, %v3809
    %3811 = vrot.lane.b32.xlu0 %v3721, 64
    %v3812 = vpop.permute.xlu0 %3811
    %v3814 = vsel %vm483, %v3810, 0
    %v3816 = vsel %vm487, %v3812, 0
    %3818 = vmatprep.subr.mxu0 0.0
    %3819 = vmatpush1.msra.mxu0 0.0
    %3820 = vmatprep.subr.mxu0 0.0
    %3821 = vmatpush1.msra.mxu0 0.0
    %3822 = vmatprep.subr.mxu0 0.0
    %3823 = vmatpush1.msra.mxu0 0.0
    %3824 = vmatprep.subr.mxu0 0.0
    %3825 = vmatpush1.msra.mxu0 0.0
    %3826 = vmatprep.subr.mxu0 0.0
    %3827 = vmatpush1.msra.mxu0 0.0
    %3828 = vmatprep.subr.mxu0 0.0
    %3829 = vmatpush1.msra.mxu0 0.0
    %3830 = vmatprep.subr.mxu0 0.0
    %3831 = vmatpush1.msra.mxu0 0.0
    %3832 = vmatprep.subr.mxu0 0.0
    %3833 = vmatpush1.msra.mxu0 0.0
    %3834 = vmatprep.subr.mxu0 0.0
    %3835 = vmatpush1.msra.mxu0 0.0
    %3836 = vmatprep.subr.mxu0 0.0
    %3837 = vmatpush1.msra.mxu0 0.0
    %3838 = vmatprep.subr.mxu0 0.0
    %3839 = vmatpush1.msra.mxu0 0.0
    %3840 = vmatprep.subr.mxu0 0.0
    %3841 = vmatpush1.msra.mxu0 0.0
    %3842 = vmatprep.subr.mxu0 0.0
    %3843 = vmatpush1.msra.mxu0 0.0
    %3844 = vmatprep.subr.mxu0 0.0
    %3845 = vmatpush1.msra.mxu0 0.0
    %3846 = vmatprep.subr.mxu0 0.0
    %3847 = vmatpush1.msra.mxu0 0.0
    %3848 = vmatprep.subr.mxu0 0.0
    %3849 = vmatpush1.msra.mxu0 %v3816
    %3850 = vmatprep.subr.mxu0 0.0
    %3851 = vmatpush2.msra.mxu0 0.0
    %3852 = vmatprep.subr.mxu0 0.0
    %3853 = vmatpush2.msra.mxu0 0.0
    %3854 = vmatprep.subr.mxu0 0.0
    %3855 = vmatpush2.msra.mxu0 0.0
    %3856 = vmatprep.subr.mxu0 0.0
    %3857 = vmatpush2.msra.mxu0 0.0
    %3858 = vmatprep.subr.mxu0 0.0
    %3859 = vmatpush2.msra.mxu0 0.0
    %3860 = vmatprep.subr.mxu0 0.0
    %3861 = vmatpush2.msra.mxu0 0.0
    %3862 = vmatprep.subr.mxu0 0.0
    %3863 = vmatpush2.msra.mxu0 0.0
    %3864 = vmatprep.subr.mxu0 0.0
    %3865 = vmatpush2.msra.mxu0 0.0
    %3866 = vmatprep.subr.mxu0 0.0
    %3867 = vmatpush2.msra.mxu0 0.0
    %3868 = vmatprep.subr.mxu0 0.0
    %3869 = vmatpush2.msra.mxu0 0.0
    %3870 = vmatprep.subr.mxu0 0.0
    %3871 = vmatpush2.msra.mxu0 0.0
    %3872 = vmatprep.subr.mxu0 0.0
    %3873 = vmatpush2.msra.mxu0 0.0
    %3874 = vmatprep.subr.mxu0 0.0
    %3875 = vmatpush2.msra.mxu0 0.0
    %3876 = vmatprep.subr.mxu0 0.0
    %3877 = vmatpush2.msra.mxu0 0.0
    %3878 = vmatprep.subr.mxu0 0.0
    %3879 = vmatpush2.msra.mxu0 0.0
    %3880 = vmatprep.subr.mxu0 0.0
    %3881 = vmatpush2.msra.mxu0 0.0
    %3882 = vmatprep.mubr.f32.mxu0 0.0
    %3883 = vmatmul.mubr.f32.gmra.mxu0 %v3814
    %v3884 = vpop.f32.mrf.mxu0
    %v3885 = vadd.f32 0.0, %v3884
    %v3886 = vpop.f32.mrf.mxu0
    %3887 = vdwg.mxu0
    %3888 = vrot.lane.b32.xlu0 %v3721, 120
    %v3889 = vpop.permute.xlu0 %3888
    %3890 = vrot.lane.b32.xlu0 %v3721, 88
    %v3891 = vpop.permute.xlu0 %3890
    %v3892 = vsel %vm393, %v3889, 0
    %v3894 = vsel %vm393, %v3891, 0
    %3896 = vmatprep.subr.mxu0 0.0
    %3897 = vmatpush1.xpose.msra.mxu0 0.0
    %3898 = vmatprep.subr.mxu0 0.0
    %3899 = vmatpush1.xpose.msra.mxu0 0.0
    %3900 = vmatprep.subr.mxu0 0.0
    %3901 = vmatpush1.xpose.msra.mxu0 0.0
    %3902 = vmatprep.subr.mxu0 0.0
    %3903 = vmatpush1.xpose.msra.mxu0 0.0
    %3904 = vmatprep.subr.mxu0 0.0
    %3905 = vmatpush1.xpose.msra.mxu0 0.0
    %3906 = vmatprep.subr.mxu0 0.0
    %3907 = vmatpush1.xpose.msra.mxu0 0.0
    %3908 = vmatprep.subr.mxu0 0.0
    %3909 = vmatpush1.xpose.msra.mxu0 0.0
    %3910 = vmatprep.subr.mxu0 0.0
    %3911 = vmatpush1.xpose.msra.mxu0 0.0
    %3912 = vmatprep.subr.mxu0 0.0
    %3913 = vmatpush1.xpose.msra.mxu0 0.0
    %3914 = vmatprep.subr.mxu0 0.0
    %3915 = vmatpush1.xpose.msra.mxu0 0.0
    %3916 = vmatprep.subr.mxu0 0.0
    %3917 = vmatpush1.xpose.msra.mxu0 0.0
    %3918 = vmatprep.subr.mxu0 0.0
    %3919 = vmatpush1.xpose.msra.mxu0 0.0
    %3920 = vmatprep.subr.mxu0 0.0
    %3921 = vmatpush1.xpose.msra.mxu0 0.0
    %3922 = vmatprep.subr.mxu0 0.0
    %3923 = vmatpush1.xpose.msra.mxu0 0.0
    %3924 = vmatprep.subr.mxu0 0.0
    %3925 = vmatpush1.xpose.msra.mxu0 0.0
    %3926 = vmatprep.subr.mxu0 0.0
    %3927 = vmatpush1.xpose.msra.mxu0 %v3894
    %3928 = vmatprep.subr.mxu0 0.0
    %3929 = vmatpush2.xpose.msra.mxu0 0.0
    %3930 = vmatprep.subr.mxu0 0.0
    %3931 = vmatpush2.xpose.msra.mxu0 0.0
    %3932 = vmatprep.subr.mxu0 0.0
    %3933 = vmatpush2.xpose.msra.mxu0 0.0
    %3934 = vmatprep.subr.mxu0 0.0
    %3935 = vmatpush2.xpose.msra.mxu0 0.0
    %3936 = vmatprep.subr.mxu0 0.0
    %3937 = vmatpush2.xpose.msra.mxu0 0.0
    %3938 = vmatprep.subr.mxu0 0.0
    %3939 = vmatpush2.xpose.msra.mxu0 0.0
    %3940 = vmatprep.subr.mxu0 0.0
    %3941 = vmatpush2.xpose.msra.mxu0 0.0
    %3942 = vmatprep.subr.mxu0 0.0
    %3943 = vmatpush2.xpose.msra.mxu0 0.0
    %3944 = vmatprep.subr.mxu0 0.0
    %3945 = vmatpush2.xpose.msra.mxu0 0.0
    %3946 = vmatprep.subr.mxu0 0.0
    %3947 = vmatpush2.xpose.msra.mxu0 0.0
    %3948 = vmatprep.subr.mxu0 0.0
    %3949 = vmatpush2.xpose.msra.mxu0 0.0
    %3950 = vmatprep.subr.mxu0 0.0
    %3951 = vmatpush2.xpose.msra.mxu0 0.0
    %3952 = vmatprep.subr.mxu0 0.0
    %3953 = vmatpush2.xpose.msra.mxu0 0.0
    %3954 = vmatprep.subr.mxu0 0.0
    %3955 = vmatpush2.xpose.msra.mxu0 0.0
    %3956 = vmatprep.subr.mxu0 0.0
    %3957 = vmatpush2.xpose.msra.mxu0 0.0
    %3958 = vmatprep.subr.mxu0 0.0
    %3959 = vmatpush2.xpose.msra.mxu0 0.0
    %3960 = vmatprep.mubr.f32.mxu0 0.0
    %3961 = vmatmul.mubr.f32.gmra.mxu0 %v3892
    %v3962 = vpop.f32.mrf.mxu0
    %v3963 = vadd.f32 0.0, %v3962
    %v3964 = vpop.f32.mrf.mxu0
    %3965 = vdwg.mxu0
    %v3966 = vmul.f32 %v3963, 0.35355338
    %v3967 = vsel %vm469, %v3966, -inf
    %3968 = vmax.xlane.f32.xlu0 %v3967
    %v3969 = vpop.xlane.xlu0 %3968
    %v3970 = vsub.f32 %v3966, %v3969
    %v3971 = vmul.f32 %v3970, 1.442695
    %v3972 = vpow.pop %v3971
    %v3973 = vsel %vm469, %v3972, 0.0
    %3974 = vadd.xlane.f32.xlu0 %v3973
    %v3975 = vpop.xlane.xlu0 %3974
    %v3976 = vrcp.pop %v3975
    %v3977 = vmul.f32 %v3972, %v3976
    %3978 = vrot.lane.b32.xlu0 %v3721, 56
    %v3979 = vpop.permute.xlu0 %3978
    %v3981 = vsel %vm483, %v3977, 0
    %v3983 = vsel %vm487, %v3979, 0
    %3985 = vmatprep.subr.mxu0 0.0
    %3986 = vmatpush1.msra.mxu0 0.0
    %3987 = vmatprep.subr.mxu0 0.0
    %3988 = vmatpush1.msra.mxu0 0.0
    %3989 = vmatprep.subr.mxu0 0.0
    %3990 = vmatpush1.msra.mxu0 0.0
    %3991 = vmatprep.subr.mxu0 0.0
    %3992 = vmatpush1.msra.mxu0 0.0
    %3993 = vmatprep.subr.mxu0 0.0
    %3994 = vmatpush1.msra.mxu0 0.0
    %3995 = vmatprep.subr.mxu0 0.0
    %3996 = vmatpush1.msra.mxu0 0.0
    %3997 = vmatprep.subr.mxu0 0.0
    %3998 = vmatpush1.msra.mxu0 0.0
    %3999 = vmatprep.subr.mxu0 0.0
    %4000 = vmatpush1.msra.mxu0 0.0
    %4001 = vmatprep.subr.mxu0 0.0
    %4002 = vmatpush1.msra.mxu0 0.0
    %4003 = vmatprep.subr.mxu0 0.0
    %4004 = vmatpush1.msra.mxu0 0.0
    %4005 = vmatprep.subr.mxu0 0.0
    %4006 = vmatpush1.msra.mxu0 0.0
    %4007 = vmatprep.subr.mxu0 0.0
    %4008 = vmatpush1.msra.mxu0 0.0
    %4009 = vmatprep.subr.mxu0 0.0
    %4010 = vmatpush1.msra.mxu0 0.0
    %4011 = vmatprep.subr.mxu0 0.0
    %4012 = vmatpush1.msra.mxu0 0.0
    %4013 = vmatprep.subr.mxu0 0.0
    %4014 = vmatpush1.msra.mxu0 0.0
    %4015 = vmatprep.subr.mxu0 0.0
    %4016 = vmatpush1.msra.mxu0 %v3983
    %4017 = vmatprep.subr.mxu0 0.0
    %4018 = vmatpush2.msra.mxu0 0.0
    %4019 = vmatprep.subr.mxu0 0.0
    %4020 = vmatpush2.msra.mxu0 0.0
    %4021 = vmatprep.subr.mxu0 0.0
    %4022 = vmatpush2.msra.mxu0 0.0
    %4023 = vmatprep.subr.mxu0 0.0
    %4024 = vmatpush2.msra.mxu0 0.0
    %4025 = vmatprep.subr.mxu0 0.0
    %4026 = vmatpush2.msra.mxu0 0.0
    %4027 = vmatprep.subr.mxu0 0.0
    %4028 = vmatpush2.msra.mxu0 0.0
    %4029 = vmatprep.subr.mxu0 0.0
    %4030 = vmatpush2.msra.mxu0 0.0
    %4031 = vmatprep.subr.mxu0 0.0
    %4032 = vmatpush2.msra.mxu0 0.0
    %4033 = vmatprep.subr.mxu0 0.0
    %4034 = vmatpush2.msra.mxu0 0.0
    %4035 = vmatprep.subr.mxu0 0.0
    %4036 = vmatpush2.msra.mxu0 0.0
    %4037 = vmatprep.subr.mxu0 0.0
    %4038 = vmatpush2.msra.mxu0 0.0
    %4039 = vmatprep.subr.mxu0 0.0
    %4040 = vmatpush2.msra.mxu0 0.0
    %4041 = vmatprep.subr.mxu0 0.0
    %4042 = vmatpush2.msra.mxu0 0.0
    %4043 = vmatprep.subr.mxu0 0.0
    %4044 = vmatpush2.msra.mxu0 0.0
    %4045 = vmatprep.subr.mxu0 0.0
    %4046 = vmatpush2.msra.mxu0 0.0
    %4047 = vmatprep.subr.mxu0 0.0
    %4048 = vmatpush2.msra.mxu0 0.0
    %4049 = vmatprep.mubr.f32.mxu0 0.0
    %4050 = vmatmul.mubr.f32.gmra.mxu0 %v3981
    %v4051 = vpop.f32.mrf.mxu0
    %v4052 = vadd.f32 0.0, %v4051
    %v4053 = vpop.f32.mrf.mxu0
    %4054 = vdwg.mxu0
    %v4056 = vsel %vm393, %v4052, 0
    %4058 = vmatprep.subr.mxu0 0.0
    %4059 = vmatpush1.msra.mxu0 0.0
    %4060 = vmatprep.subr.mxu0 0.0
    %4061 = vmatpush1.msra.mxu0 0.0
    %4062 = vmatprep.subr.mxu0 0.0
    %4063 = vmatpush1.msra.mxu0 0.0
    %4064 = vmatprep.subr.mxu0 0.0
    %4065 = vmatpush1.msra.mxu0 0.0
    %4066 = vmatprep.subr.mxu0 0.0
    %4067 = vmatpush1.msra.mxu0 0.0
    %4068 = vmatprep.subr.mxu0 0.0
    %4069 = vmatpush1.msra.mxu0 0.0
    %4070 = vmatprep.subr.mxu0 0.0
    %4071 = vmatpush1.msra.mxu0 0.0
    %4072 = vmatprep.subr.mxu0 0.0
    %4073 = vmatpush1.msra.mxu0 0.0
    %4074 = vmatprep.subr.mxu0 0.0
    %4075 = vmatpush1.msra.mxu0 0.0
    %4076 = vmatprep.subr.mxu0 0.0
    %4077 = vmatpush1.msra.mxu0 0.0
    %4078 = vmatprep.subr.mxu0 0.0
    %4079 = vmatpush1.msra.mxu0 0.0
    %4080 = vmatprep.subr.mxu0 0.0
    %4081 = vmatpush1.msra.mxu0 0.0
    %4082 = vmatprep.subr.mxu0 0.0
    %4083 = vmatpush1.msra.mxu0 0.0
    %4084 = vmatprep.subr.mxu0 0.0
    %4085 = vmatpush1.msra.mxu0 0.0
    %4086 = vmatprep.subr.mxu0 0.0
    %4087 = vmatpush1.msra.mxu0 0.0
    %4088 = vmatprep.subr.mxu0 0.0
    %4089 = vmatpush1.msra.mxu0 %v2744
    %4090 = vmatprep.subr.mxu0 0.0
    %4091 = vmatpush2.msra.mxu0 0.0
    %4092 = vmatprep.subr.mxu0 0.0
    %4093 = vmatpush2.msra.mxu0 0.0
    %4094 = vmatprep.subr.mxu0 0.0
    %4095 = vmatpush2.msra.mxu0 0.0
    %4096 = vmatprep.subr.mxu0 0.0
    %4097 = vmatpush2.msra.mxu0 0.0
    %4098 = vmatprep.subr.mxu0 0.0
    %4099 = vmatpush2.msra.mxu0 0.0
    %4100 = vmatprep.subr.mxu0 0.0
    %4101 = vmatpush2.msra.mxu0 0.0
    %4102 = vmatprep.subr.mxu0 0.0
    %4103 = vmatpush2.msra.mxu0 0.0
    %4104 = vmatprep.subr.mxu0 0.0
    %4105 = vmatpush2.msra.mxu0 0.0
    %4106 = vmatprep.subr.mxu0 0.0
    %4107 = vmatpush2.msra.mxu0 0.0
    %4108 = vmatprep.subr.mxu0 0.0
    %4109 = vmatpush2.msra.mxu0 0.0
    %4110 = vmatprep.subr.mxu0 0.0
    %4111 = vmatpush2.msra.mxu0 0.0
    %4112 = vmatprep.subr.mxu0 0.0
    %4113 = vmatpush2.msra.mxu0 0.0
    %4114 = vmatprep.subr.mxu0 0.0
    %4115 = vmatpush2.msra.mxu0 0.0
    %4116 = vmatprep.subr.mxu0 0.0
    %4117 = vmatpush2.msra.mxu0 0.0
    %4118 = vmatprep.subr.mxu0 0.0
    %4119 = vmatpush2.msra.mxu0 0.0
    %4120 = vmatprep.subr.mxu0 0.0
    %4121 = vmatpush2.msra.mxu0 0.0
    %4122 = vmatprep.mubr.f32.mxu0 0.0
    %4123 = vmatmul.mubr.f32.gmra.mxu0 %v4056
    %v4124 = vpop.f32.mrf.mxu0
    %v4125 = vadd.f32 0.0, %v4124
    %v4126 = vpop.f32.mrf.mxu0
    %4127 = vdwg.mxu0
    %v4129 = vsel %vm393, %v3885, 0
    %4131 = vmatprep.subr.mxu0 0.0
    %4132 = vmatpush1.msra.mxu0 0.0
    %4133 = vmatprep.subr.mxu0 0.0
    %4134 = vmatpush1.msra.mxu0 0.0
    %4135 = vmatprep.subr.mxu0 0.0
    %4136 = vmatpush1.msra.mxu0 0.0
    %4137 = vmatprep.subr.mxu0 0.0
    %4138 = vmatpush1.msra.mxu0 0.0
    %4139 = vmatprep.subr.mxu0 0.0
    %4140 = vmatpush1.msra.mxu0 0.0
    %4141 = vmatprep.subr.mxu0 0.0
    %4142 = vmatpush1.msra.mxu0 0.0
    %4143 = vmatprep.subr.mxu0 0.0
    %4144 = vmatpush1.msra.mxu0 0.0
    %4145 = vmatprep.subr.mxu0 0.0
    %4146 = vmatpush1.msra.mxu0 0.0
    %4147 = vmatprep.subr.mxu0 0.0
    %4148 = vmatpush1.msra.mxu0 0.0
    %4149 = vmatprep.subr.mxu0 0.0
    %4150 = vmatpush1.msra.mxu0 0.0
    %4151 = vmatprep.subr.mxu0 0.0
    %4152 = vmatpush1.msra.mxu0 0.0
    %4153 = vmatprep.subr.mxu0 0.0
    %4154 = vmatpush1.msra.mxu0 0.0
    %4155 = vmatprep.subr.mxu0 0.0
    %4156 = vmatpush1.msra.mxu0 0.0
    %4157 = vmatprep.subr.mxu0 0.0
    %4158 = vmatpush1.msra.mxu0 0.0
    %4159 = vmatprep.subr.mxu0 0.0
    %4160 = vmatpush1.msra.mxu0 0.0
    %4161 = vmatprep.subr.mxu0 0.0
    %4162 = vmatpush1.msra.mxu0 %v2743
    %4163 = vmatprep.subr.mxu0 0.0
    %4164 = vmatpush2.msra.mxu0 0.0
    %4165 = vmatprep.subr.mxu0 0.0
    %4166 = vmatpush2.msra.mxu0 0.0
    %4167 = vmatprep.subr.mxu0 0.0
    %4168 = vmatpush2.msra.mxu0 0.0
    %4169 = vmatprep.subr.mxu0 0.0
    %4170 = vmatpush2.msra.mxu0 0.0
    %4171 = vmatprep.subr.mxu0 0.0
    %4172 = vmatpush2.msra.mxu0 0.0
    %4173 = vmatprep.subr.mxu0 0.0
    %4174 = vmatpush2.msra.mxu0 0.0
    %4175 = vmatprep.subr.mxu0 0.0
    %4176 = vmatpush2.msra.mxu0 0.0
    %4177 = vmatprep.subr.mxu0 0.0
    %4178 = vmatpush2.msra.mxu0 0.0
    %4179 = vmatprep.subr.mxu0 0.0
    %4180 = vmatpush2.msra.mxu0 0.0
    %4181 = vmatprep.subr.mxu0 0.0
    %4182 = vmatpush2.msra.mxu0 0.0
    %4183 = vmatprep.subr.mxu0 0.0
    %4184 = vmatpush2.msra.mxu0 0.0
    %4185 = vmatprep.subr.mxu0 0.0
    %4186 = vmatpush2.msra.mxu0 0.0
    %4187 = vmatprep.subr.mxu0 0.0
    %4188 = vmatpush2.msra.mxu0 0.0
    %4189 = vmatprep.subr.mxu0 0.0
    %4190 = vmatpush2.msra.mxu0 0.0
    %4191 = vmatprep.subr.mxu0 0.0
    %4192 = vmatpush2.msra.mxu0 0.0
    %4193 = vmatprep.subr.mxu0 0.0
    %4194 = vmatpush2.msra.mxu0 0.0
    %4195 = vmatprep.mubr.f32.mxu0 0.0
    %4196 = vmatmul.mubr.f32.gmra.mxu0 %v4129
    %v4197 = vpop.f32.mrf.mxu0
    %v4198 = vadd.f32 %v4125, %v4197
    %v4199 = vpop.f32.mrf.mxu0
    %4200 = vdwg.mxu0
    %4201 = vrot.lane.b32.xlu0 %v3721, 112
    %v4202 = vpop.permute.xlu0 %4201
    %4203 = vrot.lane.b32.xlu0 %v3721, 80
    %v4204 = vpop.permute.xlu0 %4203
    %v4205 = vsel %vm393, %v4202, 0
    %v4207 = vsel %vm393, %v4204, 0
    %4209 = vmatprep.subr.mxu0 0.0
    %4210 = vmatpush1.xpose.msra.mxu0 0.0
    %4211 = vmatprep.subr.mxu0 0.0
    %4212 = vmatpush1.xpose.msra.mxu0 0.0
    %4213 = vmatprep.subr.mxu0 0.0
    %4214 = vmatpush1.xpose.msra.mxu0 0.0
    %4215 = vmatprep.subr.mxu0 0.0
    %4216 = vmatpush1.xpose.msra.mxu0 0.0
    %4217 = vmatprep.subr.mxu0 0.0
    %4218 = vmatpush1.xpose.msra.mxu0 0.0
    %4219 = vmatprep.subr.mxu0 0.0
    %4220 = vmatpush1.xpose.msra.mxu0 0.0
    %4221 = vmatprep.subr.mxu0 0.0
    %4222 = vmatpush1.xpose.msra.mxu0 0.0
    %4223 = vmatprep.subr.mxu0 0.0
    %4224 = vmatpush1.xpose.msra.mxu0 0.0
    %4225 = vmatprep.subr.mxu0 0.0
    %4226 = vmatpush1.xpose.msra.mxu0 0.0
    %4227 = vmatprep.subr.mxu0 0.0
    %4228 = vmatpush1.xpose.msra.mxu0 0.0
    %4229 = vmatprep.subr.mxu0 0.0
    %4230 = vmatpush1.xpose.msra.mxu0 0.0
    %4231 = vmatprep.subr.mxu0 0.0
    %4232 = vmatpush1.xpose.msra.mxu0 0.0
    %4233 = vmatprep.subr.mxu0 0.0
    %4234 = vmatpush1.xpose.msra.mxu0 0.0
    %4235 = vmatprep.subr.mxu0 0.0
    %4236 = vmatpush1.xpose.msra.mxu0 0.0
    %4237 = vmatprep.subr.mxu0 0.0
    %4238 = vmatpush1.xpose.msra.mxu0 0.0
    %4239 = vmatprep.subr.mxu0 0.0
    %4240 = vmatpush1.xpose.msra.mxu0 %v4207
    %4241 = vmatprep.subr.mxu0 0.0
    %4242 = vmatpush2.xpose.msra.mxu0 0.0
    %4243 = vmatprep.subr.mxu0 0.0
    %4244 = vmatpush2.xpose.msra.mxu0 0.0
    %4245 = vmatprep.subr.mxu0 0.0
    %4246 = vmatpush2.xpose.msra.mxu0 0.0
    %4247 = vmatprep.subr.mxu0 0.0
    %4248 = vmatpush2.xpose.msra.mxu0 0.0
    %4249 = vmatprep.subr.mxu0 0.0
    %4250 = vmatpush2.xpose.msra.mxu0 0.0
    %4251 = vmatprep.subr.mxu0 0.0
    %4252 = vmatpush2.xpose.msra.mxu0 0.0
    %4253 = vmatprep.subr.mxu0 0.0
    %4254 = vmatpush2.xpose.msra.mxu0 0.0
    %4255 = vmatprep.subr.mxu0 0.0
    %4256 = vmatpush2.xpose.msra.mxu0 0.0
    %4257 = vmatprep.subr.mxu0 0.0
    %4258 = vmatpush2.xpose.msra.mxu0 0.0
    %4259 = vmatprep.subr.mxu0 0.0
    %4260 = vmatpush2.xpose.msra.mxu0 0.0
    %4261 = vmatprep.subr.mxu0 0.0
    %4262 = vmatpush2.xpose.msra.mxu0 0.0
    %4263 = vmatprep.subr.mxu0 0.0
    %4264 = vmatpush2.xpose.msra.mxu0 0.0
    %4265 = vmatprep.subr.mxu0 0.0
    %4266 = vmatpush2.xpose.msra.mxu0 0.0
    %4267 = vmatprep.subr.mxu0 0.0
    %4268 = vmatpush2.xpose.msra.mxu0 0.0
    %4269 = vmatprep.subr.mxu0 0.0
    %4270 = vmatpush2.xpose.msra.mxu0 0.0
    %4271 = vmatprep.subr.mxu0 0.0
    %4272 = vmatpush2.xpose.msra.mxu0 0.0
    %4273 = vmatprep.mubr.f32.mxu0 0.0
    %4274 = vmatmul.mubr.f32.gmra.mxu0 %v4205
    %v4275 = vpop.f32.mrf.mxu0
    %v4276 = vadd.f32 0.0, %v4275
    %v4277 = vpop.f32.mrf.mxu0
    %4278 = vdwg.mxu0
    %v4279 = vmul.f32 %v4276, 0.35355338
    %v4280 = vsel %vm469, %v4279, -inf
    %4281 = vmax.xlane.f32.xlu0 %v4280
    %v4282 = vpop.xlane.xlu0 %4281
    %v4283 = vsub.f32 %v4279, %v4282
    %v4284 = vmul.f32 %v4283, 1.442695
    %v4285 = vpow.pop %v4284
    %v4286 = vsel %vm469, %v4285, 0.0
    %4287 = vadd.xlane.f32.xlu0 %v4286
    %v4288 = vpop.xlane.xlu0 %4287
    %v4289 = vrcp.pop %v4288
    %v4290 = vmul.f32 %v4285, %v4289
    %4291 = vrot.lane.b32.xlu0 %v3721, 48
    %v4292 = vpop.permute.xlu0 %4291
    %v4294 = vsel %vm483, %v4290, 0
    %v4296 = vsel %vm487, %v4292, 0
    %4298 = vmatprep.subr.mxu0 0.0
    %4299 = vmatpush1.msra.mxu0 0.0
    %4300 = vmatprep.subr.mxu0 0.0
    %4301 = vmatpush1.msra.mxu0 0.0
    %4302 = vmatprep.subr.mxu0 0.0
    %4303 = vmatpush1.msra.mxu0 0.0
    %4304 = vmatprep.subr.mxu0 0.0
    %4305 = vmatpush1.msra.mxu0 0.0
    %4306 = vmatprep.subr.mxu0 0.0
    %4307 = vmatpush1.msra.mxu0 0.0
    %4308 = vmatprep.subr.mxu0 0.0
    %4309 = vmatpush1.msra.mxu0 0.0
    %4310 = vmatprep.subr.mxu0 0.0
    %4311 = vmatpush1.msra.mxu0 0.0
    %4312 = vmatprep.subr.mxu0 0.0
    %4313 = vmatpush1.msra.mxu0 0.0
    %4314 = vmatprep.subr.mxu0 0.0
    %4315 = vmatpush1.msra.mxu0 0.0
    %4316 = vmatprep.subr.mxu0 0.0
    %4317 = vmatpush1.msra.mxu0 0.0
    %4318 = vmatprep.subr.mxu0 0.0
    %4319 = vmatpush1.msra.mxu0 0.0
    %4320 = vmatprep.subr.mxu0 0.0
    %4321 = vmatpush1.msra.mxu0 0.0
    %4322 = vmatprep.subr.mxu0 0.0
    %4323 = vmatpush1.msra.mxu0 0.0
    %4324 = vmatprep.subr.mxu0 0.0
    %4325 = vmatpush1.msra.mxu0 0.0
    %4326 = vmatprep.subr.mxu0 0.0
    %4327 = vmatpush1.msra.mxu0 0.0
    %4328 = vmatprep.subr.mxu0 0.0
    %4329 = vmatpush1.msra.mxu0 %v4296
    %4330 = vmatprep.subr.mxu0 0.0
    %4331 = vmatpush2.msra.mxu0 0.0
    %4332 = vmatprep.subr.mxu0 0.0
    %4333 = vmatpush2.msra.mxu0 0.0
    %4334 = vmatprep.subr.mxu0 0.0
    %4335 = vmatpush2.msra.mxu0 0.0
    %4336 = vmatprep.subr.mxu0 0.0
    %4337 = vmatpush2.msra.mxu0 0.0
    %4338 = vmatprep.subr.mxu0 0.0
    %4339 = vmatpush2.msra.mxu0 0.0
    %4340 = vmatprep.subr.mxu0 0.0
    %4341 = vmatpush2.msra.mxu0 0.0
    %4342 = vmatprep.subr.mxu0 0.0
    %4343 = vmatpush2.msra.mxu0 0.0
    %4344 = vmatprep.subr.mxu0 0.0
    %4345 = vmatpush2.msra.mxu0 0.0
    %4346 = vmatprep.subr.mxu0 0.0
    %4347 = vmatpush2.msra.mxu0 0.0
    %4348 = vmatprep.subr.mxu0 0.0
    %4349 = vmatpush2.msra.mxu0 0.0
    %4350 = vmatprep.subr.mxu0 0.0
    %4351 = vmatpush2.msra.mxu0 0.0
    %4352 = vmatprep.subr.mxu0 0.0
    %4353 = vmatpush2.msra.mxu0 0.0
    %4354 = vmatprep.subr.mxu0 0.0
    %4355 = vmatpush2.msra.mxu0 0.0
    %4356 = vmatprep.subr.mxu0 0.0
    %4357 = vmatpush2.msra.mxu0 0.0
    %4358 = vmatprep.subr.mxu0 0.0
    %4359 = vmatpush2.msra.mxu0 0.0
    %4360 = vmatprep.subr.mxu0 0.0
    %4361 = vmatpush2.msra.mxu0 0.0
    %4362 = vmatprep.mubr.f32.mxu0 0.0
    %4363 = vmatmul.mubr.f32.gmra.mxu0 %v4294
    %v4364 = vpop.f32.mrf.mxu0
    %v4365 = vadd.f32 0.0, %v4364
    %v4366 = vpop.f32.mrf.mxu0
    %4367 = vdwg.mxu0
    %v4369 = vsel %vm393, %v4365, 0
    %4371 = vmatprep.subr.mxu0 0.0
    %4372 = vmatpush1.msra.mxu0 0.0
    %4373 = vmatprep.subr.mxu0 0.0
    %4374 = vmatpush1.msra.mxu0 0.0
    %4375 = vmatprep.subr.mxu0 0.0
    %4376 = vmatpush1.msra.mxu0 0.0
    %4377 = vmatprep.subr.mxu0 0.0
    %4378 = vmatpush1.msra.mxu0 0.0
    %4379 = vmatprep.subr.mxu0 0.0
    %4380 = vmatpush1.msra.mxu0 0.0
    %4381 = vmatprep.subr.mxu0 0.0
    %4382 = vmatpush1.msra.mxu0 0.0
    %4383 = vmatprep.subr.mxu0 0.0
    %4384 = vmatpush1.msra.mxu0 0.0
    %4385 = vmatprep.subr.mxu0 0.0
    %4386 = vmatpush1.msra.mxu0 0.0
    %4387 = vmatprep.subr.mxu0 0.0
    %4388 = vmatpush1.msra.mxu0 0.0
    %4389 = vmatprep.subr.mxu0 0.0
    %4390 = vmatpush1.msra.mxu0 0.0
    %4391 = vmatprep.subr.mxu0 0.0
    %4392 = vmatpush1.msra.mxu0 0.0
    %4393 = vmatprep.subr.mxu0 0.0
    %4394 = vmatpush1.msra.mxu0 0.0
    %4395 = vmatprep.subr.mxu0 0.0
    %4396 = vmatpush1.msra.mxu0 0.0
    %4397 = vmatprep.subr.mxu0 0.0
    %4398 = vmatpush1.msra.mxu0 0.0
    %4399 = vmatprep.subr.mxu0 0.0
    %4400 = vmatpush1.msra.mxu0 0.0
    %4401 = vmatprep.subr.mxu0 0.0
    %4402 = vmatpush1.msra.mxu0 %v2745
    %4403 = vmatprep.subr.mxu0 0.0
    %4404 = vmatpush2.msra.mxu0 0.0
    %4405 = vmatprep.subr.mxu0 0.0
    %4406 = vmatpush2.msra.mxu0 0.0
    %4407 = vmatprep.subr.mxu0 0.0
    %4408 = vmatpush2.msra.mxu0 0.0
    %4409 = vmatprep.subr.mxu0 0.0
    %4410 = vmatpush2.msra.mxu0 0.0
    %4411 = vmatprep.subr.mxu0 0.0
    %4412 = vmatpush2.msra.mxu0 0.0
    %4413 = vmatprep.subr.mxu0 0.0
    %4414 = vmatpush2.msra.mxu0 0.0
    %4415 = vmatprep.subr.mxu0 0.0
    %4416 = vmatpush2.msra.mxu0 0.0
    %4417 = vmatprep.subr.mxu0 0.0
    %4418 = vmatpush2.msra.mxu0 0.0
    %4419 = vmatprep.subr.mxu0 0.0
    %4420 = vmatpush2.msra.mxu0 0.0
    %4421 = vmatprep.subr.mxu0 0.0
    %4422 = vmatpush2.msra.mxu0 0.0
    %4423 = vmatprep.subr.mxu0 0.0
    %4424 = vmatpush2.msra.mxu0 0.0
    %4425 = vmatprep.subr.mxu0 0.0
    %4426 = vmatpush2.msra.mxu0 0.0
    %4427 = vmatprep.subr.mxu0 0.0
    %4428 = vmatpush2.msra.mxu0 0.0
    %4429 = vmatprep.subr.mxu0 0.0
    %4430 = vmatpush2.msra.mxu0 0.0
    %4431 = vmatprep.subr.mxu0 0.0
    %4432 = vmatpush2.msra.mxu0 0.0
    %4433 = vmatprep.subr.mxu0 0.0
    %4434 = vmatpush2.msra.mxu0 0.0
    %4435 = vmatprep.mubr.f32.mxu0 0.0
    %4436 = vmatmul.mubr.f32.gmra.mxu0 %v4369
    %v4437 = vpop.f32.mrf.mxu0
    %v4438 = vadd.f32 0.0, %v4437
    %v4439 = vpop.f32.mrf.mxu0
    %4440 = vdwg.mxu0
    %v4441 = vadd.f32 %v4198, %v4438
    %4442 = vrot.lane.b32.xlu0 %v3721, 104
    %v4443 = vpop.permute.xlu0 %4442
    %4444 = vrot.lane.b32.xlu0 %v3721, 72
    %v4445 = vpop.permute.xlu0 %4444
    %v4446 = vsel %vm393, %v4443, 0
    %v4448 = vsel %vm393, %v4445, 0
    %4450 = vmatprep.subr.mxu0 0.0
    %4451 = vmatpush1.xpose.msra.mxu0 0.0
    %4452 = vmatprep.subr.mxu0 0.0
    %4453 = vmatpush1.xpose.msra.mxu0 0.0
    %4454 = vmatprep.subr.mxu0 0.0
    %4455 = vmatpush1.xpose.msra.mxu0 0.0
    %4456 = vmatprep.subr.mxu0 0.0
    %4457 = vmatpush1.xpose.msra.mxu0 0.0
    %4458 = vmatprep.subr.mxu0 0.0
    %4459 = vmatpush1.xpose.msra.mxu0 0.0
    %4460 = vmatprep.subr.mxu0 0.0
    %4461 = vmatpush1.xpose.msra.mxu0 0.0
    %4462 = vmatprep.subr.mxu0 0.0
    %4463 = vmatpush1.xpose.msra.mxu0 0.0
    %4464 = vmatprep.subr.mxu0 0.0
    %4465 = vmatpush1.xpose.msra.mxu0 0.0
    %4466 = vmatprep.subr.mxu0 0.0
    %4467 = vmatpush1.xpose.msra.mxu0 0.0
    %4468 = vmatprep.subr.mxu0 0.0
    %4469 = vmatpush1.xpose.msra.mxu0 0.0
    %4470 = vmatprep.subr.mxu0 0.0
    %4471 = vmatpush1.xpose.msra.mxu0 0.0
    %4472 = vmatprep.subr.mxu0 0.0
    %4473 = vmatpush1.xpose.msra.mxu0 0.0
    %4474 = vmatprep.subr.mxu0 0.0
    %4475 = vmatpush1.xpose.msra.mxu0 0.0
    %4476 = vmatprep.subr.mxu0 0.0
    %4477 = vmatpush1.xpose.msra.mxu0 0.0
    %4478 = vmatprep.subr.mxu0 0.0
    %4479 = vmatpush1.xpose.msra.mxu0 0.0
    %4480 = vmatprep.subr.mxu0 0.0
    %4481 = vmatpush1.xpose.msra.mxu0 %v4448
    %4482 = vmatprep.subr.mxu0 0.0
    %4483 = vmatpush2.xpose.msra.mxu0 0.0
    %4484 = vmatprep.subr.mxu0 0.0
    %4485 = vmatpush2.xpose.msra.mxu0 0.0
    %4486 = vmatprep.subr.mxu0 0.0
    %4487 = vmatpush2.xpose.msra.mxu0 0.0
    %4488 = vmatprep.subr.mxu0 0.0
    %4489 = vmatpush2.xpose.msra.mxu0 0.0
    %4490 = vmatprep.subr.mxu0 0.0
    %4491 = vmatpush2.xpose.msra.mxu0 0.0
    %4492 = vmatprep.subr.mxu0 0.0
    %4493 = vmatpush2.xpose.msra.mxu0 0.0
    %4494 = vmatprep.subr.mxu0 0.0
    %4495 = vmatpush2.xpose.msra.mxu0 0.0
    %4496 = vmatprep.subr.mxu0 0.0
    %4497 = vmatpush2.xpose.msra.mxu0 0.0
    %4498 = vmatprep.subr.mxu0 0.0
    %4499 = vmatpush2.xpose.msra.mxu0 0.0
    %4500 = vmatprep.subr.mxu0 0.0
    %4501 = vmatpush2.xpose.msra.mxu0 0.0
    %4502 = vmatprep.subr.mxu0 0.0
    %4503 = vmatpush2.xpose.msra.mxu0 0.0
    %4504 = vmatprep.subr.mxu0 0.0
    %4505 = vmatpush2.xpose.msra.mxu0 0.0
    %4506 = vmatprep.subr.mxu0 0.0
    %4507 = vmatpush2.xpose.msra.mxu0 0.0
    %4508 = vmatprep.subr.mxu0 0.0
    %4509 = vmatpush2.xpose.msra.mxu0 0.0
    %4510 = vmatprep.subr.mxu0 0.0
    %4511 = vmatpush2.xpose.msra.mxu0 0.0
    %4512 = vmatprep.subr.mxu0 0.0
    %4513 = vmatpush2.xpose.msra.mxu0 0.0
    %4514 = vmatprep.mubr.f32.mxu0 0.0
    %4515 = vmatmul.mubr.f32.gmra.mxu0 %v4446
    %v4516 = vpop.f32.mrf.mxu0
    %v4517 = vadd.f32 0.0, %v4516
    %v4518 = vpop.f32.mrf.mxu0
    %4519 = vdwg.mxu0
    %v4520 = vmul.f32 %v4517, 0.35355338
    %v4521 = vsel %vm469, %v4520, -inf
    %4522 = vmax.xlane.f32.xlu0 %v4521
    %v4523 = vpop.xlane.xlu0 %4522
    %v4524 = vsub.f32 %v4520, %v4523
    %v4525 = vmul.f32 %v4524, 1.442695
    %v4526 = vpow.pop %v4525
    %v4527 = vsel %vm469, %v4526, 0.0
    %4528 = vadd.xlane.f32.xlu0 %v4527
    %v4529 = vpop.xlane.xlu0 %4528
    %v4530 = vrcp.pop %v4529
    %v4531 = vmul.f32 %v4526, %v4530
    %4532 = vrot.lane.b32.xlu0 %v3721, 40
    %v4533 = vpop.permute.xlu0 %4532
    %v4535 = vsel %vm483, %v4531, 0
    %v4537 = vsel %vm487, %v4533, 0
    %4539 = vmatprep.subr.mxu0 0.0
    %4540 = vmatpush1.msra.mxu0 0.0
    %4541 = vmatprep.subr.mxu0 0.0
    %4542 = vmatpush1.msra.mxu0 0.0
    %4543 = vmatprep.subr.mxu0 0.0
    %4544 = vmatpush1.msra.mxu0 0.0
    %4545 = vmatprep.subr.mxu0 0.0
    %4546 = vmatpush1.msra.mxu0 0.0
    %4547 = vmatprep.subr.mxu0 0.0
    %4548 = vmatpush1.msra.mxu0 0.0
    %4549 = vmatprep.subr.mxu0 0.0
    %4550 = vmatpush1.msra.mxu0 0.0
    %4551 = vmatprep.subr.mxu0 0.0
    %4552 = vmatpush1.msra.mxu0 0.0
    %4553 = vmatprep.subr.mxu0 0.0
    %4554 = vmatpush1.msra.mxu0 0.0
    %4555 = vmatprep.subr.mxu0 0.0
    %4556 = vmatpush1.msra.mxu0 0.0
    %4557 = vmatprep.subr.mxu0 0.0
    %4558 = vmatpush1.msra.mxu0 0.0
    %4559 = vmatprep.subr.mxu0 0.0
    %4560 = vmatpush1.msra.mxu0 0.0
    %4561 = vmatprep.subr.mxu0 0.0
    %4562 = vmatpush1.msra.mxu0 0.0
    %4563 = vmatprep.subr.mxu0 0.0
    %4564 = vmatpush1.msra.mxu0 0.0
    %4565 = vmatprep.subr.mxu0 0.0
    %4566 = vmatpush1.msra.mxu0 0.0
    %4567 = vmatprep.subr.mxu0 0.0
    %4568 = vmatpush1.msra.mxu0 0.0
    %4569 = vmatprep.subr.mxu0 0.0
    %4570 = vmatpush1.msra.mxu0 %v4537
    %4571 = vmatprep.subr.mxu0 0.0
    %4572 = vmatpush2.msra.mxu0 0.0
    %4573 = vmatprep.subr.mxu0 0.0
    %4574 = vmatpush2.msra.mxu0 0.0
    %4575 = vmatprep.subr.mxu0 0.0
    %4576 = vmatpush2.msra.mxu0 0.0
    %4577 = vmatprep.subr.mxu0 0.0
    %4578 = vmatpush2.msra.mxu0 0.0
    %4579 = vmatprep.subr.mxu0 0.0
    %4580 = vmatpush2.msra.mxu0 0.0
    %4581 = vmatprep.subr.mxu0 0.0
    %4582 = vmatpush2.msra.mxu0 0.0
    %4583 = vmatprep.subr.mxu0 0.0
    %4584 = vmatpush2.msra.mxu0 0.0
    %4585 = vmatprep.subr.mxu0 0.0
    %4586 = vmatpush2.msra.mxu0 0.0
    %4587 = vmatprep.subr.mxu0 0.0
    %4588 = vmatpush2.msra.mxu0 0.0
    %4589 = vmatprep.subr.mxu0 0.0
    %4590 = vmatpush2.msra.mxu0 0.0
    %4591 = vmatprep.subr.mxu0 0.0
    %4592 = vmatpush2.msra.mxu0 0.0
    %4593 = vmatprep.subr.mxu0 0.0
    %4594 = vmatpush2.msra.mxu0 0.0
    %4595 = vmatprep.subr.mxu0 0.0
    %4596 = vmatpush2.msra.mxu0 0.0
    %4597 = vmatprep.subr.mxu0 0.0
    %4598 = vmatpush2.msra.mxu0 0.0
    %4599 = vmatprep.subr.mxu0 0.0
    %4600 = vmatpush2.msra.mxu0 0.0
    %4601 = vmatprep.subr.mxu0 0.0
    %4602 = vmatpush2.msra.mxu0 0.0
    %4603 = vmatprep.mubr.f32.mxu0 0.0
    %4604 = vmatmul.mubr.f32.gmra.mxu0 %v4535
    %v4605 = vpop.f32.mrf.mxu0
    %v4606 = vadd.f32 0.0, %v4605
    %v4607 = vpop.f32.mrf.mxu0
    %4608 = vdwg.mxu0
    %v4610 = vsel %vm393, %v4606, 0
    %4612 = vmatprep.subr.mxu0 0.0
    %4613 = vmatpush1.msra.mxu0 0.0
    %4614 = vmatprep.subr.mxu0 0.0
    %4615 = vmatpush1.msra.mxu0 0.0
    %4616 = vmatprep.subr.mxu0 0.0
    %4617 = vmatpush1.msra.mxu0 0.0
    %4618 = vmatprep.subr.mxu0 0.0
    %4619 = vmatpush1.msra.mxu0 0.0
    %4620 = vmatprep.subr.mxu0 0.0
    %4621 = vmatpush1.msra.mxu0 0.0
    %4622 = vmatprep.subr.mxu0 0.0
    %4623 = vmatpush1.msra.mxu0 0.0
    %4624 = vmatprep.subr.mxu0 0.0
    %4625 = vmatpush1.msra.mxu0 0.0
    %4626 = vmatprep.subr.mxu0 0.0
    %4627 = vmatpush1.msra.mxu0 0.0
    %4628 = vmatprep.subr.mxu0 0.0
    %4629 = vmatpush1.msra.mxu0 0.0
    %4630 = vmatprep.subr.mxu0 0.0
    %4631 = vmatpush1.msra.mxu0 0.0
    %4632 = vmatprep.subr.mxu0 0.0
    %4633 = vmatpush1.msra.mxu0 0.0
    %4634 = vmatprep.subr.mxu0 0.0
    %4635 = vmatpush1.msra.mxu0 0.0
    %4636 = vmatprep.subr.mxu0 0.0
    %4637 = vmatpush1.msra.mxu0 0.0
    %4638 = vmatprep.subr.mxu0 0.0
    %4639 = vmatpush1.msra.mxu0 0.0
    %4640 = vmatprep.subr.mxu0 0.0
    %4641 = vmatpush1.msra.mxu0 0.0
    %4642 = vmatprep.subr.mxu0 0.0
    %4643 = vmatpush1.msra.mxu0 %v2746
    %4644 = vmatprep.subr.mxu0 0.0
    %4645 = vmatpush2.msra.mxu0 0.0
    %4646 = vmatprep.subr.mxu0 0.0
    %4647 = vmatpush2.msra.mxu0 0.0
    %4648 = vmatprep.subr.mxu0 0.0
    %4649 = vmatpush2.msra.mxu0 0.0
    %4650 = vmatprep.subr.mxu0 0.0
    %4651 = vmatpush2.msra.mxu0 0.0
    %4652 = vmatprep.subr.mxu0 0.0
    %4653 = vmatpush2.msra.mxu0 0.0
    %4654 = vmatprep.subr.mxu0 0.0
    %4655 = vmatpush2.msra.mxu0 0.0
    %4656 = vmatprep.subr.mxu0 0.0
    %4657 = vmatpush2.msra.mxu0 0.0
    %4658 = vmatprep.subr.mxu0 0.0
    %4659 = vmatpush2.msra.mxu0 0.0
    %4660 = vmatprep.subr.mxu0 0.0
    %4661 = vmatpush2.msra.mxu0 0.0
    %4662 = vmatprep.subr.mxu0 0.0
    %4663 = vmatpush2.msra.mxu0 0.0
    %4664 = vmatprep.subr.mxu0 0.0
    %4665 = vmatpush2.msra.mxu0 0.0
    %4666 = vmatprep.subr.mxu0 0.0
    %4667 = vmatpush2.msra.mxu0 0.0
    %4668 = vmatprep.subr.mxu0 0.0
    %4669 = vmatpush2.msra.mxu0 0.0
    %4670 = vmatprep.subr.mxu0 0.0
    %4671 = vmatpush2.msra.mxu0 0.0
    %4672 = vmatprep.subr.mxu0 0.0
    %4673 = vmatpush2.msra.mxu0 0.0
    %4674 = vmatprep.subr.mxu0 0.0
    %4675 = vmatpush2.msra.mxu0 0.0
    %4676 = vmatprep.mubr.f32.mxu0 0.0
    %4677 = vmatmul.mubr.f32.gmra.mxu0 %v4610
    %v4678 = vpop.f32.mrf.mxu0
    %v4679 = vadd.f32 0.0, %v4678
    %v4680 = vpop.f32.mrf.mxu0
    %4681 = vdwg.mxu0
    %v4682 = vadd.f32 %v4441, %v4679
    %v4683 = vld [vmem:[#allocation2 + $0x8] sm:$0x1f]
    %v4684 = vadd.f32 %v4683, %v4682
    %v4685 = vld [vmem:[%s3711] sm:$0x1]
    %v4687 = vlaneseq
    %v4688 = vshrl.u32 %v4687, 7
    %v4689 = vsub.s32 0, %v4688
    %v4690 = vrot.slane %v4685, %v4689
    %v4692 = vadd.f32 %v4684, %v4690
    %4693 = vst.msk [vmem:[#allocation2 + $0x8] sm:$0x1f] %vm1365, %v4692
    %v4694 = vld [vmem:[#allocation2] sm:$0xff]
    %v4695 = vld [vmem:[#allocation2 + $0x8] sm:$0xff]
    %s4696 = scalar_lea.vmem %s11, 1
    %v4697 = vld [vmem:[%s4696] sm:$0x1]
    %s4698 = scalar_lea.vmem %s12, 1
    %v4699 = vld [vmem:[%s4698] sm:$0x1]
    %v4700 = vsel %vm190, %v4694, 0.0
    %4701 = vadd.xlane.f32.xlu0 %v4700
    %v4702 = vpop.xlane.xlu0 %4701
    %v4703 = vsel %vm190, %v4695, 0.0
    %4704 = vadd.xlane.f32.xlu0 %v4703
    %v4705 = vpop.xlane.xlu0 %4704
    %v4706 = vmul.f32 %v4702, %v205
    %v4707 = vmul.f32 %v4705, %v205
    %v4708 = vsub.f32 %v4694, %v4706
    %v4709 = vsub.f32 %v4695, %v4707
    %v4710 = vmul.f32 %v4708, %v4708
    %v4711 = vmul.f32 %v4709, %v4709
    %v4712 = vsel %vm190, %v4710, 0.0
    %4713 = vadd.xlane.f32.xlu0 %v4712
    %v4714 = vpop.xlane.xlu0 %4713
    %v4715 = vsel %vm190, %v4711, 0.0
    %4716 = vadd.xlane.f32.xlu0 %v4715
    %v4717 = vpop.xlane.xlu0 %4716
    %v4718 = vmul.f32 %v4714, %v205
    %v4719 = vmul.f32 %v4717, %v205
    %v4720 = vadd.f32 %v4718, 1e-05
    %v4721 = vadd.f32 %v4719, 1e-05
    %v4722 = vrsqrt.pop %v4720
    %v4723 = vrsqrt.pop %v4721
    %v4724 = vmul.f32 %v4708, %v4722
    %v4725 = vmul.f32 %v4709, %v4723
    %v4727 = vlaneseq
    %v4728 = vshrl.u32 %v4727, 7
    %v4729 = vsub.s32 0, %v4728
    %v4730 = vrot.slane %v4697, %v4729
    %v4732 = vmul.f32 %v4724, %v4730
    %v4733 = vmul.f32 %v4725, %v4730
    %v4735 = vlaneseq
    %v4736 = vshrl.u32 %v4735, 7
    %v4737 = vsub.s32 0, %v4736
    %v4738 = vrot.slane %v4699, %v4737
    %v4740 = vadd.f32 %v4732, %v4738
    %v4741 = vadd.f32 %v4733, %v4738
    %s4742 = scalar_lea.vmem %s13, 32
    %v4743 = vld [vmem:[%s4742] sm:$0xff]
    %v4744 = vld [vmem:[%s4742 + $0x8] sm:$0xff]
    %v4745 = vld [vmem:[%s4742 + $0x10] sm:$0xff]
    %v4746 = vld [vmem:[%s4742 + $0x18] sm:$0xff]
    %s4747 = scalar_lea.vmem %s14, 1
    %v4748 = vld [vmem:[%s4747] sm:$0x1]
    %v4750 = vlaneseq
    %v4751 = vshrl.u32 %v4750, 7
    %v4752 = vsub.s32 0, %v4751
    %v4753 = vrot.slane %v4748, %v4752
    %v4756 = vsel %vm190, %v4740, 0
    %v4759 = vsel %vm190, %v4741, 0
    %4761 = vmatprep.subr.mxu0 0.0
    %4762 = vmatpush1.msra.mxu0 0.0
    %4763 = vmatprep.subr.mxu0 0.0
    %4764 = vmatpush1.msra.mxu0 0.0
    %4765 = vmatprep.subr.mxu0 0.0
    %4766 = vmatpush1.msra.mxu0 0.0
    %4767 = vmatprep.subr.mxu0 0.0
    %4768 = vmatpush1.msra.mxu0 0.0
    %4769 = vmatprep.subr.mxu0 0.0
    %4770 = vmatpush1.msra.mxu0 0.0
    %4771 = vmatprep.subr.mxu0 0.0
    %4772 = vmatpush1.msra.mxu0 0.0
    %4773 = vmatprep.subr.mxu0 0.0
    %4774 = vmatpush1.msra.mxu0 0.0
    %4775 = vmatprep.subr.mxu0 0.0
    %4776 = vmatpush1.msra.mxu0 0.0
    %4777 = vmatprep.subr.mxu0 0.0
    %4778 = vmatpush1.msra.mxu0 0.0
    %4779 = vmatprep.subr.mxu0 0.0
    %4780 = vmatpush1.msra.mxu0 0.0
    %4781 = vmatprep.subr.mxu0 0.0
    %4782 = vmatpush1.msra.mxu0 0.0
    %4783 = vmatprep.subr.mxu0 0.0
    %4784 = vmatpush1.msra.mxu0 0.0
    %4785 = vmatprep.subr.mxu0 0.0
    %4786 = vmatpush1.msra.mxu0 %v4746
    %4787 = vmatprep.subr.mxu0 0.0
    %4788 = vmatpush1.msra.mxu0 %v4745
    %4789 = vmatprep.subr.mxu0 0.0
    %4790 = vmatpush1.msra.mxu0 %v4744
    %4791 = vmatprep.subr.mxu0 0.0
    %4792 = vmatpush1.msra.mxu0 %v4743
    %4793 = vmatprep.subr.mxu0 0.0
    %4794 = vmatpush2.msra.mxu0 0.0
    %4795 = vmatprep.subr.mxu0 0.0
    %4796 = vmatpush2.msra.mxu0 0.0
    %4797 = vmatprep.subr.mxu0 0.0
    %4798 = vmatpush2.msra.mxu0 0.0
    %4799 = vmatprep.subr.mxu0 0.0
    %4800 = vmatpush2.msra.mxu0 0.0
    %4801 = vmatprep.subr.mxu0 0.0
    %4802 = vmatpush2.msra.mxu0 0.0
    %4803 = vmatprep.subr.mxu0 0.0
    %4804 = vmatpush2.msra.mxu0 0.0
    %4805 = vmatprep.subr.mxu0 0.0
    %4806 = vmatpush2.msra.mxu0 0.0
    %4807 = vmatprep.subr.mxu0 0.0
    %4808 = vmatpush2.msra.mxu0 0.0
    %4809 = vmatprep.subr.mxu0 0.0
    %4810 = vmatpush2.msra.mxu0 0.0
    %4811 = vmatprep.subr.mxu0 0.0
    %4812 = vmatpush2.msra.mxu0 0.0
    %4813 = vmatprep.subr.mxu0 0.0
    %4814 = vmatpush2.msra.mxu0 0.0
    %4815 = vmatprep.subr.mxu0 0.0
    %4816 = vmatpush2.msra.mxu0 0.0
    %4817 = vmatprep.subr.mxu0 0.0
    %4818 = vmatpush2.msra.mxu0 0.0
    %4819 = vmatprep.subr.mxu0 0.0
    %4820 = vmatpush2.msra.mxu0 0.0
    %4821 = vmatprep.subr.mxu0 0.0
    %4822 = vmatpush2.msra.mxu0 0.0
    %4823 = vmatprep.subr.mxu0 0.0
    %4824 = vmatpush2.msra.mxu0 0.0
    %4825 = vmatprep.mubr.f32.mxu0 0.0
    %4826 = vmatmul.mubr.f32.gmra.mxu0 %v4756
    %v4827 = vpop.f32.mrf.mxu0
    %v4828 = vadd.f32 %v4753, %v4827
    %v4829 = vpop.f32.mrf.mxu0
    %4830 = vmatprep.mubr.f32.mxu0 0.0
    %4831 = vmatmul.mubr.f32.gmra.mxu0 %v4759
    %v4832 = vpop.f32.mrf.mxu0
    %v4833 = vadd.f32 %v4753, %v4832
    %v4834 = vpop.f32.mrf.mxu0
    %4835 = vdwg.mxu0
    %v4836 = vmul.f32 %v4828, 1.702
    %v4837 = vmul.f32 %v4833, 1.702
    %v4838 = vxor.u32 %v4836, 2147483648
    %v4839 = vxor.u32 %v4837, 2147483648
    %v4840 = vmul.f32 %v4838, 1.442695
    %v4841 = vpow.pop %v4840
    %v4842 = vmul.f32 %v4839, 1.442695
    %v4843 = vpow.pop %v4842
    %v4844 = vadd.f32 %v4841, 1.0
    %v4845 = vadd.f32 %v4843, 1.0
    %v4846 = vrcp.pop %v4844
    %v4847 = vmul.f32 1.0, %v4846
    %v4848 = vrcp.pop %v4845
    %v4849 = vmul.f32 1.0, %v4848
    %v4850 = vmul.f32 %v4828, %v4847
    %v4851 = vmul.f32 %v4833, %v4849
    %s4852 = scalar_lea.vmem %s15, 128
    %v4853 = vld [vmem:[%s4852] sm:$0xff]
    %v4854 = vld [vmem:[%s4852 + $0x8] sm:$0xff]
    %v4855 = vld [vmem:[%s4852 + $0x10] sm:$0xff]
    %v4856 = vld [vmem:[%s4852 + $0x18] sm:$0xff]
    %v4857 = vld [vmem:[%s4852 + $0x20] sm:$0xff]
    %v4858 = vld [vmem:[%s4852 + $0x28] sm:$0xff]
    %v4859 = vld [vmem:[%s4852 + $0x30] sm:$0xff]
    %v4860 = vld [vmem:[%s4852 + $0x38] sm:$0xff]
    %v4861 = vld [vmem:[%s4852 + $0x40] sm:$0xff]
    %v4862 = vld [vmem:[%s4852 + $0x48] sm:$0xff]
    %v4863 = vld [vmem:[%s4852 + $0x50] sm:$0xff]
    %v4864 = vld [vmem:[%s4852 + $0x58] sm:$0xff]
    %v4865 = vld [vmem:[%s4852 + $0x60] sm:$0xff]
    %v4866 = vld [vmem:[%s4852 + $0x68] sm:$0xff]
    %v4867 = vld [vmem:[%s4852 + $0x70] sm:$0xff]
    %v4868 = vld [vmem:[%s4852 + $0x78] sm:$0xff]
    %4869 = vmatprep.subr.mxu0 0.0
    %4870 = vmatpush1.msra.mxu0 %v4868
    %4871 = vmatprep.subr.mxu0 0.0
    %4872 = vmatpush1.msra.mxu0 %v4867
    %4873 = vmatprep.subr.mxu0 0.0
    %4874 = vmatpush1.msra.mxu0 %v4866
    %4875 = vmatprep.subr.mxu0 0.0
    %4876 = vmatpush1.msra.mxu0 %v4865
    %4877 = vmatprep.subr.mxu0 0.0
    %4878 = vmatpush1.msra.mxu0 %v4864
    %4879 = vmatprep.subr.mxu0 0.0
    %4880 = vmatpush1.msra.mxu0 %v4863
    %4881 = vmatprep.subr.mxu0 0.0
    %4882 = vmatpush1.msra.mxu0 %v4862
    %4883 = vmatprep.subr.mxu0 0.0
    %4884 = vmatpush1.msra.mxu0 %v4861
    %4885 = vmatprep.subr.mxu0 0.0
    %4886 = vmatpush1.msra.mxu0 %v4860
    %4887 = vmatprep.subr.mxu0 0.0
    %4888 = vmatpush1.msra.mxu0 %v4859
    %4889 = vmatprep.subr.mxu0 0.0
    %4890 = vmatpush1.msra.mxu0 %v4858
    %4891 = vmatprep.subr.mxu0 0.0
    %4892 = vmatpush1.msra.mxu0 %v4857
    %4893 = vmatprep.subr.mxu0 0.0
    %4894 = vmatpush1.msra.mxu0 %v4856
    %4895 = vmatprep.subr.mxu0 0.0
    %4896 = vmatpush1.msra.mxu0 %v4855
    %4897 = vmatprep.subr.mxu0 0.0
    %4898 = vmatpush1.msra.mxu0 %v4854
    %4899 = vmatprep.subr.mxu0 0.0
    %4900 = vmatpush1.msra.mxu0 %v4853
    %4901 = vmatprep.subr.mxu0 0.0
    %4902 = vmatpush2.msra.mxu0 0.0
    %4903 = vmatprep.subr.mxu0 0.0
    %4904 = vmatpush2.msra.mxu0 0.0
    %4905 = vmatprep.subr.mxu0 0.0
    %4906 = vmatpush2.msra.mxu0 0.0
    %4907 = vmatprep.subr.mxu0 0.0
    %4908 = vmatpush2.msra.mxu0 0.0
    %4909 = vmatprep.subr.mxu0 0.0
    %4910 = vmatpush2.msra.mxu0 0.0
    %4911 = vmatprep.subr.mxu0 0.0
    %4912 = vmatpush2.msra.mxu0 0.0
    %4913 = vmatprep.subr.mxu0 0.0
    %4914 = vmatpush2.msra.mxu0 0.0
    %4915 = vmatprep.subr.mxu0 0.0
    %4916 = vmatpush2.msra.mxu0 0.0
    %4917 = vmatprep.subr.mxu0 0.0
    %4918 = vmatpush2.msra.mxu0 0.0
    %4919 = vmatprep.subr.mxu0 0.0
    %4920 = vmatpush2.msra.mxu0 0.0
    %4921 = vmatprep.subr.mxu0 0.0
    %4922 = vmatpush2.msra.mxu0 0.0
    %4923 = vmatprep.subr.mxu0 0.0
    %4924 = vmatpush2.msra.mxu0 0.0
    %4925 = vmatprep.subr.mxu0 0.0
    %4926 = vmatpush2.msra.mxu0 0.0
    %4927 = vmatprep.subr.mxu0 0.0
    %4928 = vmatpush2.msra.mxu0 0.0
    %4929 = vmatprep.subr.mxu0 0.0
    %4930 = vmatpush2.msra.mxu0 0.0
    %4931 = vmatprep.subr.mxu0 0.0
    %4932 = vmatpush2.msra.mxu0 0.0
    %4933 = vmatprep.mubr.f32.mxu0 0.0
    %4934 = vmatmul.mubr.f32.gmra.mxu0 %v4850
    %v4935 = vpop.f32.mrf.mxu0
    %v4936 = vadd.f32 0.0, %v4935
    %v4937 = vpop.f32.mrf.mxu0
    %4938 = vmatprep.mubr.f32.mxu0 0.0
    %4939 = vmatmul.mubr.f32.gmra.mxu0 %v4851
    %v4940 = vpop.f32.mrf.mxu0
    %v4941 = vadd.f32 0.0, %v4940
    %v4942 = vpop.f32.mrf.mxu0
    %4943 = vdwg.mxu0
    %v4944 = vadd.f32 %v4694, %v4936
    %v4945 = vadd.f32 %v4695, %v4941
    %s4946 = scalar_lea.vmem %s16, 1
    %v4947 = vld [vmem:[%s4946] sm:$0x1]
    %v4949 = vlaneseq
    %v4950 = vshrl.u32 %v4949, 7
    %v4951 = vsub.s32 0, %v4950
    %v4952 = vrot.slane %v4947, %v4951
    %v4954 = vadd.f32 %v4944, %v4952
    %v4955 = vadd.f32 %v4945, %v4952
    %4956 = vst.msk [vmem:[#allocation2] sm:$0xff] %vm190, %v4954
    %4957 = vst.msk [vmem:[#allocation2 + $0x8] sm:$0xff] %vm190, %v4955
    %s4958 = sld [smem:[#allocation4]]
    %v4959 = vstv %s4958
    %v4960 = vmul.f32 %v4959, 1.442695
    %v4961 = vpow.pop %v4960
    %s4962 = vtos %v4961
    %v4963 = vld [vmem:[#allocation2] sm:$0x1]
    %v4964 = vld [vmem:[%s17] sm:$0x1]
    %v4965 = vld [vmem:[%s18] sm:$0x1]
    %vm4966 = vcmask 253952
    %v4967 = vsel %vm4966, %v4963, 0.0
    %4968 = vadd.xlane.f32.xlu0 %v4967
    %v4969 = vpop.xlane.xlu0 %4968
    %v4970 = vmul.f32 %v4969, %v205
    %v4971 = vsub.f32 %v4963, %v4970
    %v4972 = vmul.f32 %v4971, %v4971
    %v4973 = vsel %vm4966, %v4972, 0.0
    %4974 = vadd.xlane.f32.xlu0 %v4973
    %v4975 = vpop.xlane.xlu0 %4974
    %v4976 = vmul.f32 %v4975, %v205
    %v4977 = vadd.f32 %v4976, 1e-05
    %v4978 = vrsqrt.pop %v4977
    %v4979 = vmul.f32 %v4971, %v4978
    %v4980 = vmul.f32 %v4979, %v4964
    %v4981 = vadd.f32 %v4980, %v4965
    %v4982 = vld [vmem:[%s19] sm:$0xff]
    %v4983 = vld [vmem:[%s19 + $0x8] sm:$0xff]
    %v4984 = vld [vmem:[%s19 + $0x10] sm:$0xff]
    %v4985 = vld [vmem:[%s19 + $0x18] sm:$0xff]
    %v4987 = vsel %vm190, %v4981, 0
    %4989 = vmatprep.subr.mxu0 0.0
    %4990 = vmatpush1.msra.mxu0 0.0
    %4991 = vmatprep.subr.mxu0 0.0
    %4992 = vmatpush1.msra.mxu0 0.0
    %4993 = vmatprep.subr.mxu0 0.0
    %4994 = vmatpush1.msra.mxu0 0.0
    %4995 = vmatprep.subr.mxu0 0.0
    %4996 = vmatpush1.msra.mxu0 0.0
    %4997 = vmatprep.subr.mxu0 0.0
    %4998 = vmatpush1.msra.mxu0 0.0
    %4999 = vmatprep.subr.mxu0 0.0
    %5000 = vmatpush1.msra.mxu0 0.0
    %5001 = vmatprep.subr.mxu0 0.0
    %5002 = vmatpush1.msra.mxu0 0.0
    %5003 = vmatprep.subr.mxu0 0.0
    %5004 = vmatpush1.msra.mxu0 0.0
    %5005 = vmatprep.subr.mxu0 0.0
    %5006 = vmatpush1.msra.mxu0 0.0
    %5007 = vmatprep.subr.mxu0 0.0
    %5008 = vmatpush1.msra.mxu0 0.0
    %5009 = vmatprep.subr.mxu0 0.0
    %5010 = vmatpush1.msra.mxu0 0.0
    %5011 = vmatprep.subr.mxu0 0.0
    %5012 = vmatpush1.msra.mxu0 0.0
    %5013 = vmatprep.subr.mxu0 0.0
    %5014 = vmatpush1.msra.mxu0 %v4985
    %5015 = vmatprep.subr.mxu0 0.0
    %5016 = vmatpush1.msra.mxu0 %v4984
    %5017 = vmatprep.subr.mxu0 0.0
    %5018 = vmatpush1.msra.mxu0 %v4983
    %5019 = vmatprep.subr.mxu0 0.0
    %5020 = vmatpush1.msra.mxu0 %v4982
    %5021 = vmatprep.subr.mxu0 0.0
    %5022 = vmatpush2.msra.mxu0 0.0
    %5023 = vmatprep.subr.mxu0 0.0
    %5024 = vmatpush2.msra.mxu0 0.0
    %5025 = vmatprep.subr.mxu0 0.0
    %5026 = vmatpush2.msra.mxu0 0.0
    %5027 = vmatprep.subr.mxu0 0.0
    %5028 = vmatpush2.msra.mxu0 0.0
    %5029 = vmatprep.subr.mxu0 0.0
    %5030 = vmatpush2.msra.mxu0 0.0
    %5031 = vmatprep.subr.mxu0 0.0
    %5032 = vmatpush2.msra.mxu0 0.0
    %5033 = vmatprep.subr.mxu0 0.0
    %5034 = vmatpush2.msra.mxu0 0.0
    %5035 = vmatprep.subr.mxu0 0.0
    %5036 = vmatpush2.msra.mxu0 0.0
    %5037 = vmatprep.subr.mxu0 0.0
    %5038 = vmatpush2.msra.mxu0 0.0
    %5039 = vmatprep.subr.mxu0 0.0
    %5040 = vmatpush2.msra.mxu0 0.0
    %5041 = vmatprep.subr.mxu0 0.0
    %5042 = vmatpush2.msra.mxu0 0.0
    %5043 = vmatprep.subr.mxu0 0.0
    %5044 = vmatpush2.msra.mxu0 0.0
    %5045 = vmatprep.subr.mxu0 0.0
    %5046 = vmatpush2.msra.mxu0 0.0
    %5047 = vmatprep.subr.mxu0 0.0
    %5048 = vmatpush2.msra.mxu0 0.0
    %5049 = vmatprep.subr.mxu0 0.0
    %5050 = vmatpush2.msra.mxu0 0.0
    %5051 = vmatprep.subr.mxu0 0.0
    %5052 = vmatpush2.msra.mxu0 0.0
    %5053 = vmatprep.mubr.f32.mxu0 0.0
    %5054 = vmatmul.mubr.f32.gmra.mxu0 %v4987
    %v5055 = vpop.f32.mrf.mxu0
    %v5056 = vadd.f32 0.0, %v5055
    %v5057 = vpop.f32.mrf.mxu0
    %5058 = vdwg.mxu0
    %v5059 = vmul.f32 %v5056, %v5056
    %vm5060 = vcmask 122880
    %v5061 = vsel %vm5060, %v5059, 0.0
    %5062 = vadd.xlane.f32.xlu0 %v5061
    %v5063 = vpop.xlane.xlu0 %5062
    %v5064 = vrsqrt.pop %v5063
    %v5065 = vmul.f32 %v5056, %v5064
    %v5066 = vld [vmem:[%s20] sm:$0xff]
    %v5067 = vld [vmem:[%s20 + $0x8] sm:$0xf]
    %vm5068 = vcmask 130048
    %v5070 = vsel %vm5068, %v5065, 0
    %v5073 = vsel %vm5068, %v5066, 0
    %v5076 = vsel %vm5068, %v5067, 0
    %5078 = vmatprep.subr.mxu0 0.0
    %5079 = vmatpush1.xpose.msra.mxu0 0.0
    %5080 = vmatprep.subr.mxu0 0.0
    %5081 = vmatpush1.xpose.msra.mxu0 0.0
    %5082 = vmatprep.subr.mxu0 0.0
    %5083 = vmatpush1.xpose.msra.mxu0 0.0
    %5084 = vmatprep.subr.mxu0 0.0
    %5085 = vmatpush1.xpose.msra.mxu0 0.0
    %5086 = vmatprep.subr.mxu0 0.0
    %5087 = vmatpush1.xpose.msra.mxu0 0.0
    %5088 = vmatprep.subr.mxu0 0.0
    %5089 = vmatpush1.xpose.msra.mxu0 0.0
    %5090 = vmatprep.subr.mxu0 0.0
    %5091 = vmatpush1.xpose.msra.mxu0 0.0
    %5092 = vmatprep.subr.mxu0 0.0
    %5093 = vmatpush1.xpose.msra.mxu0 0.0
    %5094 = vmatprep.subr.mxu0 0.0
    %5095 = vmatpush1.xpose.msra.mxu0 0.0
    %5096 = vmatprep.subr.mxu0 0.0
    %5097 = vmatpush1.xpose.msra.mxu0 0.0
    %5098 = vmatprep.subr.mxu0 0.0
    %5099 = vmatpush1.xpose.msra.mxu0 0.0
    %5100 = vmatprep.subr.mxu0 0.0
    %5101 = vmatpush1.xpose.msra.mxu0 0.0
    %5102 = vmatprep.subr.mxu0 0.0
    %5103 = vmatpush1.xpose.msra.mxu0 0.0
    %5104 = vmatprep.subr.mxu0 0.0
    %5105 = vmatpush1.xpose.msra.mxu0 0.0
    %5106 = vmatprep.subr.mxu0 0.0
    %5107 = vmatpush1.xpose.msra.mxu0 %v5076
    %5108 = vmatprep.subr.mxu0 0.0
    %5109 = vmatpush1.xpose.msra.mxu0 %v5073
    %5110 = vmatprep.subr.mxu0 0.0
    %5111 = vmatpush2.xpose.msra.mxu0 0.0
    %5112 = vmatprep.subr.mxu0 0.0
    %5113 = vmatpush2.xpose.msra.mxu0 0.0
    %5114 = vmatprep.subr.mxu0 0.0
    %5115 = vmatpush2.xpose.msra.mxu0 0.0
    %5116 = vmatprep.subr.mxu0 0.0
    %5117 = vmatpush2.xpose.msra.mxu0 0.0
    %5118 = vmatprep.subr.mxu0 0.0
    %5119 = vmatpush2.xpose.msra.mxu0 0.0
    %5120 = vmatprep.subr.mxu0 0.0
    %5121 = vmatpush2.xpose.msra.mxu0 0.0
    %5122 = vmatprep.subr.mxu0 0.0
    %5123 = vmatpush2.xpose.msra.mxu0 0.0
    %5124 = vmatprep.subr.mxu0 0.0
    %5125 = vmatpush2.xpose.msra.mxu0 0.0
    %5126 = vmatprep.subr.mxu0 0.0
    %5127 = vmatpush2.xpose.msra.mxu0 0.0
    %5128 = vmatprep.subr.mxu0 0.0
    %5129 = vmatpush2.xpose.msra.mxu0 0.0
    %5130 = vmatprep.subr.mxu0 0.0
    %5131 = vmatpush2.xpose.msra.mxu0 0.0
    %5132 = vmatprep.subr.mxu0 0.0
    %5133 = vmatpush2.xpose.msra.mxu0 0.0
    %5134 = vmatprep.subr.mxu0 0.0
    %5135 = vmatpush2.xpose.msra.mxu0 0.0
    %5136 = vmatprep.subr.mxu0 0.0
    %5137 = vmatpush2.xpose.msra.mxu0 0.0
    %5138 = vmatprep.subr.mxu0 0.0
    %5139 = vmatpush2.xpose.msra.mxu0 0.0
    %5140 = vmatprep.subr.mxu0 0.0
    %5141 = vmatpush2.xpose.msra.mxu0 0.0
    %5142 = vmatprep.mubr.f32.mxu0 0.0
    %5143 = vmatmul.mubr.f32.gmra.mxu0 %v5070
    %v5144 = vpop.f32.mrf.mxu0
    %v5145 = vadd.f32 0.0, %v5144
    %v5146 = vpop.f32.mrf.mxu0
    %5147 = vdwg.mxu0
    %v5148 = vstv %s4962
    %v5149 = vmul.f32 %v5148, %v5145
    %vm5150 = vcmask 90112
    %5151 = vst.msk [vmem:[#allocation5] sm:$0x1] %vm5150, %v5149
    %v5152 = vld [vmem:[#allocation2 + $0x8] sm:$0x1]
    %v5153 = vld [vmem:[%s17] sm:$0x1]
    %v5154 = vld [vmem:[%s18] sm:$0x1]
    %v5155 = vsel %vm4966, %v5152, 0.0
    %5156 = vadd.xlane.f32.xlu0 %v5155
    %v5157 = vpop.xlane.xlu0 %5156
    %v5158 = vmul.f32 %v5157, %v205
    %v5159 = vsub.f32 %v5152, %v5158
    %v5160 = vmul.f32 %v5159, %v5159
    %v5161 = vsel %vm4966, %v5160, 0.0
    %5162 = vadd.xlane.f32.xlu0 %v5161
    %v5163 = vpop.xlane.xlu0 %5162
    %v5164 = vmul.f32 %v5163, %v205
    %v5165 = vadd.f32 %v5164, 1e-05
    %v5166 = vrsqrt.pop %v5165
    %v5167 = vmul.f32 %v5159, %v5166
    %v5168 = vmul.f32 %v5167, %v5153
    %v5169 = vadd.f32 %v5168, %v5154
    %v5170 = vld [vmem:[%s19] sm:$0xff]
    %v5171 = vld [vmem:[%s19 + $0x8] sm:$0xff]
    %v5172 = vld [vmem:[%s19 + $0x10] sm:$0xff]
    %v5173 = vld [vmem:[%s19 + $0x18] sm:$0xff]
    %v5175 = vsel %vm190, %v5169, 0
    %5177 = vmatprep.subr.mxu0 0.0
    %5178 = vmatpush1.msra.mxu0 0.0
    %5179 = vmatprep.subr.mxu0 0.0
    %5180 = vmatpush1.msra.mxu0 0.0
    %5181 = vmatprep.subr.mxu0 0.0
    %5182 = vmatpush1.msra.mxu0 0.0
    %5183 = vmatprep.subr.mxu0 0.0
    %5184 = vmatpush1.msra.mxu0 0.0
    %5185 = vmatprep.subr.mxu0 0.0
    %5186 = vmatpush1.msra.mxu0 0.0
    %5187 = vmatprep.subr.mxu0 0.0
    %5188 = vmatpush1.msra.mxu0 0.0
    %5189 = vmatprep.subr.mxu0 0.0
    %5190 = vmatpush1.msra.mxu0 0.0
    %5191 = vmatprep.subr.mxu0 0.0
    %5192 = vmatpush1.msra.mxu0 0.0
    %5193 = vmatprep.subr.mxu0 0.0
    %5194 = vmatpush1.msra.mxu0 0.0
    %5195 = vmatprep.subr.mxu0 0.0
    %5196 = vmatpush1.msra.mxu0 0.0
    %5197 = vmatprep.subr.mxu0 0.0
    %5198 = vmatpush1.msra.mxu0 0.0
    %5199 = vmatprep.subr.mxu0 0.0
    %5200 = vmatpush1.msra.mxu0 0.0
    %5201 = vmatprep.subr.mxu0 0.0
    %5202 = vmatpush1.msra.mxu0 %v5173
    %5203 = vmatprep.subr.mxu0 0.0
    %5204 = vmatpush1.msra.mxu0 %v5172
    %5205 = vmatprep.subr.mxu0 0.0
    %5206 = vmatpush1.msra.mxu0 %v5171
    %5207 = vmatprep.subr.mxu0 0.0
    %5208 = vmatpush1.msra.mxu0 %v5170
    %5209 = vmatprep.subr.mxu0 0.0
    %5210 = vmatpush2.msra.mxu0 0.0
    %5211 = vmatprep.subr.mxu0 0.0
    %5212 = vmatpush2.msra.mxu0 0.0
    %5213 = vmatprep.subr.mxu0 0.0
    %5214 = vmatpush2.msra.mxu0 0.0
    %5215 = vmatprep.subr.mxu0 0.0
    %5216 = vmatpush2.msra.mxu0 0.0
    %5217 = vmatprep.subr.mxu0 0.0
    %5218 = vmatpush2.msra.mxu0 0.0
    %5219 = vmatprep.subr.mxu0 0.0
    %5220 = vmatpush2.msra.mxu0 0.0
    %5221 = vmatprep.subr.mxu0 0.0
    %5222 = vmatpush2.msra.mxu0 0.0
    %5223 = vmatprep.subr.mxu0 0.0
    %5224 = vmatpush2.msra.mxu0 0.0
    %5225 = vmatprep.subr.mxu0 0.0
    %5226 = vmatpush2.msra.mxu0 0.0
    %5227 = vmatprep.subr.mxu0 0.0
    %5228 = vmatpush2.msra.mxu0 0.0
    %5229 = vmatprep.subr.mxu0 0.0
    %5230 = vmatpush2.msra.mxu0 0.0
    %5231 = vmatprep.subr.mxu0 0.0
    %5232 = vmatpush2.msra.mxu0 0.0
    %5233 = vmatprep.subr.mxu0 0.0
    %5234 = vmatpush2.msra.mxu0 0.0
    %5235 = vmatprep.subr.mxu0 0.0
    %5236 = vmatpush2.msra.mxu0 0.0
    %5237 = vmatprep.subr.mxu0 0.0
    %5238 = vmatpush2.msra.mxu0 0.0
    %5239 = vmatprep.subr.mxu0 0.0
    %5240 = vmatpush2.msra.mxu0 0.0
    %5241 = vmatprep.mubr.f32.mxu0 0.0
    %5242 = vmatmul.mubr.f32.gmra.mxu0 %v5175
    %v5243 = vpop.f32.mrf.mxu0
    %v5244 = vadd.f32 0.0, %v5243
    %v5245 = vpop.f32.mrf.mxu0
    %5246 = vdwg.mxu0
    %v5247 = vmul.f32 %v5244, %v5244
    %v5248 = vsel %vm5060, %v5247, 0.0
    %5249 = vadd.xlane.f32.xlu0 %v5248
    %v5250 = vpop.xlane.xlu0 %5249
    %v5251 = vrsqrt.pop %v5250
    %v5252 = vmul.f32 %v5244, %v5251
    %v5253 = vld [vmem:[%s20] sm:$0xff]
    %v5254 = vld [vmem:[%s20 + $0x8] sm:$0xf]
    %v5256 = vsel %vm5068, %v5252, 0
    %v5259 = vsel %vm5068, %v5253, 0
    %v5262 = vsel %vm5068, %v5254, 0
    %5264 = vmatprep.subr.mxu0 0.0
    %5265 = vmatpush1.xpose.msra.mxu0 0.0
    %5266 = vmatprep.subr.mxu0 0.0
    %5267 = vmatpush1.xpose.msra.mxu0 0.0
    %5268 = vmatprep.subr.mxu0 0.0
    %5269 = vmatpush1.xpose.msra.mxu0 0.0
    %5270 = vmatprep.subr.mxu0 0.0
    %5271 = vmatpush1.xpose.msra.mxu0 0.0
    %5272 = vmatprep.subr.mxu0 0.0
    %5273 = vmatpush1.xpose.msra.mxu0 0.0
    %5274 = vmatprep.subr.mxu0 0.0
    %5275 = vmatpush1.xpose.msra.mxu0 0.0
    %5276 = vmatprep.subr.mxu0 0.0
    %5277 = vmatpush1.xpose.msra.mxu0 0.0
    %5278 = vmatprep.subr.mxu0 0.0
    %5279 = vmatpush1.xpose.msra.mxu0 0.0
    %5280 = vmatprep.subr.mxu0 0.0
    %5281 = vmatpush1.xpose.msra.mxu0 0.0
    %5282 = vmatprep.subr.mxu0 0.0
    %5283 = vmatpush1.xpose.msra.mxu0 0.0
    %5284 = vmatprep.subr.mxu0 0.0
    %5285 = vmatpush1.xpose.msra.mxu0 0.0
    %5286 = vmatprep.subr.mxu0 0.0
    %5287 = vmatpush1.xpose.msra.mxu0 0.0
    %5288 = vmatprep.subr.mxu0 0.0
    %5289 = vmatpush1.xpose.msra.mxu0 0.0
    %5290 = vmatprep.subr.mxu0 0.0
    %5291 = vmatpush1.xpose.msra.mxu0 0.0
    %5292 = vmatprep.subr.mxu0 0.0
    %5293 = vmatpush1.xpose.msra.mxu0 %v5262
    %5294 = vmatprep.subr.mxu0 0.0
    %5295 = vmatpush1.xpose.msra.mxu0 %v5259
    %5296 = vmatprep.subr.mxu0 0.0
    %5297 = vmatpush2.xpose.msra.mxu0 0.0
    %5298 = vmatprep.subr.mxu0 0.0
    %5299 = vmatpush2.xpose.msra.mxu0 0.0
    %5300 = vmatprep.subr.mxu0 0.0
    %5301 = vmatpush2.xpose.msra.mxu0 0.0
    %5302 = vmatprep.subr.mxu0 0.0
    %5303 = vmatpush2.xpose.msra.mxu0 0.0
    %5304 = vmatprep.subr.mxu0 0.0
    %5305 = vmatpush2.xpose.msra.mxu0 0.0
    %5306 = vmatprep.subr.mxu0 0.0
    %5307 = vmatpush2.xpose.msra.mxu0 0.0
    %5308 = vmatprep.subr.mxu0 0.0
    %5309 = vmatpush2.xpose.msra.mxu0 0.0
    %5310 = vmatprep.subr.mxu0 0.0
    %5311 = vmatpush2.xpose.msra.mxu0 0.0
    %5312 = vmatprep.subr.mxu0 0.0
    %5313 = vmatpush2.xpose.msra.mxu0 0.0
    %5314 = vmatprep.subr.mxu0 0.0
    %5315 = vmatpush2.xpose.msra.mxu0 0.0
    %5316 = vmatprep.subr.mxu0 0.0
    %5317 = vmatpush2.xpose.msra.mxu0 0.0
    %5318 = vmatprep.subr.mxu0 0.0
    %5319 = vmatpush2.xpose.msra.mxu0 0.0
    %5320 = vmatprep.subr.mxu0 0.0
    %5321 = vmatpush2.xpose.msra.mxu0 0.0
    %5322 = vmatprep.subr.mxu0 0.0
    %5323 = vmatpush2.xpose.msra.mxu0 0.0
    %5324 = vmatprep.subr.mxu0 0.0
    %5325 = vmatpush2.xpose.msra.mxu0 0.0
    %5326 = vmatprep.subr.mxu0 0.0
    %5327 = vmatpush2.xpose.msra.mxu0 0.0
    %5328 = vmatprep.mubr.f32.mxu0 0.0
    %5329 = vmatmul.mubr.f32.gmra.mxu0 %v5256
    %v5330 = vpop.f32.mrf.mxu0
    %v5331 = vadd.f32 0.0, %v5330
    %v5332 = vpop.f32.mrf.mxu0
    %5333 = vdwg.mxu0
    %v5334 = vmul.f32 %v5148, %v5331
    %5335 = vst.msk [vmem:[#allocation5 + $0x1] sm:$0x1] %vm5150, %v5334
    // Predicated region
    $region90: #{clip_forward.1} parent=1 // pred_check
      _
    $region91: #{clip_forward.1} parent=1 // pred_check_branch
      %5337 = sbr.rel (0) target = $region93
    $region92: #{clip_forward.1} parent=1 // pred_region
      %s5339 = ssub.s32 32, 32
      %5340 = vsyncadd [#allocation6], %s5339
      %s5342 = sshll.u32 [#allocation5], 4
      %s5343 = int_to_ptr.vmem [resolvable:$true] %s5342
      %5345 = dma.vmem_to_hbm [thread:$0]  %s5343, 32, %s22, [#allocation6]
    $region93: #{clip_forward.1} parent=1 // pred_fallthru
      _
    // Predicated region
    $region94: #{clip_forward.1} parent=1 // pred_check
      _
    $region95: #{clip_forward.1} parent=1 // pred_check_branch
      %5347 = sbr.rel (0) target = $region97
    $region96: #{clip_forward.1} parent=1 // pred_region
      %5348 = dma.done [#allocation6], 32
    $region97: #{clip_forward.1} parent=1 // pred_fallthru
      _
    %5349 = vsyncpa [#allocation6], 1

</llo_original>
